<compile_context>
chip_gen: v5e
topology: v5e:2x2
jax: 0.10.0
libtpu: 0.0.40
codegen_flags: <defaults>
</compile_context>

<pallas_src>
import jax
import jax.numpy as jnp
import numpy as np
from jax import lax
from jax.experimental import pallas as pl
from jax.experimental.pallas import tpu as pltpu


def _brnn_kernel(
    x2d_ref,                       # (T*Bp, D)   bf16, time-major rows: row = t*Bp + b
    wih0f_ref, wih0b_ref,          # (D, 4H)     bf16  layer-0 input weights (fwd / bwd)
    b0f_ref, b0b_ref,              # (1, 4H)     f32   combined biases (b_ih + b_hh)
    whh0f_ref, whh0b_ref,          # (H, 4H)     bf16  layer-0 recurrent weights
    wih1f_ref,                     # (2H, 4H)    bf16  layer-1 fwd input weight ([h_f|h_b] -> gates)
    whh1f_ref,                     # (H, 4H)     bf16  layer-1 fwd recurrent weight
    b1f_ref,                       # (1, 4H)     f32
    wih1b_ref,                     # (2H, 4H)    bf16  layer-1 bwd input weight
    b1b_ref,                       # (1, 4H)     f32
    wfc_ref,                       # (2H, C)     bf16  fc weight on [h2_fwd | h2_bwd]
    bfc_ref,                       # (1, C)      f32
    out_ref,                       # (Bp, C)     f32
    g0f_ref, g0b_ref,              # (T*Bp, 4H)  f32 scratch (g0f reused for layer-1 fwd gates)
    h01_ref,                       # (T*Bp, 2H)  bf16 scratch: layer-0 outputs [fwd | bwd]
):
    Bp, _ = out_ref.shape
    H = whh0f_ref.shape[0]
    T = x2d_ref.shape[0] // Bp
    f32 = jnp.float32
    bf16 = jnp.bfloat16
    unroll = True if T <= 16 else 8

    def cell(gates, c):
        # PyTorch LSTM gate order: i, f, g, o.  One wide sigmoid over (Bp, 4H), one tanh on g.
        sg = jax.nn.sigmoid(gates)
        i = sg[:, 0 * H:1 * H]
        f = sg[:, 1 * H:2 * H]
        o = sg[:, 3 * H:4 * H]
        g = jnp.tanh(gates[:, 2 * H:3 * H])
        c_new = f * c + i * g
        h_new = o * jnp.tanh(c_new)
        return h_new, c_new

    zeros = jnp.zeros((Bp, H), f32)

    # ---- Layer 0: batched input projections, written directly into the gate scratches ----
    x2d = x2d_ref[...]
    g0f_ref[...] = (jnp.dot(x2d, wih0f_ref[...], preferred_element_type=f32) + b0f_ref[...])
    g0b_ref[...] = (jnp.dot(x2d, wih0b_ref[...], preferred_element_type=f32) + b0b_ref[...])

    # ---- Layer 0: forward and backward recurrences interleaved in one serial pass ----
    # Recurrent weights are read from VMEM inside the body (short live ranges, no spills).
    def l0_body(s, carry):
        hf, cf, hb, cb = carry
        rf = pl.multiple_of(s * Bp, 16)               # forward processes t = s
        rb = pl.multiple_of((T - 1 - s) * Bp, 16)     # backward processes t = T-1-s
        gf = g0f_ref[pl.ds(rf, Bp), :] + jnp.dot(hf.astype(bf16), whh0f_ref[...],
                                                 preferred_element_type=f32)
        gb = g0b_ref[pl.ds(rb, Bp), :] + jnp.dot(hb.astype(bf16), whh0b_ref[...],
                                                 preferred_element_type=f32)
        hf, cf = cell(gf, cf)
        hb, cb = cell(gb, cb)
        h01_ref[pl.ds(rf, Bp), 0:H] = hf.astype(bf16)
        h01_ref[pl.ds(rb, Bp), H:2 * H] = hb.astype(bf16)
        return hf, cf, hb, cb

    lax.fori_loop(0, T, l0_body, (zeros, zeros, zeros, zeros), unroll=unroll)

    # ---- Layer 1 forward: batched input projection over ALL timesteps (one K=2H matmul,
    #      reuse g0f scratch) ----
    g0f_ref[...] = (jnp.dot(h01_ref[...], wih1f_ref[...], preferred_element_type=f32)
                    + b1f_ref[...])

    # ---- Layer 1 forward recurrence (only the final hidden state is needed) ----
    def l1_body(t, carry):
        h, c = carry
        r = pl.multiple_of(t * Bp, 16)
        g = g0f_ref[pl.ds(r, Bp), :] + jnp.dot(h.astype(bf16), whh1f_ref[...],
                                               preferred_element_type=f32)
        return cell(g, c)

    h2f_last, _ = lax.fori_loop(0, T, l1_body, (zeros, zeros), unroll=unroll)

    # ---- Layer 1 backward: out[:, -1] only needs its FIRST step (t = T-1, zero initial state,
    #      so the h @ Whh term vanishes).  NOTE: valid ONLY because the module consumes out[:, -1]. ----
    rT = pl.multiple_of((T - 1) * Bp, 16)
    h1_last = h01_ref[pl.ds(rT, Bp), :]                       # (Bp, 2H) bf16 = [h1f[T-1] | h1b[T-1]]
    g1b = jnp.dot(h1_last, wih1b_ref[...], preferred_element_type=f32) + b1b_ref[...]
    h2b_last, _ = cell(g1b, zeros)

    # ---- FC on concat([h2f_last, h2b_last]) as ONE K=2H matmul ----
    h2 = jnp.concatenate([h2f_last.astype(bf16), h2b_last.astype(bf16)], axis=-1)
    out_ref[...] = jnp.dot(h2, wfc_ref[...], preferred_element_type=f32) + bfc_ref[...]


def brnn_forward(x, kparams):
    """x: (B, T, D) float32, batch_first like the PyTorch module.  Returns (B, num_classes) f32."""
    B, T, D = x.shape
    H = kparams["whh0f"].shape[0]
    C = kparams["wfc"].shape[1]
    Bp = ((B + 15) // 16) * 16                        # bf16 operands: pad batch to full packed tile

    xp = x if Bp == B else jnp.concatenate(
        [x, jnp.zeros((Bp - B, T, D), x.dtype)], axis=0)
    # Time-major, flattened (t, b) rows, bf16 operand for the MXU (layout plumbing only).
    x2d = jnp.transpose(xp, (1, 0, 2)).reshape(T * Bp, D).astype(jnp.bfloat16)

    args = (x2d,
            kparams["wih0f"], kparams["wih0b"], kparams["b0f"], kparams["b0b"],
            kparams["whh0f"], kparams["whh0b"],
            kparams["wih1f"], kparams["whh1f"], kparams["b1f"],
            kparams["wih1b"], kparams["b1b"],
            kparams["wfc"], kparams["bfc"])

    scratch_shapes = [
        pltpu.VMEM((T * Bp, 4 * H), jnp.float32),     # layer-0 fwd gates, reused for layer-1 fwd
        pltpu.VMEM((T * Bp, 4 * H), jnp.float32),     # layer-0 bwd gates
        pltpu.VMEM((T * Bp, 2 * H), jnp.bfloat16),    # layer-0 output sequence [fwd | bwd]
    ]

    # Generation/shape-aware VMEM budget: required bytes + headroom, capped below physical VMEM
    # (64 MiB on v7x, 128 MiB on v5e/v6e).
    scratch_bytes = 2 * (T * Bp * 4 * H * 4) + (T * Bp * 2 * H * 2)
    arg_bytes = sum(int(a.size) * a.dtype.itemsize for a in args) + Bp * C * 4
    need = scratch_bytes + arg_bytes + (8 << 20)
    try:
        phys = int(getattr(pltpu.get_tpu_info(), "vmem_capacity_bytes", 64 << 20))
    except Exception:
        phys = 64 << 20
    vmem_limit = int(min(max(need, 32 << 20), phys - (8 << 20)))

    out = pl.pallas_call(
        _brnn_kernel,
        out_shape=jax.ShapeDtypeStruct((Bp, C), jnp.float32),
        in_specs=[pl.BlockSpec(memory_space=pltpu.MemorySpace.VMEM)] * len(args),
        out_specs=pl.BlockSpec(memory_space=pltpu.MemorySpace.VMEM),
        scratch_shapes=scratch_shapes,
        compiler_params=pltpu.CompilerParams(vmem_limit_bytes=vmem_limit),
    )(*args)
    return out[:B]


# -------------------- parameter construction (PyTorch-style shapes) --------------------

def init_params(key, input_size, hidden_size, num_classes):
    H = hidden_size
    k = 1.0 / np.sqrt(H)
    names_shapes = {
        # layer 0
        "weight_ih_l0": (4 * H, input_size), "weight_hh_l0": (4 * H, H),
        "bias_ih_l0": (4 * H,), "bias_hh_l0": (4 * H,),
        "weight_ih_l0_reverse": (4 * H, input_size), "weight_hh_l0_reverse": (4 * H, H),
        "bias_ih_l0_reverse": (4 * H,), "bias_hh_l0_reverse": (4 * H,),
        # layer 1 (input is 2H)
        "weight_ih_l1": (4 * H, 2 * H), "weight_hh_l1": (4 * H, H),
        "bias_ih_l1": (4 * H,), "bias_hh_l1": (4 * H,),
        "weight_ih_l1_reverse": (4 * H, 2 * H), "weight_hh_l1_reverse": (4 * H, H),
        "bias_ih_l1_reverse": (4 * H,), "bias_hh_l1_reverse": (4 * H,),
        # fc
        "fc_weight": (num_classes, 2 * H), "fc_bias": (num_classes,),
    }
    params = {}
    for name, shape in names_shapes.items():
        key, sub = jax.random.split(key)
        params[name] = jax.random.uniform(sub, shape, jnp.float32, -k, k)
    return params


def to_kernel_params(p, hidden_size):
    del hidden_size
    bf16 = jnp.bfloat16
    f32 = jnp.float32

    def bias2d(bi, bh):
        return (bi + bh)[None, :].astype(f32)

    return {
        # layer 0 (per-direction halves so the kernel can write gates directly)
        "wih0f": p["weight_ih_l0"].T.astype(bf16),                    # (D, 4H)
        "wih0b": p["weight_ih_l0_reverse"].T.astype(bf16),            # (D, 4H)
        "b0f": bias2d(p["bias_ih_l0"], p["bias_hh_l0"]),
        "b0b": bias2d(p["bias_ih_l0_reverse"], p["bias_hh_l0_reverse"]),
        "whh0f": p["weight_hh_l0"].T.astype(bf16),                    # (H, 4H)
        "whh0b": p["weight_hh_l0_reverse"].T.astype(bf16),            # (H, 4H)
        # layer 1 forward: input is [h_fwd | h_bwd] (PyTorch bidirectional concat order)
        "wih1f": p["weight_ih_l1"].T.astype(bf16),                    # (2H, 4H)
        "whh1f": p["weight_hh_l1"].T.astype(bf16),                    # (H, 4H)
        "b1f": bias2d(p["bias_ih_l1"], p["bias_hh_l1"]),
        # layer 1 backward (single step at t = T-1; Whh not needed because h0 = 0)
        "wih1b": p["weight_ih_l1_reverse"].T.astype(bf16),            # (2H, 4H)
        "b1b": bias2d(p["bias_ih_l1_reverse"], p["bias_hh_l1_reverse"]),
        # fc on [h2_fwd | h2_bwd]
        "wfc": p["fc_weight"].T.astype(bf16),                         # (2H, C)
        "bfc": p["fc_bias"][None, :].astype(f32),
    }


# -------------------- pure-JAX f32 reference (mirrors torch.nn.LSTM semantics) --------------------

def _lstm_dir_ref(x_seq, w_ih, w_hh, b_ih, b_hh, reverse):
    B, T, _ = x_seq.shape
    H = w_hh.shape[1]
    h = jnp.zeros((B, H), jnp.float32)
    c = jnp.zeros((B, H), jnp.float32)
    outs = [None] * T
    order = range(T - 1, -1, -1) if reverse else range(T)
    for t in order:
        g = x_seq[:, t] @ w_ih.T + h @ w_hh.T + b_ih + b_hh
        i = jax.nn.sigmoid(g[:, :H])
        f = jax.nn.sigmoid(g[:, H:2 * H])
        gg = jnp.tanh(g[:, 2 * H:3 * H])
        o = jax.nn.sigmoid(g[:, 3 * H:])
        c = f * c + i * gg
        h = o * jnp.tanh(c)
        outs[t] = h
    return jnp.stack(outs, axis=1)  # (B, T, H)


def brnn_reference(x, p):
    l0 = jnp.concatenate([
        _lstm_dir_ref(x, p["weight_ih_l0"], p["weight_hh_l0"],
                      p["bias_ih_l0"], p["bias_hh_l0"], reverse=False),
        _lstm_dir_ref(x, p["weight_ih_l0_reverse"], p["weight_hh_l0_reverse"],
                      p["bias_ih_l0_reverse"], p["bias_hh_l0_reverse"], reverse=True),
    ], axis=-1)
    l1 = jnp.concatenate([
        _lstm_dir_ref(l0, p["weight_ih_l1"], p["weight_hh_l1"],
                      p["bias_ih_l1"], p["bias_hh_l1"], reverse=False),
        _lstm_dir_ref(l0, p["weight_ih_l1_reverse"], p["weight_hh_l1_reverse"],
                      p["bias_ih_l1_reverse"], p["bias_hh_l1_reverse"], reverse=True),
    ], axis=-1)
    return l1[:, -1, :] @ p["fc_weight"].T + p["fc_bias"]


if __name__ == "__main__":
    # Small shapes consistent with the module: batch=2, seq=8, input_size=28,
    # hidden_size=128 (scaled down from 256, kept lane-aligned), num_classes=10, 2 layers.
    B, T, D, H, C = 2, 8, 28, 128, 10

    key = jax.random.PRNGKey(0)
    key, kx = jax.random.split(key)
    x = jax.random.normal(kx, (B, T, D), jnp.float32)

    params = init_params(key, D, H, C)
    kparams = to_kernel_params(params, H)

    out = brnn_forward(x, kparams)
    out = jax.block_until_ready(out)

    ref = brnn_reference(x, params)
    # Kernel matmuls run in bf16 (f32 accumulate) and the layer-0 output sequence is stored
    # in bf16; compare against the f32 reference with a bf16-appropriate tolerance.
    np.testing.assert_allclose(np.asarray(out), np.asarray(ref), rtol=5e-2, atol=5e-2)

    print("KERNEL_OK")
</pallas_src>

<mosaic_0001>
module attributes {stable_mosaic.version = 11 : i64} {
  func.func @_brnn_kernel(%arg0: memref<128x28xbf16, #tpu.memory_space<vmem>>, %arg1: memref<28x512xbf16, #tpu.memory_space<vmem>>, %arg2: memref<28x512xbf16, #tpu.memory_space<vmem>>, %arg3: memref<1x512xf32, #tpu.memory_space<vmem>>, %arg4: memref<1x512xf32, #tpu.memory_space<vmem>>, %arg5: memref<128x512xbf16, #tpu.memory_space<vmem>>, %arg6: memref<128x512xbf16, #tpu.memory_space<vmem>>, %arg7: memref<256x512xbf16, #tpu.memory_space<vmem>>, %arg8: memref<128x512xbf16, #tpu.memory_space<vmem>>, %arg9: memref<1x512xf32, #tpu.memory_space<vmem>>, %arg10: memref<256x512xbf16, #tpu.memory_space<vmem>>, %arg11: memref<1x512xf32, #tpu.memory_space<vmem>>, %arg12: memref<256x10xbf16, #tpu.memory_space<vmem>>, %arg13: memref<1x10xf32, #tpu.memory_space<vmem>>, %arg14: memref<16x10xf32, #tpu.memory_space<vmem>>, %arg15: memref<128x512xf32, #tpu.memory_space<vmem>>, %arg16: memref<128x512xf32, #tpu.memory_space<vmem>>, %arg17: memref<128x256xbf16, #tpu.memory_space<vmem>>) attributes {dimension_semantics = [], scalar_prefetch = 0 : i64, scratch_operands = 3 : i64, tpu.core_type = #tpu.core_type<tc>} {
    %cst = arith.constant 0.000000e+00 : f32
    %0 = vector.broadcast %cst : f32 to vector<16x128xf32>
    %c0 = arith.constant 0 : index
    %c0_0 = arith.constant 0 : index
    %1 = vector.load %arg0[%c0, %c0_0] : memref<128x28xbf16, #tpu.memory_space<vmem>>, vector<128x28xbf16>
    %c0_1 = arith.constant 0 : index
    %c0_2 = arith.constant 0 : index
    %2 = vector.load %arg1[%c0_1, %c0_2] : memref<28x512xbf16, #tpu.memory_space<vmem>>, vector<28x512xbf16>
    %cst_3 = arith.constant dense<0.000000e+00> : vector<128x512xf32>
    %3 = tpu.matmul %1, %2, %cst_3 {dimension_numbers = #tpu.dot_dimension_numbers<[1], [0], [0], [1], [0, 0, 1, 1], [], []>} : vector<128x28xbf16>, vector<28x512xbf16>, vector<128x512xf32> -> vector<128x512xf32>
    %c0_4 = arith.constant 0 : index
    %c0_5 = arith.constant 0 : index
    %4 = vector.load %arg3[%c0_4, %c0_5] : memref<1x512xf32, #tpu.memory_space<vmem>>, vector<1x512xf32>
    %5 = vector.broadcast %4 : vector<1x512xf32> to vector<128x512xf32>
    %6 = arith.addf %3, %5 : vector<128x512xf32>
    %c0_6 = arith.constant 0 : index
    %c0_7 = arith.constant 0 : index
    %7 = vector.load %arg15[%c0_6, %c0_7] : memref<128x512xf32, #tpu.memory_space<vmem>>, vector<128x512xf32>
    tpu.vector_store %arg15[%c0_6, %c0_7], %6 {strides = array<i32>} : memref<128x512xf32, #tpu.memory_space<vmem>>, vector<128x512xf32>,
    %c0_8 = arith.constant 0 : index
    %c0_9 = arith.constant 0 : index
    %8 = vector.load %arg2[%c0_8, %c0_9] : memref<28x512xbf16, #tpu.memory_space<vmem>>, vector<28x512xbf16>
    %cst_10 = arith.constant dense<0.000000e+00> : vector<128x512xf32>
    %9 = tpu.matmul %1, %8, %cst_10 {dimension_numbers = #tpu.dot_dimension_numbers<[1], [0], [0], [1], [0, 0, 1, 1], [], []>} : vector<128x28xbf16>, vector<28x512xbf16>, vector<128x512xf32> -> vector<128x512xf32>
    %c0_11 = arith.constant 0 : index
    %c0_12 = arith.constant 0 : index
    %10 = vector.load %arg4[%c0_11, %c0_12] : memref<1x512xf32, #tpu.memory_space<vmem>>, vector<1x512xf32>
    %11 = vector.broadcast %10 : vector<1x512xf32> to vector<128x512xf32>
    %12 = arith.addf %9, %11 : vector<128x512xf32>
    %c0_13 = arith.constant 0 : index
    %c0_14 = arith.constant 0 : index
    %13 = vector.load %arg16[%c0_13, %c0_14] : memref<128x512xf32, #tpu.memory_space<vmem>>, vector<128x512xf32>
    tpu.vector_store %arg16[%c0_13, %c0_14], %12 {strides = array<i32>} : memref<128x512xf32, #tpu.memory_space<vmem>>, vector<128x512xf32>,
    %c0_i32 = arith.constant 0 : i32
    %c16_i32 = arith.constant 16 : i32
    %14 = arith.muli %c0_i32, %c16_i32 : i32
    %15 = tpu.assume_multiple %14, 16 : i32
    %c7_i32 = arith.constant 7 : i32
    %16 = arith.subi %c7_i32, %c0_i32 : i32
    %c16_i32_15 = arith.constant 16 : i32
    %17 = arith.muli %16, %c16_i32_15 : i32
    %18 = tpu.assume_multiple %17, 16 : i32
    %19 = arith.index_cast %15 : i32 to index
    %c0_16 = arith.constant 0 : index
    %20 = vector.load %arg15[%19, %c0_16] : memref<128x512xf32, #tpu.memory_space<vmem>>, vector<16x512xf32>
    %21 = arith.truncf %0 : vector<16x128xf32> to vector<16x128xbf16>
    %c0_17 = arith.constant 0 : index
    %c0_18 = arith.constant 0 : index
    %22 = vector.load %arg5[%c0_17, %c0_18] : memref<128x512xbf16, #tpu.memory_space<vmem>>, vector<128x512xbf16>
    %cst_19 = arith.constant dense<0.000000e+00> : vector<16x512xf32>
    %23 = tpu.matmul %21, %22, %cst_19 {dimension_numbers = #tpu.dot_dimension_numbers<[1], [0], [0], [1], [0, 0, 1, 1], [], []>} : vector<16x128xbf16>, vector<128x512xbf16>, vector<16x512xf32> -> vector<16x512xf32>
    %24 = arith.addf %20, %23 : vector<16x512xf32>
    %25 = arith.index_cast %18 : i32 to index
    %c0_20 = arith.constant 0 : index
    %26 = vector.load %arg16[%25, %c0_20] : memref<128x512xf32, #tpu.memory_space<vmem>>, vector<16x512xf32>
    %27 = arith.truncf %0 : vector<16x128xf32> to vector<16x128xbf16>
    %c0_21 = arith.constant 0 : index
    %c0_22 = arith.constant 0 : index
    %28 = vector.load %arg6[%c0_21, %c0_22] : memref<128x512xbf16, #tpu.memory_space<vmem>>, vector<128x512xbf16>
    %cst_23 = arith.constant dense<0.000000e+00> : vector<16x512xf32>
    %29 = tpu.matmul %27, %28, %cst_23 {dimension_numbers = #tpu.dot_dimension_numbers<[1], [0], [0], [1], [0, 0, 1, 1], [], []>} : vector<16x128xbf16>, vector<128x512xbf16>, vector<16x512xf32> -> vector<16x512xf32>
    %30 = arith.addf %26, %29 : vector<16x512xf32>
    %31 = arith.negf %24 : vector<16x512xf32>
    %32 = math.exp %31 : vector<16x512xf32>
    %cst_24 = arith.constant 1.000000e+00 : f32
    %33 = vector.broadcast %cst_24 : f32 to vector<16x512xf32>
    %34 = arith.addf %33, %32 : vector<16x512xf32>
    %35 = arith.divf %33, %34 : vector<16x512xf32>
    %36 = vector.extract_strided_slice %35 {offsets = [0, 0], sizes = [16, 128], strides = [1, 1]} : vector<16x512xf32> to vector<16x128xf32>
    %37 = vector.extract_strided_slice %35 {offsets = [0, 128], sizes = [16, 128], strides = [1, 1]} : vector<16x512xf32> to vector<16x128xf32>
    %38 = vector.extract_strided_slice %35 {offsets = [0, 384], sizes = [16, 128], strides = [1, 1]} : vector<16x512xf32> to vector<16x128xf32>
    %39 = vector.extract_strided_slice %24 {offsets = [0, 256], sizes = [16, 128], strides = [1, 1]} : vector<16x512xf32> to vector<16x128xf32>
    %40 = math.tanh %39 : vector<16x128xf32>
    %41 = arith.mulf %37, %0 : vector<16x128xf32>
    %42 = arith.mulf %36, %40 : vector<16x128xf32>
    %43 = arith.addf %41, %42 : vector<16x128xf32>
    %44 = math.tanh %43 : vector<16x128xf32>
    %45 = arith.mulf %38, %44 : vector<16x128xf32>
    %46 = arith.negf %30 : vector<16x512xf32>
    %47 = math.exp %46 : vector<16x512xf32>
    %cst_25 = arith.constant 1.000000e+00 : f32
    %48 = vector.broadcast %cst_25 : f32 to vector<16x512xf32>
    %49 = arith.addf %48, %47 : vector<16x512xf32>
    %50 = arith.divf %48, %49 : vector<16x512xf32>
    %51 = vector.extract_strided_slice %50 {offsets = [0, 0], sizes = [16, 128], strides = [1, 1]} : vector<16x512xf32> to vector<16x128xf32>
    %52 = vector.extract_strided_slice %50 {offsets = [0, 128], sizes = [16, 128], strides = [1, 1]} : vector<16x512xf32> to vector<16x128xf32>
    %53 = vector.extract_strided_slice %50 {offsets = [0, 384], sizes = [16, 128], strides = [1, 1]} : vector<16x512xf32> to vector<16x128xf32>
    %54 = vector.extract_strided_slice %30 {offsets = [0, 256], sizes = [16, 128], strides = [1, 1]} : vector<16x512xf32> to vector<16x128xf32>
    %55 = math.tanh %54 : vector<16x128xf32>
    %56 = arith.mulf %52, %0 : vector<16x128xf32>
    %57 = arith.mulf %51, %55 : vector<16x128xf32>
    %58 = arith.addf %56, %57 : vector<16x128xf32>
    %59 = math.tanh %58 : vector<16x128xf32>
    %60 = arith.mulf %53, %59 : vector<16x128xf32>
    %61 = arith.truncf %45 : vector<16x128xf32> to vector<16x128xbf16>
    %62 = arith.index_cast %15 : i32 to index
    %c0_26 = arith.constant 0 : index
    %63 = vector.load %arg17[%62, %c0_26] : memref<128x256xbf16, #tpu.memory_space<vmem>>, vector<16x128xbf16>
    tpu.vector_store %arg17[%62, %c0_26], %61 {strides = array<i32>} : memref<128x256xbf16, #tpu.memory_space<vmem>>, vector<16x128xbf16>,
    %64 = arith.truncf %60 : vector<16x128xf32> to vector<16x128xbf16>
    %65 = arith.index_cast %18 : i32 to index
    %c128 = arith.constant 128 : index
    %66 = vector.load %arg17[%65, %c128] : memref<128x256xbf16, #tpu.memory_space<vmem>>, vector<16x128xbf16>
    tpu.vector_store %arg17[%65, %c128], %64 {strides = array<i32>} : memref<128x256xbf16, #tpu.memory_space<vmem>>, vector<16x128xbf16>,
    %c1_i32 = arith.constant 1 : i32
    %c16_i32_27 = arith.constant 16 : i32
    %67 = arith.muli %c1_i32, %c16_i32_27 : i32
    %68 = tpu.assume_multiple %67, 16 : i32
    %c7_i32_28 = arith.constant 7 : i32
    %69 = arith.subi %c7_i32_28, %c1_i32 : i32
    %c16_i32_29 = arith.constant 16 : i32
    %70 = arith.muli %69, %c16_i32_29 : i32
    %71 = tpu.assume_multiple %70, 16 : i32
    %72 = arith.index_cast %68 : i32 to index
    %c0_30 = arith.constant 0 : index
    %73 = vector.load %arg15[%72, %c0_30] : memref<128x512xf32, #tpu.memory_space<vmem>>, vector<16x512xf32>
    %74 = arith.truncf %45 : vector<16x128xf32> to vector<16x128xbf16>
    %c0_31 = arith.constant 0 : index
    %c0_32 = arith.constant 0 : index
    %75 = vector.load %arg5[%c0_31, %c0_32] : memref<128x512xbf16, #tpu.memory_space<vmem>>, vector<128x512xbf16>
    %cst_33 = arith.constant dense<0.000000e+00> : vector<16x512xf32>
    %76 = tpu.matmul %74, %75, %cst_33 {dimension_numbers = #tpu.dot_dimension_numbers<[1], [0], [0], [1], [0, 0, 1, 1], [], []>} : vector<16x128xbf16>, vector<128x512xbf16>, vector<16x512xf32> -> vector<16x512xf32>
    %77 = arith.addf %73, %76 : vector<16x512xf32>
    %78 = arith.index_cast %71 : i32 to index
    %c0_34 = arith.constant 0 : index
    %79 = vector.load %arg16[%78, %c0_34] : memref<128x512xf32, #tpu.memory_space<vmem>>, vector<16x512xf32>
    %80 = arith.truncf %60 : vector<16x128xf32> to vector<16x128xbf16>
    %c0_35 = arith.constant 0 : index
    %c0_36 = arith.constant 0 : index
    %81 = vector.load %arg6[%c0_35, %c0_36] : memref<128x512xbf16, #tpu.memory_space<vmem>>, vector<128x512xbf16>
    %cst_37 = arith.constant dense<0.000000e+00> : vector<16x512xf32>
    %82 = tpu.matmul %80, %81, %cst_37 {dimension_numbers = #tpu.dot_dimension_numbers<[1], [0], [0], [1], [0, 0, 1, 1], [], []>} : vector<16x128xbf16>, vector<128x512xbf16>, vector<16x512xf32> -> vector<16x512xf32>
    %83 = arith.addf %79, %82 : vector<16x512xf32>
    %84 = arith.negf %77 : vector<16x512xf32>
    %85 = math.exp %84 : vector<16x512xf32>
    %cst_38 = arith.constant 1.000000e+00 : f32
    %86 = vector.broadcast %cst_38 : f32 to vector<16x512xf32>
    %87 = arith.addf %86, %85 : vector<16x512xf32>
    %88 = arith.divf %86, %87 : vector<16x512xf32>
    %89 = vector.extract_strided_slice %88 {offsets = [0, 0], sizes = [16, 128], strides = [1, 1]} : vector<16x512xf32> to vector<16x128xf32>
    %90 = vector.extract_strided_slice %88 {offsets = [0, 128], sizes = [16, 128], strides = [1, 1]} : vector<16x512xf32> to vector<16x128xf32>
    %91 = vector.extract_strided_slice %88 {offsets = [0, 384], sizes = [16, 128], strides = [1, 1]} : vector<16x512xf32> to vector<16x128xf32>
    %92 = vector.extract_strided_slice %77 {offsets = [0, 256], sizes = [16, 128], strides = [1, 1]} : vector<16x512xf32> to vector<16x128xf32>
    %93 = math.tanh %92 : vector<16x128xf32>
    %94 = arith.mulf %90, %43 : vector<16x128xf32>
    %95 = arith.mulf %89, %93 : vector<16x128xf32>
    %96 = arith.addf %94, %95 : vector<16x128xf32>
    %97 = math.tanh %96 : vector<16x128xf32>
    %98 = arith.mulf %91, %97 : vector<16x128xf32>
    %99 = arith.negf %83 : vector<16x512xf32>
    %100 = math.exp %99 : vector<16x512xf32>
    %cst_39 = arith.constant 1.000000e+00 : f32
    %101 = vector.broadcast %cst_39 : f32 to vector<16x512xf32>
    %102 = arith.addf %101, %100 : vector<16x512xf32>
    %103 = arith.divf %101, %102 : vector<16x512xf32>
    %104 = vector.extract_strided_slice %103 {offsets = [0, 0], sizes = [16, 128], strides = [1, 1]} : vector<16x512xf32> to vector<16x128xf32>
    %105 = vector.extract_strided_slice %103 {offsets = [0, 128], sizes = [16, 128], strides = [1, 1]} : vector<16x512xf32> to vector<16x128xf32>
    %106 = vector.extract_strided_slice %103 {offsets = [0, 384], sizes = [16, 128], strides = [1, 1]} : vector<16x512xf32> to vector<16x128xf32>
    %107 = vector.extract_strided_slice %83 {offsets = [0, 256], sizes = [16, 128], strides = [1, 1]} : vector<16x512xf32> to vector<16x128xf32>
    %108 = math.tanh %107 : vector<16x128xf32>
    %109 = arith.mulf %105, %58 : vector<16x128xf32>
    %110 = arith.mulf %104, %108 : vector<16x128xf32>
    %111 = arith.addf %109, %110 : vector<16x128xf32>
    %112 = math.tanh %111 : vector<16x128xf32>
    %113 = arith.mulf %106, %112 : vector<16x128xf32>
    %114 = arith.truncf %98 : vector<16x128xf32> to vector<16x128xbf16>
    %115 = arith.index_cast %68 : i32 to index
    %c0_40 = arith.constant 0 : index
    %116 = vector.load %arg17[%115, %c0_40] : memref<128x256xbf16, #tpu.memory_space<vmem>>, vector<16x128xbf16>
    tpu.vector_store %arg17[%115, %c0_40], %114 {strides = array<i32>} : memref<128x256xbf16, #tpu.memory_space<vmem>>, vector<16x128xbf16>,
    %117 = arith.truncf %113 : vector<16x128xf32> to vector<16x128xbf16>
    %118 = arith.index_cast %71 : i32 to index
    %c128_41 = arith.constant 128 : index
    %119 = vector.load %arg17[%118, %c128_41] : memref<128x256xbf16, #tpu.memory_space<vmem>>, vector<16x128xbf16>
    tpu.vector_store %arg17[%118, %c128_41], %117 {strides = array<i32>} : memref<128x256xbf16, #tpu.memory_space<vmem>>, vector<16x128xbf16>,
    %c2_i32 = arith.constant 2 : i32
    %c16_i32_42 = arith.constant 16 : i32
    %120 = arith.muli %c2_i32, %c16_i32_42 : i32
    %121 = tpu.assume_multiple %120, 16 : i32
    %c7_i32_43 = arith.constant 7 : i32
    %122 = arith.subi %c7_i32_43, %c2_i32 : i32
    %c16_i32_44 = arith.constant 16 : i32
    %123 = arith.muli %122, %c16_i32_44 : i32
    %124 = tpu.assume_multiple %123, 16 : i32
    %125 = arith.index_cast %121 : i32 to index
    %c0_45 = arith.constant 0 : index
    %126 = vector.load %arg15[%125, %c0_45] : memref<128x512xf32, #tpu.memory_space<vmem>>, vector<16x512xf32>
    %127 = arith.truncf %98 : vector<16x128xf32> to vector<16x128xbf16>
    %c0_46 = arith.constant 0 : index
    %c0_47 = arith.constant 0 : index
    %128 = vector.load %arg5[%c0_46, %c0_47] : memref<128x512xbf16, #tpu.memory_space<vmem>>, vector<128x512xbf16>
    %cst_48 = arith.constant dense<0.000000e+00> : vector<16x512xf32>
    %129 = tpu.matmul %127, %128, %cst_48 {dimension_numbers = #tpu.dot_dimension_numbers<[1], [0], [0], [1], [0, 0, 1, 1], [], []>} : vector<16x128xbf16>, vector<128x512xbf16>, vector<16x512xf32> -> vector<16x512xf32>
    %130 = arith.addf %126, %129 : vector<16x512xf32>
    %131 = arith.index_cast %124 : i32 to index
    %c0_49 = arith.constant 0 : index
    %132 = vector.load %arg16[%131, %c0_49] : memref<128x512xf32, #tpu.memory_space<vmem>>, vector<16x512xf32>
    %133 = arith.truncf %113 : vector<16x128xf32> to vector<16x128xbf16>
    %c0_50 = arith.constant 0 : index
    %c0_51 = arith.constant 0 : index
    %134 = vector.load %arg6[%c0_50, %c0_51] : memref<128x512xbf16, #tpu.memory_space<vmem>>, vector<128x512xbf16>
    %cst_52 = arith.constant dense<0.000000e+00> : vector<16x512xf32>
    %135 = tpu.matmul %133, %134, %cst_52 {dimension_numbers = #tpu.dot_dimension_numbers<[1], [0], [0], [1], [0, 0, 1, 1], [], []>} : vector<16x128xbf16>, vector<128x512xbf16>, vector<16x512xf32> -> vector<16x512xf32>
    %136 = arith.addf %132, %135 : vector<16x512xf32>
    %137 = arith.negf %130 : vector<16x512xf32>
    %138 = math.exp %137 : vector<16x512xf32>
    %cst_53 = arith.constant 1.000000e+00 : f32
    %139 = vector.broadcast %cst_53 : f32 to vector<16x512xf32>
    %140 = arith.addf %139, %138 : vector<16x512xf32>
    %141 = arith.divf %139, %140 : vector<16x512xf32>
    %142 = vector.extract_strided_slice %141 {offsets = [0, 0], sizes = [16, 128], strides = [1, 1]} : vector<16x512xf32> to vector<16x128xf32>
    %143 = vector.extract_strided_slice %141 {offsets = [0, 128], sizes = [16, 128], strides = [1, 1]} : vector<16x512xf32> to vector<16x128xf32>
    %144 = vector.extract_strided_slice %141 {offsets = [0, 384], sizes = [16, 128], strides = [1, 1]} : vector<16x512xf32> to vector<16x128xf32>
    %145 = vector.extract_strided_slice %130 {offsets = [0, 256], sizes = [16, 128], strides = [1, 1]} : vector<16x512xf32> to vector<16x128xf32>
    %146 = math.tanh %145 : vector<16x128xf32>
    %147 = arith.mulf %143, %96 : vector<16x128xf32>
    %148 = arith.mulf %142, %146 : vector<16x128xf32>
    %149 = arith.addf %147, %148 : vector<16x128xf32>
    %150 = math.tanh %149 : vector<16x128xf32>
    %151 = arith.mulf %144, %150 : vector<16x128xf32>
    %152 = arith.negf %136 : vector<16x512xf32>
    %153 = math.exp %152 : vector<16x512xf32>
    %cst_54 = arith.constant 1.000000e+00 : f32
    %154 = vector.broadcast %cst_54 : f32 to vector<16x512xf32>
    %155 = arith.addf %154, %153 : vector<16x512xf32>
    %156 = arith.divf %154, %155 : vector<16x512xf32>
    %157 = vector.extract_strided_slice %156 {offsets = [0, 0], sizes = [16, 128], strides = [1, 1]} : vector<16x512xf32> to vector<16x128xf32>
    %158 = vector.extract_strided_slice %156 {offsets = [0, 128], sizes = [16, 128], strides = [1, 1]} : vector<16x512xf32> to vector<16x128xf32>
    %159 = vector.extract_strided_slice %156 {offsets = [0, 384], sizes = [16, 128], strides = [1, 1]} : vector<16x512xf32> to vector<16x128xf32>
    %160 = vector.extract_strided_slice %136 {offsets = [0, 256], sizes = [16, 128], strides = [1, 1]} : vector<16x512xf32> to vector<16x128xf32>
    %161 = math.tanh %160 : vector<16x128xf32>
    %162 = arith.mulf %158, %111 : vector<16x128xf32>
    %163 = arith.mulf %157, %161 : vector<16x128xf32>
    %164 = arith.addf %162, %163 : vector<16x128xf32>
    %165 = math.tanh %164 : vector<16x128xf32>
    %166 = arith.mulf %159, %165 : vector<16x128xf32>
    %167 = arith.truncf %151 : vector<16x128xf32> to vector<16x128xbf16>
    %168 = arith.index_cast %121 : i32 to index
    %c0_55 = arith.constant 0 : index
    %169 = vector.load %arg17[%168, %c0_55] : memref<128x256xbf16, #tpu.memory_space<vmem>>, vector<16x128xbf16>
    tpu.vector_store %arg17[%168, %c0_55], %167 {strides = array<i32>} : memref<128x256xbf16, #tpu.memory_space<vmem>>, vector<16x128xbf16>,
    %170 = arith.truncf %166 : vector<16x128xf32> to vector<16x128xbf16>
    %171 = arith.index_cast %124 : i32 to index
    %c128_56 = arith.constant 128 : index
    %172 = vector.load %arg17[%171, %c128_56] : memref<128x256xbf16, #tpu.memory_space<vmem>>, vector<16x128xbf16>
    tpu.vector_store %arg17[%171, %c128_56], %170 {strides = array<i32>} : memref<128x256xbf16, #tpu.memory_space<vmem>>, vector<16x128xbf16>,
    %c3_i32 = arith.constant 3 : i32
    %c16_i32_57 = arith.constant 16 : i32
    %173 = arith.muli %c3_i32, %c16_i32_57 : i32
    %174 = tpu.assume_multiple %173, 16 : i32
    %c7_i32_58 = arith.constant 7 : i32
    %175 = arith.subi %c7_i32_58, %c3_i32 : i32
    %c16_i32_59 = arith.constant 16 : i32
    %176 = arith.muli %175, %c16_i32_59 : i32
    %177 = tpu.assume_multiple %176, 16 : i32
    %178 = arith.index_cast %174 : i32 to index
    %c0_60 = arith.constant 0 : index
    %179 = vector.load %arg15[%178, %c0_60] : memref<128x512xf32, #tpu.memory_space<vmem>>, vector<16x512xf32>
    %180 = arith.truncf %151 : vector<16x128xf32> to vector<16x128xbf16>
    %c0_61 = arith.constant 0 : index
    %c0_62 = arith.constant 0 : index
    %181 = vector.load %arg5[%c0_61, %c0_62] : memref<128x512xbf16, #tpu.memory_space<vmem>>, vector<128x512xbf16>
    %cst_63 = arith.constant dense<0.000000e+00> : vector<16x512xf32>
    %182 = tpu.matmul %180, %181, %cst_63 {dimension_numbers = #tpu.dot_dimension_numbers<[1], [0], [0], [1], [0, 0, 1, 1], [], []>} : vector<16x128xbf16>, vector<128x512xbf16>, vector<16x512xf32> -> vector<16x512xf32>
    %183 = arith.addf %179, %182 : vector<16x512xf32>
    %184 = arith.index_cast %177 : i32 to index
    %c0_64 = arith.constant 0 : index
    %185 = vector.load %arg16[%184, %c0_64] : memref<128x512xf32, #tpu.memory_space<vmem>>, vector<16x512xf32>
    %186 = arith.truncf %166 : vector<16x128xf32> to vector<16x128xbf16>
    %c0_65 = arith.constant 0 : index
    %c0_66 = arith.constant 0 : index
    %187 = vector.load %arg6[%c0_65, %c0_66] : memref<128x512xbf16, #tpu.memory_space<vmem>>, vector<128x512xbf16>
    %cst_67 = arith.constant dense<0.000000e+00> : vector<16x512xf32>
    %188 = tpu.matmul %186, %187, %cst_67 {dimension_numbers = #tpu.dot_dimension_numbers<[1], [0], [0], [1], [0, 0, 1, 1], [], []>} : vector<16x128xbf16>, vector<128x512xbf16>, vector<16x512xf32> -> vector<16x512xf32>
    %189 = arith.addf %185, %188 : vector<16x512xf32>
    %190 = arith.negf %183 : vector<16x512xf32>
    %191 = math.exp %190 : vector<16x512xf32>
    %cst_68 = arith.constant 1.000000e+00 : f32
    %192 = vector.broadcast %cst_68 : f32 to vector<16x512xf32>
    %193 = arith.addf %192, %191 : vector<16x512xf32>
    %194 = arith.divf %192, %193 : vector<16x512xf32>
    %195 = vector.extract_strided_slice %194 {offsets = [0, 0], sizes = [16, 128], strides = [1, 1]} : vector<16x512xf32> to vector<16x128xf32>
    %196 = vector.extract_strided_slice %194 {offsets = [0, 128], sizes = [16, 128], strides = [1, 1]} : vector<16x512xf32> to vector<16x128xf32>
    %197 = vector.extract_strided_slice %194 {offsets = [0, 384], sizes = [16, 128], strides = [1, 1]} : vector<16x512xf32> to vector<16x128xf32>
    %198 = vector.extract_strided_slice %183 {offsets = [0, 256], sizes = [16, 128], strides = [1, 1]} : vector<16x512xf32> to vector<16x128xf32>
    %199 = math.tanh %198 : vector<16x128xf32>
    %200 = arith.mulf %196, %149 : vector<16x128xf32>
    %201 = arith.mulf %195, %199 : vector<16x128xf32>
    %202 = arith.addf %200, %201 : vector<16x128xf32>
    %203 = math.tanh %202 : vector<16x128xf32>
    %204 = arith.mulf %197, %203 : vector<16x128xf32>
    %205 = arith.negf %189 : vector<16x512xf32>
    %206 = math.exp %205 : vector<16x512xf32>
    %cst_69 = arith.constant 1.000000e+00 : f32
    %207 = vector.broadcast %cst_69 : f32 to vector<16x512xf32>
    %208 = arith.addf %207, %206 : vector<16x512xf32>
    %209 = arith.divf %207, %208 : vector<16x512xf32>
    %210 = vector.extract_strided_slice %209 {offsets = [0, 0], sizes = [16, 128], strides = [1, 1]} : vector<16x512xf32> to vector<16x128xf32>
    %211 = vector.extract_strided_slice %209 {offsets = [0, 128], sizes = [16, 128], strides = [1, 1]} : vector<16x512xf32> to vector<16x128xf32>
    %212 = vector.extract_strided_slice %209 {offsets = [0, 384], sizes = [16, 128], strides = [1, 1]} : vector<16x512xf32> to vector<16x128xf32>
    %213 = vector.extract_strided_slice %189 {offsets = [0, 256], sizes = [16, 128], strides = [1, 1]} : vector<16x512xf32> to vector<16x128xf32>
    %214 = math.tanh %213 : vector<16x128xf32>
    %215 = arith.mulf %211, %164 : vector<16x128xf32>
    %216 = arith.mulf %210, %214 : vector<16x128xf32>
    %217 = arith.addf %215, %216 : vector<16x128xf32>
    %218 = math.tanh %217 : vector<16x128xf32>
    %219 = arith.mulf %212, %218 : vector<16x128xf32>
    %220 = arith.truncf %204 : vector<16x128xf32> to vector<16x128xbf16>
    %221 = arith.index_cast %174 : i32 to index
    %c0_70 = arith.constant 0 : index
    %222 = vector.load %arg17[%221, %c0_70] : memref<128x256xbf16, #tpu.memory_space<vmem>>, vector<16x128xbf16>
    tpu.vector_store %arg17[%221, %c0_70], %220 {strides = array<i32>} : memref<128x256xbf16, #tpu.memory_space<vmem>>, vector<16x128xbf16>,
    %223 = arith.truncf %219 : vector<16x128xf32> to vector<16x128xbf16>
    %224 = arith.index_cast %177 : i32 to index
    %c128_71 = arith.constant 128 : index
    %225 = vector.load %arg17[%224, %c128_71] : memref<128x256xbf16, #tpu.memory_space<vmem>>, vector<16x128xbf16>
    tpu.vector_store %arg17[%224, %c128_71], %223 {strides = array<i32>} : memref<128x256xbf16, #tpu.memory_space<vmem>>, vector<16x128xbf16>,
    %c4_i32 = arith.constant 4 : i32
    %c16_i32_72 = arith.constant 16 : i32
    %226 = arith.muli %c4_i32, %c16_i32_72 : i32
    %227 = tpu.assume_multiple %226, 16 : i32
    %c7_i32_73 = arith.constant 7 : i32
    %228 = arith.subi %c7_i32_73, %c4_i32 : i32
    %c16_i32_74 = arith.constant 16 : i32
    %229 = arith.muli %228, %c16_i32_74 : i32
    %230 = tpu.assume_multiple %229, 16 : i32
    %231 = arith.index_cast %227 : i32 to index
    %c0_75 = arith.constant 0 : index
    %232 = vector.load %arg15[%231, %c0_75] : memref<128x512xf32, #tpu.memory_space<vmem>>, vector<16x512xf32>
    %233 = arith.truncf %204 : vector<16x128xf32> to vector<16x128xbf16>
    %c0_76 = arith.constant 0 : index
    %c0_77 = arith.constant 0 : index
    %234 = vector.load %arg5[%c0_76, %c0_77] : memref<128x512xbf16, #tpu.memory_space<vmem>>, vector<128x512xbf16>
    %cst_78 = arith.constant dense<0.000000e+00> : vector<16x512xf32>
    %235 = tpu.matmul %233, %234, %cst_78 {dimension_numbers = #tpu.dot_dimension_numbers<[1], [0], [0], [1], [0, 0, 1, 1], [], []>} : vector<16x128xbf16>, vector<128x512xbf16>, vector<16x512xf32> -> vector<16x512xf32>
    %236 = arith.addf %232, %235 : vector<16x512xf32>
    %237 = arith.index_cast %230 : i32 to index
    %c0_79 = arith.constant 0 : index
    %238 = vector.load %arg16[%237, %c0_79] : memref<128x512xf32, #tpu.memory_space<vmem>>, vector<16x512xf32>
    %239 = arith.truncf %219 : vector<16x128xf32> to vector<16x128xbf16>
    %c0_80 = arith.constant 0 : index
    %c0_81 = arith.constant 0 : index
    %240 = vector.load %arg6[%c0_80, %c0_81] : memref<128x512xbf16, #tpu.memory_space<vmem>>, vector<128x512xbf16>
    %cst_82 = arith.constant dense<0.000000e+00> : vector<16x512xf32>
    %241 = tpu.matmul %239, %240, %cst_82 {dimension_numbers = #tpu.dot_dimension_numbers<[1], [0], [0], [1], [0, 0, 1, 1], [], []>} : vector<16x128xbf16>, vector<128x512xbf16>, vector<16x512xf32> -> vector<16x512xf32>
    %242 = arith.addf %238, %241 : vector<16x512xf32>
    %243 = arith.negf %236 : vector<16x512xf32>
    %244 = math.exp %243 : vector<16x512xf32>
    %cst_83 = arith.constant 1.000000e+00 : f32
    %245 = vector.broadcast %cst_83 : f32 to vector<16x512xf32>
    %246 = arith.addf %245, %244 : vector<16x512xf32>
    %247 = arith.divf %245, %246 : vector<16x512xf32>
    %248 = vector.extract_strided_slice %247 {offsets = [0, 0], sizes = [16, 128], strides = [1, 1]} : vector<16x512xf32> to vector<16x128xf32>
    %249 = vector.extract_strided_slice %247 {offsets = [0, 128], sizes = [16, 128], strides = [1, 1]} : vector<16x512xf32> to vector<16x128xf32>
    %250 = vector.extract_strided_slice %247 {offsets = [0, 384], sizes = [16, 128], strides = [1, 1]} : vector<16x512xf32> to vector<16x128xf32>
    %251 = vector.extract_strided_slice %236 {offsets = [0, 256], sizes = [16, 128], strides = [1, 1]} : vector<16x512xf32> to vector<16x128xf32>
    %252 = math.tanh %251 : vector<16x128xf32>
    %253 = arith.mulf %249, %202 : vector<16x128xf32>
    %254 = arith.mulf %248, %252 : vector<16x128xf32>
    %255 = arith.addf %253, %254 : vector<16x128xf32>
    %256 = math.tanh %255 : vector<16x128xf32>
    %257 = arith.mulf %250, %256 : vector<16x128xf32>
    %258 = arith.negf %242 : vector<16x512xf32>
    %259 = math.exp %258 : vector<16x512xf32>
    %cst_84 = arith.constant 1.000000e+00 : f32
    %260 = vector.broadcast %cst_84 : f32 to vector<16x512xf32>
    %261 = arith.addf %260, %259 : vector<16x512xf32>
    %262 = arith.divf %260, %261 : vector<16x512xf32>
    %263 = vector.extract_strided_slice %262 {offsets = [0, 0], sizes = [16, 128], strides = [1, 1]} : vector<16x512xf32> to vector<16x128xf32>
    %264 = vector.extract_strided_slice %262 {offsets = [0, 128], sizes = [16, 128], strides = [1, 1]} : vector<16x512xf32> to vector<16x128xf32>
    %265 = vector.extract_strided_slice %262 {offsets = [0, 384], sizes = [16, 128], strides = [1, 1]} : vector<16x512xf32> to vector<16x128xf32>
    %266 = vector.extract_strided_slice %242 {offsets = [0, 256], sizes = [16, 128], strides = [1, 1]} : vector<16x512xf32> to vector<16x128xf32>
    %267 = math.tanh %266 : vector<16x128xf32>
    %268 = arith.mulf %264, %217 : vector<16x128xf32>
    %269 = arith.mulf %263, %267 : vector<16x128xf32>
    %270 = arith.addf %268, %269 : vector<16x128xf32>
    %271 = math.tanh %270 : vector<16x128xf32>
    %272 = arith.mulf %265, %271 : vector<16x128xf32>
    %273 = arith.truncf %257 : vector<16x128xf32> to vector<16x128xbf16>
    %274 = arith.index_cast %227 : i32 to index
    %c0_85 = arith.constant 0 : index
    %275 = vector.load %arg17[%274, %c0_85] : memref<128x256xbf16, #tpu.memory_space<vmem>>, vector<16x128xbf16>
    tpu.vector_store %arg17[%274, %c0_85], %273 {strides = array<i32>} : memref<128x256xbf16, #tpu.memory_space<vmem>>, vector<16x128xbf16>,
    %276 = arith.truncf %272 : vector<16x128xf32> to vector<16x128xbf16>
    %277 = arith.index_cast %230 : i32 to index
    %c128_86 = arith.constant 128 : index
    %278 = vector.load %arg17[%277, %c128_86] : memref<128x256xbf16, #tpu.memory_space<vmem>>, vector<16x128xbf16>
    tpu.vector_store %arg17[%277, %c128_86], %276 {strides = array<i32>} : memref<128x256xbf16, #tpu.memory_space<vmem>>, vector<16x128xbf16>,
    %c5_i32 = arith.constant 5 : i32
    %c16_i32_87 = arith.constant 16 : i32
    %279 = arith.muli %c5_i32, %c16_i32_87 : i32
    %280 = tpu.assume_multiple %279, 16 : i32
    %c7_i32_88 = arith.constant 7 : i32
    %281 = arith.subi %c7_i32_88, %c5_i32 : i32
    %c16_i32_89 = arith.constant 16 : i32
    %282 = arith.muli %281, %c16_i32_89 : i32
    %283 = tpu.assume_multiple %282, 16 : i32
    %284 = arith.index_cast %280 : i32 to index
    %c0_90 = arith.constant 0 : index
    %285 = vector.load %arg15[%284, %c0_90] : memref<128x512xf32, #tpu.memory_space<vmem>>, vector<16x512xf32>
    %286 = arith.truncf %257 : vector<16x128xf32> to vector<16x128xbf16>
    %c0_91 = arith.constant 0 : index
    %c0_92 = arith.constant 0 : index
    %287 = vector.load %arg5[%c0_91, %c0_92] : memref<128x512xbf16, #tpu.memory_space<vmem>>, vector<128x512xbf16>
    %cst_93 = arith.constant dense<0.000000e+00> : vector<16x512xf32>
    %288 = tpu.matmul %286, %287, %cst_93 {dimension_numbers = #tpu.dot_dimension_numbers<[1], [0], [0], [1], [0, 0, 1, 1], [], []>} : vector<16x128xbf16>, vector<128x512xbf16>, vector<16x512xf32> -> vector<16x512xf32>
    %289 = arith.addf %285, %288 : vector<16x512xf32>
    %290 = arith.index_cast %283 : i32 to index
    %c0_94 = arith.constant 0 : index
    %291 = vector.load %arg16[%290, %c0_94] : memref<128x512xf32, #tpu.memory_space<vmem>>, vector<16x512xf32>
    %292 = arith.truncf %272 : vector<16x128xf32> to vector<16x128xbf16>
    %c0_95 = arith.constant 0 : index
    %c0_96 = arith.constant 0 : index
    %293 = vector.load %arg6[%c0_95, %c0_96] : memref<128x512xbf16, #tpu.memory_space<vmem>>, vector<128x512xbf16>
    %cst_97 = arith.constant dense<0.000000e+00> : vector<16x512xf32>
    %294 = tpu.matmul %292, %293, %cst_97 {dimension_numbers = #tpu.dot_dimension_numbers<[1], [0], [0], [1], [0, 0, 1, 1], [], []>} : vector<16x128xbf16>, vector<128x512xbf16>, vector<16x512xf32> -> vector<16x512xf32>
    %295 = arith.addf %291, %294 : vector<16x512xf32>
    %296 = arith.negf %289 : vector<16x512xf32>
    %297 = math.exp %296 : vector<16x512xf32>
    %cst_98 = arith.constant 1.000000e+00 : f32
    %298 = vector.broadcast %cst_98 : f32 to vector<16x512xf32>
    %299 = arith.addf %298, %297 : vector<16x512xf32>
    %300 = arith.divf %298, %299 : vector<16x512xf32>
    %301 = vector.extract_strided_slice %300 {offsets = [0, 0], sizes = [16, 128], strides = [1, 1]} : vector<16x512xf32> to vector<16x128xf32>
    %302 = vector.extract_strided_slice %300 {offsets = [0, 128], sizes = [16, 128], strides = [1, 1]} : vector<16x512xf32> to vector<16x128xf32>
    %303 = vector.extract_strided_slice %300 {offsets = [0, 384], sizes = [16, 128], strides = [1, 1]} : vector<16x512xf32> to vector<16x128xf32>
    %304 = vector.extract_strided_slice %289 {offsets = [0, 256], sizes = [16, 128], strides = [1, 1]} : vector<16x512xf32> to vector<16x128xf32>
    %305 = math.tanh %304 : vector<16x128xf32>
    %306 = arith.mulf %302, %255 : vector<16x128xf32>
    %307 = arith.mulf %301, %305 : vector<16x128xf32>
    %308 = arith.addf %306, %307 : vector<16x128xf32>
    %309 = math.tanh %308 : vector<16x128xf32>
    %310 = arith.mulf %303, %309 : vector<16x128xf32>
    %311 = arith.negf %295 : vector<16x512xf32>
    %312 = math.exp %311 : vector<16x512xf32>
    %cst_99 = arith.constant 1.000000e+00 : f32
    %313 = vector.broadcast %cst_99 : f32 to vector<16x512xf32>
    %314 = arith.addf %313, %312 : vector<16x512xf32>
    %315 = arith.divf %313, %314 : vector<16x512xf32>
    %316 = vector.extract_strided_slice %315 {offsets = [0, 0], sizes = [16, 128], strides = [1, 1]} : vector<16x512xf32> to vector<16x128xf32>
    %317 = vector.extract_strided_slice %315 {offsets = [0, 128], sizes = [16, 128], strides = [1, 1]} : vector<16x512xf32> to vector<16x128xf32>
    %318 = vector.extract_strided_slice %315 {offsets = [0, 384], sizes = [16, 128], strides = [1, 1]} : vector<16x512xf32> to vector<16x128xf32>
    %319 = vector.extract_strided_slice %295 {offsets = [0, 256], sizes = [16, 128], strides = [1, 1]} : vector<16x512xf32> to vector<16x128xf32>
    %320 = math.tanh %319 : vector<16x128xf32>
    %321 = arith.mulf %317, %270 : vector<16x128xf32>
    %322 = arith.mulf %316, %320 : vector<16x128xf32>
    %323 = arith.addf %321, %322 : vector<16x128xf32>
    %324 = math.tanh %323 : vector<16x128xf32>
    %325 = arith.mulf %318, %324 : vector<16x128xf32>
    %326 = arith.truncf %310 : vector<16x128xf32> to vector<16x128xbf16>
    %327 = arith.index_cast %280 : i32 to index
    %c0_100 = arith.constant 0 : index
    %328 = vector.load %arg17[%327, %c0_100] : memref<128x256xbf16, #tpu.memory_space<vmem>>, vector<16x128xbf16>
    tpu.vector_store %arg17[%327, %c0_100], %326 {strides = array<i32>} : memref<128x256xbf16, #tpu.memory_space<vmem>>, vector<16x128xbf16>,
    %329 = arith.truncf %325 : vector<16x128xf32> to vector<16x128xbf16>
    %330 = arith.index_cast %283 : i32 to index
    %c128_101 = arith.constant 128 : index
    %331 = vector.load %arg17[%330, %c128_101] : memref<128x256xbf16, #tpu.memory_space<vmem>>, vector<16x128xbf16>
    tpu.vector_store %arg17[%330, %c128_101], %329 {strides = array<i32>} : memref<128x256xbf16, #tpu.memory_space<vmem>>, vector<16x128xbf16>,
    %c6_i32 = arith.constant 6 : i32
    %c16_i32_102 = arith.constant 16 : i32
    %332 = arith.muli %c6_i32, %c16_i32_102 : i32
    %333 = tpu.assume_multiple %332, 16 : i32
    %c7_i32_103 = arith.constant 7 : i32
    %334 = arith.subi %c7_i32_103, %c6_i32 : i32
    %c16_i32_104 = arith.constant 16 : i32
    %335 = arith.muli %334, %c16_i32_104 : i32
    %336 = tpu.assume_multiple %335, 16 : i32
    %337 = arith.index_cast %333 : i32 to index
    %c0_105 = arith.constant 0 : index
    %338 = vector.load %arg15[%337, %c0_105] : memref<128x512xf32, #tpu.memory_space<vmem>>, vector<16x512xf32>
    %339 = arith.truncf %310 : vector<16x128xf32> to vector<16x128xbf16>
    %c0_106 = arith.constant 0 : index
    %c0_107 = arith.constant 0 : index
    %340 = vector.load %arg5[%c0_106, %c0_107] : memref<128x512xbf16, #tpu.memory_space<vmem>>, vector<128x512xbf16>
    %cst_108 = arith.constant dense<0.000000e+00> : vector<16x512xf32>
    %341 = tpu.matmul %339, %340, %cst_108 {dimension_numbers = #tpu.dot_dimension_numbers<[1], [0], [0], [1], [0, 0, 1, 1], [], []>} : vector<16x128xbf16>, vector<128x512xbf16>, vector<16x512xf32> -> vector<16x512xf32>
    %342 = arith.addf %338, %341 : vector<16x512xf32>
    %343 = arith.index_cast %336 : i32 to index
    %c0_109 = arith.constant 0 : index
    %344 = vector.load %arg16[%343, %c0_109] : memref<128x512xf32, #tpu.memory_space<vmem>>, vector<16x512xf32>
    %345 = arith.truncf %325 : vector<16x128xf32> to vector<16x128xbf16>
    %c0_110 = arith.constant 0 : index
    %c0_111 = arith.constant 0 : index
    %346 = vector.load %arg6[%c0_110, %c0_111] : memref<128x512xbf16, #tpu.memory_space<vmem>>, vector<128x512xbf16>
    %cst_112 = arith.constant dense<0.000000e+00> : vector<16x512xf32>
    %347 = tpu.matmul %345, %346, %cst_112 {dimension_numbers = #tpu.dot_dimension_numbers<[1], [0], [0], [1], [0, 0, 1, 1], [], []>} : vector<16x128xbf16>, vector<128x512xbf16>, vector<16x512xf32> -> vector<16x512xf32>
    %348 = arith.addf %344, %347 : vector<16x512xf32>
    %349 = arith.negf %342 : vector<16x512xf32>
    %350 = math.exp %349 : vector<16x512xf32>
    %cst_113 = arith.constant 1.000000e+00 : f32
    %351 = vector.broadcast %cst_113 : f32 to vector<16x512xf32>
    %352 = arith.addf %351, %350 : vector<16x512xf32>
    %353 = arith.divf %351, %352 : vector<16x512xf32>
    %354 = vector.extract_strided_slice %353 {offsets = [0, 0], sizes = [16, 128], strides = [1, 1]} : vector<16x512xf32> to vector<16x128xf32>
    %355 = vector.extract_strided_slice %353 {offsets = [0, 128], sizes = [16, 128], strides = [1, 1]} : vector<16x512xf32> to vector<16x128xf32>
    %356 = vector.extract_strided_slice %353 {offsets = [0, 384], sizes = [16, 128], strides = [1, 1]} : vector<16x512xf32> to vector<16x128xf32>
    %357 = vector.extract_strided_slice %342 {offsets = [0, 256], sizes = [16, 128], strides = [1, 1]} : vector<16x512xf32> to vector<16x128xf32>
    %358 = math.tanh %357 : vector<16x128xf32>
    %359 = arith.mulf %355, %308 : vector<16x128xf32>
    %360 = arith.mulf %354, %358 : vector<16x128xf32>
    %361 = arith.addf %359, %360 : vector<16x128xf32>
    %362 = math.tanh %361 : vector<16x128xf32>
    %363 = arith.mulf %356, %362 : vector<16x128xf32>
    %364 = arith.negf %348 : vector<16x512xf32>
    %365 = math.exp %364 : vector<16x512xf32>
    %cst_114 = arith.constant 1.000000e+00 : f32
    %366 = vector.broadcast %cst_114 : f32 to vector<16x512xf32>
    %367 = arith.addf %366, %365 : vector<16x512xf32>
    %368 = arith.divf %366, %367 : vector<16x512xf32>
    %369 = vector.extract_strided_slice %368 {offsets = [0, 0], sizes = [16, 128], strides = [1, 1]} : vector<16x512xf32> to vector<16x128xf32>
    %370 = vector.extract_strided_slice %368 {offsets = [0, 128], sizes = [16, 128], strides = [1, 1]} : vector<16x512xf32> to vector<16x128xf32>
    %371 = vector.extract_strided_slice %368 {offsets = [0, 384], sizes = [16, 128], strides = [1, 1]} : vector<16x512xf32> to vector<16x128xf32>
    %372 = vector.extract_strided_slice %348 {offsets = [0, 256], sizes = [16, 128], strides = [1, 1]} : vector<16x512xf32> to vector<16x128xf32>
    %373 = math.tanh %372 : vector<16x128xf32>
    %374 = arith.mulf %370, %323 : vector<16x128xf32>
    %375 = arith.mulf %369, %373 : vector<16x128xf32>
    %376 = arith.addf %374, %375 : vector<16x128xf32>
    %377 = math.tanh %376 : vector<16x128xf32>
    %378 = arith.mulf %371, %377 : vector<16x128xf32>
    %379 = arith.truncf %363 : vector<16x128xf32> to vector<16x128xbf16>
    %380 = arith.index_cast %333 : i32 to index
    %c0_115 = arith.constant 0 : index
    %381 = vector.load %arg17[%380, %c0_115] : memref<128x256xbf16, #tpu.memory_space<vmem>>, vector<16x128xbf16>
    tpu.vector_store %arg17[%380, %c0_115], %379 {strides = array<i32>} : memref<128x256xbf16, #tpu.memory_space<vmem>>, vector<16x128xbf16>,
    %382 = arith.truncf %378 : vector<16x128xf32> to vector<16x128xbf16>
    %383 = arith.index_cast %336 : i32 to index
    %c128_116 = arith.constant 128 : index
    %384 = vector.load %arg17[%383, %c128_116] : memref<128x256xbf16, #tpu.memory_space<vmem>>, vector<16x128xbf16>
    tpu.vector_store %arg17[%383, %c128_116], %382 {strides = array<i32>} : memref<128x256xbf16, #tpu.memory_space<vmem>>, vector<16x128xbf16>,
    %c7_i32_117 = arith.constant 7 : i32
    %c16_i32_118 = arith.constant 16 : i32
    %385 = arith.muli %c7_i32_117, %c16_i32_118 : i32
    %386 = tpu.assume_multiple %385, 16 : i32
    %c7_i32_119 = arith.constant 7 : i32
    %387 = arith.subi %c7_i32_119, %c7_i32_117 : i32
    %c16_i32_120 = arith.constant 16 : i32
    %388 = arith.muli %387, %c16_i32_120 : i32
    %389 = tpu.assume_multiple %388, 16 : i32
    %390 = arith.index_cast %386 : i32 to index
    %c0_121 = arith.constant 0 : index
    %391 = vector.load %arg15[%390, %c0_121] : memref<128x512xf32, #tpu.memory_space<vmem>>, vector<16x512xf32>
    %392 = arith.truncf %363 : vector<16x128xf32> to vector<16x128xbf16>
    %c0_122 = arith.constant 0 : index
    %c0_123 = arith.constant 0 : index
    %393 = vector.load %arg5[%c0_122, %c0_123] : memref<128x512xbf16, #tpu.memory_space<vmem>>, vector<128x512xbf16>
    %cst_124 = arith.constant dense<0.000000e+00> : vector<16x512xf32>
    %394 = tpu.matmul %392, %393, %cst_124 {dimension_numbers = #tpu.dot_dimension_numbers<[1], [0], [0], [1], [0, 0, 1, 1], [], []>} : vector<16x128xbf16>, vector<128x512xbf16>, vector<16x512xf32> -> vector<16x512xf32>
    %395 = arith.addf %391, %394 : vector<16x512xf32>
    %396 = arith.index_cast %389 : i32 to index
    %c0_125 = arith.constant 0 : index
    %397 = vector.load %arg16[%396, %c0_125] : memref<128x512xf32, #tpu.memory_space<vmem>>, vector<16x512xf32>
    %398 = arith.truncf %378 : vector<16x128xf32> to vector<16x128xbf16>
    %c0_126 = arith.constant 0 : index
    %c0_127 = arith.constant 0 : index
    %399 = vector.load %arg6[%c0_126, %c0_127] : memref<128x512xbf16, #tpu.memory_space<vmem>>, vector<128x512xbf16>
    %cst_128 = arith.constant dense<0.000000e+00> : vector<16x512xf32>
    %400 = tpu.matmul %398, %399, %cst_128 {dimension_numbers = #tpu.dot_dimension_numbers<[1], [0], [0], [1], [0, 0, 1, 1], [], []>} : vector<16x128xbf16>, vector<128x512xbf16>, vector<16x512xf32> -> vector<16x512xf32>
    %401 = arith.addf %397, %400 : vector<16x512xf32>
    %402 = arith.negf %395 : vector<16x512xf32>
    %403 = math.exp %402 : vector<16x512xf32>
    %cst_129 = arith.constant 1.000000e+00 : f32
    %404 = vector.broadcast %cst_129 : f32 to vector<16x512xf32>
    %405 = arith.addf %404, %403 : vector<16x512xf32>
    %406 = arith.divf %404, %405 : vector<16x512xf32>
    %407 = vector.extract_strided_slice %406 {offsets = [0, 0], sizes = [16, 128], strides = [1, 1]} : vector<16x512xf32> to vector<16x128xf32>
    %408 = vector.extract_strided_slice %406 {offsets = [0, 128], sizes = [16, 128], strides = [1, 1]} : vector<16x512xf32> to vector<16x128xf32>
    %409 = vector.extract_strided_slice %406 {offsets = [0, 384], sizes = [16, 128], strides = [1, 1]} : vector<16x512xf32> to vector<16x128xf32>
    %410 = vector.extract_strided_slice %395 {offsets = [0, 256], sizes = [16, 128], strides = [1, 1]} : vector<16x512xf32> to vector<16x128xf32>
    %411 = math.tanh %410 : vector<16x128xf32>
    %412 = arith.mulf %408, %361 : vector<16x128xf32>
    %413 = arith.mulf %407, %411 : vector<16x128xf32>
    %414 = arith.addf %412, %413 : vector<16x128xf32>
    %415 = math.tanh %414 : vector<16x128xf32>
    %416 = arith.mulf %409, %415 : vector<16x128xf32>
    %417 = arith.negf %401 : vector<16x512xf32>
    %418 = math.exp %417 : vector<16x512xf32>
    %cst_130 = arith.constant 1.000000e+00 : f32
    %419 = vector.broadcast %cst_130 : f32 to vector<16x512xf32>
    %420 = arith.addf %419, %418 : vector<16x512xf32>
    %421 = arith.divf %419, %420 : vector<16x512xf32>
    %422 = vector.extract_strided_slice %421 {offsets = [0, 0], sizes = [16, 128], strides = [1, 1]} : vector<16x512xf32> to vector<16x128xf32>
    %423 = vector.extract_strided_slice %421 {offsets = [0, 128], sizes = [16, 128], strides = [1, 1]} : vector<16x512xf32> to vector<16x128xf32>
    %424 = vector.extract_strided_slice %421 {offsets = [0, 384], sizes = [16, 128], strides = [1, 1]} : vector<16x512xf32> to vector<16x128xf32>
    %425 = vector.extract_strided_slice %401 {offsets = [0, 256], sizes = [16, 128], strides = [1, 1]} : vector<16x512xf32> to vector<16x128xf32>
    %426 = math.tanh %425 : vector<16x128xf32>
    %427 = arith.mulf %423, %376 : vector<16x128xf32>
    %428 = arith.mulf %422, %426 : vector<16x128xf32>
    %429 = arith.addf %427, %428 : vector<16x128xf32>
    %430 = math.tanh %429 : vector<16x128xf32>
    %431 = arith.mulf %424, %430 : vector<16x128xf32>
    %432 = arith.truncf %416 : vector<16x128xf32> to vector<16x128xbf16>
    %433 = arith.index_cast %386 : i32 to index
    %c0_131 = arith.constant 0 : index
    %434 = vector.load %arg17[%433, %c0_131] : memref<128x256xbf16, #tpu.memory_space<vmem>>, vector<16x128xbf16>
    tpu.vector_store %arg17[%433, %c0_131], %432 {strides = array<i32>} : memref<128x256xbf16, #tpu.memory_space<vmem>>, vector<16x128xbf16>,
    %435 = arith.truncf %431 : vector<16x128xf32> to vector<16x128xbf16>
    %436 = arith.index_cast %389 : i32 to index
    %c128_132 = arith.constant 128 : index
    %437 = vector.load %arg17[%436, %c128_132] : memref<128x256xbf16, #tpu.memory_space<vmem>>, vector<16x128xbf16>
    tpu.vector_store %arg17[%436, %c128_132], %435 {strides = array<i32>} : memref<128x256xbf16, #tpu.memory_space<vmem>>, vector<16x128xbf16>,
    %c8_i32 = arith.constant 8 : i32
    %c0_133 = arith.constant 0 : index
    %c0_134 = arith.constant 0 : index
    %438 = vector.load %arg17[%c0_133, %c0_134] : memref<128x256xbf16, #tpu.memory_space<vmem>>, vector<128x256xbf16>
    %c0_135 = arith.constant 0 : index
    %c0_136 = arith.constant 0 : index
    %439 = vector.load %arg7[%c0_135, %c0_136] : memref<256x512xbf16, #tpu.memory_space<vmem>>, vector<256x512xbf16>
    %cst_137 = arith.constant dense<0.000000e+00> : vector<128x512xf32>
    %440 = tpu.matmul %438, %439, %cst_137 {dimension_numbers = #tpu.dot_dimension_numbers<[1], [0], [0], [1], [0, 0, 1, 1], [], []>} : vector<128x256xbf16>, vector<256x512xbf16>, vector<128x512xf32> -> vector<128x512xf32>
    %c0_138 = arith.constant 0 : index
    %c0_139 = arith.constant 0 : index
    %441 = vector.load %arg9[%c0_138, %c0_139] : memref<1x512xf32, #tpu.memory_space<vmem>>, vector<1x512xf32>
    %442 = vector.broadcast %441 : vector<1x512xf32> to vector<128x512xf32>
    %443 = arith.addf %440, %442 : vector<128x512xf32>
    %c0_140 = arith.constant 0 : index
    %c0_141 = arith.constant 0 : index
    %444 = vector.load %arg15[%c0_140, %c0_141] : memref<128x512xf32, #tpu.memory_space<vmem>>, vector<128x512xf32>
    tpu.vector_store %arg15[%c0_140, %c0_141], %443 {strides = array<i32>} : memref<128x512xf32, #tpu.memory_space<vmem>>, vector<128x512xf32>,
    %c0_i32_142 = arith.constant 0 : i32
    %c16_i32_143 = arith.constant 16 : i32
    %445 = arith.muli %c0_i32_142, %c16_i32_143 : i32
    %446 = tpu.assume_multiple %445, 16 : i32
    %447 = arith.index_cast %446 : i32 to index
    %c0_144 = arith.constant 0 : index
    %448 = vector.load %arg15[%447, %c0_144] : memref<128x512xf32, #tpu.memory_space<vmem>>, vector<16x512xf32>
    %449 = arith.truncf %0 : vector<16x128xf32> to vector<16x128xbf16>
    %c0_145 = arith.constant 0 : index
    %c0_146 = arith.constant 0 : index
    %450 = vector.load %arg8[%c0_145, %c0_146] : memref<128x512xbf16, #tpu.memory_space<vmem>>, vector<128x512xbf16>
    %cst_147 = arith.constant dense<0.000000e+00> : vector<16x512xf32>
    %451 = tpu.matmul %449, %450, %cst_147 {dimension_numbers = #tpu.dot_dimension_numbers<[1], [0], [0], [1], [0, 0, 1, 1], [], []>} : vector<16x128xbf16>, vector<128x512xbf16>, vector<16x512xf32> -> vector<16x512xf32>
    %452 = arith.addf %448, %451 : vector<16x512xf32>
    %453 = arith.negf %452 : vector<16x512xf32>
    %454 = math.exp %453 : vector<16x512xf32>
    %cst_148 = arith.constant 1.000000e+00 : f32
    %455 = vector.broadcast %cst_148 : f32 to vector<16x512xf32>
    %456 = arith.addf %455, %454 : vector<16x512xf32>
    %457 = arith.divf %455, %456 : vector<16x512xf32>
    %458 = vector.extract_strided_slice %457 {offsets = [0, 0], sizes = [16, 128], strides = [1, 1]} : vector<16x512xf32> to vector<16x128xf32>
    %459 = vector.extract_strided_slice %457 {offsets = [0, 128], sizes = [16, 128], strides = [1, 1]} : vector<16x512xf32> to vector<16x128xf32>
    %460 = vector.extract_strided_slice %457 {offsets = [0, 384], sizes = [16, 128], strides = [1, 1]} : vector<16x512xf32> to vector<16x128xf32>
    %461 = vector.extract_strided_slice %452 {offsets = [0, 256], sizes = [16, 128], strides = [1, 1]} : vector<16x512xf32> to vector<16x128xf32>
    %462 = math.tanh %461 : vector<16x128xf32>
    %463 = arith.mulf %459, %0 : vector<16x128xf32>
    %464 = arith.mulf %458, %462 : vector<16x128xf32>
    %465 = arith.addf %463, %464 : vector<16x128xf32>
    %466 = math.tanh %465 : vector<16x128xf32>
    %467 = arith.mulf %460, %466 : vector<16x128xf32>
    %c1_i32_149 = arith.constant 1 : i32
    %c16_i32_150 = arith.constant 16 : i32
    %468 = arith.muli %c1_i32_149, %c16_i32_150 : i32
    %469 = tpu.assume_multiple %468, 16 : i32
    %470 = arith.index_cast %469 : i32 to index
    %c0_151 = arith.constant 0 : index
    %471 = vector.load %arg15[%470, %c0_151] : memref<128x512xf32, #tpu.memory_space<vmem>>, vector<16x512xf32>
    %472 = arith.truncf %467 : vector<16x128xf32> to vector<16x128xbf16>
    %c0_152 = arith.constant 0 : index
    %c0_153 = arith.constant 0 : index
    %473 = vector.load %arg8[%c0_152, %c0_153] : memref<128x512xbf16, #tpu.memory_space<vmem>>, vector<128x512xbf16>
    %cst_154 = arith.constant dense<0.000000e+00> : vector<16x512xf32>
    %474 = tpu.matmul %472, %473, %cst_154 {dimension_numbers = #tpu.dot_dimension_numbers<[1], [0], [0], [1], [0, 0, 1, 1], [], []>} : vector<16x128xbf16>, vector<128x512xbf16>, vector<16x512xf32> -> vector<16x512xf32>
    %475 = arith.addf %471, %474 : vector<16x512xf32>
    %476 = arith.negf %475 : vector<16x512xf32>
    %477 = math.exp %476 : vector<16x512xf32>
    %cst_155 = arith.constant 1.000000e+00 : f32
    %478 = vector.broadcast %cst_155 : f32 to vector<16x512xf32>
    %479 = arith.addf %478, %477 : vector<16x512xf32>
    %480 = arith.divf %478, %479 : vector<16x512xf32>
    %481 = vector.extract_strided_slice %480 {offsets = [0, 0], sizes = [16, 128], strides = [1, 1]} : vector<16x512xf32> to vector<16x128xf32>
    %482 = vector.extract_strided_slice %480 {offsets = [0, 128], sizes = [16, 128], strides = [1, 1]} : vector<16x512xf32> to vector<16x128xf32>
    %483 = vector.extract_strided_slice %480 {offsets = [0, 384], sizes = [16, 128], strides = [1, 1]} : vector<16x512xf32> to vector<16x128xf32>
    %484 = vector.extract_strided_slice %475 {offsets = [0, 256], sizes = [16, 128], strides = [1, 1]} : vector<16x512xf32> to vector<16x128xf32>
    %485 = math.tanh %484 : vector<16x128xf32>
    %486 = arith.mulf %482, %465 : vector<16x128xf32>
    %487 = arith.mulf %481, %485 : vector<16x128xf32>
    %488 = arith.addf %486, %487 : vector<16x128xf32>
    %489 = math.tanh %488 : vector<16x128xf32>
    %490 = arith.mulf %483, %489 : vector<16x128xf32>
    %c2_i32_156 = arith.constant 2 : i32
    %c16_i32_157 = arith.constant 16 : i32
    %491 = arith.muli %c2_i32_156, %c16_i32_157 : i32
    %492 = tpu.assume_multiple %491, 16 : i32
    %493 = arith.index_cast %492 : i32 to index
    %c0_158 = arith.constant 0 : index
    %494 = vector.load %arg15[%493, %c0_158] : memref<128x512xf32, #tpu.memory_space<vmem>>, vector<16x512xf32>
    %495 = arith.truncf %490 : vector<16x128xf32> to vector<16x128xbf16>
    %c0_159 = arith.constant 0 : index
    %c0_160 = arith.constant 0 : index
    %496 = vector.load %arg8[%c0_159, %c0_160] : memref<128x512xbf16, #tpu.memory_space<vmem>>, vector<128x512xbf16>
    %cst_161 = arith.constant dense<0.000000e+00> : vector<16x512xf32>
    %497 = tpu.matmul %495, %496, %cst_161 {dimension_numbers = #tpu.dot_dimension_numbers<[1], [0], [0], [1], [0, 0, 1, 1], [], []>} : vector<16x128xbf16>, vector<128x512xbf16>, vector<16x512xf32> -> vector<16x512xf32>
    %498 = arith.addf %494, %497 : vector<16x512xf32>
    %499 = arith.negf %498 : vector<16x512xf32>
    %500 = math.exp %499 : vector<16x512xf32>
    %cst_162 = arith.constant 1.000000e+00 : f32
    %501 = vector.broadcast %cst_162 : f32 to vector<16x512xf32>
    %502 = arith.addf %501, %500 : vector<16x512xf32>
    %503 = arith.divf %501, %502 : vector<16x512xf32>
    %504 = vector.extract_strided_slice %503 {offsets = [0, 0], sizes = [16, 128], strides = [1, 1]} : vector<16x512xf32> to vector<16x128xf32>
    %505 = vector.extract_strided_slice %503 {offsets = [0, 128], sizes = [16, 128], strides = [1, 1]} : vector<16x512xf32> to vector<16x128xf32>
    %506 = vector.extract_strided_slice %503 {offsets = [0, 384], sizes = [16, 128], strides = [1, 1]} : vector<16x512xf32> to vector<16x128xf32>
    %507 = vector.extract_strided_slice %498 {offsets = [0, 256], sizes = [16, 128], strides = [1, 1]} : vector<16x512xf32> to vector<16x128xf32>
    %508 = math.tanh %507 : vector<16x128xf32>
    %509 = arith.mulf %505, %488 : vector<16x128xf32>
    %510 = arith.mulf %504, %508 : vector<16x128xf32>
    %511 = arith.addf %509, %510 : vector<16x128xf32>
    %512 = math.tanh %511 : vector<16x128xf32>
    %513 = arith.mulf %506, %512 : vector<16x128xf32>
    %c3_i32_163 = arith.constant 3 : i32
    %c16_i32_164 = arith.constant 16 : i32
    %514 = arith.muli %c3_i32_163, %c16_i32_164 : i32
    %515 = tpu.assume_multiple %514, 16 : i32
    %516 = arith.index_cast %515 : i32 to index
    %c0_165 = arith.constant 0 : index
    %517 = vector.load %arg15[%516, %c0_165] : memref<128x512xf32, #tpu.memory_space<vmem>>, vector<16x512xf32>
    %518 = arith.truncf %513 : vector<16x128xf32> to vector<16x128xbf16>
    %c0_166 = arith.constant 0 : index
    %c0_167 = arith.constant 0 : index
    %519 = vector.load %arg8[%c0_166, %c0_167] : memref<128x512xbf16, #tpu.memory_space<vmem>>, vector<128x512xbf16>
    %cst_168 = arith.constant dense<0.000000e+00> : vector<16x512xf32>
    %520 = tpu.matmul %518, %519, %cst_168 {dimension_numbers = #tpu.dot_dimension_numbers<[1], [0], [0], [1], [0, 0, 1, 1], [], []>} : vector<16x128xbf16>, vector<128x512xbf16>, vector<16x512xf32> -> vector<16x512xf32>
    %521 = arith.addf %517, %520 : vector<16x512xf32>
    %522 = arith.negf %521 : vector<16x512xf32>
    %523 = math.exp %522 : vector<16x512xf32>
    %cst_169 = arith.constant 1.000000e+00 : f32
    %524 = vector.broadcast %cst_169 : f32 to vector<16x512xf32>
    %525 = arith.addf %524, %523 : vector<16x512xf32>
    %526 = arith.divf %524, %525 : vector<16x512xf32>
    %527 = vector.extract_strided_slice %526 {offsets = [0, 0], sizes = [16, 128], strides = [1, 1]} : vector<16x512xf32> to vector<16x128xf32>
    %528 = vector.extract_strided_slice %526 {offsets = [0, 128], sizes = [16, 128], strides = [1, 1]} : vector<16x512xf32> to vector<16x128xf32>
    %529 = vector.extract_strided_slice %526 {offsets = [0, 384], sizes = [16, 128], strides = [1, 1]} : vector<16x512xf32> to vector<16x128xf32>
    %530 = vector.extract_strided_slice %521 {offsets = [0, 256], sizes = [16, 128], strides = [1, 1]} : vector<16x512xf32> to vector<16x128xf32>
    %531 = math.tanh %530 : vector<16x128xf32>
    %532 = arith.mulf %528, %511 : vector<16x128xf32>
    %533 = arith.mulf %527, %531 : vector<16x128xf32>
    %534 = arith.addf %532, %533 : vector<16x128xf32>
    %535 = math.tanh %534 : vector<16x128xf32>
    %536 = arith.mulf %529, %535 : vector<16x128xf32>
    %c4_i32_170 = arith.constant 4 : i32
    %c16_i32_171 = arith.constant 16 : i32
    %537 = arith.muli %c4_i32_170, %c16_i32_171 : i32
    %538 = tpu.assume_multiple %537, 16 : i32
    %539 = arith.index_cast %538 : i32 to index
    %c0_172 = arith.constant 0 : index
    %540 = vector.load %arg15[%539, %c0_172] : memref<128x512xf32, #tpu.memory_space<vmem>>, vector<16x512xf32>
    %541 = arith.truncf %536 : vector<16x128xf32> to vector<16x128xbf16>
    %c0_173 = arith.constant 0 : index
    %c0_174 = arith.constant 0 : index
    %542 = vector.load %arg8[%c0_173, %c0_174] : memref<128x512xbf16, #tpu.memory_space<vmem>>, vector<128x512xbf16>
    %cst_175 = arith.constant dense<0.000000e+00> : vector<16x512xf32>
    %543 = tpu.matmul %541, %542, %cst_175 {dimension_numbers = #tpu.dot_dimension_numbers<[1], [0], [0], [1], [0, 0, 1, 1], [], []>} : vector<16x128xbf16>, vector<128x512xbf16>, vector<16x512xf32> -> vector<16x512xf32>
    %544 = arith.addf %540, %543 : vector<16x512xf32>
    %545 = arith.negf %544 : vector<16x512xf32>
    %546 = math.exp %545 : vector<16x512xf32>
    %cst_176 = arith.constant 1.000000e+00 : f32
    %547 = vector.broadcast %cst_176 : f32 to vector<16x512xf32>
    %548 = arith.addf %547, %546 : vector<16x512xf32>
    %549 = arith.divf %547, %548 : vector<16x512xf32>
    %550 = vector.extract_strided_slice %549 {offsets = [0, 0], sizes = [16, 128], strides = [1, 1]} : vector<16x512xf32> to vector<16x128xf32>
    %551 = vector.extract_strided_slice %549 {offsets = [0, 128], sizes = [16, 128], strides = [1, 1]} : vector<16x512xf32> to vector<16x128xf32>
    %552 = vector.extract_strided_slice %549 {offsets = [0, 384], sizes = [16, 128], strides = [1, 1]} : vector<16x512xf32> to vector<16x128xf32>
    %553 = vector.extract_strided_slice %544 {offsets = [0, 256], sizes = [16, 128], strides = [1, 1]} : vector<16x512xf32> to vector<16x128xf32>
    %554 = math.tanh %553 : vector<16x128xf32>
    %555 = arith.mulf %551, %534 : vector<16x128xf32>
    %556 = arith.mulf %550, %554 : vector<16x128xf32>
    %557 = arith.addf %555, %556 : vector<16x128xf32>
    %558 = math.tanh %557 : vector<16x128xf32>
    %559 = arith.mulf %552, %558 : vector<16x128xf32>
    %c5_i32_177 = arith.constant 5 : i32
    %c16_i32_178 = arith.constant 16 : i32
    %560 = arith.muli %c5_i32_177, %c16_i32_178 : i32
    %561 = tpu.assume_multiple %560, 16 : i32
    %562 = arith.index_cast %561 : i32 to index
    %c0_179 = arith.constant 0 : index
    %563 = vector.load %arg15[%562, %c0_179] : memref<128x512xf32, #tpu.memory_space<vmem>>, vector<16x512xf32>
    %564 = arith.truncf %559 : vector<16x128xf32> to vector<16x128xbf16>
    %c0_180 = arith.constant 0 : index
    %c0_181 = arith.constant 0 : index
    %565 = vector.load %arg8[%c0_180, %c0_181] : memref<128x512xbf16, #tpu.memory_space<vmem>>, vector<128x512xbf16>
    %cst_182 = arith.constant dense<0.000000e+00> : vector<16x512xf32>
    %566 = tpu.matmul %564, %565, %cst_182 {dimension_numbers = #tpu.dot_dimension_numbers<[1], [0], [0], [1], [0, 0, 1, 1], [], []>} : vector<16x128xbf16>, vector<128x512xbf16>, vector<16x512xf32> -> vector<16x512xf32>
    %567 = arith.addf %563, %566 : vector<16x512xf32>
    %568 = arith.negf %567 : vector<16x512xf32>
    %569 = math.exp %568 : vector<16x512xf32>
    %cst_183 = arith.constant 1.000000e+00 : f32
    %570 = vector.broadcast %cst_183 : f32 to vector<16x512xf32>
    %571 = arith.addf %570, %569 : vector<16x512xf32>
    %572 = arith.divf %570, %571 : vector<16x512xf32>
    %573 = vector.extract_strided_slice %572 {offsets = [0, 0], sizes = [16, 128], strides = [1, 1]} : vector<16x512xf32> to vector<16x128xf32>
    %574 = vector.extract_strided_slice %572 {offsets = [0, 128], sizes = [16, 128], strides = [1, 1]} : vector<16x512xf32> to vector<16x128xf32>
    %575 = vector.extract_strided_slice %572 {offsets = [0, 384], sizes = [16, 128], strides = [1, 1]} : vector<16x512xf32> to vector<16x128xf32>
    %576 = vector.extract_strided_slice %567 {offsets = [0, 256], sizes = [16, 128], strides = [1, 1]} : vector<16x512xf32> to vector<16x128xf32>
    %577 = math.tanh %576 : vector<16x128xf32>
    %578 = arith.mulf %574, %557 : vector<16x128xf32>
    %579 = arith.mulf %573, %577 : vector<16x128xf32>
    %580 = arith.addf %578, %579 : vector<16x128xf32>
    %581 = math.tanh %580 : vector<16x128xf32>
    %582 = arith.mulf %575, %581 : vector<16x128xf32>
    %c6_i32_184 = arith.constant 6 : i32
    %c16_i32_185 = arith.constant 16 : i32
    %583 = arith.muli %c6_i32_184, %c16_i32_185 : i32
    %584 = tpu.assume_multiple %583, 16 : i32
    %585 = arith.index_cast %584 : i32 to index
    %c0_186 = arith.constant 0 : index
    %586 = vector.load %arg15[%585, %c0_186] : memref<128x512xf32, #tpu.memory_space<vmem>>, vector<16x512xf32>
    %587 = arith.truncf %582 : vector<16x128xf32> to vector<16x128xbf16>
    %c0_187 = arith.constant 0 : index
    %c0_188 = arith.constant 0 : index
    %588 = vector.load %arg8[%c0_187, %c0_188] : memref<128x512xbf16, #tpu.memory_space<vmem>>, vector<128x512xbf16>
    %cst_189 = arith.constant dense<0.000000e+00> : vector<16x512xf32>
    %589 = tpu.matmul %587, %588, %cst_189 {dimension_numbers = #tpu.dot_dimension_numbers<[1], [0], [0], [1], [0, 0, 1, 1], [], []>} : vector<16x128xbf16>, vector<128x512xbf16>, vector<16x512xf32> -> vector<16x512xf32>
    %590 = arith.addf %586, %589 : vector<16x512xf32>
    %591 = arith.negf %590 : vector<16x512xf32>
    %592 = math.exp %591 : vector<16x512xf32>
    %cst_190 = arith.constant 1.000000e+00 : f32
    %593 = vector.broadcast %cst_190 : f32 to vector<16x512xf32>
    %594 = arith.addf %593, %592 : vector<16x512xf32>
    %595 = arith.divf %593, %594 : vector<16x512xf32>
    %596 = vector.extract_strided_slice %595 {offsets = [0, 0], sizes = [16, 128], strides = [1, 1]} : vector<16x512xf32> to vector<16x128xf32>
    %597 = vector.extract_strided_slice %595 {offsets = [0, 128], sizes = [16, 128], strides = [1, 1]} : vector<16x512xf32> to vector<16x128xf32>
    %598 = vector.extract_strided_slice %595 {offsets = [0, 384], sizes = [16, 128], strides = [1, 1]} : vector<16x512xf32> to vector<16x128xf32>
    %599 = vector.extract_strided_slice %590 {offsets = [0, 256], sizes = [16, 128], strides = [1, 1]} : vector<16x512xf32> to vector<16x128xf32>
    %600 = math.tanh %599 : vector<16x128xf32>
    %601 = arith.mulf %597, %580 : vector<16x128xf32>
    %602 = arith.mulf %596, %600 : vector<16x128xf32>
    %603 = arith.addf %601, %602 : vector<16x128xf32>
    %604 = math.tanh %603 : vector<16x128xf32>
    %605 = arith.mulf %598, %604 : vector<16x128xf32>
    %c7_i32_191 = arith.constant 7 : i32
    %c16_i32_192 = arith.constant 16 : i32
    %606 = arith.muli %c7_i32_191, %c16_i32_192 : i32
    %607 = tpu.assume_multiple %606, 16 : i32
    %608 = arith.index_cast %607 : i32 to index
    %c0_193 = arith.constant 0 : index
    %609 = vector.load %arg15[%608, %c0_193] : memref<128x512xf32, #tpu.memory_space<vmem>>, vector<16x512xf32>
    %610 = arith.truncf %605 : vector<16x128xf32> to vector<16x128xbf16>
    %c0_194 = arith.constant 0 : index
    %c0_195 = arith.constant 0 : index
    %611 = vector.load %arg8[%c0_194, %c0_195] : memref<128x512xbf16, #tpu.memory_space<vmem>>, vector<128x512xbf16>
    %cst_196 = arith.constant dense<0.000000e+00> : vector<16x512xf32>
    %612 = tpu.matmul %610, %611, %cst_196 {dimension_numbers = #tpu.dot_dimension_numbers<[1], [0], [0], [1], [0, 0, 1, 1], [], []>} : vector<16x128xbf16>, vector<128x512xbf16>, vector<16x512xf32> -> vector<16x512xf32>
    %613 = arith.addf %609, %612 : vector<16x512xf32>
    %614 = arith.negf %613 : vector<16x512xf32>
    %615 = math.exp %614 : vector<16x512xf32>
    %cst_197 = arith.constant 1.000000e+00 : f32
    %616 = vector.broadcast %cst_197 : f32 to vector<16x512xf32>
    %617 = arith.addf %616, %615 : vector<16x512xf32>
    %618 = arith.divf %616, %617 : vector<16x512xf32>
    %619 = vector.extract_strided_slice %618 {offsets = [0, 0], sizes = [16, 128], strides = [1, 1]} : vector<16x512xf32> to vector<16x128xf32>
    %620 = vector.extract_strided_slice %618 {offsets = [0, 128], sizes = [16, 128], strides = [1, 1]} : vector<16x512xf32> to vector<16x128xf32>
    %621 = vector.extract_strided_slice %618 {offsets = [0, 384], sizes = [16, 128], strides = [1, 1]} : vector<16x512xf32> to vector<16x128xf32>
    %622 = vector.extract_strided_slice %613 {offsets = [0, 256], sizes = [16, 128], strides = [1, 1]} : vector<16x512xf32> to vector<16x128xf32>
    %623 = math.tanh %622 : vector<16x128xf32>
    %624 = arith.mulf %620, %603 : vector<16x128xf32>
    %625 = arith.mulf %619, %623 : vector<16x128xf32>
    %626 = arith.addf %624, %625 : vector<16x128xf32>
    %627 = math.tanh %626 : vector<16x128xf32>
    %628 = arith.mulf %621, %627 : vector<16x128xf32>
    %c8_i32_198 = arith.constant 8 : i32
    %c112_i32 = arith.constant 112 : i32
    %629 = tpu.assume_multiple %c112_i32, 16 : i32
    %630 = arith.index_cast %629 : i32 to index
    %c0_199 = arith.constant 0 : index
    %631 = vector.load %arg17[%630, %c0_199] : memref<128x256xbf16, #tpu.memory_space<vmem>>, vector<16x256xbf16>
    %c0_200 = arith.constant 0 : index
    %c0_201 = arith.constant 0 : index
    %632 = vector.load %arg10[%c0_200, %c0_201] : memref<256x512xbf16, #tpu.memory_space<vmem>>, vector<256x512xbf16>
    %cst_202 = arith.constant dense<0.000000e+00> : vector<16x512xf32>
    %633 = tpu.matmul %631, %632, %cst_202 {dimension_numbers = #tpu.dot_dimension_numbers<[1], [0], [0], [1], [0, 0, 1, 1], [], []>} : vector<16x256xbf16>, vector<256x512xbf16>, vector<16x512xf32> -> vector<16x512xf32>
    %c0_203 = arith.constant 0 : index
    %c0_204 = arith.constant 0 : index
    %634 = vector.load %arg11[%c0_203, %c0_204] : memref<1x512xf32, #tpu.memory_space<vmem>>, vector<1x512xf32>
    %635 = vector.broadcast %634 : vector<1x512xf32> to vector<16x512xf32>
    %636 = arith.addf %633, %635 : vector<16x512xf32>
    %637 = arith.negf %636 : vector<16x512xf32>
    %638 = math.exp %637 : vector<16x512xf32>
    %cst_205 = arith.constant 1.000000e+00 : f32
    %639 = vector.broadcast %cst_205 : f32 to vector<16x512xf32>
    %640 = arith.addf %639, %638 : vector<16x512xf32>
    %641 = arith.divf %639, %640 : vector<16x512xf32>
    %642 = vector.extract_strided_slice %641 {offsets = [0, 0], sizes = [16, 128], strides = [1, 1]} : vector<16x512xf32> to vector<16x128xf32>
    %643 = vector.extract_strided_slice %641 {offsets = [0, 128], sizes = [16, 128], strides = [1, 1]} : vector<16x512xf32> to vector<16x128xf32>
    %644 = vector.extract_strided_slice %641 {offsets = [0, 384], sizes = [16, 128], strides = [1, 1]} : vector<16x512xf32> to vector<16x128xf32>
    %645 = vector.extract_strided_slice %636 {offsets = [0, 256], sizes = [16, 128], strides = [1, 1]} : vector<16x512xf32> to vector<16x128xf32>
    %646 = math.tanh %645 : vector<16x128xf32>
    %647 = arith.mulf %643, %0 : vector<16x128xf32>
    %648 = arith.mulf %642, %646 : vector<16x128xf32>
    %649 = arith.addf %647, %648 : vector<16x128xf32>
    %650 = math.tanh %649 : vector<16x128xf32>
    %651 = arith.mulf %644, %650 : vector<16x128xf32>
    %652 = arith.truncf %628 : vector<16x128xf32> to vector<16x128xbf16>
    %653 = arith.truncf %651 : vector<16x128xf32> to vector<16x128xbf16>
    %654 = tpu.concatenate %652, %653 in 1 : vector<16x128xbf16>, vector<16x128xbf16> -> vector<16x256xbf16>
    %c0_206 = arith.constant 0 : index
    %c0_207 = arith.constant 0 : index
    %655 = vector.load %arg12[%c0_206, %c0_207] : memref<256x10xbf16, #tpu.memory_space<vmem>>, vector<256x10xbf16>
    %cst_208 = arith.constant dense<0.000000e+00> : vector<16x10xf32>
    %656 = tpu.matmul %654, %655, %cst_208 {dimension_numbers = #tpu.dot_dimension_numbers<[1], [0], [0], [1], [0, 0, 1, 1], [], []>} : vector<16x256xbf16>, vector<256x10xbf16>, vector<16x10xf32> -> vector<16x10xf32>
    %c0_209 = arith.constant 0 : index
    %c0_210 = arith.constant 0 : index
    %657 = vector.load %arg13[%c0_209, %c0_210] : memref<1x10xf32, #tpu.memory_space<vmem>>, vector<1x10xf32>
    %658 = vector.broadcast %657 : vector<1x10xf32> to vector<16x10xf32>
    %659 = arith.addf %656, %658 : vector<16x10xf32>
    %c0_211 = arith.constant 0 : index
    %c0_212 = arith.constant 0 : index
    %660 = vector.load %arg14[%c0_211, %c0_212] : memref<16x10xf32, #tpu.memory_space<vmem>>, vector<16x10xf32>
    tpu.vector_store %arg14[%c0_211, %c0_212], %659 {strides = array<i32>} : memref<16x10xf32, #tpu.memory_space<vmem>>, vector<16x10xf32>,
    return
  }
}

</mosaic_0001>

<llo_original>
// kernel: tpu_custom_call.1
$region0: #{tpu_custom_call.1}
  #allocation0 [shape = 'u32[]', space=smem, size = 0x4, offset = 0x4, fixed_abs, tag = 'smem constant byte address 0x4 - core index']
  #allocation1 [shape = 'u32[72,128]{1,0:T(1,128)}', space=vmem, size = 0x9000, scoped, tag = 'internal scratch']
  #allocation2 [shape = 'f32[128,512]{1,0:T(8,128)}', space=vmem, size = 0x40000, scoped, tag = 'scratch operand']
  #allocation3 [shape = 'f32[128,512]{1,0:T(8,128)}', space=vmem, size = 0x40000, scoped, tag = 'scratch operand']
  #allocation4 [shape = 'bf16[128,256]{1,0:T(8,128)(2,1)}', space=vmem, size = 0x10000, scoped, tag = 'scratch operand']
  %s0 = inlined_call_operand.vmem [shape: bf16[128,28], index: 0, kind: input, shape index: {}]
  %s1 = inlined_call_operand.vmem [shape: bf16[28,512], index: 1, kind: input, shape index: {}]
  %s2 = inlined_call_operand.vmem [shape: bf16[28,512], index: 2, kind: input, shape index: {}]
  %s3 = inlined_call_operand.vmem [shape: f32[1,512], index: 3, kind: input, shape index: {}]
  %s4 = inlined_call_operand.vmem [shape: f32[1,512], index: 4, kind: input, shape index: {}]
  %s5 = inlined_call_operand.hbm [shape: bf16[128,512], index: 5, kind: input, shape index: {}]
  %s6 = inlined_call_operand.hbm [shape: bf16[128,512], index: 6, kind: input, shape index: {}]
  %s7 = inlined_call_operand.hbm [shape: bf16[256,512], index: 7, kind: input, shape index: {}]
  %s8 = inlined_call_operand.hbm [shape: bf16[128,512], index: 8, kind: input, shape index: {}]
  %s9 = inlined_call_operand.vmem [shape: f32[1,512], index: 9, kind: input, shape index: {}]
  %s10 = inlined_call_operand.hbm [shape: bf16[256,512], index: 10, kind: input, shape index: {}]
  %s11 = inlined_call_operand.vmem [shape: f32[1,512], index: 11, kind: input, shape index: {}]
  %s12 = inlined_call_operand.vmem [shape: bf16[256,10], index: 12, kind: input, shape index: {}]
  %s13 = inlined_call_operand.vmem [shape: f32[1,10], index: 13, kind: input, shape index: {}]
  %s14 = inlined_call_operand.hbm [shape: f32[16,10], index: 14, kind: output, shape index: {}]
  %s15 = sld [smem:[#allocation0]]
  $region86: #{tpu_custom_call.1} parent=0
    _
  %s17 = ssub.s32 1, %s15
  %s18 = scalar_select 0, %s17, %s15
  $region1: #{tpu_custom_call.1} parent=0
    #allocation5 [shape = 'u8[131072]{0}', space=vmem, size = 0x20000, scoped, tag = 'input window, operand 5, single buffered']
    #allocation6 [shape = 's32[1]{0}', space=sflag, size = 0x4, scoped, tag = 'scoped memory for tpu_custom_call.1']
    #allocation7 [shape = 's32[1]{0}', space=sflag, size = 0x4, scoped, tag = 'scoped memory for tpu_custom_call.1']
    #allocation8 [shape = 'u8[131072]{0}', space=vmem, size = 0x20000, scoped, tag = 'input window, operand 6, single buffered']
    #allocation9 [shape = 's32[1]{0}', space=sflag, size = 0x4, scoped, tag = 'scoped memory for tpu_custom_call.1']
    #allocation10 [shape = 'u8[262144]{0}', space=vmem, size = 0x40000, scoped, tag = 'input window, operand 7, single buffered']
    #allocation11 [shape = 'u8[131072]{0}', space=vmem, size = 0x20000, scoped, tag = 'input window, operand 8, single buffered']
    #allocation12 [shape = 's32[1]{0}', space=sflag, size = 0x4, scoped, tag = 'scoped memory for tpu_custom_call.1']
    #allocation13 [shape = 'u8[262144]{0}', space=vmem, size = 0x40000, scoped, tag = 'input window, operand 10, single buffered']
    #allocation14 [shape = 'u8[8192]{0}', space=vmem, size = 0x2000, scoped, tag = 'output window, operand 0, single buffered']
    %19 = vsyncpa [#allocation6], 0
    %20 = vsyncpa [#allocation9], 0
    %21 = vsyncpa [#allocation12], 0
    %22 = vsyncpa [#allocation7], 0
    // Predicated region
    $region2: #{tpu_custom_call.1} parent=1 // pred_check
      _
    $region3: #{tpu_custom_call.1} parent=1 // pred_check_branch
      %24 = sbr.rel (0) target = $region5
    $region4: #{tpu_custom_call.1} parent=1 // pred_region
      _
    $region5: #{tpu_custom_call.1} parent=1 // pred_fallthru
      _
    // Predicated region
    $region6: #{tpu_custom_call.1} parent=1 // pred_check
      _
    $region7: #{tpu_custom_call.1} parent=1 // pred_check_branch
      %26 = sbr.rel (0) target = $region9
    $region8: #{tpu_custom_call.1} parent=1 // pred_region
      _
    $region9: #{tpu_custom_call.1} parent=1 // pred_fallthru
      _
    // Predicated region
    $region10: #{tpu_custom_call.1} parent=1 // pred_check
      _
    $region11: #{tpu_custom_call.1} parent=1 // pred_check_branch
      %28 = sbr.rel (0) target = $region13
    $region12: #{tpu_custom_call.1} parent=1 // pred_region
      _
    $region13: #{tpu_custom_call.1} parent=1 // pred_fallthru
      _
    // Predicated region
    $region14: #{tpu_custom_call.1} parent=1 // pred_check
      _
    $region15: #{tpu_custom_call.1} parent=1 // pred_check_branch
      %30 = sbr.rel (0) target = $region17
    $region16: #{tpu_custom_call.1} parent=1 // pred_region
      _
    $region17: #{tpu_custom_call.1} parent=1 // pred_fallthru
      _
    // Predicated region
    $region18: #{tpu_custom_call.1} parent=1 // pred_check
      _
    $region19: #{tpu_custom_call.1} parent=1 // pred_check_branch
      %32 = sbr.rel (0) target = $region21
    $region20: #{tpu_custom_call.1} parent=1 // pred_region
      _
    $region21: #{tpu_custom_call.1} parent=1 // pred_fallthru
      _
    // Predicated region
    $region22: #{tpu_custom_call.1} parent=1 // pred_check
      _
    $region23: #{tpu_custom_call.1} parent=1 // pred_check_branch
      %34 = sbr.rel (0) target = $region25
    $region24: #{tpu_custom_call.1} parent=1 // pred_region
      %36 = vsyncadd [#allocation6], 0
      %s37 = sshll.u32 %s5, 4
      %s38 = int_to_ptr.hbm [resolvable:$true] %s37
      %s39 = sshll.u32 [#allocation5], 4
      %s40 = int_to_ptr.vmem [resolvable:$true] %s39
      %45 = dma.hbm_to_vmem [thread:$0]  %s38, 4096, %s40, [#allocation6], 256, 256, 16
    $region25: #{tpu_custom_call.1} parent=1 // pred_fallthru
      _
    // Predicated region
    $region26: #{tpu_custom_call.1} parent=1 // pred_check
      _
    $region27: #{tpu_custom_call.1} parent=1 // pred_check_branch
      %47 = sbr.rel (0) target = $region29
    $region28: #{tpu_custom_call.1} parent=1 // pred_region
      %49 = vsyncadd [#allocation9], 0
      %s50 = sshll.u32 %s6, 4
      %s51 = int_to_ptr.hbm [resolvable:$true] %s50
      %s52 = sshll.u32 [#allocation8], 4
      %s53 = int_to_ptr.vmem [resolvable:$true] %s52
      %58 = dma.hbm_to_vmem [thread:$0]  %s51, 4096, %s53, [#allocation9], 256, 256, 16
    $region29: #{tpu_custom_call.1} parent=1 // pred_fallthru
      _
    // Predicated region
    $region30: #{tpu_custom_call.1} parent=1 // pred_check
      _
    $region31: #{tpu_custom_call.1} parent=1 // pred_check_branch
      %60 = sbr.rel (0) target = $region33
    $region32: #{tpu_custom_call.1} parent=1 // pred_region
      %62 = vsyncadd [#allocation9], 0
      %s63 = sshll.u32 %s7, 4
      %s64 = int_to_ptr.hbm [resolvable:$true] %s63
      %s65 = sshll.u32 [#allocation10], 4
      %s66 = int_to_ptr.vmem [resolvable:$true] %s65
      %71 = dma.hbm_to_vmem [thread:$0]  %s64, 8192, %s66, [#allocation9], 256, 256, 16
    $region33: #{tpu_custom_call.1} parent=1 // pred_fallthru
      _
    // Predicated region
    $region34: #{tpu_custom_call.1} parent=1 // pred_check
      _
    $region35: #{tpu_custom_call.1} parent=1 // pred_check_branch
      %73 = sbr.rel (0) target = $region37
    $region36: #{tpu_custom_call.1} parent=1 // pred_region
      %75 = vsyncadd [#allocation12], 0
      %s76 = sshll.u32 %s8, 4
      %s77 = int_to_ptr.hbm [resolvable:$true] %s76
      %s78 = sshll.u32 [#allocation11], 4
      %s79 = int_to_ptr.vmem [resolvable:$true] %s78
      %84 = dma.hbm_to_vmem [thread:$0]  %s77, 4096, %s79, [#allocation12], 256, 256, 16
    $region37: #{tpu_custom_call.1} parent=1 // pred_fallthru
      _
    // Predicated region
    $region38: #{tpu_custom_call.1} parent=1 // pred_check
      _
    $region39: #{tpu_custom_call.1} parent=1 // pred_check_branch
      %86 = sbr.rel (0) target = $region41
    $region40: #{tpu_custom_call.1} parent=1 // pred_region
      _
    $region41: #{tpu_custom_call.1} parent=1 // pred_fallthru
      _
    // Predicated region
    $region42: #{tpu_custom_call.1} parent=1 // pred_check
      _
    $region43: #{tpu_custom_call.1} parent=1 // pred_check_branch
      %88 = sbr.rel (0) target = $region45
    $region44: #{tpu_custom_call.1} parent=1 // pred_region
      %90 = vsyncadd [#allocation12], 0
      %s91 = sshll.u32 %s10, 4
      %s92 = int_to_ptr.hbm [resolvable:$true] %s91
      %s93 = sshll.u32 [#allocation13], 4
      %s94 = int_to_ptr.vmem [resolvable:$true] %s93
      %99 = dma.hbm_to_vmem [thread:$0]  %s92, 8192, %s94, [#allocation12], 256, 256, 16
    $region45: #{tpu_custom_call.1} parent=1 // pred_fallthru
      _
    // Predicated region
    $region46: #{tpu_custom_call.1} parent=1 // pred_check
      _
    $region47: #{tpu_custom_call.1} parent=1 // pred_check_branch
      %101 = sbr.rel (0) target = $region49
    $region48: #{tpu_custom_call.1} parent=1 // pred_region
      _
    $region49: #{tpu_custom_call.1} parent=1 // pred_fallthru
      _
    // Predicated region
    $region50: #{tpu_custom_call.1} parent=1 // pred_check
      _
    $region51: #{tpu_custom_call.1} parent=1 // pred_check_branch
      %103 = sbr.rel (0) target = $region53
    $region52: #{tpu_custom_call.1} parent=1 // pred_region
      _
    $region53: #{tpu_custom_call.1} parent=1 // pred_fallthru
      _
    // Predicated region
    $region54: #{tpu_custom_call.1} parent=1 // pred_check
      _
    $region55: #{tpu_custom_call.1} parent=1 // pred_check_branch
      %105 = sbr.rel (0) target = $region57
    $region56: #{tpu_custom_call.1} parent=1 // pred_region
      _
    $region57: #{tpu_custom_call.1} parent=1 // pred_fallthru
      _
    // Predicated region
    $region58: #{tpu_custom_call.1} parent=1 // pred_check
      _
    $region59: #{tpu_custom_call.1} parent=1 // pred_check_branch
      %107 = sbr.rel (0) target = $region61
    $region60: #{tpu_custom_call.1} parent=1 // pred_region
      %109 = dma.done [#allocation6], 4096
    $region61: #{tpu_custom_call.1} parent=1 // pred_fallthru
      _
    // Predicated region
    $region62: #{tpu_custom_call.1} parent=1 // pred_check
      _
    $region63: #{tpu_custom_call.1} parent=1 // pred_check_branch
      %111 = sbr.rel (0) target = $region65
    $region64: #{tpu_custom_call.1} parent=1 // pred_region
      %113 = dma.done [#allocation9], 4096
    $region65: #{tpu_custom_call.1} parent=1 // pred_fallthru
      _
    // Predicated region
    $region66: #{tpu_custom_call.1} parent=1 // pred_check
      _
    $region67: #{tpu_custom_call.1} parent=1 // pred_check_branch
      %115 = sbr.rel (0) target = $region69
    $region68: #{tpu_custom_call.1} parent=1 // pred_region
      %117 = dma.done [#allocation9], 8192
    $region69: #{tpu_custom_call.1} parent=1 // pred_fallthru
      _
    // Predicated region
    $region70: #{tpu_custom_call.1} parent=1 // pred_check
      _
    $region71: #{tpu_custom_call.1} parent=1 // pred_check_branch
      %119 = sbr.rel (0) target = $region73
    $region72: #{tpu_custom_call.1} parent=1 // pred_region
      %121 = dma.done [#allocation12], 4096
    $region73: #{tpu_custom_call.1} parent=1 // pred_fallthru
      _
    // Predicated region
    $region74: #{tpu_custom_call.1} parent=1 // pred_check
      _
    $region75: #{tpu_custom_call.1} parent=1 // pred_check_branch
      %123 = sbr.rel (0) target = $region77
    $region76: #{tpu_custom_call.1} parent=1 // pred_region
      %125 = dma.done [#allocation12], 8192
    $region77: #{tpu_custom_call.1} parent=1 // pred_fallthru
      _
    %v127 = vld [vmem:[%s0] sm:$0xf]
    %v128 = vld [vmem:[%s0 + $0x4] sm:$0xf]
    %v129 = vld [vmem:[%s0 + $0x8] sm:$0xf]
    %v130 = vld [vmem:[%s0 + $0xc] sm:$0xf]
    %v131 = vld [vmem:[%s0 + $0x10] sm:$0xf]
    %v132 = vld [vmem:[%s0 + $0x14] sm:$0xf]
    %v133 = vld [vmem:[%s0 + $0x18] sm:$0xf]
    %v134 = vld [vmem:[%s0 + $0x1c] sm:$0xf]
    %v135 = vld [vmem:[%s0 + $0x20] sm:$0xf]
    %v136 = vld [vmem:[%s0 + $0x24] sm:$0xf]
    %v137 = vld [vmem:[%s0 + $0x28] sm:$0xf]
    %v138 = vld [vmem:[%s0 + $0x2c] sm:$0xf]
    %v139 = vld [vmem:[%s0 + $0x30] sm:$0xf]
    %v140 = vld [vmem:[%s0 + $0x34] sm:$0xf]
    %v141 = vld [vmem:[%s0 + $0x38] sm:$0xf]
    %v142 = vld [vmem:[%s0 + $0x3c] sm:$0xf]
    %v143 = vld [vmem:[%s1] sm:$0xff]
    %v144 = vld [vmem:[%s1 + $0x8] sm:$0xff]
    %v145 = vld [vmem:[%s1 + $0x10] sm:$0xff]
    %v146 = vld [vmem:[%s1 + $0x18] sm:$0xff]
    %v147 = vld [vmem:[%s1 + $0x20] sm:$0xff]
    %v148 = vld [vmem:[%s1 + $0x28] sm:$0xff]
    %v149 = vld [vmem:[%s1 + $0x30] sm:$0x33]
    %v150 = vld [vmem:[%s1 + $0x38] sm:$0x33]
    %v151 = vld [vmem:[%s3] sm:$0xf]
    %v153 = vperm.slane %v151, 0
    %v154 = vperm.slane %v151, 1
    %v155 = vperm.slane %v151, 2
    %v156 = vperm.slane %v151, 3
    %v177 = vunpack.c.l.b16 %v127
    %v178 = vunpack.c.l.b16 %v128
    %v179 = vunpack.c.l.b16 %v129
    %v180 = vunpack.c.l.b16 %v130
    %v181 = vunpack.c.l.b16 %v131
    %v182 = vunpack.c.l.b16 %v132
    %v183 = vunpack.c.l.b16 %v133
    %v184 = vunpack.c.l.b16 %v134
    %v185 = vunpack.c.l.b16 %v135
    %v186 = vunpack.c.l.b16 %v136
    %v187 = vunpack.c.l.b16 %v137
    %v188 = vunpack.c.l.b16 %v138
    %v189 = vunpack.c.l.b16 %v139
    %v190 = vunpack.c.l.b16 %v140
    %v191 = vunpack.c.l.b16 %v141
    %v192 = vunpack.c.l.b16 %v142
    %v193 = vpack.c.b16 %v178, %v177
    %v194 = vpack.c.b16 %v180, %v179
    %v195 = vpack.c.b16 %v182, %v181
    %v196 = vpack.c.b16 %v184, %v183
    %v197 = vpack.c.b16 %v186, %v185
    %v198 = vpack.c.b16 %v188, %v187
    %v199 = vpack.c.b16 %v190, %v189
    %v200 = vpack.c.b16 %v192, %v191
    %v209 = vunpack.c.l.b16 %v143
    %v210 = vunpack.c.h.b16 %v143
    %v211 = vunpack.c.l.b16 %v144
    %v212 = vunpack.c.h.b16 %v144
    %v213 = vunpack.c.l.b16 %v145
    %v214 = vunpack.c.h.b16 %v145
    %v215 = vunpack.c.l.b16 %v146
    %v216 = vunpack.c.h.b16 %v146
    %v217 = vunpack.c.l.b16 %v147
    %v218 = vunpack.c.h.b16 %v147
    %v219 = vunpack.c.l.b16 %v148
    %v220 = vunpack.c.h.b16 %v148
    %v221 = vunpack.c.l.b16 %v149
    %v222 = vunpack.c.h.b16 %v149
    %v223 = vunpack.c.l.b16 %v150
    %v224 = vunpack.c.h.b16 %v150
    %v225 = vpack.c.b16 %v213, %v209
    %v226 = vpack.c.b16 %v214, %v210
    %v227 = vpack.c.b16 %v215, %v211
    %v228 = vpack.c.b16 %v216, %v212
    %v229 = vpack.c.b16 %v221, %v217
    %v230 = vpack.c.b16 %v222, %v218
    %v231 = vpack.c.b16 %v223, %v219
    %v232 = vpack.c.b16 %v224, %v220
    %vm237 = vcmask 228352
    %v239 = vsel %vm237, %v193, 0
    %v242 = vsel %vm237, %v194, 0
    %v245 = vsel %vm237, %v195, 0
    %v248 = vsel %vm237, %v196, 0
    %v251 = vsel %vm237, %v197, 0
    %v254 = vsel %vm237, %v198, 0
    %v257 = vsel %vm237, %v199, 0
    %v260 = vsel %vm237, %v200, 0
    %vm262 = vcmask 1045504
    %v264 = vsel %vm262, %v229, 0
    %v267 = vsel %vm262, %v230, 0
    %v270 = vsel %vm262, %v231, 0
    %v273 = vsel %vm262, %v232, 0
    %275 = vmatpush.bf16.msra.mxu0 0
    %276 = vmatpush.bf16.msra.mxu0 0
    %277 = vmatpush.bf16.msra.mxu0 0
    %278 = vmatpush.bf16.msra.mxu0 0
    %279 = vmatpush.bf16.msra.mxu0 0
    %280 = vmatpush.bf16.msra.mxu0 0
    %281 = vmatpush.bf16.msra.mxu0 %v264
    %282 = vmatpush.bf16.msra.mxu0 %v225
    %283 = vmatmul.bf16.gmra.mxu0 %v239
    %v284 = vpop.f32.mrf.mxu0
    %v285 = vadd.f32 %v153, %v284
    %v286 = vpop.f32.mrf.mxu0
    %v287 = vadd.f32 %v153, %v286
    %288 = vmatmul.bf16.gmra.mxu0 %v242
    %v289 = vpop.f32.mrf.mxu0
    %v290 = vadd.f32 %v153, %v289
    %v291 = vpop.f32.mrf.mxu0
    %v292 = vadd.f32 %v153, %v291
    %293 = vmatmul.bf16.gmra.mxu0 %v245
    %v294 = vpop.f32.mrf.mxu0
    %v295 = vadd.f32 %v153, %v294
    %v296 = vpop.f32.mrf.mxu0
    %v297 = vadd.f32 %v153, %v296
    %298 = vmatmul.bf16.gmra.mxu0 %v248
    %v299 = vpop.f32.mrf.mxu0
    %v300 = vadd.f32 %v153, %v299
    %v301 = vpop.f32.mrf.mxu0
    %v302 = vadd.f32 %v153, %v301
    %303 = vmatmul.bf16.gmra.mxu0 %v251
    %v304 = vpop.f32.mrf.mxu0
    %v305 = vadd.f32 %v153, %v304
    %v306 = vpop.f32.mrf.mxu0
    %v307 = vadd.f32 %v153, %v306
    %308 = vmatmul.bf16.gmra.mxu0 %v254
    %v309 = vpop.f32.mrf.mxu0
    %v310 = vadd.f32 %v153, %v309
    %v311 = vpop.f32.mrf.mxu0
    %v312 = vadd.f32 %v153, %v311
    %313 = vmatmul.bf16.gmra.mxu0 %v257
    %v314 = vpop.f32.mrf.mxu0
    %v315 = vadd.f32 %v153, %v314
    %v316 = vpop.f32.mrf.mxu0
    %v317 = vadd.f32 %v153, %v316
    %318 = vmatmul.bf16.gmra.mxu0 %v260
    %v319 = vpop.f32.mrf.mxu0
    %v320 = vadd.f32 %v153, %v319
    %v321 = vpop.f32.mrf.mxu0
    %v322 = vadd.f32 %v153, %v321
    %323 = vdwg.mxu0
    %324 = vmatpush.bf16.msra.mxu0 0
    %325 = vmatpush.bf16.msra.mxu0 0
    %326 = vmatpush.bf16.msra.mxu0 0
    %327 = vmatpush.bf16.msra.mxu0 0
    %328 = vmatpush.bf16.msra.mxu0 0
    %329 = vmatpush.bf16.msra.mxu0 0
    %330 = vmatpush.bf16.msra.mxu0 %v267
    %331 = vmatpush.bf16.msra.mxu0 %v226
    %332 = vmatmul.bf16.gmra.mxu0 %v239
    %v333 = vpop.f32.mrf.mxu0
    %v334 = vadd.f32 %v154, %v333
    %v335 = vpop.f32.mrf.mxu0
    %v336 = vadd.f32 %v154, %v335
    %337 = vmatmul.bf16.gmra.mxu0 %v242
    %v338 = vpop.f32.mrf.mxu0
    %v339 = vadd.f32 %v154, %v338
    %v340 = vpop.f32.mrf.mxu0
    %v341 = vadd.f32 %v154, %v340
    %342 = vmatmul.bf16.gmra.mxu0 %v245
    %v343 = vpop.f32.mrf.mxu0
    %v344 = vadd.f32 %v154, %v343
    %v345 = vpop.f32.mrf.mxu0
    %v346 = vadd.f32 %v154, %v345
    %347 = vmatmul.bf16.gmra.mxu0 %v248
    %v348 = vpop.f32.mrf.mxu0
    %v349 = vadd.f32 %v154, %v348
    %v350 = vpop.f32.mrf.mxu0
    %v351 = vadd.f32 %v154, %v350
    %352 = vmatmul.bf16.gmra.mxu0 %v251
    %v353 = vpop.f32.mrf.mxu0
    %v354 = vadd.f32 %v154, %v353
    %v355 = vpop.f32.mrf.mxu0
    %v356 = vadd.f32 %v154, %v355
    %357 = vmatmul.bf16.gmra.mxu0 %v254
    %v358 = vpop.f32.mrf.mxu0
    %v359 = vadd.f32 %v154, %v358
    %v360 = vpop.f32.mrf.mxu0
    %v361 = vadd.f32 %v154, %v360
    %362 = vmatmul.bf16.gmra.mxu0 %v257
    %v363 = vpop.f32.mrf.mxu0
    %v364 = vadd.f32 %v154, %v363
    %v365 = vpop.f32.mrf.mxu0
    %v366 = vadd.f32 %v154, %v365
    %367 = vmatmul.bf16.gmra.mxu0 %v260
    %v368 = vpop.f32.mrf.mxu0
    %v369 = vadd.f32 %v154, %v368
    %v370 = vpop.f32.mrf.mxu0
    %v371 = vadd.f32 %v154, %v370
    %372 = vdwg.mxu0
    %373 = vmatpush.bf16.msra.mxu0 0
    %374 = vmatpush.bf16.msra.mxu0 0
    %375 = vmatpush.bf16.msra.mxu0 0
    %376 = vmatpush.bf16.msra.mxu0 0
    %377 = vmatpush.bf16.msra.mxu0 0
    %378 = vmatpush.bf16.msra.mxu0 0
    %379 = vmatpush.bf16.msra.mxu0 %v270
    %380 = vmatpush.bf16.msra.mxu0 %v227
    %381 = vmatmul.bf16.gmra.mxu0 %v239
    %v382 = vpop.f32.mrf.mxu0
    %v383 = vadd.f32 %v155, %v382
    %v384 = vpop.f32.mrf.mxu0
    %v385 = vadd.f32 %v155, %v384
    %386 = vmatmul.bf16.gmra.mxu0 %v242
    %v387 = vpop.f32.mrf.mxu0
    %v388 = vadd.f32 %v155, %v387
    %v389 = vpop.f32.mrf.mxu0
    %v390 = vadd.f32 %v155, %v389
    %391 = vmatmul.bf16.gmra.mxu0 %v245
    %v392 = vpop.f32.mrf.mxu0
    %v393 = vadd.f32 %v155, %v392
    %v394 = vpop.f32.mrf.mxu0
    %v395 = vadd.f32 %v155, %v394
    %396 = vmatmul.bf16.gmra.mxu0 %v248
    %v397 = vpop.f32.mrf.mxu0
    %v398 = vadd.f32 %v155, %v397
    %v399 = vpop.f32.mrf.mxu0
    %v400 = vadd.f32 %v155, %v399
    %401 = vmatmul.bf16.gmra.mxu0 %v251
    %v402 = vpop.f32.mrf.mxu0
    %v403 = vadd.f32 %v155, %v402
    %v404 = vpop.f32.mrf.mxu0
    %v405 = vadd.f32 %v155, %v404
    %406 = vmatmul.bf16.gmra.mxu0 %v254
    %v407 = vpop.f32.mrf.mxu0
    %v408 = vadd.f32 %v155, %v407
    %v409 = vpop.f32.mrf.mxu0
    %v410 = vadd.f32 %v155, %v409
    %411 = vmatmul.bf16.gmra.mxu0 %v257
    %v412 = vpop.f32.mrf.mxu0
    %v413 = vadd.f32 %v155, %v412
    %v414 = vpop.f32.mrf.mxu0
    %v415 = vadd.f32 %v155, %v414
    %416 = vmatmul.bf16.gmra.mxu0 %v260
    %v417 = vpop.f32.mrf.mxu0
    %v418 = vadd.f32 %v155, %v417
    %v419 = vpop.f32.mrf.mxu0
    %v420 = vadd.f32 %v155, %v419
    %421 = vdwg.mxu0
    %422 = vmatpush.bf16.msra.mxu0 0
    %423 = vmatpush.bf16.msra.mxu0 0
    %424 = vmatpush.bf16.msra.mxu0 0
    %425 = vmatpush.bf16.msra.mxu0 0
    %426 = vmatpush.bf16.msra.mxu0 0
    %427 = vmatpush.bf16.msra.mxu0 0
    %428 = vmatpush.bf16.msra.mxu0 %v273
    %429 = vmatpush.bf16.msra.mxu0 %v228
    %430 = vmatmul.bf16.gmra.mxu0 %v239
    %v431 = vpop.f32.mrf.mxu0
    %v432 = vadd.f32 %v156, %v431
    %v433 = vpop.f32.mrf.mxu0
    %v434 = vadd.f32 %v156, %v433
    %435 = vmatmul.bf16.gmra.mxu0 %v242
    %v436 = vpop.f32.mrf.mxu0
    %v437 = vadd.f32 %v156, %v436
    %v438 = vpop.f32.mrf.mxu0
    %v439 = vadd.f32 %v156, %v438
    %440 = vmatmul.bf16.gmra.mxu0 %v245
    %v441 = vpop.f32.mrf.mxu0
    %v442 = vadd.f32 %v156, %v441
    %v443 = vpop.f32.mrf.mxu0
    %v444 = vadd.f32 %v156, %v443
    %445 = vmatmul.bf16.gmra.mxu0 %v248
    %v446 = vpop.f32.mrf.mxu0
    %v447 = vadd.f32 %v156, %v446
    %v448 = vpop.f32.mrf.mxu0
    %v449 = vadd.f32 %v156, %v448
    %450 = vmatmul.bf16.gmra.mxu0 %v251
    %v451 = vpop.f32.mrf.mxu0
    %v452 = vadd.f32 %v156, %v451
    %v453 = vpop.f32.mrf.mxu0
    %v454 = vadd.f32 %v156, %v453
    %455 = vmatmul.bf16.gmra.mxu0 %v254
    %v456 = vpop.f32.mrf.mxu0
    %v457 = vadd.f32 %v156, %v456
    %v458 = vpop.f32.mrf.mxu0
    %v459 = vadd.f32 %v156, %v458
    %460 = vmatmul.bf16.gmra.mxu0 %v257
    %v461 = vpop.f32.mrf.mxu0
    %v462 = vadd.f32 %v156, %v461
    %v463 = vpop.f32.mrf.mxu0
    %v464 = vadd.f32 %v156, %v463
    %465 = vmatmul.bf16.gmra.mxu0 %v260
    %v466 = vpop.f32.mrf.mxu0
    %v467 = vadd.f32 %v156, %v466
    %v468 = vpop.f32.mrf.mxu0
    %v469 = vadd.f32 %v156, %v468
    %470 = vdwg.mxu0
    %471 = vst [vmem:[#allocation2] sm:$0xff] %v285
    %472 = vst [vmem:[#allocation2 + $0x8] sm:$0xff] %v334
    %473 = vst [vmem:[#allocation2 + $0x10] sm:$0xff] %v383
    %474 = vst [vmem:[#allocation2 + $0x18] sm:$0xff] %v432
    %475 = vst [vmem:[#allocation2 + $0x20] sm:$0xff] %v287
    %476 = vst [vmem:[#allocation2 + $0x28] sm:$0xff] %v336
    %477 = vst [vmem:[#allocation2 + $0x30] sm:$0xff] %v385
    %478 = vst [vmem:[#allocation2 + $0x38] sm:$0xff] %v434
    %479 = vst [vmem:[#allocation2 + $0x40] sm:$0xff] %v290
    %480 = vst [vmem:[#allocation2 + $0x48] sm:$0xff] %v339
    %481 = vst [vmem:[#allocation2 + $0x50] sm:$0xff] %v388
    %482 = vst [vmem:[#allocation2 + $0x58] sm:$0xff] %v437
    %483 = vst [vmem:[#allocation2 + $0x60] sm:$0xff] %v292
    %484 = vst [vmem:[#allocation2 + $0x68] sm:$0xff] %v341
    %485 = vst [vmem:[#allocation2 + $0x70] sm:$0xff] %v390
    %486 = vst [vmem:[#allocation2 + $0x78] sm:$0xff] %v439
    %487 = vst [vmem:[#allocation2 + $0x80] sm:$0xff] %v295
    %488 = vst [vmem:[#allocation2 + $0x88] sm:$0xff] %v344
    %489 = vst [vmem:[#allocation2 + $0x90] sm:$0xff] %v393
    %490 = vst [vmem:[#allocation2 + $0x98] sm:$0xff] %v442
    %491 = vst [vmem:[#allocation2 + $0xa0] sm:$0xff] %v297
    %492 = vst [vmem:[#allocation2 + $0xa8] sm:$0xff] %v346
    %493 = vst [vmem:[#allocation2 + $0xb0] sm:$0xff] %v395
    %494 = vst [vmem:[#allocation2 + $0xb8] sm:$0xff] %v444
    %495 = vst [vmem:[#allocation2 + $0xc0] sm:$0xff] %v300
    %496 = vst [vmem:[#allocation2 + $0xc8] sm:$0xff] %v349
    %497 = vst [vmem:[#allocation2 + $0xd0] sm:$0xff] %v398
    %498 = vst [vmem:[#allocation2 + $0xd8] sm:$0xff] %v447
    %499 = vst [vmem:[#allocation2 + $0xe0] sm:$0xff] %v302
    %500 = vst [vmem:[#allocation2 + $0xe8] sm:$0xff] %v351
    %501 = vst [vmem:[#allocation2 + $0xf0] sm:$0xff] %v400
    %502 = vst [vmem:[#allocation2 + $0xf8] sm:$0xff] %v449
    %503 = vst [vmem:[#allocation2 + $0x100] sm:$0xff] %v305
    %504 = vst [vmem:[#allocation2 + $0x108] sm:$0xff] %v354
    %505 = vst [vmem:[#allocation2 + $0x110] sm:$0xff] %v403
    %506 = vst [vmem:[#allocation2 + $0x118] sm:$0xff] %v452
    %507 = vst [vmem:[#allocation2 + $0x120] sm:$0xff] %v307
    %508 = vst [vmem:[#allocation2 + $0x128] sm:$0xff] %v356
    %509 = vst [vmem:[#allocation2 + $0x130] sm:$0xff] %v405
    %510 = vst [vmem:[#allocation2 + $0x138] sm:$0xff] %v454
    %511 = vst [vmem:[#allocation2 + $0x140] sm:$0xff] %v310
    %512 = vst [vmem:[#allocation2 + $0x148] sm:$0xff] %v359
    %513 = vst [vmem:[#allocation2 + $0x150] sm:$0xff] %v408
    %514 = vst [vmem:[#allocation2 + $0x158] sm:$0xff] %v457
    %515 = vst [vmem:[#allocation2 + $0x160] sm:$0xff] %v312
    %516 = vst [vmem:[#allocation2 + $0x168] sm:$0xff] %v361
    %517 = vst [vmem:[#allocation2 + $0x170] sm:$0xff] %v410
    %518 = vst [vmem:[#allocation2 + $0x178] sm:$0xff] %v459
    %519 = vst [vmem:[#allocation2 + $0x180] sm:$0xff] %v315
    %520 = vst [vmem:[#allocation2 + $0x188] sm:$0xff] %v364
    %521 = vst [vmem:[#allocation2 + $0x190] sm:$0xff] %v413
    %522 = vst [vmem:[#allocation2 + $0x198] sm:$0xff] %v462
    %523 = vst [vmem:[#allocation2 + $0x1a0] sm:$0xff] %v317
    %524 = vst [vmem:[#allocation2 + $0x1a8] sm:$0xff] %v366
    %525 = vst [vmem:[#allocation2 + $0x1b0] sm:$0xff] %v415
    %526 = vst [vmem:[#allocation2 + $0x1b8] sm:$0xff] %v464
    %527 = vst [vmem:[#allocation2 + $0x1c0] sm:$0xff] %v320
    %528 = vst [vmem:[#allocation2 + $0x1c8] sm:$0xff] %v369
    %529 = vst [vmem:[#allocation2 + $0x1d0] sm:$0xff] %v418
    %530 = vst [vmem:[#allocation2 + $0x1d8] sm:$0xff] %v467
    %531 = vst [vmem:[#allocation2 + $0x1e0] sm:$0xff] %v322
    %532 = vst [vmem:[#allocation2 + $0x1e8] sm:$0xff] %v371
    %533 = vst [vmem:[#allocation2 + $0x1f0] sm:$0xff] %v420
    %534 = vst [vmem:[#allocation2 + $0x1f8] sm:$0xff] %v469
    %v535 = vld [vmem:[%s2] sm:$0xff]
    %v536 = vld [vmem:[%s2 + $0x8] sm:$0xff]
    %v537 = vld [vmem:[%s2 + $0x10] sm:$0xff]
    %v538 = vld [vmem:[%s2 + $0x18] sm:$0xff]
    %v539 = vld [vmem:[%s2 + $0x20] sm:$0xff]
    %v540 = vld [vmem:[%s2 + $0x28] sm:$0xff]
    %v541 = vld [vmem:[%s2 + $0x30] sm:$0x33]
    %v542 = vld [vmem:[%s2 + $0x38] sm:$0x33]
    %v543 = vld [vmem:[%s4] sm:$0xf]
    %v545 = vperm.slane %v543, 0
    %v546 = vperm.slane %v543, 1
    %v547 = vperm.slane %v543, 2
    %v548 = vperm.slane %v543, 3
    %v561 = vunpack.c.l.b16 %v535
    %v562 = vunpack.c.h.b16 %v535
    %v563 = vunpack.c.l.b16 %v536
    %v564 = vunpack.c.h.b16 %v536
    %v565 = vunpack.c.l.b16 %v537
    %v566 = vunpack.c.h.b16 %v537
    %v567 = vunpack.c.l.b16 %v538
    %v568 = vunpack.c.h.b16 %v538
    %v569 = vunpack.c.l.b16 %v539
    %v570 = vunpack.c.h.b16 %v539
    %v571 = vunpack.c.l.b16 %v540
    %v572 = vunpack.c.h.b16 %v540
    %v573 = vunpack.c.l.b16 %v541
    %v574 = vunpack.c.h.b16 %v541
    %v575 = vunpack.c.l.b16 %v542
    %v576 = vunpack.c.h.b16 %v542
    %v577 = vpack.c.b16 %v565, %v561
    %v578 = vpack.c.b16 %v566, %v562
    %v579 = vpack.c.b16 %v567, %v563
    %v580 = vpack.c.b16 %v568, %v564
    %v581 = vpack.c.b16 %v573, %v569
    %v582 = vpack.c.b16 %v574, %v570
    %v583 = vpack.c.b16 %v575, %v571
    %v584 = vpack.c.b16 %v576, %v572
    %v590 = vsel %vm262, %v581, 0
    %v593 = vsel %vm262, %v582, 0
    %v596 = vsel %vm262, %v583, 0
    %v599 = vsel %vm262, %v584, 0
    %601 = vmatpush.bf16.msra.mxu0 0
    %602 = vmatpush.bf16.msra.mxu0 0
    %603 = vmatpush.bf16.msra.mxu0 0
    %604 = vmatpush.bf16.msra.mxu0 0
    %605 = vmatpush.bf16.msra.mxu0 0
    %606 = vmatpush.bf16.msra.mxu0 0
    %607 = vmatpush.bf16.msra.mxu0 %v590
    %608 = vmatpush.bf16.msra.mxu0 %v577
    %609 = vmatmul.bf16.gmra.mxu0 %v239
    %v610 = vpop.f32.mrf.mxu0
    %v611 = vadd.f32 %v545, %v610
    %v612 = vpop.f32.mrf.mxu0
    %v613 = vadd.f32 %v545, %v612
    %614 = vmatmul.bf16.gmra.mxu0 %v242
    %v615 = vpop.f32.mrf.mxu0
    %v616 = vadd.f32 %v545, %v615
    %v617 = vpop.f32.mrf.mxu0
    %v618 = vadd.f32 %v545, %v617
    %619 = vmatmul.bf16.gmra.mxu0 %v245
    %v620 = vpop.f32.mrf.mxu0
    %v621 = vadd.f32 %v545, %v620
    %v622 = vpop.f32.mrf.mxu0
    %v623 = vadd.f32 %v545, %v622
    %624 = vmatmul.bf16.gmra.mxu0 %v248
    %v625 = vpop.f32.mrf.mxu0
    %v626 = vadd.f32 %v545, %v625
    %v627 = vpop.f32.mrf.mxu0
    %v628 = vadd.f32 %v545, %v627
    %629 = vmatmul.bf16.gmra.mxu0 %v251
    %v630 = vpop.f32.mrf.mxu0
    %v631 = vadd.f32 %v545, %v630
    %v632 = vpop.f32.mrf.mxu0
    %v633 = vadd.f32 %v545, %v632
    %634 = vmatmul.bf16.gmra.mxu0 %v254
    %v635 = vpop.f32.mrf.mxu0
    %v636 = vadd.f32 %v545, %v635
    %v637 = vpop.f32.mrf.mxu0
    %v638 = vadd.f32 %v545, %v637
    %639 = vmatmul.bf16.gmra.mxu0 %v257
    %v640 = vpop.f32.mrf.mxu0
    %v641 = vadd.f32 %v545, %v640
    %v642 = vpop.f32.mrf.mxu0
    %v643 = vadd.f32 %v545, %v642
    %644 = vmatmul.bf16.gmra.mxu0 %v260
    %v645 = vpop.f32.mrf.mxu0
    %v646 = vadd.f32 %v545, %v645
    %v647 = vpop.f32.mrf.mxu0
    %v648 = vadd.f32 %v545, %v647
    %649 = vdwg.mxu0
    %650 = vmatpush.bf16.msra.mxu0 0
    %651 = vmatpush.bf16.msra.mxu0 0
    %652 = vmatpush.bf16.msra.mxu0 0
    %653 = vmatpush.bf16.msra.mxu0 0
    %654 = vmatpush.bf16.msra.mxu0 0
    %655 = vmatpush.bf16.msra.mxu0 0
    %656 = vmatpush.bf16.msra.mxu0 %v593
    %657 = vmatpush.bf16.msra.mxu0 %v578
    %658 = vmatmul.bf16.gmra.mxu0 %v239
    %v659 = vpop.f32.mrf.mxu0
    %v660 = vadd.f32 %v546, %v659
    %v661 = vpop.f32.mrf.mxu0
    %v662 = vadd.f32 %v546, %v661
    %663 = vmatmul.bf16.gmra.mxu0 %v242
    %v664 = vpop.f32.mrf.mxu0
    %v665 = vadd.f32 %v546, %v664
    %v666 = vpop.f32.mrf.mxu0
    %v667 = vadd.f32 %v546, %v666
    %668 = vmatmul.bf16.gmra.mxu0 %v245
    %v669 = vpop.f32.mrf.mxu0
    %v670 = vadd.f32 %v546, %v669
    %v671 = vpop.f32.mrf.mxu0
    %v672 = vadd.f32 %v546, %v671
    %673 = vmatmul.bf16.gmra.mxu0 %v248
    %v674 = vpop.f32.mrf.mxu0
    %v675 = vadd.f32 %v546, %v674
    %v676 = vpop.f32.mrf.mxu0
    %v677 = vadd.f32 %v546, %v676
    %678 = vmatmul.bf16.gmra.mxu0 %v251
    %v679 = vpop.f32.mrf.mxu0
    %v680 = vadd.f32 %v546, %v679
    %v681 = vpop.f32.mrf.mxu0
    %v682 = vadd.f32 %v546, %v681
    %683 = vmatmul.bf16.gmra.mxu0 %v254
    %v684 = vpop.f32.mrf.mxu0
    %v685 = vadd.f32 %v546, %v684
    %v686 = vpop.f32.mrf.mxu0
    %v687 = vadd.f32 %v546, %v686
    %688 = vmatmul.bf16.gmra.mxu0 %v257
    %v689 = vpop.f32.mrf.mxu0
    %v690 = vadd.f32 %v546, %v689
    %v691 = vpop.f32.mrf.mxu0
    %v692 = vadd.f32 %v546, %v691
    %693 = vmatmul.bf16.gmra.mxu0 %v260
    %v694 = vpop.f32.mrf.mxu0
    %v695 = vadd.f32 %v546, %v694
    %v696 = vpop.f32.mrf.mxu0
    %v697 = vadd.f32 %v546, %v696
    %698 = vdwg.mxu0
    %699 = vmatpush.bf16.msra.mxu0 0
    %700 = vmatpush.bf16.msra.mxu0 0
    %701 = vmatpush.bf16.msra.mxu0 0
    %702 = vmatpush.bf16.msra.mxu0 0
    %703 = vmatpush.bf16.msra.mxu0 0
    %704 = vmatpush.bf16.msra.mxu0 0
    %705 = vmatpush.bf16.msra.mxu0 %v596
    %706 = vmatpush.bf16.msra.mxu0 %v579
    %707 = vmatmul.bf16.gmra.mxu0 %v239
    %v708 = vpop.f32.mrf.mxu0
    %v709 = vadd.f32 %v547, %v708
    %v710 = vpop.f32.mrf.mxu0
    %v711 = vadd.f32 %v547, %v710
    %712 = vmatmul.bf16.gmra.mxu0 %v242
    %v713 = vpop.f32.mrf.mxu0
    %v714 = vadd.f32 %v547, %v713
    %v715 = vpop.f32.mrf.mxu0
    %v716 = vadd.f32 %v547, %v715
    %717 = vmatmul.bf16.gmra.mxu0 %v245
    %v718 = vpop.f32.mrf.mxu0
    %v719 = vadd.f32 %v547, %v718
    %v720 = vpop.f32.mrf.mxu0
    %v721 = vadd.f32 %v547, %v720
    %722 = vmatmul.bf16.gmra.mxu0 %v248
    %v723 = vpop.f32.mrf.mxu0
    %v724 = vadd.f32 %v547, %v723
    %v725 = vpop.f32.mrf.mxu0
    %v726 = vadd.f32 %v547, %v725
    %727 = vmatmul.bf16.gmra.mxu0 %v251
    %v728 = vpop.f32.mrf.mxu0
    %v729 = vadd.f32 %v547, %v728
    %v730 = vpop.f32.mrf.mxu0
    %v731 = vadd.f32 %v547, %v730
    %732 = vmatmul.bf16.gmra.mxu0 %v254
    %v733 = vpop.f32.mrf.mxu0
    %v734 = vadd.f32 %v547, %v733
    %v735 = vpop.f32.mrf.mxu0
    %v736 = vadd.f32 %v547, %v735
    %737 = vmatmul.bf16.gmra.mxu0 %v257
    %v738 = vpop.f32.mrf.mxu0
    %v739 = vadd.f32 %v547, %v738
    %v740 = vpop.f32.mrf.mxu0
    %v741 = vadd.f32 %v547, %v740
    %742 = vmatmul.bf16.gmra.mxu0 %v260
    %v743 = vpop.f32.mrf.mxu0
    %v744 = vadd.f32 %v547, %v743
    %v745 = vpop.f32.mrf.mxu0
    %v746 = vadd.f32 %v547, %v745
    %747 = vdwg.mxu0
    %748 = vmatpush.bf16.msra.mxu0 0
    %749 = vmatpush.bf16.msra.mxu0 0
    %750 = vmatpush.bf16.msra.mxu0 0
    %751 = vmatpush.bf16.msra.mxu0 0
    %752 = vmatpush.bf16.msra.mxu0 0
    %753 = vmatpush.bf16.msra.mxu0 0
    %754 = vmatpush.bf16.msra.mxu0 %v599
    %755 = vmatpush.bf16.msra.mxu0 %v580
    %756 = vmatmul.bf16.gmra.mxu0 %v239
    %v757 = vpop.f32.mrf.mxu0
    %v758 = vadd.f32 %v548, %v757
    %v759 = vpop.f32.mrf.mxu0
    %v760 = vadd.f32 %v548, %v759
    %761 = vmatmul.bf16.gmra.mxu0 %v242
    %v762 = vpop.f32.mrf.mxu0
    %v763 = vadd.f32 %v548, %v762
    %v764 = vpop.f32.mrf.mxu0
    %v765 = vadd.f32 %v548, %v764
    %766 = vmatmul.bf16.gmra.mxu0 %v245
    %v767 = vpop.f32.mrf.mxu0
    %v768 = vadd.f32 %v548, %v767
    %v769 = vpop.f32.mrf.mxu0
    %v770 = vadd.f32 %v548, %v769
    %771 = vmatmul.bf16.gmra.mxu0 %v248
    %v772 = vpop.f32.mrf.mxu0
    %v773 = vadd.f32 %v548, %v772
    %v774 = vpop.f32.mrf.mxu0
    %v775 = vadd.f32 %v548, %v774
    %776 = vmatmul.bf16.gmra.mxu0 %v251
    %v777 = vpop.f32.mrf.mxu0
    %v778 = vadd.f32 %v548, %v777
    %v779 = vpop.f32.mrf.mxu0
    %v780 = vadd.f32 %v548, %v779
    %781 = vmatmul.bf16.gmra.mxu0 %v254
    %v782 = vpop.f32.mrf.mxu0
    %v783 = vadd.f32 %v548, %v782
    %v784 = vpop.f32.mrf.mxu0
    %v785 = vadd.f32 %v548, %v784
    %786 = vmatmul.bf16.gmra.mxu0 %v257
    %v787 = vpop.f32.mrf.mxu0
    %v788 = vadd.f32 %v548, %v787
    %v789 = vpop.f32.mrf.mxu0
    %v790 = vadd.f32 %v548, %v789
    %791 = vmatmul.bf16.gmra.mxu0 %v260
    %v792 = vpop.f32.mrf.mxu0
    %v793 = vadd.f32 %v548, %v792
    %v794 = vpop.f32.mrf.mxu0
    %v795 = vadd.f32 %v548, %v794
    %796 = vdwg.mxu0
    %797 = vst [vmem:[#allocation3] sm:$0xff] %v611
    %798 = vst [vmem:[#allocation3 + $0x8] sm:$0xff] %v660
    %799 = vst [vmem:[#allocation3 + $0x10] sm:$0xff] %v709
    %800 = vst [vmem:[#allocation3 + $0x18] sm:$0xff] %v758
    %801 = vst [vmem:[#allocation3 + $0x20] sm:$0xff] %v613
    %802 = vst [vmem:[#allocation3 + $0x28] sm:$0xff] %v662
    %803 = vst [vmem:[#allocation3 + $0x30] sm:$0xff] %v711
    %804 = vst [vmem:[#allocation3 + $0x38] sm:$0xff] %v760
    %805 = vst [vmem:[#allocation3 + $0x40] sm:$0xff] %v616
    %806 = vst [vmem:[#allocation3 + $0x48] sm:$0xff] %v665
    %807 = vst [vmem:[#allocation3 + $0x50] sm:$0xff] %v714
    %808 = vst [vmem:[#allocation3 + $0x58] sm:$0xff] %v763
    %809 = vst [vmem:[#allocation3 + $0x60] sm:$0xff] %v618
    %810 = vst [vmem:[#allocation3 + $0x68] sm:$0xff] %v667
    %811 = vst [vmem:[#allocation3 + $0x70] sm:$0xff] %v716
    %812 = vst [vmem:[#allocation3 + $0x78] sm:$0xff] %v765
    %813 = vst [vmem:[#allocation3 + $0x80] sm:$0xff] %v621
    %814 = vst [vmem:[#allocation3 + $0x88] sm:$0xff] %v670
    %815 = vst [vmem:[#allocation3 + $0x90] sm:$0xff] %v719
    %816 = vst [vmem:[#allocation3 + $0x98] sm:$0xff] %v768
    %817 = vst [vmem:[#allocation3 + $0xa0] sm:$0xff] %v623
    %818 = vst [vmem:[#allocation3 + $0xa8] sm:$0xff] %v672
    %819 = vst [vmem:[#allocation3 + $0xb0] sm:$0xff] %v721
    %820 = vst [vmem:[#allocation3 + $0xb8] sm:$0xff] %v770
    %821 = vst [vmem:[#allocation3 + $0xc0] sm:$0xff] %v626
    %822 = vst [vmem:[#allocation3 + $0xc8] sm:$0xff] %v675
    %823 = vst [vmem:[#allocation3 + $0xd0] sm:$0xff] %v724
    %824 = vst [vmem:[#allocation3 + $0xd8] sm:$0xff] %v773
    %825 = vst [vmem:[#allocation3 + $0xe0] sm:$0xff] %v628
    %826 = vst [vmem:[#allocation3 + $0xe8] sm:$0xff] %v677
    %827 = vst [vmem:[#allocation3 + $0xf0] sm:$0xff] %v726
    %828 = vst [vmem:[#allocation3 + $0xf8] sm:$0xff] %v775
    %829 = vst [vmem:[#allocation3 + $0x100] sm:$0xff] %v631
    %830 = vst [vmem:[#allocation3 + $0x108] sm:$0xff] %v680
    %831 = vst [vmem:[#allocation3 + $0x110] sm:$0xff] %v729
    %832 = vst [vmem:[#allocation3 + $0x118] sm:$0xff] %v778
    %833 = vst [vmem:[#allocation3 + $0x120] sm:$0xff] %v633
    %834 = vst [vmem:[#allocation3 + $0x128] sm:$0xff] %v682
    %835 = vst [vmem:[#allocation3 + $0x130] sm:$0xff] %v731
    %836 = vst [vmem:[#allocation3 + $0x138] sm:$0xff] %v780
    %837 = vst [vmem:[#allocation3 + $0x140] sm:$0xff] %v636
    %838 = vst [vmem:[#allocation3 + $0x148] sm:$0xff] %v685
    %839 = vst [vmem:[#allocation3 + $0x150] sm:$0xff] %v734
    %840 = vst [vmem:[#allocation3 + $0x158] sm:$0xff] %v783
    %841 = vst [vmem:[#allocation3 + $0x160] sm:$0xff] %v638
    %842 = vst [vmem:[#allocation3 + $0x168] sm:$0xff] %v687
    %843 = vst [vmem:[#allocation3 + $0x170] sm:$0xff] %v736
    %844 = vst [vmem:[#allocation3 + $0x178] sm:$0xff] %v785
    %845 = vst [vmem:[#allocation3 + $0x180] sm:$0xff] %v641
    %846 = vst [vmem:[#allocation3 + $0x188] sm:$0xff] %v690
    %847 = vst [vmem:[#allocation3 + $0x190] sm:$0xff] %v739
    %848 = vst [vmem:[#allocation3 + $0x198] sm:$0xff] %v788
    %849 = vst [vmem:[#allocation3 + $0x1a0] sm:$0xff] %v643
    %850 = vst [vmem:[#allocation3 + $0x1a8] sm:$0xff] %v692
    %851 = vst [vmem:[#allocation3 + $0x1b0] sm:$0xff] %v741
    %852 = vst [vmem:[#allocation3 + $0x1b8] sm:$0xff] %v790
    %853 = vst [vmem:[#allocation3 + $0x1c0] sm:$0xff] %v646
    %854 = vst [vmem:[#allocation3 + $0x1c8] sm:$0xff] %v695
    %855 = vst [vmem:[#allocation3 + $0x1d0] sm:$0xff] %v744
    %856 = vst [vmem:[#allocation3 + $0x1d8] sm:$0xff] %v793
    %857 = vst [vmem:[#allocation3 + $0x1e0] sm:$0xff] %v648
    %858 = vst [vmem:[#allocation3 + $0x1e8] sm:$0xff] %v697
    %859 = vst [vmem:[#allocation3 + $0x1f0] sm:$0xff] %v746
    %860 = vst [vmem:[#allocation3 + $0x1f8] sm:$0xff] %v795
    %s861 = smul.u32 0, 4
    %s862 = smul.addr %s861, 8
    %s863 = scalar_lea.vmem [#allocation2], %s862
    %v864 = vld [vmem:[%s863] sm:$0xff]
    %v865 = vld [vmem:[%s863 + $0x8] sm:$0xff]
    %v866 = vld [vmem:[%s863 + $0x10] sm:$0xff]
    %v867 = vld [vmem:[%s863 + $0x18] sm:$0xff]
    %v868 = vld [vmem:[%s863 + $0x20] sm:$0xff]
    %v869 = vld [vmem:[%s863 + $0x28] sm:$0xff]
    %v870 = vld [vmem:[%s863 + $0x30] sm:$0xff]
    %v871 = vld [vmem:[%s863 + $0x38] sm:$0xff]
    %v872 = vld [vmem:[#allocation5] sm:$0xff]
    %v873 = vld [vmem:[#allocation5 + $0x8] sm:$0xff]
    %v874 = vld [vmem:[#allocation5 + $0x10] sm:$0xff]
    %v875 = vld [vmem:[#allocation5 + $0x18] sm:$0xff]
    %v876 = vld [vmem:[#allocation5 + $0x20] sm:$0xff]
    %v877 = vld [vmem:[#allocation5 + $0x28] sm:$0xff]
    %v878 = vld [vmem:[#allocation5 + $0x30] sm:$0xff]
    %v879 = vld [vmem:[#allocation5 + $0x38] sm:$0xff]
    %v880 = vld [vmem:[#allocation5 + $0x40] sm:$0xff]
    %v881 = vld [vmem:[#allocation5 + $0x48] sm:$0xff]
    %v882 = vld [vmem:[#allocation5 + $0x50] sm:$0xff]
    %v883 = vld [vmem:[#allocation5 + $0x58] sm:$0xff]
    %v884 = vld [vmem:[#allocation5 + $0x60] sm:$0xff]
    %v885 = vld [vmem:[#allocation5 + $0x68] sm:$0xff]
    %v886 = vld [vmem:[#allocation5 + $0x70] sm:$0xff]
    %v887 = vld [vmem:[#allocation5 + $0x78] sm:$0xff]
    %v888 = vld [vmem:[#allocation5 + $0x80] sm:$0xff]
    %v889 = vld [vmem:[#allocation5 + $0x88] sm:$0xff]
    %v890 = vld [vmem:[#allocation5 + $0x90] sm:$0xff]
    %v891 = vld [vmem:[#allocation5 + $0x98] sm:$0xff]
    %v892 = vld [vmem:[#allocation5 + $0xa0] sm:$0xff]
    %v893 = vld [vmem:[#allocation5 + $0xa8] sm:$0xff]
    %v894 = vld [vmem:[#allocation5 + $0xb0] sm:$0xff]
    %v895 = vld [vmem:[#allocation5 + $0xb8] sm:$0xff]
    %v896 = vld [vmem:[#allocation5 + $0xc0] sm:$0xff]
    %v897 = vld [vmem:[#allocation5 + $0xc8] sm:$0xff]
    %v898 = vld [vmem:[#allocation5 + $0xd0] sm:$0xff]
    %v899 = vld [vmem:[#allocation5 + $0xd8] sm:$0xff]
    %v900 = vld [vmem:[#allocation5 + $0xe0] sm:$0xff]
    %v901 = vld [vmem:[#allocation5 + $0xe8] sm:$0xff]
    %v902 = vld [vmem:[#allocation5 + $0xf0] sm:$0xff]
    %v903 = vld [vmem:[#allocation5 + $0xf8] sm:$0xff]
    %v936 = vunpack.c.l.b16 %v872
    %v937 = vunpack.c.h.b16 %v872
    %v938 = vunpack.c.l.b16 %v873
    %v939 = vunpack.c.h.b16 %v873
    %v940 = vunpack.c.l.b16 %v874
    %v941 = vunpack.c.h.b16 %v874
    %v942 = vunpack.c.l.b16 %v875
    %v943 = vunpack.c.h.b16 %v875
    %v944 = vunpack.c.l.b16 %v876
    %v945 = vunpack.c.h.b16 %v876
    %v946 = vunpack.c.l.b16 %v877
    %v947 = vunpack.c.h.b16 %v877
    %v948 = vunpack.c.l.b16 %v878
    %v949 = vunpack.c.h.b16 %v878
    %v950 = vunpack.c.l.b16 %v879
    %v951 = vunpack.c.h.b16 %v879
    %v952 = vunpack.c.l.b16 %v880
    %v953 = vunpack.c.h.b16 %v880
    %v954 = vunpack.c.l.b16 %v881
    %v955 = vunpack.c.h.b16 %v881
    %v956 = vunpack.c.l.b16 %v882
    %v957 = vunpack.c.h.b16 %v882
    %v958 = vunpack.c.l.b16 %v883
    %v959 = vunpack.c.h.b16 %v883
    %v960 = vunpack.c.l.b16 %v884
    %v961 = vunpack.c.h.b16 %v884
    %v962 = vunpack.c.l.b16 %v885
    %v963 = vunpack.c.h.b16 %v885
    %v964 = vunpack.c.l.b16 %v886
    %v965 = vunpack.c.h.b16 %v886
    %v966 = vunpack.c.l.b16 %v887
    %v967 = vunpack.c.h.b16 %v887
    %v968 = vunpack.c.l.b16 %v888
    %v969 = vunpack.c.h.b16 %v888
    %v970 = vunpack.c.l.b16 %v889
    %v971 = vunpack.c.h.b16 %v889
    %v972 = vunpack.c.l.b16 %v890
    %v973 = vunpack.c.h.b16 %v890
    %v974 = vunpack.c.l.b16 %v891
    %v975 = vunpack.c.h.b16 %v891
    %v976 = vunpack.c.l.b16 %v892
    %v977 = vunpack.c.h.b16 %v892
    %v978 = vunpack.c.l.b16 %v893
    %v979 = vunpack.c.h.b16 %v893
    %v980 = vunpack.c.l.b16 %v894
    %v981 = vunpack.c.h.b16 %v894
    %v982 = vunpack.c.l.b16 %v895
    %v983 = vunpack.c.h.b16 %v895
    %v984 = vunpack.c.l.b16 %v896
    %v985 = vunpack.c.h.b16 %v896
    %v986 = vunpack.c.l.b16 %v897
    %v987 = vunpack.c.h.b16 %v897
    %v988 = vunpack.c.l.b16 %v898
    %v989 = vunpack.c.h.b16 %v898
    %v990 = vunpack.c.l.b16 %v899
    %v991 = vunpack.c.h.b16 %v899
    %v992 = vunpack.c.l.b16 %v900
    %v993 = vunpack.c.h.b16 %v900
    %v994 = vunpack.c.l.b16 %v901
    %v995 = vunpack.c.h.b16 %v901
    %v996 = vunpack.c.l.b16 %v902
    %v997 = vunpack.c.h.b16 %v902
    %v998 = vunpack.c.l.b16 %v903
    %v999 = vunpack.c.h.b16 %v903
    %v1000 = vpack.c.b16 %v940, %v936
    %v1001 = vpack.c.b16 %v941, %v937
    %v1002 = vpack.c.b16 %v942, %v938
    %v1003 = vpack.c.b16 %v943, %v939
    %v1004 = vpack.c.b16 %v948, %v944
    %v1005 = vpack.c.b16 %v949, %v945
    %v1006 = vpack.c.b16 %v950, %v946
    %v1007 = vpack.c.b16 %v951, %v947
    %v1008 = vpack.c.b16 %v956, %v952
    %v1009 = vpack.c.b16 %v957, %v953
    %v1010 = vpack.c.b16 %v958, %v954
    %v1011 = vpack.c.b16 %v959, %v955
    %v1012 = vpack.c.b16 %v964, %v960
    %v1013 = vpack.c.b16 %v965, %v961
    %v1014 = vpack.c.b16 %v966, %v962
    %v1015 = vpack.c.b16 %v967, %v963
    %v1016 = vpack.c.b16 %v972, %v968
    %v1017 = vpack.c.b16 %v973, %v969
    %v1018 = vpack.c.b16 %v974, %v970
    %v1019 = vpack.c.b16 %v975, %v971
    %v1020 = vpack.c.b16 %v980, %v976
    %v1021 = vpack.c.b16 %v981, %v977
    %v1022 = vpack.c.b16 %v982, %v978
    %v1023 = vpack.c.b16 %v983, %v979
    %v1024 = vpack.c.b16 %v988, %v984
    %v1025 = vpack.c.b16 %v989, %v985
    %v1026 = vpack.c.b16 %v990, %v986
    %v1027 = vpack.c.b16 %v991, %v987
    %v1028 = vpack.c.b16 %v996, %v992
    %v1029 = vpack.c.b16 %v997, %v993
    %v1030 = vpack.c.b16 %v998, %v994
    %v1031 = vpack.c.b16 %v999, %v995
    %1064 = vmatpush.bf16.msra.mxu0 %v1028
    %1065 = vmatpush.bf16.msra.mxu0 %v1024
    %1066 = vmatpush.bf16.msra.mxu0 %v1020
    %1067 = vmatpush.bf16.msra.mxu0 %v1016
    %1068 = vmatpush.bf16.msra.mxu0 %v1012
    %1069 = vmatpush.bf16.msra.mxu0 %v1008
    %1070 = vmatpush.bf16.msra.mxu0 %v1004
    %1071 = vmatpush.bf16.msra.mxu0 %v1000
    %1072 = vmatmul.bf16.gmra.mxu0 0
    %v1073 = vpop.f32.mrf.mxu0
    %v1074 = vadd.f32 0.0, %v1073
    %v1075 = vpop.f32.mrf.mxu0
    %v1076 = vadd.f32 0.0, %v1075
    %1077 = vdwg.mxu0
    %1078 = vmatpush.bf16.msra.mxu0 %v1029
    %1079 = vmatpush.bf16.msra.mxu0 %v1025
    %1080 = vmatpush.bf16.msra.mxu0 %v1021
    %1081 = vmatpush.bf16.msra.mxu0 %v1017
    %1082 = vmatpush.bf16.msra.mxu0 %v1013
    %1083 = vmatpush.bf16.msra.mxu0 %v1009
    %1084 = vmatpush.bf16.msra.mxu0 %v1005
    %1085 = vmatpush.bf16.msra.mxu0 %v1001
    %1086 = vmatmul.bf16.gmra.mxu0 0
    %v1087 = vpop.f32.mrf.mxu0
    %v1088 = vadd.f32 0.0, %v1087
    %v1089 = vpop.f32.mrf.mxu0
    %v1090 = vadd.f32 0.0, %v1089
    %1091 = vdwg.mxu0
    %1092 = vmatpush.bf16.msra.mxu0 %v1030
    %1093 = vmatpush.bf16.msra.mxu0 %v1026
    %1094 = vmatpush.bf16.msra.mxu0 %v1022
    %1095 = vmatpush.bf16.msra.mxu0 %v1018
    %1096 = vmatpush.bf16.msra.mxu0 %v1014
    %1097 = vmatpush.bf16.msra.mxu0 %v1010
    %1098 = vmatpush.bf16.msra.mxu0 %v1006
    %1099 = vmatpush.bf16.msra.mxu0 %v1002
    %1100 = vmatmul.bf16.gmra.mxu0 0
    %v1101 = vpop.f32.mrf.mxu0
    %v1102 = vadd.f32 0.0, %v1101
    %v1103 = vpop.f32.mrf.mxu0
    %v1104 = vadd.f32 0.0, %v1103
    %1105 = vdwg.mxu0
    %1106 = vmatpush.bf16.msra.mxu0 %v1031
    %1107 = vmatpush.bf16.msra.mxu0 %v1027
    %1108 = vmatpush.bf16.msra.mxu0 %v1023
    %1109 = vmatpush.bf16.msra.mxu0 %v1019
    %1110 = vmatpush.bf16.msra.mxu0 %v1015
    %1111 = vmatpush.bf16.msra.mxu0 %v1011
    %1112 = vmatpush.bf16.msra.mxu0 %v1007
    %1113 = vmatpush.bf16.msra.mxu0 %v1003
    %1114 = vmatmul.bf16.gmra.mxu0 0
    %v1115 = vpop.f32.mrf.mxu0
    %v1116 = vadd.f32 0.0, %v1115
    %v1117 = vpop.f32.mrf.mxu0
    %v1118 = vadd.f32 0.0, %v1117
    %1119 = vdwg.mxu0
    %v1120 = vadd.f32 %v864, %v1074
    %v1121 = vadd.f32 %v865, %v1088
    %v1122 = vadd.f32 %v866, %v1102
    %v1123 = vadd.f32 %v867, %v1116
    %v1124 = vadd.f32 %v868, %v1076
    %v1125 = vadd.f32 %v869, %v1090
    %v1126 = vadd.f32 %v870, %v1104
    %v1127 = vadd.f32 %v871, %v1118
    %s1128 = smul.u32 14, 4
    %s1129 = smul.addr %s1128, 8
    %s1130 = scalar_lea.vmem [#allocation3], %s1129
    %v1131 = vld [vmem:[%s1130] sm:$0xff]
    %v1132 = vld [vmem:[%s1130 + $0x8] sm:$0xff]
    %v1133 = vld [vmem:[%s1130 + $0x10] sm:$0xff]
    %v1134 = vld [vmem:[%s1130 + $0x18] sm:$0xff]
    %v1135 = vld [vmem:[%s1130 + $0x20] sm:$0xff]
    %v1136 = vld [vmem:[%s1130 + $0x28] sm:$0xff]
    %v1137 = vld [vmem:[%s1130 + $0x30] sm:$0xff]
    %v1138 = vld [vmem:[%s1130 + $0x38] sm:$0xff]
    %v1139 = vld [vmem:[#allocation8] sm:$0xff]
    %v1140 = vld [vmem:[#allocation8 + $0x8] sm:$0xff]
    %v1141 = vld [vmem:[#allocation8 + $0x10] sm:$0xff]
    %v1142 = vld [vmem:[#allocation8 + $0x18] sm:$0xff]
    %v1143 = vld [vmem:[#allocation8 + $0x20] sm:$0xff]
    %v1144 = vld [vmem:[#allocation8 + $0x28] sm:$0xff]
    %v1145 = vld [vmem:[#allocation8 + $0x30] sm:$0xff]
    %v1146 = vld [vmem:[#allocation8 + $0x38] sm:$0xff]
    %v1147 = vld [vmem:[#allocation8 + $0x40] sm:$0xff]
    %v1148 = vld [vmem:[#allocation8 + $0x48] sm:$0xff]
    %v1149 = vld [vmem:[#allocation8 + $0x50] sm:$0xff]
    %v1150 = vld [vmem:[#allocation8 + $0x58] sm:$0xff]
    %v1151 = vld [vmem:[#allocation8 + $0x60] sm:$0xff]
    %v1152 = vld [vmem:[#allocation8 + $0x68] sm:$0xff]
    %v1153 = vld [vmem:[#allocation8 + $0x70] sm:$0xff]
    %v1154 = vld [vmem:[#allocation8 + $0x78] sm:$0xff]
    %v1155 = vld [vmem:[#allocation8 + $0x80] sm:$0xff]
    %v1156 = vld [vmem:[#allocation8 + $0x88] sm:$0xff]
    %v1157 = vld [vmem:[#allocation8 + $0x90] sm:$0xff]
    %v1158 = vld [vmem:[#allocation8 + $0x98] sm:$0xff]
    %v1159 = vld [vmem:[#allocation8 + $0xa0] sm:$0xff]
    %v1160 = vld [vmem:[#allocation8 + $0xa8] sm:$0xff]
    %v1161 = vld [vmem:[#allocation8 + $0xb0] sm:$0xff]
    %v1162 = vld [vmem:[#allocation8 + $0xb8] sm:$0xff]
    %v1163 = vld [vmem:[#allocation8 + $0xc0] sm:$0xff]
    %v1164 = vld [vmem:[#allocation8 + $0xc8] sm:$0xff]
    %v1165 = vld [vmem:[#allocation8 + $0xd0] sm:$0xff]
    %v1166 = vld [vmem:[#allocation8 + $0xd8] sm:$0xff]
    %v1167 = vld [vmem:[#allocation8 + $0xe0] sm:$0xff]
    %v1168 = vld [vmem:[#allocation8 + $0xe8] sm:$0xff]
    %v1169 = vld [vmem:[#allocation8 + $0xf0] sm:$0xff]
    %v1170 = vld [vmem:[#allocation8 + $0xf8] sm:$0xff]
    %v1203 = vunpack.c.l.b16 %v1139
    %v1204 = vunpack.c.h.b16 %v1139
    %v1205 = vunpack.c.l.b16 %v1140
    %v1206 = vunpack.c.h.b16 %v1140
    %v1207 = vunpack.c.l.b16 %v1141
    %v1208 = vunpack.c.h.b16 %v1141
    %v1209 = vunpack.c.l.b16 %v1142
    %v1210 = vunpack.c.h.b16 %v1142
    %v1211 = vunpack.c.l.b16 %v1143
    %v1212 = vunpack.c.h.b16 %v1143
    %v1213 = vunpack.c.l.b16 %v1144
    %v1214 = vunpack.c.h.b16 %v1144
    %v1215 = vunpack.c.l.b16 %v1145
    %v1216 = vunpack.c.h.b16 %v1145
    %v1217 = vunpack.c.l.b16 %v1146
    %v1218 = vunpack.c.h.b16 %v1146
    %v1219 = vunpack.c.l.b16 %v1147
    %v1220 = vunpack.c.h.b16 %v1147
    %v1221 = vunpack.c.l.b16 %v1148
    %v1222 = vunpack.c.h.b16 %v1148
    %v1223 = vunpack.c.l.b16 %v1149
    %v1224 = vunpack.c.h.b16 %v1149
    %v1225 = vunpack.c.l.b16 %v1150
    %v1226 = vunpack.c.h.b16 %v1150
    %v1227 = vunpack.c.l.b16 %v1151
    %v1228 = vunpack.c.h.b16 %v1151
    %v1229 = vunpack.c.l.b16 %v1152
    %v1230 = vunpack.c.h.b16 %v1152
    %v1231 = vunpack.c.l.b16 %v1153
    %v1232 = vunpack.c.h.b16 %v1153
    %v1233 = vunpack.c.l.b16 %v1154
    %v1234 = vunpack.c.h.b16 %v1154
    %v1235 = vunpack.c.l.b16 %v1155
    %v1236 = vunpack.c.h.b16 %v1155
    %v1237 = vunpack.c.l.b16 %v1156
    %v1238 = vunpack.c.h.b16 %v1156
    %v1239 = vunpack.c.l.b16 %v1157
    %v1240 = vunpack.c.h.b16 %v1157
    %v1241 = vunpack.c.l.b16 %v1158
    %v1242 = vunpack.c.h.b16 %v1158
    %v1243 = vunpack.c.l.b16 %v1159
    %v1244 = vunpack.c.h.b16 %v1159
    %v1245 = vunpack.c.l.b16 %v1160
    %v1246 = vunpack.c.h.b16 %v1160
    %v1247 = vunpack.c.l.b16 %v1161
    %v1248 = vunpack.c.h.b16 %v1161
    %v1249 = vunpack.c.l.b16 %v1162
    %v1250 = vunpack.c.h.b16 %v1162
    %v1251 = vunpack.c.l.b16 %v1163
    %v1252 = vunpack.c.h.b16 %v1163
    %v1253 = vunpack.c.l.b16 %v1164
    %v1254 = vunpack.c.h.b16 %v1164
    %v1255 = vunpack.c.l.b16 %v1165
    %v1256 = vunpack.c.h.b16 %v1165
    %v1257 = vunpack.c.l.b16 %v1166
    %v1258 = vunpack.c.h.b16 %v1166
    %v1259 = vunpack.c.l.b16 %v1167
    %v1260 = vunpack.c.h.b16 %v1167
    %v1261 = vunpack.c.l.b16 %v1168
    %v1262 = vunpack.c.h.b16 %v1168
    %v1263 = vunpack.c.l.b16 %v1169
    %v1264 = vunpack.c.h.b16 %v1169
    %v1265 = vunpack.c.l.b16 %v1170
    %v1266 = vunpack.c.h.b16 %v1170
    %v1267 = vpack.c.b16 %v1207, %v1203
    %v1268 = vpack.c.b16 %v1208, %v1204
    %v1269 = vpack.c.b16 %v1209, %v1205
    %v1270 = vpack.c.b16 %v1210, %v1206
    %v1271 = vpack.c.b16 %v1215, %v1211
    %v1272 = vpack.c.b16 %v1216, %v1212
    %v1273 = vpack.c.b16 %v1217, %v1213
    %v1274 = vpack.c.b16 %v1218, %v1214
    %v1275 = vpack.c.b16 %v1223, %v1219
    %v1276 = vpack.c.b16 %v1224, %v1220
    %v1277 = vpack.c.b16 %v1225, %v1221
    %v1278 = vpack.c.b16 %v1226, %v1222
    %v1279 = vpack.c.b16 %v1231, %v1227
    %v1280 = vpack.c.b16 %v1232, %v1228
    %v1281 = vpack.c.b16 %v1233, %v1229
    %v1282 = vpack.c.b16 %v1234, %v1230
    %v1283 = vpack.c.b16 %v1239, %v1235
    %v1284 = vpack.c.b16 %v1240, %v1236
    %v1285 = vpack.c.b16 %v1241, %v1237
    %v1286 = vpack.c.b16 %v1242, %v1238
    %v1287 = vpack.c.b16 %v1247, %v1243
    %v1288 = vpack.c.b16 %v1248, %v1244
    %v1289 = vpack.c.b16 %v1249, %v1245
    %v1290 = vpack.c.b16 %v1250, %v1246
    %v1291 = vpack.c.b16 %v1255, %v1251
    %v1292 = vpack.c.b16 %v1256, %v1252
    %v1293 = vpack.c.b16 %v1257, %v1253
    %v1294 = vpack.c.b16 %v1258, %v1254
    %v1295 = vpack.c.b16 %v1263, %v1259
    %v1296 = vpack.c.b16 %v1264, %v1260
    %v1297 = vpack.c.b16 %v1265, %v1261
    %v1298 = vpack.c.b16 %v1266, %v1262
    %1331 = vmatpush.bf16.msra.mxu0 %v1295
    %1332 = vmatpush.bf16.msra.mxu0 %v1291
    %1333 = vmatpush.bf16.msra.mxu0 %v1287
    %1334 = vmatpush.bf16.msra.mxu0 %v1283
    %1335 = vmatpush.bf16.msra.mxu0 %v1279
    %1336 = vmatpush.bf16.msra.mxu0 %v1275
    %1337 = vmatpush.bf16.msra.mxu0 %v1271
    %1338 = vmatpush.bf16.msra.mxu0 %v1267
    %1339 = vmatmul.bf16.gmra.mxu0 0
    %v1340 = vpop.f32.mrf.mxu0
    %v1341 = vadd.f32 0.0, %v1340
    %v1342 = vpop.f32.mrf.mxu0
    %v1343 = vadd.f32 0.0, %v1342
    %1344 = vdwg.mxu0
    %1345 = vmatpush.bf16.msra.mxu0 %v1296
    %1346 = vmatpush.bf16.msra.mxu0 %v1292
    %1347 = vmatpush.bf16.msra.mxu0 %v1288
    %1348 = vmatpush.bf16.msra.mxu0 %v1284
    %1349 = vmatpush.bf16.msra.mxu0 %v1280
    %1350 = vmatpush.bf16.msra.mxu0 %v1276
    %1351 = vmatpush.bf16.msra.mxu0 %v1272
    %1352 = vmatpush.bf16.msra.mxu0 %v1268
    %1353 = vmatmul.bf16.gmra.mxu0 0
    %v1354 = vpop.f32.mrf.mxu0
    %v1355 = vadd.f32 0.0, %v1354
    %v1356 = vpop.f32.mrf.mxu0
    %v1357 = vadd.f32 0.0, %v1356
    %1358 = vdwg.mxu0
    %1359 = vmatpush.bf16.msra.mxu0 %v1297
    %1360 = vmatpush.bf16.msra.mxu0 %v1293
    %1361 = vmatpush.bf16.msra.mxu0 %v1289
    %1362 = vmatpush.bf16.msra.mxu0 %v1285
    %1363 = vmatpush.bf16.msra.mxu0 %v1281
    %1364 = vmatpush.bf16.msra.mxu0 %v1277
    %1365 = vmatpush.bf16.msra.mxu0 %v1273
    %1366 = vmatpush.bf16.msra.mxu0 %v1269
    %1367 = vmatmul.bf16.gmra.mxu0 0
    %v1368 = vpop.f32.mrf.mxu0
    %v1369 = vadd.f32 0.0, %v1368
    %v1370 = vpop.f32.mrf.mxu0
    %v1371 = vadd.f32 0.0, %v1370
    %1372 = vdwg.mxu0
    %1373 = vmatpush.bf16.msra.mxu0 %v1298
    %1374 = vmatpush.bf16.msra.mxu0 %v1294
    %1375 = vmatpush.bf16.msra.mxu0 %v1290
    %1376 = vmatpush.bf16.msra.mxu0 %v1286
    %1377 = vmatpush.bf16.msra.mxu0 %v1282
    %1378 = vmatpush.bf16.msra.mxu0 %v1278
    %1379 = vmatpush.bf16.msra.mxu0 %v1274
    %1380 = vmatpush.bf16.msra.mxu0 %v1270
    %1381 = vmatmul.bf16.gmra.mxu0 0
    %v1382 = vpop.f32.mrf.mxu0
    %v1383 = vadd.f32 0.0, %v1382
    %v1384 = vpop.f32.mrf.mxu0
    %v1385 = vadd.f32 0.0, %v1384
    %1386 = vdwg.mxu0
    %v1387 = vadd.f32 %v1131, %v1341
    %v1388 = vadd.f32 %v1132, %v1355
    %v1389 = vadd.f32 %v1133, %v1369
    %v1390 = vadd.f32 %v1134, %v1383
    %v1391 = vadd.f32 %v1135, %v1343
    %v1392 = vadd.f32 %v1136, %v1357
    %v1393 = vadd.f32 %v1137, %v1371
    %v1394 = vadd.f32 %v1138, %v1385
    %v1395 = vxor.u32 %v1120, 2147483648
    %v1396 = vxor.u32 %v1121, 2147483648
    %v1397 = vxor.u32 %v1123, 2147483648
    %v1398 = vxor.u32 %v1124, 2147483648
    %v1399 = vxor.u32 %v1125, 2147483648
    %v1400 = vxor.u32 %v1127, 2147483648
    %v1401 = vmul.f32 %v1395, 1.442695
    %v1402 = vpow.pop %v1401
    %v1403 = vmul.f32 %v1396, 1.442695
    %v1404 = vpow.pop %v1403
    %v1405 = vmul.f32 %v1397, 1.442695
    %v1406 = vpow.pop %v1405
    %v1407 = vmul.f32 %v1398, 1.442695
    %v1408 = vpow.pop %v1407
    %v1409 = vmul.f32 %v1399, 1.442695
    %v1410 = vpow.pop %v1409
    %v1411 = vmul.f32 %v1400, 1.442695
    %v1412 = vpow.pop %v1411
    %v1413 = vadd.f32 %v1402, 1.0
    %v1414 = vadd.f32 %v1404, 1.0
    %v1415 = vadd.f32 %v1406, 1.0
    %v1416 = vadd.f32 %v1408, 1.0
    %v1417 = vadd.f32 %v1410, 1.0
    %v1418 = vadd.f32 %v1412, 1.0
    %v1419 = vrcp.pop %v1413
    %v1420 = vmul.f32 %v1413, %v1419
    %v1421 = vsub.f32 1.0, %v1420
    %v1422 = vmul.f32 %v1419, %v1421
    %v1423 = vadd.f32 %v1419, %v1422
    %vm1424 = vweird.f32 %v1413
    %vm1425 = vweird.f32 %v1419
    %vm1426 = vmor %vm1424, %vm1425
    %v1427 = vsel %vm1426, %v1419, %v1423
    %v1428 = vand.u32 2147483647, %v1413
    %vm1429 = vcmp.eq.f32.partialorder %v1428, 8.507059e+37
    %v1430 = vand.u32 %v1413, 2147483648
    %v1431 = vor.u32 1.1754944e-38, %v1430
    %v1432 = vsel %vm1429, %v1431, %v1427
    %v1433 = vmul.f32 1.0, %v1432
    %v1434 = vrcp.pop %v1414
    %v1435 = vmul.f32 %v1414, %v1434
    %v1436 = vsub.f32 1.0, %v1435
    %v1437 = vmul.f32 %v1434, %v1436
    %v1438 = vadd.f32 %v1434, %v1437
    %vm1439 = vweird.f32 %v1414
    %vm1440 = vweird.f32 %v1434
    %vm1441 = vmor %vm1439, %vm1440
    %v1442 = vsel %vm1441, %v1434, %v1438
    %v1443 = vand.u32 2147483647, %v1414
    %vm1444 = vcmp.eq.f32.partialorder %v1443, 8.507059e+37
    %v1445 = vand.u32 %v1414, 2147483648
    %v1446 = vor.u32 1.1754944e-38, %v1445
    %v1447 = vsel %vm1444, %v1446, %v1442
    %v1448 = vmul.f32 1.0, %v1447
    %v1449 = vrcp.pop %v1415
    %v1450 = vmul.f32 %v1415, %v1449
    %v1451 = vsub.f32 1.0, %v1450
    %v1452 = vmul.f32 %v1449, %v1451
    %v1453 = vadd.f32 %v1449, %v1452
    %vm1454 = vweird.f32 %v1415
    %vm1455 = vweird.f32 %v1449
    %vm1456 = vmor %vm1454, %vm1455
    %v1457 = vsel %vm1456, %v1449, %v1453
    %v1458 = vand.u32 2147483647, %v1415
    %vm1459 = vcmp.eq.f32.partialorder %v1458, 8.507059e+37
    %v1460 = vand.u32 %v1415, 2147483648
    %v1461 = vor.u32 1.1754944e-38, %v1460
    %v1462 = vsel %vm1459, %v1461, %v1457
    %v1463 = vmul.f32 1.0, %v1462
    %v1464 = vrcp.pop %v1416
    %v1465 = vmul.f32 %v1416, %v1464
    %v1466 = vsub.f32 1.0, %v1465
    %v1467 = vmul.f32 %v1464, %v1466
    %v1468 = vadd.f32 %v1464, %v1467
    %vm1469 = vweird.f32 %v1416
    %vm1470 = vweird.f32 %v1464
    %vm1471 = vmor %vm1469, %vm1470
    %v1472 = vsel %vm1471, %v1464, %v1468
    %v1473 = vand.u32 2147483647, %v1416
    %vm1474 = vcmp.eq.f32.partialorder %v1473, 8.507059e+37
    %v1475 = vand.u32 %v1416, 2147483648
    %v1476 = vor.u32 1.1754944e-38, %v1475
    %v1477 = vsel %vm1474, %v1476, %v1472
    %v1478 = vmul.f32 1.0, %v1477
    %v1479 = vrcp.pop %v1417
    %v1480 = vmul.f32 %v1417, %v1479
    %v1481 = vsub.f32 1.0, %v1480
    %v1482 = vmul.f32 %v1479, %v1481
    %v1483 = vadd.f32 %v1479, %v1482
    %vm1484 = vweird.f32 %v1417
    %vm1485 = vweird.f32 %v1479
    %vm1486 = vmor %vm1484, %vm1485
    %v1487 = vsel %vm1486, %v1479, %v1483
    %v1488 = vand.u32 2147483647, %v1417
    %vm1489 = vcmp.eq.f32.partialorder %v1488, 8.507059e+37
    %v1490 = vand.u32 %v1417, 2147483648
    %v1491 = vor.u32 1.1754944e-38, %v1490
    %v1492 = vsel %vm1489, %v1491, %v1487
    %v1493 = vmul.f32 1.0, %v1492
    %v1494 = vrcp.pop %v1418
    %v1495 = vmul.f32 %v1418, %v1494
    %v1496 = vsub.f32 1.0, %v1495
    %v1497 = vmul.f32 %v1494, %v1496
    %v1498 = vadd.f32 %v1494, %v1497
    %vm1499 = vweird.f32 %v1418
    %vm1500 = vweird.f32 %v1494
    %vm1501 = vmor %vm1499, %vm1500
    %v1502 = vsel %vm1501, %v1494, %v1498
    %v1503 = vand.u32 2147483647, %v1418
    %vm1504 = vcmp.eq.f32.partialorder %v1503, 8.507059e+37
    %v1505 = vand.u32 %v1418, 2147483648
    %v1506 = vor.u32 1.1754944e-38, %v1505
    %v1507 = vsel %vm1504, %v1506, %v1502
    %v1508 = vmul.f32 1.0, %v1507
    %v1509 = vtanh.pop %v1122
    %v1510 = vtanh.pop %v1126
    %v1511 = vmul.f32 %v1448, 0.0
    %v1512 = vmul.f32 %v1493, 0.0
    %v1513 = vmul.f32 %v1433, %v1509
    %v1514 = vmul.f32 %v1478, %v1510
    %v1515 = vadd.f32 %v1511, %v1513
    %v1516 = vadd.f32 %v1512, %v1514
    %v1517 = vtanh.pop %v1515
    %v1518 = vtanh.pop %v1516
    %v1519 = vmul.f32 %v1463, %v1517
    %v1520 = vmul.f32 %v1508, %v1518
    %v1521 = vxor.u32 %v1387, 2147483648
    %v1522 = vxor.u32 %v1388, 2147483648
    %v1523 = vxor.u32 %v1390, 2147483648
    %v1524 = vxor.u32 %v1391, 2147483648
    %v1525 = vxor.u32 %v1392, 2147483648
    %v1526 = vxor.u32 %v1394, 2147483648
    %v1527 = vmul.f32 %v1521, 1.442695
    %v1528 = vpow.pop %v1527
    %v1529 = vmul.f32 %v1522, 1.442695
    %v1530 = vpow.pop %v1529
    %v1531 = vmul.f32 %v1523, 1.442695
    %v1532 = vpow.pop %v1531
    %v1533 = vmul.f32 %v1524, 1.442695
    %v1534 = vpow.pop %v1533
    %v1535 = vmul.f32 %v1525, 1.442695
    %v1536 = vpow.pop %v1535
    %v1537 = vmul.f32 %v1526, 1.442695
    %v1538 = vpow.pop %v1537
    %v1539 = vadd.f32 %v1528, 1.0
    %v1540 = vadd.f32 %v1530, 1.0
    %v1541 = vadd.f32 %v1532, 1.0
    %v1542 = vadd.f32 %v1534, 1.0
    %v1543 = vadd.f32 %v1536, 1.0
    %v1544 = vadd.f32 %v1538, 1.0
    %v1545 = vrcp.pop %v1539
    %v1546 = vmul.f32 %v1539, %v1545
    %v1547 = vsub.f32 1.0, %v1546
    %v1548 = vmul.f32 %v1545, %v1547
    %v1549 = vadd.f32 %v1545, %v1548
    %vm1550 = vweird.f32 %v1539
    %vm1551 = vweird.f32 %v1545
    %vm1552 = vmor %vm1550, %vm1551
    %v1553 = vsel %vm1552, %v1545, %v1549
    %v1554 = vand.u32 2147483647, %v1539
    %vm1555 = vcmp.eq.f32.partialorder %v1554, 8.507059e+37
    %v1556 = vand.u32 %v1539, 2147483648
    %v1557 = vor.u32 1.1754944e-38, %v1556
    %v1558 = vsel %vm1555, %v1557, %v1553
    %v1559 = vmul.f32 1.0, %v1558
    %v1560 = vrcp.pop %v1540
    %v1561 = vmul.f32 %v1540, %v1560
    %v1562 = vsub.f32 1.0, %v1561
    %v1563 = vmul.f32 %v1560, %v1562
    %v1564 = vadd.f32 %v1560, %v1563
    %vm1565 = vweird.f32 %v1540
    %vm1566 = vweird.f32 %v1560
    %vm1567 = vmor %vm1565, %vm1566
    %v1568 = vsel %vm1567, %v1560, %v1564
    %v1569 = vand.u32 2147483647, %v1540
    %vm1570 = vcmp.eq.f32.partialorder %v1569, 8.507059e+37
    %v1571 = vand.u32 %v1540, 2147483648
    %v1572 = vor.u32 1.1754944e-38, %v1571
    %v1573 = vsel %vm1570, %v1572, %v1568
    %v1574 = vmul.f32 1.0, %v1573
    %v1575 = vrcp.pop %v1541
    %v1576 = vmul.f32 %v1541, %v1575
    %v1577 = vsub.f32 1.0, %v1576
    %v1578 = vmul.f32 %v1575, %v1577
    %v1579 = vadd.f32 %v1575, %v1578
    %vm1580 = vweird.f32 %v1541
    %vm1581 = vweird.f32 %v1575
    %vm1582 = vmor %vm1580, %vm1581
    %v1583 = vsel %vm1582, %v1575, %v1579
    %v1584 = vand.u32 2147483647, %v1541
    %vm1585 = vcmp.eq.f32.partialorder %v1584, 8.507059e+37
    %v1586 = vand.u32 %v1541, 2147483648
    %v1587 = vor.u32 1.1754944e-38, %v1586
    %v1588 = vsel %vm1585, %v1587, %v1583
    %v1589 = vmul.f32 1.0, %v1588
    %v1590 = vrcp.pop %v1542
    %v1591 = vmul.f32 %v1542, %v1590
    %v1592 = vsub.f32 1.0, %v1591
    %v1593 = vmul.f32 %v1590, %v1592
    %v1594 = vadd.f32 %v1590, %v1593
    %vm1595 = vweird.f32 %v1542
    %vm1596 = vweird.f32 %v1590
    %vm1597 = vmor %vm1595, %vm1596
    %v1598 = vsel %vm1597, %v1590, %v1594
    %v1599 = vand.u32 2147483647, %v1542
    %vm1600 = vcmp.eq.f32.partialorder %v1599, 8.507059e+37
    %v1601 = vand.u32 %v1542, 2147483648
    %v1602 = vor.u32 1.1754944e-38, %v1601
    %v1603 = vsel %vm1600, %v1602, %v1598
    %v1604 = vmul.f32 1.0, %v1603
    %v1605 = vrcp.pop %v1543
    %v1606 = vmul.f32 %v1543, %v1605
    %v1607 = vsub.f32 1.0, %v1606
    %v1608 = vmul.f32 %v1605, %v1607
    %v1609 = vadd.f32 %v1605, %v1608
    %vm1610 = vweird.f32 %v1543
    %vm1611 = vweird.f32 %v1605
    %vm1612 = vmor %vm1610, %vm1611
    %v1613 = vsel %vm1612, %v1605, %v1609
    %v1614 = vand.u32 2147483647, %v1543
    %vm1615 = vcmp.eq.f32.partialorder %v1614, 8.507059e+37
    %v1616 = vand.u32 %v1543, 2147483648
    %v1617 = vor.u32 1.1754944e-38, %v1616
    %v1618 = vsel %vm1615, %v1617, %v1613
    %v1619 = vmul.f32 1.0, %v1618
    %v1620 = vrcp.pop %v1544
    %v1621 = vmul.f32 %v1544, %v1620
    %v1622 = vsub.f32 1.0, %v1621
    %v1623 = vmul.f32 %v1620, %v1622
    %v1624 = vadd.f32 %v1620, %v1623
    %vm1625 = vweird.f32 %v1544
    %vm1626 = vweird.f32 %v1620
    %vm1627 = vmor %vm1625, %vm1626
    %v1628 = vsel %vm1627, %v1620, %v1624
    %v1629 = vand.u32 2147483647, %v1544
    %vm1630 = vcmp.eq.f32.partialorder %v1629, 8.507059e+37
    %v1631 = vand.u32 %v1544, 2147483648
    %v1632 = vor.u32 1.1754944e-38, %v1631
    %v1633 = vsel %vm1630, %v1632, %v1628
    %v1634 = vmul.f32 1.0, %v1633
    %v1635 = vtanh.pop %v1389
    %v1636 = vtanh.pop %v1393
    %v1637 = vmul.f32 %v1574, 0.0
    %v1638 = vmul.f32 %v1619, 0.0
    %v1639 = vmul.f32 %v1559, %v1635
    %v1640 = vmul.f32 %v1604, %v1636
    %v1641 = vadd.f32 %v1637, %v1639
    %v1642 = vadd.f32 %v1638, %v1640
    %v1643 = vtanh.pop %v1641
    %v1644 = vtanh.pop %v1642
    %v1645 = vmul.f32 %v1589, %v1643
    %v1646 = vmul.f32 %v1634, %v1644
    %v1647 = vpack.c.bf16 %v1519, %v1519
    %v1648 = vpack.c.bf16 %v1520, %v1520
    %s1649 = smul.u32 0, 2
    %s1650 = smul.addr %s1649, 4
    %s1651 = scalar_lea.vmem [#allocation4], %s1650
    %1652 = vst [vmem:[%s1651] sm:$0xf] %v1647
    %1653 = vst [vmem:[%s1651 + $0x8] sm:$0xf] %v1648
    %v1654 = vpack.c.bf16 %v1645, %v1645
    %v1655 = vpack.c.bf16 %v1646, %v1646
    %s1656 = smul.u32 14, 2
    %s1657 = smul.addr %s1656, 4
    %s1658 = scalar_lea.vmem [#allocation4], %s1657
    %1659 = vst [vmem:[%s1658 + $0x4] sm:$0xf] %v1654
    %1660 = vst [vmem:[%s1658 + $0xc] sm:$0xf] %v1655
    %s1661 = smul.u32 2, 4
    %s1662 = smul.addr %s1661, 8
    %s1663 = scalar_lea.vmem [#allocation2], %s1662
    %v1664 = vld [vmem:[%s1663] sm:$0xff]
    %v1665 = vld [vmem:[%s1663 + $0x8] sm:$0xff]
    %v1666 = vld [vmem:[%s1663 + $0x10] sm:$0xff]
    %v1667 = vld [vmem:[%s1663 + $0x18] sm:$0xff]
    %v1668 = vld [vmem:[%s1663 + $0x20] sm:$0xff]
    %v1669 = vld [vmem:[%s1663 + $0x28] sm:$0xff]
    %v1670 = vld [vmem:[%s1663 + $0x30] sm:$0xff]
    %v1671 = vld [vmem:[%s1663 + $0x38] sm:$0xff]
    %v1672 = vld [vmem:[#allocation5] sm:$0xff]
    %v1673 = vld [vmem:[#allocation5 + $0x8] sm:$0xff]
    %v1674 = vld [vmem:[#allocation5 + $0x10] sm:$0xff]
    %v1675 = vld [vmem:[#allocation5 + $0x18] sm:$0xff]
    %v1676 = vld [vmem:[#allocation5 + $0x20] sm:$0xff]
    %v1677 = vld [vmem:[#allocation5 + $0x28] sm:$0xff]
    %v1678 = vld [vmem:[#allocation5 + $0x30] sm:$0xff]
    %v1679 = vld [vmem:[#allocation5 + $0x38] sm:$0xff]
    %v1680 = vld [vmem:[#allocation5 + $0x40] sm:$0xff]
    %v1681 = vld [vmem:[#allocation5 + $0x48] sm:$0xff]
    %v1682 = vld [vmem:[#allocation5 + $0x50] sm:$0xff]
    %v1683 = vld [vmem:[#allocation5 + $0x58] sm:$0xff]
    %v1684 = vld [vmem:[#allocation5 + $0x60] sm:$0xff]
    %v1685 = vld [vmem:[#allocation5 + $0x68] sm:$0xff]
    %v1686 = vld [vmem:[#allocation5 + $0x70] sm:$0xff]
    %v1687 = vld [vmem:[#allocation5 + $0x78] sm:$0xff]
    %v1688 = vld [vmem:[#allocation5 + $0x80] sm:$0xff]
    %v1689 = vld [vmem:[#allocation5 + $0x88] sm:$0xff]
    %v1690 = vld [vmem:[#allocation5 + $0x90] sm:$0xff]
    %v1691 = vld [vmem:[#allocation5 + $0x98] sm:$0xff]
    %v1692 = vld [vmem:[#allocation5 + $0xa0] sm:$0xff]
    %v1693 = vld [vmem:[#allocation5 + $0xa8] sm:$0xff]
    %v1694 = vld [vmem:[#allocation5 + $0xb0] sm:$0xff]
    %v1695 = vld [vmem:[#allocation5 + $0xb8] sm:$0xff]
    %v1696 = vld [vmem:[#allocation5 + $0xc0] sm:$0xff]
    %v1697 = vld [vmem:[#allocation5 + $0xc8] sm:$0xff]
    %v1698 = vld [vmem:[#allocation5 + $0xd0] sm:$0xff]
    %v1699 = vld [vmem:[#allocation5 + $0xd8] sm:$0xff]
    %v1700 = vld [vmem:[#allocation5 + $0xe0] sm:$0xff]
    %v1701 = vld [vmem:[#allocation5 + $0xe8] sm:$0xff]
    %v1702 = vld [vmem:[#allocation5 + $0xf0] sm:$0xff]
    %v1703 = vld [vmem:[#allocation5 + $0xf8] sm:$0xff]
    %v1706 = vunpack.c.l.b16 %v1647
    %v1707 = vunpack.c.l.b16 %v1648
    %v1708 = vpack.c.b16 %v1707, %v1706
    %v1742 = vunpack.c.l.b16 %v1672
    %v1743 = vunpack.c.h.b16 %v1672
    %v1744 = vunpack.c.l.b16 %v1673
    %v1745 = vunpack.c.h.b16 %v1673
    %v1746 = vunpack.c.l.b16 %v1674
    %v1747 = vunpack.c.h.b16 %v1674
    %v1748 = vunpack.c.l.b16 %v1675
    %v1749 = vunpack.c.h.b16 %v1675
    %v1750 = vunpack.c.l.b16 %v1676
    %v1751 = vunpack.c.h.b16 %v1676
    %v1752 = vunpack.c.l.b16 %v1677
    %v1753 = vunpack.c.h.b16 %v1677
    %v1754 = vunpack.c.l.b16 %v1678
    %v1755 = vunpack.c.h.b16 %v1678
    %v1756 = vunpack.c.l.b16 %v1679
    %v1757 = vunpack.c.h.b16 %v1679
    %v1758 = vunpack.c.l.b16 %v1680
    %v1759 = vunpack.c.h.b16 %v1680
    %v1760 = vunpack.c.l.b16 %v1681
    %v1761 = vunpack.c.h.b16 %v1681
    %v1762 = vunpack.c.l.b16 %v1682
    %v1763 = vunpack.c.h.b16 %v1682
    %v1764 = vunpack.c.l.b16 %v1683
    %v1765 = vunpack.c.h.b16 %v1683
    %v1766 = vunpack.c.l.b16 %v1684
    %v1767 = vunpack.c.h.b16 %v1684
    %v1768 = vunpack.c.l.b16 %v1685
    %v1769 = vunpack.c.h.b16 %v1685
    %v1770 = vunpack.c.l.b16 %v1686
    %v1771 = vunpack.c.h.b16 %v1686
    %v1772 = vunpack.c.l.b16 %v1687
    %v1773 = vunpack.c.h.b16 %v1687
    %v1774 = vunpack.c.l.b16 %v1688
    %v1775 = vunpack.c.h.b16 %v1688
    %v1776 = vunpack.c.l.b16 %v1689
    %v1777 = vunpack.c.h.b16 %v1689
    %v1778 = vunpack.c.l.b16 %v1690
    %v1779 = vunpack.c.h.b16 %v1690
    %v1780 = vunpack.c.l.b16 %v1691
    %v1781 = vunpack.c.h.b16 %v1691
    %v1782 = vunpack.c.l.b16 %v1692
    %v1783 = vunpack.c.h.b16 %v1692
    %v1784 = vunpack.c.l.b16 %v1693
    %v1785 = vunpack.c.h.b16 %v1693
    %v1786 = vunpack.c.l.b16 %v1694
    %v1787 = vunpack.c.h.b16 %v1694
    %v1788 = vunpack.c.l.b16 %v1695
    %v1789 = vunpack.c.h.b16 %v1695
    %v1790 = vunpack.c.l.b16 %v1696
    %v1791 = vunpack.c.h.b16 %v1696
    %v1792 = vunpack.c.l.b16 %v1697
    %v1793 = vunpack.c.h.b16 %v1697
    %v1794 = vunpack.c.l.b16 %v1698
    %v1795 = vunpack.c.h.b16 %v1698
    %v1796 = vunpack.c.l.b16 %v1699
    %v1797 = vunpack.c.h.b16 %v1699
    %v1798 = vunpack.c.l.b16 %v1700
    %v1799 = vunpack.c.h.b16 %v1700
    %v1800 = vunpack.c.l.b16 %v1701
    %v1801 = vunpack.c.h.b16 %v1701
    %v1802 = vunpack.c.l.b16 %v1702
    %v1803 = vunpack.c.h.b16 %v1702
    %v1804 = vunpack.c.l.b16 %v1703
    %v1805 = vunpack.c.h.b16 %v1703
    %v1806 = vpack.c.b16 %v1746, %v1742
    %v1807 = vpack.c.b16 %v1747, %v1743
    %v1808 = vpack.c.b16 %v1748, %v1744
    %v1809 = vpack.c.b16 %v1749, %v1745
    %v1810 = vpack.c.b16 %v1754, %v1750
    %v1811 = vpack.c.b16 %v1755, %v1751
    %v1812 = vpack.c.b16 %v1756, %v1752
    %v1813 = vpack.c.b16 %v1757, %v1753
    %v1814 = vpack.c.b16 %v1762, %v1758
    %v1815 = vpack.c.b16 %v1763, %v1759
    %v1816 = vpack.c.b16 %v1764, %v1760
    %v1817 = vpack.c.b16 %v1765, %v1761
    %v1818 = vpack.c.b16 %v1770, %v1766
    %v1819 = vpack.c.b16 %v1771, %v1767
    %v1820 = vpack.c.b16 %v1772, %v1768
    %v1821 = vpack.c.b16 %v1773, %v1769
    %v1822 = vpack.c.b16 %v1778, %v1774
    %v1823 = vpack.c.b16 %v1779, %v1775
    %v1824 = vpack.c.b16 %v1780, %v1776
    %v1825 = vpack.c.b16 %v1781, %v1777
    %v1826 = vpack.c.b16 %v1786, %v1782
    %v1827 = vpack.c.b16 %v1787, %v1783
    %v1828 = vpack.c.b16 %v1788, %v1784
    %v1829 = vpack.c.b16 %v1789, %v1785
    %v1830 = vpack.c.b16 %v1794, %v1790
    %v1831 = vpack.c.b16 %v1795, %v1791
    %v1832 = vpack.c.b16 %v1796, %v1792
    %v1833 = vpack.c.b16 %v1797, %v1793
    %v1834 = vpack.c.b16 %v1802, %v1798
    %v1835 = vpack.c.b16 %v1803, %v1799
    %v1836 = vpack.c.b16 %v1804, %v1800
    %v1837 = vpack.c.b16 %v1805, %v1801
    %1870 = vmatpush.bf16.msra.mxu0 %v1834
    %1871 = vmatpush.bf16.msra.mxu0 %v1830
    %1872 = vmatpush.bf16.msra.mxu0 %v1826
    %1873 = vmatpush.bf16.msra.mxu0 %v1822
    %1874 = vmatpush.bf16.msra.mxu0 %v1818
    %1875 = vmatpush.bf16.msra.mxu0 %v1814
    %1876 = vmatpush.bf16.msra.mxu0 %v1810
    %1877 = vmatpush.bf16.msra.mxu0 %v1806
    %1878 = vmatmul.bf16.gmra.mxu0 %v1708
    %v1879 = vpop.f32.mrf.mxu0
    %v1880 = vadd.f32 0.0, %v1879
    %v1881 = vpop.f32.mrf.mxu0
    %v1882 = vadd.f32 0.0, %v1881
    %1883 = vdwg.mxu0
    %1884 = vmatpush.bf16.msra.mxu0 %v1835
    %1885 = vmatpush.bf16.msra.mxu0 %v1831
    %1886 = vmatpush.bf16.msra.mxu0 %v1827
    %1887 = vmatpush.bf16.msra.mxu0 %v1823
    %1888 = vmatpush.bf16.msra.mxu0 %v1819
    %1889 = vmatpush.bf16.msra.mxu0 %v1815
    %1890 = vmatpush.bf16.msra.mxu0 %v1811
    %1891 = vmatpush.bf16.msra.mxu0 %v1807
    %1892 = vmatmul.bf16.gmra.mxu0 %v1708
    %v1893 = vpop.f32.mrf.mxu0
    %v1894 = vadd.f32 0.0, %v1893
    %v1895 = vpop.f32.mrf.mxu0
    %v1896 = vadd.f32 0.0, %v1895
    %1897 = vdwg.mxu0
    %1898 = vmatpush.bf16.msra.mxu0 %v1836
    %1899 = vmatpush.bf16.msra.mxu0 %v1832
    %1900 = vmatpush.bf16.msra.mxu0 %v1828
    %1901 = vmatpush.bf16.msra.mxu0 %v1824
    %1902 = vmatpush.bf16.msra.mxu0 %v1820
    %1903 = vmatpush.bf16.msra.mxu0 %v1816
    %1904 = vmatpush.bf16.msra.mxu0 %v1812
    %1905 = vmatpush.bf16.msra.mxu0 %v1808
    %1906 = vmatmul.bf16.gmra.mxu0 %v1708
    %v1907 = vpop.f32.mrf.mxu0
    %v1908 = vadd.f32 0.0, %v1907
    %v1909 = vpop.f32.mrf.mxu0
    %v1910 = vadd.f32 0.0, %v1909
    %1911 = vdwg.mxu0
    %1912 = vmatpush.bf16.msra.mxu0 %v1837
    %1913 = vmatpush.bf16.msra.mxu0 %v1833
    %1914 = vmatpush.bf16.msra.mxu0 %v1829
    %1915 = vmatpush.bf16.msra.mxu0 %v1825
    %1916 = vmatpush.bf16.msra.mxu0 %v1821
    %1917 = vmatpush.bf16.msra.mxu0 %v1817
    %1918 = vmatpush.bf16.msra.mxu0 %v1813
    %1919 = vmatpush.bf16.msra.mxu0 %v1809
    %1920 = vmatmul.bf16.gmra.mxu0 %v1708
    %v1921 = vpop.f32.mrf.mxu0
    %v1922 = vadd.f32 0.0, %v1921
    %v1923 = vpop.f32.mrf.mxu0
    %v1924 = vadd.f32 0.0, %v1923
    %1925 = vdwg.mxu0
    %v1926 = vadd.f32 %v1664, %v1880
    %v1927 = vadd.f32 %v1665, %v1894
    %v1928 = vadd.f32 %v1666, %v1908
    %v1929 = vadd.f32 %v1667, %v1922
    %v1930 = vadd.f32 %v1668, %v1882
    %v1931 = vadd.f32 %v1669, %v1896
    %v1932 = vadd.f32 %v1670, %v1910
    %v1933 = vadd.f32 %v1671, %v1924
    %s1934 = smul.u32 12, 4
    %s1935 = smul.addr %s1934, 8
    %s1936 = scalar_lea.vmem [#allocation3], %s1935
    %v1937 = vld [vmem:[%s1936] sm:$0xff]
    %v1938 = vld [vmem:[%s1936 + $0x8] sm:$0xff]
    %v1939 = vld [vmem:[%s1936 + $0x10] sm:$0xff]
    %v1940 = vld [vmem:[%s1936 + $0x18] sm:$0xff]
    %v1941 = vld [vmem:[%s1936 + $0x20] sm:$0xff]
    %v1942 = vld [vmem:[%s1936 + $0x28] sm:$0xff]
    %v1943 = vld [vmem:[%s1936 + $0x30] sm:$0xff]
    %v1944 = vld [vmem:[%s1936 + $0x38] sm:$0xff]
    %v1945 = vld [vmem:[#allocation8] sm:$0xff]
    %v1946 = vld [vmem:[#allocation8 + $0x8] sm:$0xff]
    %v1947 = vld [vmem:[#allocation8 + $0x10] sm:$0xff]
    %v1948 = vld [vmem:[#allocation8 + $0x18] sm:$0xff]
    %v1949 = vld [vmem:[#allocation8 + $0x20] sm:$0xff]
    %v1950 = vld [vmem:[#allocation8 + $0x28] sm:$0xff]
    %v1951 = vld [vmem:[#allocation8 + $0x30] sm:$0xff]
    %v1952 = vld [vmem:[#allocation8 + $0x38] sm:$0xff]
    %v1953 = vld [vmem:[#allocation8 + $0x40] sm:$0xff]
    %v1954 = vld [vmem:[#allocation8 + $0x48] sm:$0xff]
    %v1955 = vld [vmem:[#allocation8 + $0x50] sm:$0xff]
    %v1956 = vld [vmem:[#allocation8 + $0x58] sm:$0xff]
    %v1957 = vld [vmem:[#allocation8 + $0x60] sm:$0xff]
    %v1958 = vld [vmem:[#allocation8 + $0x68] sm:$0xff]
    %v1959 = vld [vmem:[#allocation8 + $0x70] sm:$0xff]
    %v1960 = vld [vmem:[#allocation8 + $0x78] sm:$0xff]
    %v1961 = vld [vmem:[#allocation8 + $0x80] sm:$0xff]
    %v1962 = vld [vmem:[#allocation8 + $0x88] sm:$0xff]
    %v1963 = vld [vmem:[#allocation8 + $0x90] sm:$0xff]
    %v1964 = vld [vmem:[#allocation8 + $0x98] sm:$0xff]
    %v1965 = vld [vmem:[#allocation8 + $0xa0] sm:$0xff]
    %v1966 = vld [vmem:[#allocation8 + $0xa8] sm:$0xff]
    %v1967 = vld [vmem:[#allocation8 + $0xb0] sm:$0xff]
    %v1968 = vld [vmem:[#allocation8 + $0xb8] sm:$0xff]
    %v1969 = vld [vmem:[#allocation8 + $0xc0] sm:$0xff]
    %v1970 = vld [vmem:[#allocation8 + $0xc8] sm:$0xff]
    %v1971 = vld [vmem:[#allocation8 + $0xd0] sm:$0xff]
    %v1972 = vld [vmem:[#allocation8 + $0xd8] sm:$0xff]
    %v1973 = vld [vmem:[#allocation8 + $0xe0] sm:$0xff]
    %v1974 = vld [vmem:[#allocation8 + $0xe8] sm:$0xff]
    %v1975 = vld [vmem:[#allocation8 + $0xf0] sm:$0xff]
    %v1976 = vld [vmem:[#allocation8 + $0xf8] sm:$0xff]
    %v1979 = vunpack.c.l.b16 %v1654
    %v1980 = vunpack.c.l.b16 %v1655
    %v1981 = vpack.c.b16 %v1980, %v1979
    %v2015 = vunpack.c.l.b16 %v1945
    %v2016 = vunpack.c.h.b16 %v1945
    %v2017 = vunpack.c.l.b16 %v1946
    %v2018 = vunpack.c.h.b16 %v1946
    %v2019 = vunpack.c.l.b16 %v1947
    %v2020 = vunpack.c.h.b16 %v1947
    %v2021 = vunpack.c.l.b16 %v1948
    %v2022 = vunpack.c.h.b16 %v1948
    %v2023 = vunpack.c.l.b16 %v1949
    %v2024 = vunpack.c.h.b16 %v1949
    %v2025 = vunpack.c.l.b16 %v1950
    %v2026 = vunpack.c.h.b16 %v1950
    %v2027 = vunpack.c.l.b16 %v1951
    %v2028 = vunpack.c.h.b16 %v1951
    %v2029 = vunpack.c.l.b16 %v1952
    %v2030 = vunpack.c.h.b16 %v1952
    %v2031 = vunpack.c.l.b16 %v1953
    %v2032 = vunpack.c.h.b16 %v1953
    %v2033 = vunpack.c.l.b16 %v1954
    %v2034 = vunpack.c.h.b16 %v1954
    %v2035 = vunpack.c.l.b16 %v1955
    %v2036 = vunpack.c.h.b16 %v1955
    %v2037 = vunpack.c.l.b16 %v1956
    %v2038 = vunpack.c.h.b16 %v1956
    %v2039 = vunpack.c.l.b16 %v1957
    %v2040 = vunpack.c.h.b16 %v1957
    %v2041 = vunpack.c.l.b16 %v1958
    %v2042 = vunpack.c.h.b16 %v1958
    %v2043 = vunpack.c.l.b16 %v1959
    %v2044 = vunpack.c.h.b16 %v1959
    %v2045 = vunpack.c.l.b16 %v1960
    %v2046 = vunpack.c.h.b16 %v1960
    %v2047 = vunpack.c.l.b16 %v1961
    %v2048 = vunpack.c.h.b16 %v1961
    %v2049 = vunpack.c.l.b16 %v1962
    %v2050 = vunpack.c.h.b16 %v1962
    %v2051 = vunpack.c.l.b16 %v1963
    %v2052 = vunpack.c.h.b16 %v1963
    %v2053 = vunpack.c.l.b16 %v1964
    %v2054 = vunpack.c.h.b16 %v1964
    %v2055 = vunpack.c.l.b16 %v1965
    %v2056 = vunpack.c.h.b16 %v1965
    %v2057 = vunpack.c.l.b16 %v1966
    %v2058 = vunpack.c.h.b16 %v1966
    %v2059 = vunpack.c.l.b16 %v1967
    %v2060 = vunpack.c.h.b16 %v1967
    %v2061 = vunpack.c.l.b16 %v1968
    %v2062 = vunpack.c.h.b16 %v1968
    %v2063 = vunpack.c.l.b16 %v1969
    %v2064 = vunpack.c.h.b16 %v1969
    %v2065 = vunpack.c.l.b16 %v1970
    %v2066 = vunpack.c.h.b16 %v1970
    %v2067 = vunpack.c.l.b16 %v1971
    %v2068 = vunpack.c.h.b16 %v1971
    %v2069 = vunpack.c.l.b16 %v1972
    %v2070 = vunpack.c.h.b16 %v1972
    %v2071 = vunpack.c.l.b16 %v1973
    %v2072 = vunpack.c.h.b16 %v1973
    %v2073 = vunpack.c.l.b16 %v1974
    %v2074 = vunpack.c.h.b16 %v1974
    %v2075 = vunpack.c.l.b16 %v1975
    %v2076 = vunpack.c.h.b16 %v1975
    %v2077 = vunpack.c.l.b16 %v1976
    %v2078 = vunpack.c.h.b16 %v1976
    %v2079 = vpack.c.b16 %v2019, %v2015
    %v2080 = vpack.c.b16 %v2020, %v2016
    %v2081 = vpack.c.b16 %v2021, %v2017
    %v2082 = vpack.c.b16 %v2022, %v2018
    %v2083 = vpack.c.b16 %v2027, %v2023
    %v2084 = vpack.c.b16 %v2028, %v2024
    %v2085 = vpack.c.b16 %v2029, %v2025
    %v2086 = vpack.c.b16 %v2030, %v2026
    %v2087 = vpack.c.b16 %v2035, %v2031
    %v2088 = vpack.c.b16 %v2036, %v2032
    %v2089 = vpack.c.b16 %v2037, %v2033
    %v2090 = vpack.c.b16 %v2038, %v2034
    %v2091 = vpack.c.b16 %v2043, %v2039
    %v2092 = vpack.c.b16 %v2044, %v2040
    %v2093 = vpack.c.b16 %v2045, %v2041
    %v2094 = vpack.c.b16 %v2046, %v2042
    %v2095 = vpack.c.b16 %v2051, %v2047
    %v2096 = vpack.c.b16 %v2052, %v2048
    %v2097 = vpack.c.b16 %v2053, %v2049
    %v2098 = vpack.c.b16 %v2054, %v2050
    %v2099 = vpack.c.b16 %v2059, %v2055
    %v2100 = vpack.c.b16 %v2060, %v2056
    %v2101 = vpack.c.b16 %v2061, %v2057
    %v2102 = vpack.c.b16 %v2062, %v2058
    %v2103 = vpack.c.b16 %v2067, %v2063
    %v2104 = vpack.c.b16 %v2068, %v2064
    %v2105 = vpack.c.b16 %v2069, %v2065
    %v2106 = vpack.c.b16 %v2070, %v2066
    %v2107 = vpack.c.b16 %v2075, %v2071
    %v2108 = vpack.c.b16 %v2076, %v2072
    %v2109 = vpack.c.b16 %v2077, %v2073
    %v2110 = vpack.c.b16 %v2078, %v2074
    %2143 = vmatpush.bf16.msra.mxu0 %v2107
    %2144 = vmatpush.bf16.msra.mxu0 %v2103
    %2145 = vmatpush.bf16.msra.mxu0 %v2099
    %2146 = vmatpush.bf16.msra.mxu0 %v2095
    %2147 = vmatpush.bf16.msra.mxu0 %v2091
    %2148 = vmatpush.bf16.msra.mxu0 %v2087
    %2149 = vmatpush.bf16.msra.mxu0 %v2083
    %2150 = vmatpush.bf16.msra.mxu0 %v2079
    %2151 = vmatmul.bf16.gmra.mxu0 %v1981
    %v2152 = vpop.f32.mrf.mxu0
    %v2153 = vadd.f32 0.0, %v2152
    %v2154 = vpop.f32.mrf.mxu0
    %v2155 = vadd.f32 0.0, %v2154
    %2156 = vdwg.mxu0
    %2157 = vmatpush.bf16.msra.mxu0 %v2108
    %2158 = vmatpush.bf16.msra.mxu0 %v2104
    %2159 = vmatpush.bf16.msra.mxu0 %v2100
    %2160 = vmatpush.bf16.msra.mxu0 %v2096
    %2161 = vmatpush.bf16.msra.mxu0 %v2092
    %2162 = vmatpush.bf16.msra.mxu0 %v2088
    %2163 = vmatpush.bf16.msra.mxu0 %v2084
    %2164 = vmatpush.bf16.msra.mxu0 %v2080
    %2165 = vmatmul.bf16.gmra.mxu0 %v1981
    %v2166 = vpop.f32.mrf.mxu0
    %v2167 = vadd.f32 0.0, %v2166
    %v2168 = vpop.f32.mrf.mxu0
    %v2169 = vadd.f32 0.0, %v2168
    %2170 = vdwg.mxu0
    %2171 = vmatpush.bf16.msra.mxu0 %v2109
    %2172 = vmatpush.bf16.msra.mxu0 %v2105
    %2173 = vmatpush.bf16.msra.mxu0 %v2101
    %2174 = vmatpush.bf16.msra.mxu0 %v2097
    %2175 = vmatpush.bf16.msra.mxu0 %v2093
    %2176 = vmatpush.bf16.msra.mxu0 %v2089
    %2177 = vmatpush.bf16.msra.mxu0 %v2085
    %2178 = vmatpush.bf16.msra.mxu0 %v2081
    %2179 = vmatmul.bf16.gmra.mxu0 %v1981
    %v2180 = vpop.f32.mrf.mxu0
    %v2181 = vadd.f32 0.0, %v2180
    %v2182 = vpop.f32.mrf.mxu0
    %v2183 = vadd.f32 0.0, %v2182
    %2184 = vdwg.mxu0
    %2185 = vmatpush.bf16.msra.mxu0 %v2110
    %2186 = vmatpush.bf16.msra.mxu0 %v2106
    %2187 = vmatpush.bf16.msra.mxu0 %v2102
    %2188 = vmatpush.bf16.msra.mxu0 %v2098
    %2189 = vmatpush.bf16.msra.mxu0 %v2094
    %2190 = vmatpush.bf16.msra.mxu0 %v2090
    %2191 = vmatpush.bf16.msra.mxu0 %v2086
    %2192 = vmatpush.bf16.msra.mxu0 %v2082
    %2193 = vmatmul.bf16.gmra.mxu0 %v1981
    %v2194 = vpop.f32.mrf.mxu0
    %v2195 = vadd.f32 0.0, %v2194
    %v2196 = vpop.f32.mrf.mxu0
    %v2197 = vadd.f32 0.0, %v2196
    %2198 = vdwg.mxu0
    %v2199 = vadd.f32 %v1937, %v2153
    %v2200 = vadd.f32 %v1938, %v2167
    %v2201 = vadd.f32 %v1939, %v2181
    %v2202 = vadd.f32 %v1940, %v2195
    %v2203 = vadd.f32 %v1941, %v2155
    %v2204 = vadd.f32 %v1942, %v2169
    %v2205 = vadd.f32 %v1943, %v2183
    %v2206 = vadd.f32 %v1944, %v2197
    %v2207 = vxor.u32 %v1926, 2147483648
    %v2208 = vxor.u32 %v1927, 2147483648
    %v2209 = vxor.u32 %v1929, 2147483648
    %v2210 = vxor.u32 %v1930, 2147483648
    %v2211 = vxor.u32 %v1931, 2147483648
    %v2212 = vxor.u32 %v1933, 2147483648
    %v2213 = vmul.f32 %v2207, 1.442695
    %v2214 = vpow.pop %v2213
    %v2215 = vmul.f32 %v2208, 1.442695
    %v2216 = vpow.pop %v2215
    %v2217 = vmul.f32 %v2209, 1.442695
    %v2218 = vpow.pop %v2217
    %v2219 = vmul.f32 %v2210, 1.442695
    %v2220 = vpow.pop %v2219
    %v2221 = vmul.f32 %v2211, 1.442695
    %v2222 = vpow.pop %v2221
    %v2223 = vmul.f32 %v2212, 1.442695
    %v2224 = vpow.pop %v2223
    %v2225 = vadd.f32 %v2214, 1.0
    %v2226 = vadd.f32 %v2216, 1.0
    %v2227 = vadd.f32 %v2218, 1.0
    %v2228 = vadd.f32 %v2220, 1.0
    %v2229 = vadd.f32 %v2222, 1.0
    %v2230 = vadd.f32 %v2224, 1.0
    %v2231 = vrcp.pop %v2225
    %v2232 = vmul.f32 %v2225, %v2231
    %v2233 = vsub.f32 1.0, %v2232
    %v2234 = vmul.f32 %v2231, %v2233
    %v2235 = vadd.f32 %v2231, %v2234
    %vm2236 = vweird.f32 %v2225
    %vm2237 = vweird.f32 %v2231
    %vm2238 = vmor %vm2236, %vm2237
    %v2239 = vsel %vm2238, %v2231, %v2235
    %v2240 = vand.u32 2147483647, %v2225
    %vm2241 = vcmp.eq.f32.partialorder %v2240, 8.507059e+37
    %v2242 = vand.u32 %v2225, 2147483648
    %v2243 = vor.u32 1.1754944e-38, %v2242
    %v2244 = vsel %vm2241, %v2243, %v2239
    %v2245 = vmul.f32 1.0, %v2244
    %v2246 = vrcp.pop %v2226
    %v2247 = vmul.f32 %v2226, %v2246
    %v2248 = vsub.f32 1.0, %v2247
    %v2249 = vmul.f32 %v2246, %v2248
    %v2250 = vadd.f32 %v2246, %v2249
    %vm2251 = vweird.f32 %v2226
    %vm2252 = vweird.f32 %v2246
    %vm2253 = vmor %vm2251, %vm2252
    %v2254 = vsel %vm2253, %v2246, %v2250
    %v2255 = vand.u32 2147483647, %v2226
    %vm2256 = vcmp.eq.f32.partialorder %v2255, 8.507059e+37
    %v2257 = vand.u32 %v2226, 2147483648
    %v2258 = vor.u32 1.1754944e-38, %v2257
    %v2259 = vsel %vm2256, %v2258, %v2254
    %v2260 = vmul.f32 1.0, %v2259
    %v2261 = vrcp.pop %v2227
    %v2262 = vmul.f32 %v2227, %v2261
    %v2263 = vsub.f32 1.0, %v2262
    %v2264 = vmul.f32 %v2261, %v2263
    %v2265 = vadd.f32 %v2261, %v2264
    %vm2266 = vweird.f32 %v2227
    %vm2267 = vweird.f32 %v2261
    %vm2268 = vmor %vm2266, %vm2267
    %v2269 = vsel %vm2268, %v2261, %v2265
    %v2270 = vand.u32 2147483647, %v2227
    %vm2271 = vcmp.eq.f32.partialorder %v2270, 8.507059e+37
    %v2272 = vand.u32 %v2227, 2147483648
    %v2273 = vor.u32 1.1754944e-38, %v2272
    %v2274 = vsel %vm2271, %v2273, %v2269
    %v2275 = vmul.f32 1.0, %v2274
    %v2276 = vrcp.pop %v2228
    %v2277 = vmul.f32 %v2228, %v2276
    %v2278 = vsub.f32 1.0, %v2277
    %v2279 = vmul.f32 %v2276, %v2278
    %v2280 = vadd.f32 %v2276, %v2279
    %vm2281 = vweird.f32 %v2228
    %vm2282 = vweird.f32 %v2276
    %vm2283 = vmor %vm2281, %vm2282
    %v2284 = vsel %vm2283, %v2276, %v2280
    %v2285 = vand.u32 2147483647, %v2228
    %vm2286 = vcmp.eq.f32.partialorder %v2285, 8.507059e+37
    %v2287 = vand.u32 %v2228, 2147483648
    %v2288 = vor.u32 1.1754944e-38, %v2287
    %v2289 = vsel %vm2286, %v2288, %v2284
    %v2290 = vmul.f32 1.0, %v2289
    %v2291 = vrcp.pop %v2229
    %v2292 = vmul.f32 %v2229, %v2291
    %v2293 = vsub.f32 1.0, %v2292
    %v2294 = vmul.f32 %v2291, %v2293
    %v2295 = vadd.f32 %v2291, %v2294
    %vm2296 = vweird.f32 %v2229
    %vm2297 = vweird.f32 %v2291
    %vm2298 = vmor %vm2296, %vm2297
    %v2299 = vsel %vm2298, %v2291, %v2295
    %v2300 = vand.u32 2147483647, %v2229
    %vm2301 = vcmp.eq.f32.partialorder %v2300, 8.507059e+37
    %v2302 = vand.u32 %v2229, 2147483648
    %v2303 = vor.u32 1.1754944e-38, %v2302
    %v2304 = vsel %vm2301, %v2303, %v2299
    %v2305 = vmul.f32 1.0, %v2304
    %v2306 = vrcp.pop %v2230
    %v2307 = vmul.f32 %v2230, %v2306
    %v2308 = vsub.f32 1.0, %v2307
    %v2309 = vmul.f32 %v2306, %v2308
    %v2310 = vadd.f32 %v2306, %v2309
    %vm2311 = vweird.f32 %v2230
    %vm2312 = vweird.f32 %v2306
    %vm2313 = vmor %vm2311, %vm2312
    %v2314 = vsel %vm2313, %v2306, %v2310
    %v2315 = vand.u32 2147483647, %v2230
    %vm2316 = vcmp.eq.f32.partialorder %v2315, 8.507059e+37
    %v2317 = vand.u32 %v2230, 2147483648
    %v2318 = vor.u32 1.1754944e-38, %v2317
    %v2319 = vsel %vm2316, %v2318, %v2314
    %v2320 = vmul.f32 1.0, %v2319
    %v2321 = vtanh.pop %v1928
    %v2322 = vtanh.pop %v1932
    %v2323 = vmul.f32 %v2260, %v1515
    %v2324 = vmul.f32 %v2305, %v1516
    %v2325 = vmul.f32 %v2245, %v2321
    %v2326 = vmul.f32 %v2290, %v2322
    %v2327 = vadd.f32 %v2323, %v2325
    %v2328 = vadd.f32 %v2324, %v2326
    %v2329 = vtanh.pop %v2327
    %v2330 = vtanh.pop %v2328
    %v2331 = vmul.f32 %v2275, %v2329
    %v2332 = vmul.f32 %v2320, %v2330
    %v2333 = vxor.u32 %v2199, 2147483648
    %v2334 = vxor.u32 %v2200, 2147483648
    %v2335 = vxor.u32 %v2202, 2147483648
    %v2336 = vxor.u32 %v2203, 2147483648
    %v2337 = vxor.u32 %v2204, 2147483648
    %v2338 = vxor.u32 %v2206, 2147483648
    %v2339 = vmul.f32 %v2333, 1.442695
    %v2340 = vpow.pop %v2339
    %v2341 = vmul.f32 %v2334, 1.442695
    %v2342 = vpow.pop %v2341
    %v2343 = vmul.f32 %v2335, 1.442695
    %v2344 = vpow.pop %v2343
    %v2345 = vmul.f32 %v2336, 1.442695
    %v2346 = vpow.pop %v2345
    %v2347 = vmul.f32 %v2337, 1.442695
    %v2348 = vpow.pop %v2347
    %v2349 = vmul.f32 %v2338, 1.442695
    %v2350 = vpow.pop %v2349
    %v2351 = vadd.f32 %v2340, 1.0
    %v2352 = vadd.f32 %v2342, 1.0
    %v2353 = vadd.f32 %v2344, 1.0
    %v2354 = vadd.f32 %v2346, 1.0
    %v2355 = vadd.f32 %v2348, 1.0
    %v2356 = vadd.f32 %v2350, 1.0
    %v2357 = vrcp.pop %v2351
    %v2358 = vmul.f32 %v2351, %v2357
    %v2359 = vsub.f32 1.0, %v2358
    %v2360 = vmul.f32 %v2357, %v2359
    %v2361 = vadd.f32 %v2357, %v2360
    %vm2362 = vweird.f32 %v2351
    %vm2363 = vweird.f32 %v2357
    %vm2364 = vmor %vm2362, %vm2363
    %v2365 = vsel %vm2364, %v2357, %v2361
    %v2366 = vand.u32 2147483647, %v2351
    %vm2367 = vcmp.eq.f32.partialorder %v2366, 8.507059e+37
    %v2368 = vand.u32 %v2351, 2147483648
    %v2369 = vor.u32 1.1754944e-38, %v2368
    %v2370 = vsel %vm2367, %v2369, %v2365
    %v2371 = vmul.f32 1.0, %v2370
    %v2372 = vrcp.pop %v2352
    %v2373 = vmul.f32 %v2352, %v2372
    %v2374 = vsub.f32 1.0, %v2373
    %v2375 = vmul.f32 %v2372, %v2374
    %v2376 = vadd.f32 %v2372, %v2375
    %vm2377 = vweird.f32 %v2352
    %vm2378 = vweird.f32 %v2372
    %vm2379 = vmor %vm2377, %vm2378
    %v2380 = vsel %vm2379, %v2372, %v2376
    %v2381 = vand.u32 2147483647, %v2352
    %vm2382 = vcmp.eq.f32.partialorder %v2381, 8.507059e+37
    %v2383 = vand.u32 %v2352, 2147483648
    %v2384 = vor.u32 1.1754944e-38, %v2383
    %v2385 = vsel %vm2382, %v2384, %v2380
    %v2386 = vmul.f32 1.0, %v2385
    %v2387 = vrcp.pop %v2353
    %v2388 = vmul.f32 %v2353, %v2387
    %v2389 = vsub.f32 1.0, %v2388
    %v2390 = vmul.f32 %v2387, %v2389
    %v2391 = vadd.f32 %v2387, %v2390
    %vm2392 = vweird.f32 %v2353
    %vm2393 = vweird.f32 %v2387
    %vm2394 = vmor %vm2392, %vm2393
    %v2395 = vsel %vm2394, %v2387, %v2391
    %v2396 = vand.u32 2147483647, %v2353
    %vm2397 = vcmp.eq.f32.partialorder %v2396, 8.507059e+37
    %v2398 = vand.u32 %v2353, 2147483648
    %v2399 = vor.u32 1.1754944e-38, %v2398
    %v2400 = vsel %vm2397, %v2399, %v2395
    %v2401 = vmul.f32 1.0, %v2400
    %v2402 = vrcp.pop %v2354
    %v2403 = vmul.f32 %v2354, %v2402
    %v2404 = vsub.f32 1.0, %v2403
    %v2405 = vmul.f32 %v2402, %v2404
    %v2406 = vadd.f32 %v2402, %v2405
    %vm2407 = vweird.f32 %v2354
    %vm2408 = vweird.f32 %v2402
    %vm2409 = vmor %vm2407, %vm2408
    %v2410 = vsel %vm2409, %v2402, %v2406
    %v2411 = vand.u32 2147483647, %v2354
    %vm2412 = vcmp.eq.f32.partialorder %v2411, 8.507059e+37
    %v2413 = vand.u32 %v2354, 2147483648
    %v2414 = vor.u32 1.1754944e-38, %v2413
    %v2415 = vsel %vm2412, %v2414, %v2410
    %v2416 = vmul.f32 1.0, %v2415
    %v2417 = vrcp.pop %v2355
    %v2418 = vmul.f32 %v2355, %v2417
    %v2419 = vsub.f32 1.0, %v2418
    %v2420 = vmul.f32 %v2417, %v2419
    %v2421 = vadd.f32 %v2417, %v2420
    %vm2422 = vweird.f32 %v2355
    %vm2423 = vweird.f32 %v2417
    %vm2424 = vmor %vm2422, %vm2423
    %v2425 = vsel %vm2424, %v2417, %v2421
    %v2426 = vand.u32 2147483647, %v2355
    %vm2427 = vcmp.eq.f32.partialorder %v2426, 8.507059e+37
    %v2428 = vand.u32 %v2355, 2147483648
    %v2429 = vor.u32 1.1754944e-38, %v2428
    %v2430 = vsel %vm2427, %v2429, %v2425
    %v2431 = vmul.f32 1.0, %v2430
    %v2432 = vrcp.pop %v2356
    %v2433 = vmul.f32 %v2356, %v2432
    %v2434 = vsub.f32 1.0, %v2433
    %v2435 = vmul.f32 %v2432, %v2434
    %v2436 = vadd.f32 %v2432, %v2435
    %vm2437 = vweird.f32 %v2356
    %vm2438 = vweird.f32 %v2432
    %vm2439 = vmor %vm2437, %vm2438
    %v2440 = vsel %vm2439, %v2432, %v2436
    %v2441 = vand.u32 2147483647, %v2356
    %vm2442 = vcmp.eq.f32.partialorder %v2441, 8.507059e+37
    %v2443 = vand.u32 %v2356, 2147483648
    %v2444 = vor.u32 1.1754944e-38, %v2443
    %v2445 = vsel %vm2442, %v2444, %v2440
    %v2446 = vmul.f32 1.0, %v2445
    %v2447 = vtanh.pop %v2201
    %v2448 = vtanh.pop %v2205
    %v2449 = vmul.f32 %v2386, %v1641
    %v2450 = vmul.f32 %v2431, %v1642
    %v2451 = vmul.f32 %v2371, %v2447
    %v2452 = vmul.f32 %v2416, %v2448
    %v2453 = vadd.f32 %v2449, %v2451
    %v2454 = vadd.f32 %v2450, %v2452
    %v2455 = vtanh.pop %v2453
    %v2456 = vtanh.pop %v2454
    %v2457 = vmul.f32 %v2401, %v2455
    %v2458 = vmul.f32 %v2446, %v2456
    %v2459 = vpack.c.bf16 %v2331, %v2331
    %v2460 = vpack.c.bf16 %v2332, %v2332
    %s2461 = smul.u32 2, 2
    %s2462 = smul.addr %s2461, 4
    %s2463 = scalar_lea.vmem [#allocation4], %s2462
    %2464 = vst [vmem:[%s2463] sm:$0xf] %v2459
    %2465 = vst [vmem:[%s2463 + $0x8] sm:$0xf] %v2460
    %v2466 = vpack.c.bf16 %v2457, %v2457
    %v2467 = vpack.c.bf16 %v2458, %v2458
    %s2468 = smul.u32 12, 2
    %s2469 = smul.addr %s2468, 4
    %s2470 = scalar_lea.vmem [#allocation4], %s2469
    %2471 = vst [vmem:[%s2470 + $0x4] sm:$0xf] %v2466
    %2472 = vst [vmem:[%s2470 + $0xc] sm:$0xf] %v2467
    %s2473 = smul.u32 4, 4
    %s2474 = smul.addr %s2473, 8
    %s2475 = scalar_lea.vmem [#allocation2], %s2474
    %v2476 = vld [vmem:[%s2475] sm:$0xff]
    %v2477 = vld [vmem:[%s2475 + $0x8] sm:$0xff]
    %v2478 = vld [vmem:[%s2475 + $0x10] sm:$0xff]
    %v2479 = vld [vmem:[%s2475 + $0x18] sm:$0xff]
    %v2480 = vld [vmem:[%s2475 + $0x20] sm:$0xff]
    %v2481 = vld [vmem:[%s2475 + $0x28] sm:$0xff]
    %v2482 = vld [vmem:[%s2475 + $0x30] sm:$0xff]
    %v2483 = vld [vmem:[%s2475 + $0x38] sm:$0xff]
    %v2484 = vld [vmem:[#allocation5] sm:$0xff]
    %v2485 = vld [vmem:[#allocation5 + $0x8] sm:$0xff]
    %v2486 = vld [vmem:[#allocation5 + $0x10] sm:$0xff]
    %v2487 = vld [vmem:[#allocation5 + $0x18] sm:$0xff]
    %v2488 = vld [vmem:[#allocation5 + $0x20] sm:$0xff]
    %v2489 = vld [vmem:[#allocation5 + $0x28] sm:$0xff]
    %v2490 = vld [vmem:[#allocation5 + $0x30] sm:$0xff]
    %v2491 = vld [vmem:[#allocation5 + $0x38] sm:$0xff]
    %v2492 = vld [vmem:[#allocation5 + $0x40] sm:$0xff]
    %v2493 = vld [vmem:[#allocation5 + $0x48] sm:$0xff]
    %v2494 = vld [vmem:[#allocation5 + $0x50] sm:$0xff]
    %v2495 = vld [vmem:[#allocation5 + $0x58] sm:$0xff]
    %v2496 = vld [vmem:[#allocation5 + $0x60] sm:$0xff]
    %v2497 = vld [vmem:[#allocation5 + $0x68] sm:$0xff]
    %v2498 = vld [vmem:[#allocation5 + $0x70] sm:$0xff]
    %v2499 = vld [vmem:[#allocation5 + $0x78] sm:$0xff]
    %v2500 = vld [vmem:[#allocation5 + $0x80] sm:$0xff]
    %v2501 = vld [vmem:[#allocation5 + $0x88] sm:$0xff]
    %v2502 = vld [vmem:[#allocation5 + $0x90] sm:$0xff]
    %v2503 = vld [vmem:[#allocation5 + $0x98] sm:$0xff]
    %v2504 = vld [vmem:[#allocation5 + $0xa0] sm:$0xff]
    %v2505 = vld [vmem:[#allocation5 + $0xa8] sm:$0xff]
    %v2506 = vld [vmem:[#allocation5 + $0xb0] sm:$0xff]
    %v2507 = vld [vmem:[#allocation5 + $0xb8] sm:$0xff]
    %v2508 = vld [vmem:[#allocation5 + $0xc0] sm:$0xff]
    %v2509 = vld [vmem:[#allocation5 + $0xc8] sm:$0xff]
    %v2510 = vld [vmem:[#allocation5 + $0xd0] sm:$0xff]
    %v2511 = vld [vmem:[#allocation5 + $0xd8] sm:$0xff]
    %v2512 = vld [vmem:[#allocation5 + $0xe0] sm:$0xff]
    %v2513 = vld [vmem:[#allocation5 + $0xe8] sm:$0xff]
    %v2514 = vld [vmem:[#allocation5 + $0xf0] sm:$0xff]
    %v2515 = vld [vmem:[#allocation5 + $0xf8] sm:$0xff]
    %v2518 = vunpack.c.l.b16 %v2459
    %v2519 = vunpack.c.l.b16 %v2460
    %v2520 = vpack.c.b16 %v2519, %v2518
    %v2554 = vunpack.c.l.b16 %v2484
    %v2555 = vunpack.c.h.b16 %v2484
    %v2556 = vunpack.c.l.b16 %v2485
    %v2557 = vunpack.c.h.b16 %v2485
    %v2558 = vunpack.c.l.b16 %v2486
    %v2559 = vunpack.c.h.b16 %v2486
    %v2560 = vunpack.c.l.b16 %v2487
    %v2561 = vunpack.c.h.b16 %v2487
    %v2562 = vunpack.c.l.b16 %v2488
    %v2563 = vunpack.c.h.b16 %v2488
    %v2564 = vunpack.c.l.b16 %v2489
    %v2565 = vunpack.c.h.b16 %v2489
    %v2566 = vunpack.c.l.b16 %v2490
    %v2567 = vunpack.c.h.b16 %v2490
    %v2568 = vunpack.c.l.b16 %v2491
    %v2569 = vunpack.c.h.b16 %v2491
    %v2570 = vunpack.c.l.b16 %v2492
    %v2571 = vunpack.c.h.b16 %v2492
    %v2572 = vunpack.c.l.b16 %v2493
    %v2573 = vunpack.c.h.b16 %v2493
    %v2574 = vunpack.c.l.b16 %v2494
    %v2575 = vunpack.c.h.b16 %v2494
    %v2576 = vunpack.c.l.b16 %v2495
    %v2577 = vunpack.c.h.b16 %v2495
    %v2578 = vunpack.c.l.b16 %v2496
    %v2579 = vunpack.c.h.b16 %v2496
    %v2580 = vunpack.c.l.b16 %v2497
    %v2581 = vunpack.c.h.b16 %v2497
    %v2582 = vunpack.c.l.b16 %v2498
    %v2583 = vunpack.c.h.b16 %v2498
    %v2584 = vunpack.c.l.b16 %v2499
    %v2585 = vunpack.c.h.b16 %v2499
    %v2586 = vunpack.c.l.b16 %v2500
    %v2587 = vunpack.c.h.b16 %v2500
    %v2588 = vunpack.c.l.b16 %v2501
    %v2589 = vunpack.c.h.b16 %v2501
    %v2590 = vunpack.c.l.b16 %v2502
    %v2591 = vunpack.c.h.b16 %v2502
    %v2592 = vunpack.c.l.b16 %v2503
    %v2593 = vunpack.c.h.b16 %v2503
    %v2594 = vunpack.c.l.b16 %v2504
    %v2595 = vunpack.c.h.b16 %v2504
    %v2596 = vunpack.c.l.b16 %v2505
    %v2597 = vunpack.c.h.b16 %v2505
    %v2598 = vunpack.c.l.b16 %v2506
    %v2599 = vunpack.c.h.b16 %v2506
    %v2600 = vunpack.c.l.b16 %v2507
    %v2601 = vunpack.c.h.b16 %v2507
    %v2602 = vunpack.c.l.b16 %v2508
    %v2603 = vunpack.c.h.b16 %v2508
    %v2604 = vunpack.c.l.b16 %v2509
    %v2605 = vunpack.c.h.b16 %v2509
    %v2606 = vunpack.c.l.b16 %v2510
    %v2607 = vunpack.c.h.b16 %v2510
    %v2608 = vunpack.c.l.b16 %v2511
    %v2609 = vunpack.c.h.b16 %v2511
    %v2610 = vunpack.c.l.b16 %v2512
    %v2611 = vunpack.c.h.b16 %v2512
    %v2612 = vunpack.c.l.b16 %v2513
    %v2613 = vunpack.c.h.b16 %v2513
    %v2614 = vunpack.c.l.b16 %v2514
    %v2615 = vunpack.c.h.b16 %v2514
    %v2616 = vunpack.c.l.b16 %v2515
    %v2617 = vunpack.c.h.b16 %v2515
    %v2618 = vpack.c.b16 %v2558, %v2554
    %v2619 = vpack.c.b16 %v2559, %v2555
    %v2620 = vpack.c.b16 %v2560, %v2556
    %v2621 = vpack.c.b16 %v2561, %v2557
    %v2622 = vpack.c.b16 %v2566, %v2562
    %v2623 = vpack.c.b16 %v2567, %v2563
    %v2624 = vpack.c.b16 %v2568, %v2564
    %v2625 = vpack.c.b16 %v2569, %v2565
    %v2626 = vpack.c.b16 %v2574, %v2570
    %v2627 = vpack.c.b16 %v2575, %v2571
    %v2628 = vpack.c.b16 %v2576, %v2572
    %v2629 = vpack.c.b16 %v2577, %v2573
    %v2630 = vpack.c.b16 %v2582, %v2578
    %v2631 = vpack.c.b16 %v2583, %v2579
    %v2632 = vpack.c.b16 %v2584, %v2580
    %v2633 = vpack.c.b16 %v2585, %v2581
    %v2634 = vpack.c.b16 %v2590, %v2586
    %v2635 = vpack.c.b16 %v2591, %v2587
    %v2636 = vpack.c.b16 %v2592, %v2588
    %v2637 = vpack.c.b16 %v2593, %v2589
    %v2638 = vpack.c.b16 %v2598, %v2594
    %v2639 = vpack.c.b16 %v2599, %v2595
    %v2640 = vpack.c.b16 %v2600, %v2596
    %v2641 = vpack.c.b16 %v2601, %v2597
    %v2642 = vpack.c.b16 %v2606, %v2602
    %v2643 = vpack.c.b16 %v2607, %v2603
    %v2644 = vpack.c.b16 %v2608, %v2604
    %v2645 = vpack.c.b16 %v2609, %v2605
    %v2646 = vpack.c.b16 %v2614, %v2610
    %v2647 = vpack.c.b16 %v2615, %v2611
    %v2648 = vpack.c.b16 %v2616, %v2612
    %v2649 = vpack.c.b16 %v2617, %v2613
    %2682 = vmatpush.bf16.msra.mxu0 %v2646
    %2683 = vmatpush.bf16.msra.mxu0 %v2642
    %2684 = vmatpush.bf16.msra.mxu0 %v2638
    %2685 = vmatpush.bf16.msra.mxu0 %v2634
    %2686 = vmatpush.bf16.msra.mxu0 %v2630
    %2687 = vmatpush.bf16.msra.mxu0 %v2626
    %2688 = vmatpush.bf16.msra.mxu0 %v2622
    %2689 = vmatpush.bf16.msra.mxu0 %v2618
    %2690 = vmatmul.bf16.gmra.mxu0 %v2520
    %v2691 = vpop.f32.mrf.mxu0
    %v2692 = vadd.f32 0.0, %v2691
    %v2693 = vpop.f32.mrf.mxu0
    %v2694 = vadd.f32 0.0, %v2693
    %2695 = vdwg.mxu0
    %2696 = vmatpush.bf16.msra.mxu0 %v2647
    %2697 = vmatpush.bf16.msra.mxu0 %v2643
    %2698 = vmatpush.bf16.msra.mxu0 %v2639
    %2699 = vmatpush.bf16.msra.mxu0 %v2635
    %2700 = vmatpush.bf16.msra.mxu0 %v2631
    %2701 = vmatpush.bf16.msra.mxu0 %v2627
    %2702 = vmatpush.bf16.msra.mxu0 %v2623
    %2703 = vmatpush.bf16.msra.mxu0 %v2619
    %2704 = vmatmul.bf16.gmra.mxu0 %v2520
    %v2705 = vpop.f32.mrf.mxu0
    %v2706 = vadd.f32 0.0, %v2705
    %v2707 = vpop.f32.mrf.mxu0
    %v2708 = vadd.f32 0.0, %v2707
    %2709 = vdwg.mxu0
    %2710 = vmatpush.bf16.msra.mxu0 %v2648
    %2711 = vmatpush.bf16.msra.mxu0 %v2644
    %2712 = vmatpush.bf16.msra.mxu0 %v2640
    %2713 = vmatpush.bf16.msra.mxu0 %v2636
    %2714 = vmatpush.bf16.msra.mxu0 %v2632
    %2715 = vmatpush.bf16.msra.mxu0 %v2628
    %2716 = vmatpush.bf16.msra.mxu0 %v2624
    %2717 = vmatpush.bf16.msra.mxu0 %v2620
    %2718 = vmatmul.bf16.gmra.mxu0 %v2520
    %v2719 = vpop.f32.mrf.mxu0
    %v2720 = vadd.f32 0.0, %v2719
    %v2721 = vpop.f32.mrf.mxu0
    %v2722 = vadd.f32 0.0, %v2721
    %2723 = vdwg.mxu0
    %2724 = vmatpush.bf16.msra.mxu0 %v2649
    %2725 = vmatpush.bf16.msra.mxu0 %v2645
    %2726 = vmatpush.bf16.msra.mxu0 %v2641
    %2727 = vmatpush.bf16.msra.mxu0 %v2637
    %2728 = vmatpush.bf16.msra.mxu0 %v2633
    %2729 = vmatpush.bf16.msra.mxu0 %v2629
    %2730 = vmatpush.bf16.msra.mxu0 %v2625
    %2731 = vmatpush.bf16.msra.mxu0 %v2621
    %2732 = vmatmul.bf16.gmra.mxu0 %v2520
    %v2733 = vpop.f32.mrf.mxu0
    %v2734 = vadd.f32 0.0, %v2733
    %v2735 = vpop.f32.mrf.mxu0
    %v2736 = vadd.f32 0.0, %v2735
    %2737 = vdwg.mxu0
    %v2738 = vadd.f32 %v2476, %v2692
    %v2739 = vadd.f32 %v2477, %v2706
    %v2740 = vadd.f32 %v2478, %v2720
    %v2741 = vadd.f32 %v2479, %v2734
    %v2742 = vadd.f32 %v2480, %v2694
    %v2743 = vadd.f32 %v2481, %v2708
    %v2744 = vadd.f32 %v2482, %v2722
    %v2745 = vadd.f32 %v2483, %v2736
    %s2746 = smul.u32 10, 4
    %s2747 = smul.addr %s2746, 8
    %s2748 = scalar_lea.vmem [#allocation3], %s2747
    %v2749 = vld [vmem:[%s2748] sm:$0xff]
    %v2750 = vld [vmem:[%s2748 + $0x8] sm:$0xff]
    %v2751 = vld [vmem:[%s2748 + $0x10] sm:$0xff]
    %v2752 = vld [vmem:[%s2748 + $0x18] sm:$0xff]
    %v2753 = vld [vmem:[%s2748 + $0x20] sm:$0xff]
    %v2754 = vld [vmem:[%s2748 + $0x28] sm:$0xff]
    %v2755 = vld [vmem:[%s2748 + $0x30] sm:$0xff]
    %v2756 = vld [vmem:[%s2748 + $0x38] sm:$0xff]
    %v2757 = vld [vmem:[#allocation8] sm:$0xff]
    %v2758 = vld [vmem:[#allocation8 + $0x8] sm:$0xff]
    %v2759 = vld [vmem:[#allocation8 + $0x10] sm:$0xff]
    %v2760 = vld [vmem:[#allocation8 + $0x18] sm:$0xff]
    %v2761 = vld [vmem:[#allocation8 + $0x20] sm:$0xff]
    %v2762 = vld [vmem:[#allocation8 + $0x28] sm:$0xff]
    %v2763 = vld [vmem:[#allocation8 + $0x30] sm:$0xff]
    %v2764 = vld [vmem:[#allocation8 + $0x38] sm:$0xff]
    %v2765 = vld [vmem:[#allocation8 + $0x40] sm:$0xff]
    %v2766 = vld [vmem:[#allocation8 + $0x48] sm:$0xff]
    %v2767 = vld [vmem:[#allocation8 + $0x50] sm:$0xff]
    %v2768 = vld [vmem:[#allocation8 + $0x58] sm:$0xff]
    %v2769 = vld [vmem:[#allocation8 + $0x60] sm:$0xff]
    %v2770 = vld [vmem:[#allocation8 + $0x68] sm:$0xff]
    %v2771 = vld [vmem:[#allocation8 + $0x70] sm:$0xff]
    %v2772 = vld [vmem:[#allocation8 + $0x78] sm:$0xff]
    %v2773 = vld [vmem:[#allocation8 + $0x80] sm:$0xff]
    %v2774 = vld [vmem:[#allocation8 + $0x88] sm:$0xff]
    %v2775 = vld [vmem:[#allocation8 + $0x90] sm:$0xff]
    %v2776 = vld [vmem:[#allocation8 + $0x98] sm:$0xff]
    %v2777 = vld [vmem:[#allocation8 + $0xa0] sm:$0xff]
    %v2778 = vld [vmem:[#allocation8 + $0xa8] sm:$0xff]
    %v2779 = vld [vmem:[#allocation8 + $0xb0] sm:$0xff]
    %v2780 = vld [vmem:[#allocation8 + $0xb8] sm:$0xff]
    %v2781 = vld [vmem:[#allocation8 + $0xc0] sm:$0xff]
    %v2782 = vld [vmem:[#allocation8 + $0xc8] sm:$0xff]
    %v2783 = vld [vmem:[#allocation8 + $0xd0] sm:$0xff]
    %v2784 = vld [vmem:[#allocation8 + $0xd8] sm:$0xff]
    %v2785 = vld [vmem:[#allocation8 + $0xe0] sm:$0xff]
    %v2786 = vld [vmem:[#allocation8 + $0xe8] sm:$0xff]
    %v2787 = vld [vmem:[#allocation8 + $0xf0] sm:$0xff]
    %v2788 = vld [vmem:[#allocation8 + $0xf8] sm:$0xff]
    %v2791 = vunpack.c.l.b16 %v2466
    %v2792 = vunpack.c.l.b16 %v2467
    %v2793 = vpack.c.b16 %v2792, %v2791
    %v2827 = vunpack.c.l.b16 %v2757
    %v2828 = vunpack.c.h.b16 %v2757
    %v2829 = vunpack.c.l.b16 %v2758
    %v2830 = vunpack.c.h.b16 %v2758
    %v2831 = vunpack.c.l.b16 %v2759
    %v2832 = vunpack.c.h.b16 %v2759
    %v2833 = vunpack.c.l.b16 %v2760
    %v2834 = vunpack.c.h.b16 %v2760
    %v2835 = vunpack.c.l.b16 %v2761
    %v2836 = vunpack.c.h.b16 %v2761
    %v2837 = vunpack.c.l.b16 %v2762
    %v2838 = vunpack.c.h.b16 %v2762
    %v2839 = vunpack.c.l.b16 %v2763
    %v2840 = vunpack.c.h.b16 %v2763
    %v2841 = vunpack.c.l.b16 %v2764
    %v2842 = vunpack.c.h.b16 %v2764
    %v2843 = vunpack.c.l.b16 %v2765
    %v2844 = vunpack.c.h.b16 %v2765
    %v2845 = vunpack.c.l.b16 %v2766
    %v2846 = vunpack.c.h.b16 %v2766
    %v2847 = vunpack.c.l.b16 %v2767
    %v2848 = vunpack.c.h.b16 %v2767
    %v2849 = vunpack.c.l.b16 %v2768
    %v2850 = vunpack.c.h.b16 %v2768
    %v2851 = vunpack.c.l.b16 %v2769
    %v2852 = vunpack.c.h.b16 %v2769
    %v2853 = vunpack.c.l.b16 %v2770
    %v2854 = vunpack.c.h.b16 %v2770
    %v2855 = vunpack.c.l.b16 %v2771
    %v2856 = vunpack.c.h.b16 %v2771
    %v2857 = vunpack.c.l.b16 %v2772
    %v2858 = vunpack.c.h.b16 %v2772
    %v2859 = vunpack.c.l.b16 %v2773
    %v2860 = vunpack.c.h.b16 %v2773
    %v2861 = vunpack.c.l.b16 %v2774
    %v2862 = vunpack.c.h.b16 %v2774
    %v2863 = vunpack.c.l.b16 %v2775
    %v2864 = vunpack.c.h.b16 %v2775
    %v2865 = vunpack.c.l.b16 %v2776
    %v2866 = vunpack.c.h.b16 %v2776
    %v2867 = vunpack.c.l.b16 %v2777
    %v2868 = vunpack.c.h.b16 %v2777
    %v2869 = vunpack.c.l.b16 %v2778
    %v2870 = vunpack.c.h.b16 %v2778
    %v2871 = vunpack.c.l.b16 %v2779
    %v2872 = vunpack.c.h.b16 %v2779
    %v2873 = vunpack.c.l.b16 %v2780
    %v2874 = vunpack.c.h.b16 %v2780
    %v2875 = vunpack.c.l.b16 %v2781
    %v2876 = vunpack.c.h.b16 %v2781
    %v2877 = vunpack.c.l.b16 %v2782
    %v2878 = vunpack.c.h.b16 %v2782
    %v2879 = vunpack.c.l.b16 %v2783
    %v2880 = vunpack.c.h.b16 %v2783
    %v2881 = vunpack.c.l.b16 %v2784
    %v2882 = vunpack.c.h.b16 %v2784
    %v2883 = vunpack.c.l.b16 %v2785
    %v2884 = vunpack.c.h.b16 %v2785
    %v2885 = vunpack.c.l.b16 %v2786
    %v2886 = vunpack.c.h.b16 %v2786
    %v2887 = vunpack.c.l.b16 %v2787
    %v2888 = vunpack.c.h.b16 %v2787
    %v2889 = vunpack.c.l.b16 %v2788
    %v2890 = vunpack.c.h.b16 %v2788
    %v2891 = vpack.c.b16 %v2831, %v2827
    %v2892 = vpack.c.b16 %v2832, %v2828
    %v2893 = vpack.c.b16 %v2833, %v2829
    %v2894 = vpack.c.b16 %v2834, %v2830
    %v2895 = vpack.c.b16 %v2839, %v2835
    %v2896 = vpack.c.b16 %v2840, %v2836
    %v2897 = vpack.c.b16 %v2841, %v2837
    %v2898 = vpack.c.b16 %v2842, %v2838
    %v2899 = vpack.c.b16 %v2847, %v2843
    %v2900 = vpack.c.b16 %v2848, %v2844
    %v2901 = vpack.c.b16 %v2849, %v2845
    %v2902 = vpack.c.b16 %v2850, %v2846
    %v2903 = vpack.c.b16 %v2855, %v2851
    %v2904 = vpack.c.b16 %v2856, %v2852
    %v2905 = vpack.c.b16 %v2857, %v2853
    %v2906 = vpack.c.b16 %v2858, %v2854
    %v2907 = vpack.c.b16 %v2863, %v2859
    %v2908 = vpack.c.b16 %v2864, %v2860
    %v2909 = vpack.c.b16 %v2865, %v2861
    %v2910 = vpack.c.b16 %v2866, %v2862
    %v2911 = vpack.c.b16 %v2871, %v2867
    %v2912 = vpack.c.b16 %v2872, %v2868
    %v2913 = vpack.c.b16 %v2873, %v2869
    %v2914 = vpack.c.b16 %v2874, %v2870
    %v2915 = vpack.c.b16 %v2879, %v2875
    %v2916 = vpack.c.b16 %v2880, %v2876
    %v2917 = vpack.c.b16 %v2881, %v2877
    %v2918 = vpack.c.b16 %v2882, %v2878
    %v2919 = vpack.c.b16 %v2887, %v2883
    %v2920 = vpack.c.b16 %v2888, %v2884
    %v2921 = vpack.c.b16 %v2889, %v2885
    %v2922 = vpack.c.b16 %v2890, %v2886
    %2955 = vmatpush.bf16.msra.mxu0 %v2919
    %2956 = vmatpush.bf16.msra.mxu0 %v2915
    %2957 = vmatpush.bf16.msra.mxu0 %v2911
    %2958 = vmatpush.bf16.msra.mxu0 %v2907
    %2959 = vmatpush.bf16.msra.mxu0 %v2903
    %2960 = vmatpush.bf16.msra.mxu0 %v2899
    %2961 = vmatpush.bf16.msra.mxu0 %v2895
    %2962 = vmatpush.bf16.msra.mxu0 %v2891
    %2963 = vmatmul.bf16.gmra.mxu0 %v2793
    %v2964 = vpop.f32.mrf.mxu0
    %v2965 = vadd.f32 0.0, %v2964
    %v2966 = vpop.f32.mrf.mxu0
    %v2967 = vadd.f32 0.0, %v2966
    %2968 = vdwg.mxu0
    %2969 = vmatpush.bf16.msra.mxu0 %v2920
    %2970 = vmatpush.bf16.msra.mxu0 %v2916
    %2971 = vmatpush.bf16.msra.mxu0 %v2912
    %2972 = vmatpush.bf16.msra.mxu0 %v2908
    %2973 = vmatpush.bf16.msra.mxu0 %v2904
    %2974 = vmatpush.bf16.msra.mxu0 %v2900
    %2975 = vmatpush.bf16.msra.mxu0 %v2896
    %2976 = vmatpush.bf16.msra.mxu0 %v2892
    %2977 = vmatmul.bf16.gmra.mxu0 %v2793
    %v2978 = vpop.f32.mrf.mxu0
    %v2979 = vadd.f32 0.0, %v2978
    %v2980 = vpop.f32.mrf.mxu0
    %v2981 = vadd.f32 0.0, %v2980
    %2982 = vdwg.mxu0
    %2983 = vmatpush.bf16.msra.mxu0 %v2921
    %2984 = vmatpush.bf16.msra.mxu0 %v2917
    %2985 = vmatpush.bf16.msra.mxu0 %v2913
    %2986 = vmatpush.bf16.msra.mxu0 %v2909
    %2987 = vmatpush.bf16.msra.mxu0 %v2905
    %2988 = vmatpush.bf16.msra.mxu0 %v2901
    %2989 = vmatpush.bf16.msra.mxu0 %v2897
    %2990 = vmatpush.bf16.msra.mxu0 %v2893
    %2991 = vmatmul.bf16.gmra.mxu0 %v2793
    %v2992 = vpop.f32.mrf.mxu0
    %v2993 = vadd.f32 0.0, %v2992
    %v2994 = vpop.f32.mrf.mxu0
    %v2995 = vadd.f32 0.0, %v2994
    %2996 = vdwg.mxu0
    %2997 = vmatpush.bf16.msra.mxu0 %v2922
    %2998 = vmatpush.bf16.msra.mxu0 %v2918
    %2999 = vmatpush.bf16.msra.mxu0 %v2914
    %3000 = vmatpush.bf16.msra.mxu0 %v2910
    %3001 = vmatpush.bf16.msra.mxu0 %v2906
    %3002 = vmatpush.bf16.msra.mxu0 %v2902
    %3003 = vmatpush.bf16.msra.mxu0 %v2898
    %3004 = vmatpush.bf16.msra.mxu0 %v2894
    %3005 = vmatmul.bf16.gmra.mxu0 %v2793
    %v3006 = vpop.f32.mrf.mxu0
    %v3007 = vadd.f32 0.0, %v3006
    %v3008 = vpop.f32.mrf.mxu0
    %v3009 = vadd.f32 0.0, %v3008
    %3010 = vdwg.mxu0
    %v3011 = vadd.f32 %v2749, %v2965
    %v3012 = vadd.f32 %v2750, %v2979
    %v3013 = vadd.f32 %v2751, %v2993
    %v3014 = vadd.f32 %v2752, %v3007
    %v3015 = vadd.f32 %v2753, %v2967
    %v3016 = vadd.f32 %v2754, %v2981
    %v3017 = vadd.f32 %v2755, %v2995
    %v3018 = vadd.f32 %v2756, %v3009
    %v3019 = vxor.u32 %v2738, 2147483648
    %v3020 = vxor.u32 %v2739, 2147483648
    %v3021 = vxor.u32 %v2741, 2147483648
    %v3022 = vxor.u32 %v2742, 2147483648
    %v3023 = vxor.u32 %v2743, 2147483648
    %v3024 = vxor.u32 %v2745, 2147483648
    %v3025 = vmul.f32 %v3019, 1.442695
    %v3026 = vpow.pop %v3025
    %v3027 = vmul.f32 %v3020, 1.442695
    %v3028 = vpow.pop %v3027
    %v3029 = vmul.f32 %v3021, 1.442695
    %v3030 = vpow.pop %v3029
    %v3031 = vmul.f32 %v3022, 1.442695
    %v3032 = vpow.pop %v3031
    %v3033 = vmul.f32 %v3023, 1.442695
    %v3034 = vpow.pop %v3033
    %v3035 = vmul.f32 %v3024, 1.442695
    %v3036 = vpow.pop %v3035
    %v3037 = vadd.f32 %v3026, 1.0
    %v3038 = vadd.f32 %v3028, 1.0
    %v3039 = vadd.f32 %v3030, 1.0
    %v3040 = vadd.f32 %v3032, 1.0
    %v3041 = vadd.f32 %v3034, 1.0
    %v3042 = vadd.f32 %v3036, 1.0
    %v3043 = vrcp.pop %v3037
    %v3044 = vmul.f32 %v3037, %v3043
    %v3045 = vsub.f32 1.0, %v3044
    %v3046 = vmul.f32 %v3043, %v3045
    %v3047 = vadd.f32 %v3043, %v3046
    %vm3048 = vweird.f32 %v3037
    %vm3049 = vweird.f32 %v3043
    %vm3050 = vmor %vm3048, %vm3049
    %v3051 = vsel %vm3050, %v3043, %v3047
    %v3052 = vand.u32 2147483647, %v3037
    %vm3053 = vcmp.eq.f32.partialorder %v3052, 8.507059e+37
    %v3054 = vand.u32 %v3037, 2147483648
    %v3055 = vor.u32 1.1754944e-38, %v3054
    %v3056 = vsel %vm3053, %v3055, %v3051
    %v3057 = vmul.f32 1.0, %v3056
    %v3058 = vrcp.pop %v3038
    %v3059 = vmul.f32 %v3038, %v3058
    %v3060 = vsub.f32 1.0, %v3059
    %v3061 = vmul.f32 %v3058, %v3060
    %v3062 = vadd.f32 %v3058, %v3061
    %vm3063 = vweird.f32 %v3038
    %vm3064 = vweird.f32 %v3058
    %vm3065 = vmor %vm3063, %vm3064
    %v3066 = vsel %vm3065, %v3058, %v3062
    %v3067 = vand.u32 2147483647, %v3038
    %vm3068 = vcmp.eq.f32.partialorder %v3067, 8.507059e+37
    %v3069 = vand.u32 %v3038, 2147483648
    %v3070 = vor.u32 1.1754944e-38, %v3069
    %v3071 = vsel %vm3068, %v3070, %v3066
    %v3072 = vmul.f32 1.0, %v3071
    %v3073 = vrcp.pop %v3039
    %v3074 = vmul.f32 %v3039, %v3073
    %v3075 = vsub.f32 1.0, %v3074
    %v3076 = vmul.f32 %v3073, %v3075
    %v3077 = vadd.f32 %v3073, %v3076
    %vm3078 = vweird.f32 %v3039
    %vm3079 = vweird.f32 %v3073
    %vm3080 = vmor %vm3078, %vm3079
    %v3081 = vsel %vm3080, %v3073, %v3077
    %v3082 = vand.u32 2147483647, %v3039
    %vm3083 = vcmp.eq.f32.partialorder %v3082, 8.507059e+37
    %v3084 = vand.u32 %v3039, 2147483648
    %v3085 = vor.u32 1.1754944e-38, %v3084
    %v3086 = vsel %vm3083, %v3085, %v3081
    %v3087 = vmul.f32 1.0, %v3086
    %v3088 = vrcp.pop %v3040
    %v3089 = vmul.f32 %v3040, %v3088
    %v3090 = vsub.f32 1.0, %v3089
    %v3091 = vmul.f32 %v3088, %v3090
    %v3092 = vadd.f32 %v3088, %v3091
    %vm3093 = vweird.f32 %v3040
    %vm3094 = vweird.f32 %v3088
    %vm3095 = vmor %vm3093, %vm3094
    %v3096 = vsel %vm3095, %v3088, %v3092
    %v3097 = vand.u32 2147483647, %v3040
    %vm3098 = vcmp.eq.f32.partialorder %v3097, 8.507059e+37
    %v3099 = vand.u32 %v3040, 2147483648
    %v3100 = vor.u32 1.1754944e-38, %v3099
    %v3101 = vsel %vm3098, %v3100, %v3096
    %v3102 = vmul.f32 1.0, %v3101
    %v3103 = vrcp.pop %v3041
    %v3104 = vmul.f32 %v3041, %v3103
    %v3105 = vsub.f32 1.0, %v3104
    %v3106 = vmul.f32 %v3103, %v3105
    %v3107 = vadd.f32 %v3103, %v3106
    %vm3108 = vweird.f32 %v3041
    %vm3109 = vweird.f32 %v3103
    %vm3110 = vmor %vm3108, %vm3109
    %v3111 = vsel %vm3110, %v3103, %v3107
    %v3112 = vand.u32 2147483647, %v3041
    %vm3113 = vcmp.eq.f32.partialorder %v3112, 8.507059e+37
    %v3114 = vand.u32 %v3041, 2147483648
    %v3115 = vor.u32 1.1754944e-38, %v3114
    %v3116 = vsel %vm3113, %v3115, %v3111
    %v3117 = vmul.f32 1.0, %v3116
    %v3118 = vrcp.pop %v3042
    %v3119 = vmul.f32 %v3042, %v3118
    %v3120 = vsub.f32 1.0, %v3119
    %v3121 = vmul.f32 %v3118, %v3120
    %v3122 = vadd.f32 %v3118, %v3121
    %vm3123 = vweird.f32 %v3042
    %vm3124 = vweird.f32 %v3118
    %vm3125 = vmor %vm3123, %vm3124
    %v3126 = vsel %vm3125, %v3118, %v3122
    %v3127 = vand.u32 2147483647, %v3042
    %vm3128 = vcmp.eq.f32.partialorder %v3127, 8.507059e+37
    %v3129 = vand.u32 %v3042, 2147483648
    %v3130 = vor.u32 1.1754944e-38, %v3129
    %v3131 = vsel %vm3128, %v3130, %v3126
    %v3132 = vmul.f32 1.0, %v3131
    %v3133 = vtanh.pop %v2740
    %v3134 = vtanh.pop %v2744
    %v3135 = vmul.f32 %v3072, %v2327
    %v3136 = vmul.f32 %v3117, %v2328
    %v3137 = vmul.f32 %v3057, %v3133
    %v3138 = vmul.f32 %v3102, %v3134
    %v3139 = vadd.f32 %v3135, %v3137
    %v3140 = vadd.f32 %v3136, %v3138
    %v3141 = vtanh.pop %v3139
    %v3142 = vtanh.pop %v3140
    %v3143 = vmul.f32 %v3087, %v3141
    %v3144 = vmul.f32 %v3132, %v3142
    %v3145 = vxor.u32 %v3011, 2147483648
    %v3146 = vxor.u32 %v3012, 2147483648
    %v3147 = vxor.u32 %v3014, 2147483648
    %v3148 = vxor.u32 %v3015, 2147483648
    %v3149 = vxor.u32 %v3016, 2147483648
    %v3150 = vxor.u32 %v3018, 2147483648
    %v3151 = vmul.f32 %v3145, 1.442695
    %v3152 = vpow.pop %v3151
    %v3153 = vmul.f32 %v3146, 1.442695
    %v3154 = vpow.pop %v3153
    %v3155 = vmul.f32 %v3147, 1.442695
    %v3156 = vpow.pop %v3155
    %v3157 = vmul.f32 %v3148, 1.442695
    %v3158 = vpow.pop %v3157
    %v3159 = vmul.f32 %v3149, 1.442695
    %v3160 = vpow.pop %v3159
    %v3161 = vmul.f32 %v3150, 1.442695
    %v3162 = vpow.pop %v3161
    %v3163 = vadd.f32 %v3152, 1.0
    %v3164 = vadd.f32 %v3154, 1.0
    %v3165 = vadd.f32 %v3156, 1.0
    %v3166 = vadd.f32 %v3158, 1.0
    %v3167 = vadd.f32 %v3160, 1.0
    %v3168 = vadd.f32 %v3162, 1.0
    %v3169 = vrcp.pop %v3163
    %v3170 = vmul.f32 %v3163, %v3169
    %v3171 = vsub.f32 1.0, %v3170
    %v3172 = vmul.f32 %v3169, %v3171
    %v3173 = vadd.f32 %v3169, %v3172
    %vm3174 = vweird.f32 %v3163
    %vm3175 = vweird.f32 %v3169
    %vm3176 = vmor %vm3174, %vm3175
    %v3177 = vsel %vm3176, %v3169, %v3173
    %v3178 = vand.u32 2147483647, %v3163
    %vm3179 = vcmp.eq.f32.partialorder %v3178, 8.507059e+37
    %v3180 = vand.u32 %v3163, 2147483648
    %v3181 = vor.u32 1.1754944e-38, %v3180
    %v3182 = vsel %vm3179, %v3181, %v3177
    %v3183 = vmul.f32 1.0, %v3182
    %v3184 = vrcp.pop %v3164
    %v3185 = vmul.f32 %v3164, %v3184
    %v3186 = vsub.f32 1.0, %v3185
    %v3187 = vmul.f32 %v3184, %v3186
    %v3188 = vadd.f32 %v3184, %v3187
    %vm3189 = vweird.f32 %v3164
    %vm3190 = vweird.f32 %v3184
    %vm3191 = vmor %vm3189, %vm3190
    %v3192 = vsel %vm3191, %v3184, %v3188
    %v3193 = vand.u32 2147483647, %v3164
    %vm3194 = vcmp.eq.f32.partialorder %v3193, 8.507059e+37
    %v3195 = vand.u32 %v3164, 2147483648
    %v3196 = vor.u32 1.1754944e-38, %v3195
    %v3197 = vsel %vm3194, %v3196, %v3192
    %v3198 = vmul.f32 1.0, %v3197
    %v3199 = vrcp.pop %v3165
    %v3200 = vmul.f32 %v3165, %v3199
    %v3201 = vsub.f32 1.0, %v3200
    %v3202 = vmul.f32 %v3199, %v3201
    %v3203 = vadd.f32 %v3199, %v3202
    %vm3204 = vweird.f32 %v3165
    %vm3205 = vweird.f32 %v3199
    %vm3206 = vmor %vm3204, %vm3205
    %v3207 = vsel %vm3206, %v3199, %v3203
    %v3208 = vand.u32 2147483647, %v3165
    %vm3209 = vcmp.eq.f32.partialorder %v3208, 8.507059e+37
    %v3210 = vand.u32 %v3165, 2147483648
    %v3211 = vor.u32 1.1754944e-38, %v3210
    %v3212 = vsel %vm3209, %v3211, %v3207
    %v3213 = vmul.f32 1.0, %v3212
    %v3214 = vrcp.pop %v3166
    %v3215 = vmul.f32 %v3166, %v3214
    %v3216 = vsub.f32 1.0, %v3215
    %v3217 = vmul.f32 %v3214, %v3216
    %v3218 = vadd.f32 %v3214, %v3217
    %vm3219 = vweird.f32 %v3166
    %vm3220 = vweird.f32 %v3214
    %vm3221 = vmor %vm3219, %vm3220
    %v3222 = vsel %vm3221, %v3214, %v3218
    %v3223 = vand.u32 2147483647, %v3166
    %vm3224 = vcmp.eq.f32.partialorder %v3223, 8.507059e+37
    %v3225 = vand.u32 %v3166, 2147483648
    %v3226 = vor.u32 1.1754944e-38, %v3225
    %v3227 = vsel %vm3224, %v3226, %v3222
    %v3228 = vmul.f32 1.0, %v3227
    %v3229 = vrcp.pop %v3167
    %v3230 = vmul.f32 %v3167, %v3229
    %v3231 = vsub.f32 1.0, %v3230
    %v3232 = vmul.f32 %v3229, %v3231
    %v3233 = vadd.f32 %v3229, %v3232
    %vm3234 = vweird.f32 %v3167
    %vm3235 = vweird.f32 %v3229
    %vm3236 = vmor %vm3234, %vm3235
    %v3237 = vsel %vm3236, %v3229, %v3233
    %v3238 = vand.u32 2147483647, %v3167
    %vm3239 = vcmp.eq.f32.partialorder %v3238, 8.507059e+37
    %v3240 = vand.u32 %v3167, 2147483648
    %v3241 = vor.u32 1.1754944e-38, %v3240
    %v3242 = vsel %vm3239, %v3241, %v3237
    %v3243 = vmul.f32 1.0, %v3242
    %v3244 = vrcp.pop %v3168
    %v3245 = vmul.f32 %v3168, %v3244
    %v3246 = vsub.f32 1.0, %v3245
    %v3247 = vmul.f32 %v3244, %v3246
    %v3248 = vadd.f32 %v3244, %v3247
    %vm3249 = vweird.f32 %v3168
    %vm3250 = vweird.f32 %v3244
    %vm3251 = vmor %vm3249, %vm3250
    %v3252 = vsel %vm3251, %v3244, %v3248
    %v3253 = vand.u32 2147483647, %v3168
    %vm3254 = vcmp.eq.f32.partialorder %v3253, 8.507059e+37
    %v3255 = vand.u32 %v3168, 2147483648
    %v3256 = vor.u32 1.1754944e-38, %v3255
    %v3257 = vsel %vm3254, %v3256, %v3252
    %v3258 = vmul.f32 1.0, %v3257
    %v3259 = vtanh.pop %v3013
    %v3260 = vtanh.pop %v3017
    %v3261 = vmul.f32 %v3198, %v2453
    %v3262 = vmul.f32 %v3243, %v2454
    %v3263 = vmul.f32 %v3183, %v3259
    %v3264 = vmul.f32 %v3228, %v3260
    %v3265 = vadd.f32 %v3261, %v3263
    %v3266 = vadd.f32 %v3262, %v3264
    %v3267 = vtanh.pop %v3265
    %v3268 = vtanh.pop %v3266
    %v3269 = vmul.f32 %v3213, %v3267
    %v3270 = vmul.f32 %v3258, %v3268
    %v3271 = vpack.c.bf16 %v3143, %v3143
    %v3272 = vpack.c.bf16 %v3144, %v3144
    %s3273 = smul.u32 4, 2
    %s3274 = smul.addr %s3273, 4
    %s3275 = scalar_lea.vmem [#allocation4], %s3274
    %3276 = vst [vmem:[%s3275] sm:$0xf] %v3271
    %3277 = vst [vmem:[%s3275 + $0x8] sm:$0xf] %v3272
    %v3278 = vpack.c.bf16 %v3269, %v3269
    %v3279 = vpack.c.bf16 %v3270, %v3270
    %s3280 = smul.u32 10, 2
    %s3281 = smul.addr %s3280, 4
    %s3282 = scalar_lea.vmem [#allocation4], %s3281
    %3283 = vst [vmem:[%s3282 + $0x4] sm:$0xf] %v3278
    %3284 = vst [vmem:[%s3282 + $0xc] sm:$0xf] %v3279
    %s3285 = smul.u32 6, 4
    %s3286 = smul.addr %s3285, 8
    %s3287 = scalar_lea.vmem [#allocation2], %s3286
    %v3288 = vld [vmem:[%s3287] sm:$0xff]
    %v3289 = vld [vmem:[%s3287 + $0x8] sm:$0xff]
    %v3290 = vld [vmem:[%s3287 + $0x10] sm:$0xff]
    %v3291 = vld [vmem:[%s3287 + $0x18] sm:$0xff]
    %v3292 = vld [vmem:[%s3287 + $0x20] sm:$0xff]
    %v3293 = vld [vmem:[%s3287 + $0x28] sm:$0xff]
    %v3294 = vld [vmem:[%s3287 + $0x30] sm:$0xff]
    %v3295 = vld [vmem:[%s3287 + $0x38] sm:$0xff]
    %v3296 = vld [vmem:[#allocation5] sm:$0xff]
    %v3297 = vld [vmem:[#allocation5 + $0x8] sm:$0xff]
    %v3298 = vld [vmem:[#allocation5 + $0x10] sm:$0xff]
    %v3299 = vld [vmem:[#allocation5 + $0x18] sm:$0xff]
    %v3300 = vld [vmem:[#allocation5 + $0x20] sm:$0xff]
    %v3301 = vld [vmem:[#allocation5 + $0x28] sm:$0xff]
    %v3302 = vld [vmem:[#allocation5 + $0x30] sm:$0xff]
    %v3303 = vld [vmem:[#allocation5 + $0x38] sm:$0xff]
    %v3304 = vld [vmem:[#allocation5 + $0x40] sm:$0xff]
    %v3305 = vld [vmem:[#allocation5 + $0x48] sm:$0xff]
    %v3306 = vld [vmem:[#allocation5 + $0x50] sm:$0xff]
    %v3307 = vld [vmem:[#allocation5 + $0x58] sm:$0xff]
    %v3308 = vld [vmem:[#allocation5 + $0x60] sm:$0xff]
    %v3309 = vld [vmem:[#allocation5 + $0x68] sm:$0xff]
    %v3310 = vld [vmem:[#allocation5 + $0x70] sm:$0xff]
    %v3311 = vld [vmem:[#allocation5 + $0x78] sm:$0xff]
    %v3312 = vld [vmem:[#allocation5 + $0x80] sm:$0xff]
    %v3313 = vld [vmem:[#allocation5 + $0x88] sm:$0xff]
    %v3314 = vld [vmem:[#allocation5 + $0x90] sm:$0xff]
    %v3315 = vld [vmem:[#allocation5 + $0x98] sm:$0xff]
    %v3316 = vld [vmem:[#allocation5 + $0xa0] sm:$0xff]
    %v3317 = vld [vmem:[#allocation5 + $0xa8] sm:$0xff]
    %v3318 = vld [vmem:[#allocation5 + $0xb0] sm:$0xff]
    %v3319 = vld [vmem:[#allocation5 + $0xb8] sm:$0xff]
    %v3320 = vld [vmem:[#allocation5 + $0xc0] sm:$0xff]
    %v3321 = vld [vmem:[#allocation5 + $0xc8] sm:$0xff]
    %v3322 = vld [vmem:[#allocation5 + $0xd0] sm:$0xff]
    %v3323 = vld [vmem:[#allocation5 + $0xd8] sm:$0xff]
    %v3324 = vld [vmem:[#allocation5 + $0xe0] sm:$0xff]
    %v3325 = vld [vmem:[#allocation5 + $0xe8] sm:$0xff]
    %v3326 = vld [vmem:[#allocation5 + $0xf0] sm:$0xff]
    %v3327 = vld [vmem:[#allocation5 + $0xf8] sm:$0xff]
    %v3330 = vunpack.c.l.b16 %v3271
    %v3331 = vunpack.c.l.b16 %v3272
    %v3332 = vpack.c.b16 %v3331, %v3330
    %v3366 = vunpack.c.l.b16 %v3296
    %v3367 = vunpack.c.h.b16 %v3296
    %v3368 = vunpack.c.l.b16 %v3297
    %v3369 = vunpack.c.h.b16 %v3297
    %v3370 = vunpack.c.l.b16 %v3298
    %v3371 = vunpack.c.h.b16 %v3298
    %v3372 = vunpack.c.l.b16 %v3299
    %v3373 = vunpack.c.h.b16 %v3299
    %v3374 = vunpack.c.l.b16 %v3300
    %v3375 = vunpack.c.h.b16 %v3300
    %v3376 = vunpack.c.l.b16 %v3301
    %v3377 = vunpack.c.h.b16 %v3301
    %v3378 = vunpack.c.l.b16 %v3302
    %v3379 = vunpack.c.h.b16 %v3302
    %v3380 = vunpack.c.l.b16 %v3303
    %v3381 = vunpack.c.h.b16 %v3303
    %v3382 = vunpack.c.l.b16 %v3304
    %v3383 = vunpack.c.h.b16 %v3304
    %v3384 = vunpack.c.l.b16 %v3305
    %v3385 = vunpack.c.h.b16 %v3305
    %v3386 = vunpack.c.l.b16 %v3306
    %v3387 = vunpack.c.h.b16 %v3306
    %v3388 = vunpack.c.l.b16 %v3307
    %v3389 = vunpack.c.h.b16 %v3307
    %v3390 = vunpack.c.l.b16 %v3308
    %v3391 = vunpack.c.h.b16 %v3308
    %v3392 = vunpack.c.l.b16 %v3309
    %v3393 = vunpack.c.h.b16 %v3309
    %v3394 = vunpack.c.l.b16 %v3310
    %v3395 = vunpack.c.h.b16 %v3310
    %v3396 = vunpack.c.l.b16 %v3311
    %v3397 = vunpack.c.h.b16 %v3311
    %v3398 = vunpack.c.l.b16 %v3312
    %v3399 = vunpack.c.h.b16 %v3312
    %v3400 = vunpack.c.l.b16 %v3313
    %v3401 = vunpack.c.h.b16 %v3313
    %v3402 = vunpack.c.l.b16 %v3314
    %v3403 = vunpack.c.h.b16 %v3314
    %v3404 = vunpack.c.l.b16 %v3315
    %v3405 = vunpack.c.h.b16 %v3315
    %v3406 = vunpack.c.l.b16 %v3316
    %v3407 = vunpack.c.h.b16 %v3316
    %v3408 = vunpack.c.l.b16 %v3317
    %v3409 = vunpack.c.h.b16 %v3317
    %v3410 = vunpack.c.l.b16 %v3318
    %v3411 = vunpack.c.h.b16 %v3318
    %v3412 = vunpack.c.l.b16 %v3319
    %v3413 = vunpack.c.h.b16 %v3319
    %v3414 = vunpack.c.l.b16 %v3320
    %v3415 = vunpack.c.h.b16 %v3320
    %v3416 = vunpack.c.l.b16 %v3321
    %v3417 = vunpack.c.h.b16 %v3321
    %v3418 = vunpack.c.l.b16 %v3322
    %v3419 = vunpack.c.h.b16 %v3322
    %v3420 = vunpack.c.l.b16 %v3323
    %v3421 = vunpack.c.h.b16 %v3323
    %v3422 = vunpack.c.l.b16 %v3324
    %v3423 = vunpack.c.h.b16 %v3324
    %v3424 = vunpack.c.l.b16 %v3325
    %v3425 = vunpack.c.h.b16 %v3325
    %v3426 = vunpack.c.l.b16 %v3326
    %v3427 = vunpack.c.h.b16 %v3326
    %v3428 = vunpack.c.l.b16 %v3327
    %v3429 = vunpack.c.h.b16 %v3327
    %v3430 = vpack.c.b16 %v3370, %v3366
    %v3431 = vpack.c.b16 %v3371, %v3367
    %v3432 = vpack.c.b16 %v3372, %v3368
    %v3433 = vpack.c.b16 %v3373, %v3369
    %v3434 = vpack.c.b16 %v3378, %v3374
    %v3435 = vpack.c.b16 %v3379, %v3375
    %v3436 = vpack.c.b16 %v3380, %v3376
    %v3437 = vpack.c.b16 %v3381, %v3377
    %v3438 = vpack.c.b16 %v3386, %v3382
    %v3439 = vpack.c.b16 %v3387, %v3383
    %v3440 = vpack.c.b16 %v3388, %v3384
    %v3441 = vpack.c.b16 %v3389, %v3385
    %v3442 = vpack.c.b16 %v3394, %v3390
    %v3443 = vpack.c.b16 %v3395, %v3391
    %v3444 = vpack.c.b16 %v3396, %v3392
    %v3445 = vpack.c.b16 %v3397, %v3393
    %v3446 = vpack.c.b16 %v3402, %v3398
    %v3447 = vpack.c.b16 %v3403, %v3399
    %v3448 = vpack.c.b16 %v3404, %v3400
    %v3449 = vpack.c.b16 %v3405, %v3401
    %v3450 = vpack.c.b16 %v3410, %v3406
    %v3451 = vpack.c.b16 %v3411, %v3407
    %v3452 = vpack.c.b16 %v3412, %v3408
    %v3453 = vpack.c.b16 %v3413, %v3409
    %v3454 = vpack.c.b16 %v3418, %v3414
    %v3455 = vpack.c.b16 %v3419, %v3415
    %v3456 = vpack.c.b16 %v3420, %v3416
    %v3457 = vpack.c.b16 %v3421, %v3417
    %v3458 = vpack.c.b16 %v3426, %v3422
    %v3459 = vpack.c.b16 %v3427, %v3423
    %v3460 = vpack.c.b16 %v3428, %v3424
    %v3461 = vpack.c.b16 %v3429, %v3425
    %3494 = vmatpush.bf16.msra.mxu0 %v3458
    %3495 = vmatpush.bf16.msra.mxu0 %v3454
    %3496 = vmatpush.bf16.msra.mxu0 %v3450
    %3497 = vmatpush.bf16.msra.mxu0 %v3446
    %3498 = vmatpush.bf16.msra.mxu0 %v3442
    %3499 = vmatpush.bf16.msra.mxu0 %v3438
    %3500 = vmatpush.bf16.msra.mxu0 %v3434
    %3501 = vmatpush.bf16.msra.mxu0 %v3430
    %3502 = vmatmul.bf16.gmra.mxu0 %v3332
    %v3503 = vpop.f32.mrf.mxu0
    %v3504 = vadd.f32 0.0, %v3503
    %v3505 = vpop.f32.mrf.mxu0
    %v3506 = vadd.f32 0.0, %v3505
    %3507 = vdwg.mxu0
    %3508 = vmatpush.bf16.msra.mxu0 %v3459
    %3509 = vmatpush.bf16.msra.mxu0 %v3455
    %3510 = vmatpush.bf16.msra.mxu0 %v3451
    %3511 = vmatpush.bf16.msra.mxu0 %v3447
    %3512 = vmatpush.bf16.msra.mxu0 %v3443
    %3513 = vmatpush.bf16.msra.mxu0 %v3439
    %3514 = vmatpush.bf16.msra.mxu0 %v3435
    %3515 = vmatpush.bf16.msra.mxu0 %v3431
    %3516 = vmatmul.bf16.gmra.mxu0 %v3332
    %v3517 = vpop.f32.mrf.mxu0
    %v3518 = vadd.f32 0.0, %v3517
    %v3519 = vpop.f32.mrf.mxu0
    %v3520 = vadd.f32 0.0, %v3519
    %3521 = vdwg.mxu0
    %3522 = vmatpush.bf16.msra.mxu0 %v3460
    %3523 = vmatpush.bf16.msra.mxu0 %v3456
    %3524 = vmatpush.bf16.msra.mxu0 %v3452
    %3525 = vmatpush.bf16.msra.mxu0 %v3448
    %3526 = vmatpush.bf16.msra.mxu0 %v3444
    %3527 = vmatpush.bf16.msra.mxu0 %v3440
    %3528 = vmatpush.bf16.msra.mxu0 %v3436
    %3529 = vmatpush.bf16.msra.mxu0 %v3432
    %3530 = vmatmul.bf16.gmra.mxu0 %v3332
    %v3531 = vpop.f32.mrf.mxu0
    %v3532 = vadd.f32 0.0, %v3531
    %v3533 = vpop.f32.mrf.mxu0
    %v3534 = vadd.f32 0.0, %v3533
    %3535 = vdwg.mxu0
    %3536 = vmatpush.bf16.msra.mxu0 %v3461
    %3537 = vmatpush.bf16.msra.mxu0 %v3457
    %3538 = vmatpush.bf16.msra.mxu0 %v3453
    %3539 = vmatpush.bf16.msra.mxu0 %v3449
    %3540 = vmatpush.bf16.msra.mxu0 %v3445
    %3541 = vmatpush.bf16.msra.mxu0 %v3441
    %3542 = vmatpush.bf16.msra.mxu0 %v3437
    %3543 = vmatpush.bf16.msra.mxu0 %v3433
    %3544 = vmatmul.bf16.gmra.mxu0 %v3332
    %v3545 = vpop.f32.mrf.mxu0
    %v3546 = vadd.f32 0.0, %v3545
    %v3547 = vpop.f32.mrf.mxu0
    %v3548 = vadd.f32 0.0, %v3547
    %3549 = vdwg.mxu0
    %v3550 = vadd.f32 %v3288, %v3504
    %v3551 = vadd.f32 %v3289, %v3518
    %v3552 = vadd.f32 %v3290, %v3532
    %v3553 = vadd.f32 %v3291, %v3546
    %v3554 = vadd.f32 %v3292, %v3506
    %v3555 = vadd.f32 %v3293, %v3520
    %v3556 = vadd.f32 %v3294, %v3534
    %v3557 = vadd.f32 %v3295, %v3548
    %s3558 = smul.u32 8, 4
    %s3559 = smul.addr %s3558, 8
    %s3560 = scalar_lea.vmem [#allocation3], %s3559
    %v3561 = vld [vmem:[%s3560] sm:$0xff]
    %v3562 = vld [vmem:[%s3560 + $0x8] sm:$0xff]
    %v3563 = vld [vmem:[%s3560 + $0x10] sm:$0xff]
    %v3564 = vld [vmem:[%s3560 + $0x18] sm:$0xff]
    %v3565 = vld [vmem:[%s3560 + $0x20] sm:$0xff]
    %v3566 = vld [vmem:[%s3560 + $0x28] sm:$0xff]
    %v3567 = vld [vmem:[%s3560 + $0x30] sm:$0xff]
    %v3568 = vld [vmem:[%s3560 + $0x38] sm:$0xff]
    %v3569 = vld [vmem:[#allocation8] sm:$0xff]
    %v3570 = vld [vmem:[#allocation8 + $0x8] sm:$0xff]
    %v3571 = vld [vmem:[#allocation8 + $0x10] sm:$0xff]
    %v3572 = vld [vmem:[#allocation8 + $0x18] sm:$0xff]
    %v3573 = vld [vmem:[#allocation8 + $0x20] sm:$0xff]
    %v3574 = vld [vmem:[#allocation8 + $0x28] sm:$0xff]
    %v3575 = vld [vmem:[#allocation8 + $0x30] sm:$0xff]
    %v3576 = vld [vmem:[#allocation8 + $0x38] sm:$0xff]
    %v3577 = vld [vmem:[#allocation8 + $0x40] sm:$0xff]
    %v3578 = vld [vmem:[#allocation8 + $0x48] sm:$0xff]
    %v3579 = vld [vmem:[#allocation8 + $0x50] sm:$0xff]
    %v3580 = vld [vmem:[#allocation8 + $0x58] sm:$0xff]
    %v3581 = vld [vmem:[#allocation8 + $0x60] sm:$0xff]
    %v3582 = vld [vmem:[#allocation8 + $0x68] sm:$0xff]
    %v3583 = vld [vmem:[#allocation8 + $0x70] sm:$0xff]
    %v3584 = vld [vmem:[#allocation8 + $0x78] sm:$0xff]
    %v3585 = vld [vmem:[#allocation8 + $0x80] sm:$0xff]
    %v3586 = vld [vmem:[#allocation8 + $0x88] sm:$0xff]
    %v3587 = vld [vmem:[#allocation8 + $0x90] sm:$0xff]
    %v3588 = vld [vmem:[#allocation8 + $0x98] sm:$0xff]
    %v3589 = vld [vmem:[#allocation8 + $0xa0] sm:$0xff]
    %v3590 = vld [vmem:[#allocation8 + $0xa8] sm:$0xff]
    %v3591 = vld [vmem:[#allocation8 + $0xb0] sm:$0xff]
    %v3592 = vld [vmem:[#allocation8 + $0xb8] sm:$0xff]
    %v3593 = vld [vmem:[#allocation8 + $0xc0] sm:$0xff]
    %v3594 = vld [vmem:[#allocation8 + $0xc8] sm:$0xff]
    %v3595 = vld [vmem:[#allocation8 + $0xd0] sm:$0xff]
    %v3596 = vld [vmem:[#allocation8 + $0xd8] sm:$0xff]
    %v3597 = vld [vmem:[#allocation8 + $0xe0] sm:$0xff]
    %v3598 = vld [vmem:[#allocation8 + $0xe8] sm:$0xff]
    %v3599 = vld [vmem:[#allocation8 + $0xf0] sm:$0xff]
    %v3600 = vld [vmem:[#allocation8 + $0xf8] sm:$0xff]
    %v3603 = vunpack.c.l.b16 %v3278
    %v3604 = vunpack.c.l.b16 %v3279
    %v3605 = vpack.c.b16 %v3604, %v3603
    %v3639 = vunpack.c.l.b16 %v3569
    %v3640 = vunpack.c.h.b16 %v3569
    %v3641 = vunpack.c.l.b16 %v3570
    %v3642 = vunpack.c.h.b16 %v3570
    %v3643 = vunpack.c.l.b16 %v3571
    %v3644 = vunpack.c.h.b16 %v3571
    %v3645 = vunpack.c.l.b16 %v3572
    %v3646 = vunpack.c.h.b16 %v3572
    %v3647 = vunpack.c.l.b16 %v3573
    %v3648 = vunpack.c.h.b16 %v3573
    %v3649 = vunpack.c.l.b16 %v3574
    %v3650 = vunpack.c.h.b16 %v3574
    %v3651 = vunpack.c.l.b16 %v3575
    %v3652 = vunpack.c.h.b16 %v3575
    %v3653 = vunpack.c.l.b16 %v3576
    %v3654 = vunpack.c.h.b16 %v3576
    %v3655 = vunpack.c.l.b16 %v3577
    %v3656 = vunpack.c.h.b16 %v3577
    %v3657 = vunpack.c.l.b16 %v3578
    %v3658 = vunpack.c.h.b16 %v3578
    %v3659 = vunpack.c.l.b16 %v3579
    %v3660 = vunpack.c.h.b16 %v3579
    %v3661 = vunpack.c.l.b16 %v3580
    %v3662 = vunpack.c.h.b16 %v3580
    %v3663 = vunpack.c.l.b16 %v3581
    %v3664 = vunpack.c.h.b16 %v3581
    %v3665 = vunpack.c.l.b16 %v3582
    %v3666 = vunpack.c.h.b16 %v3582
    %v3667 = vunpack.c.l.b16 %v3583
    %v3668 = vunpack.c.h.b16 %v3583
    %v3669 = vunpack.c.l.b16 %v3584
    %v3670 = vunpack.c.h.b16 %v3584
    %v3671 = vunpack.c.l.b16 %v3585
    %v3672 = vunpack.c.h.b16 %v3585
    %v3673 = vunpack.c.l.b16 %v3586
    %v3674 = vunpack.c.h.b16 %v3586
    %v3675 = vunpack.c.l.b16 %v3587
    %v3676 = vunpack.c.h.b16 %v3587
    %v3677 = vunpack.c.l.b16 %v3588
    %v3678 = vunpack.c.h.b16 %v3588
    %v3679 = vunpack.c.l.b16 %v3589
    %v3680 = vunpack.c.h.b16 %v3589
    %v3681 = vunpack.c.l.b16 %v3590
    %v3682 = vunpack.c.h.b16 %v3590
    %v3683 = vunpack.c.l.b16 %v3591
    %v3684 = vunpack.c.h.b16 %v3591
    %v3685 = vunpack.c.l.b16 %v3592
    %v3686 = vunpack.c.h.b16 %v3592
    %v3687 = vunpack.c.l.b16 %v3593
    %v3688 = vunpack.c.h.b16 %v3593
    %v3689 = vunpack.c.l.b16 %v3594
    %v3690 = vunpack.c.h.b16 %v3594
    %v3691 = vunpack.c.l.b16 %v3595
    %v3692 = vunpack.c.h.b16 %v3595
    %v3693 = vunpack.c.l.b16 %v3596
    %v3694 = vunpack.c.h.b16 %v3596
    %v3695 = vunpack.c.l.b16 %v3597
    %v3696 = vunpack.c.h.b16 %v3597
    %v3697 = vunpack.c.l.b16 %v3598
    %v3698 = vunpack.c.h.b16 %v3598
    %v3699 = vunpack.c.l.b16 %v3599
    %v3700 = vunpack.c.h.b16 %v3599
    %v3701 = vunpack.c.l.b16 %v3600
    %v3702 = vunpack.c.h.b16 %v3600
    %v3703 = vpack.c.b16 %v3643, %v3639
    %v3704 = vpack.c.b16 %v3644, %v3640
    %v3705 = vpack.c.b16 %v3645, %v3641
    %v3706 = vpack.c.b16 %v3646, %v3642
    %v3707 = vpack.c.b16 %v3651, %v3647
    %v3708 = vpack.c.b16 %v3652, %v3648
    %v3709 = vpack.c.b16 %v3653, %v3649
    %v3710 = vpack.c.b16 %v3654, %v3650
    %v3711 = vpack.c.b16 %v3659, %v3655
    %v3712 = vpack.c.b16 %v3660, %v3656
    %v3713 = vpack.c.b16 %v3661, %v3657
    %v3714 = vpack.c.b16 %v3662, %v3658
    %v3715 = vpack.c.b16 %v3667, %v3663
    %v3716 = vpack.c.b16 %v3668, %v3664
    %v3717 = vpack.c.b16 %v3669, %v3665
    %v3718 = vpack.c.b16 %v3670, %v3666
    %v3719 = vpack.c.b16 %v3675, %v3671
    %v3720 = vpack.c.b16 %v3676, %v3672
    %v3721 = vpack.c.b16 %v3677, %v3673
    %v3722 = vpack.c.b16 %v3678, %v3674
    %v3723 = vpack.c.b16 %v3683, %v3679
    %v3724 = vpack.c.b16 %v3684, %v3680
    %v3725 = vpack.c.b16 %v3685, %v3681
    %v3726 = vpack.c.b16 %v3686, %v3682
    %v3727 = vpack.c.b16 %v3691, %v3687
    %v3728 = vpack.c.b16 %v3692, %v3688
    %v3729 = vpack.c.b16 %v3693, %v3689
    %v3730 = vpack.c.b16 %v3694, %v3690
    %v3731 = vpack.c.b16 %v3699, %v3695
    %v3732 = vpack.c.b16 %v3700, %v3696
    %v3733 = vpack.c.b16 %v3701, %v3697
    %v3734 = vpack.c.b16 %v3702, %v3698
    %3767 = vmatpush.bf16.msra.mxu0 %v3731
    %3768 = vmatpush.bf16.msra.mxu0 %v3727
    %3769 = vmatpush.bf16.msra.mxu0 %v3723
    %3770 = vmatpush.bf16.msra.mxu0 %v3719
    %3771 = vmatpush.bf16.msra.mxu0 %v3715
    %3772 = vmatpush.bf16.msra.mxu0 %v3711
    %3773 = vmatpush.bf16.msra.mxu0 %v3707
    %3774 = vmatpush.bf16.msra.mxu0 %v3703
    %3775 = vmatmul.bf16.gmra.mxu0 %v3605
    %v3776 = vpop.f32.mrf.mxu0
    %v3777 = vadd.f32 0.0, %v3776
    %v3778 = vpop.f32.mrf.mxu0
    %v3779 = vadd.f32 0.0, %v3778
    %3780 = vdwg.mxu0
    %3781 = vmatpush.bf16.msra.mxu0 %v3732
    %3782 = vmatpush.bf16.msra.mxu0 %v3728
    %3783 = vmatpush.bf16.msra.mxu0 %v3724
    %3784 = vmatpush.bf16.msra.mxu0 %v3720
    %3785 = vmatpush.bf16.msra.mxu0 %v3716
    %3786 = vmatpush.bf16.msra.mxu0 %v3712
    %3787 = vmatpush.bf16.msra.mxu0 %v3708
    %3788 = vmatpush.bf16.msra.mxu0 %v3704
    %3789 = vmatmul.bf16.gmra.mxu0 %v3605
    %v3790 = vpop.f32.mrf.mxu0
    %v3791 = vadd.f32 0.0, %v3790
    %v3792 = vpop.f32.mrf.mxu0
    %v3793 = vadd.f32 0.0, %v3792
    %3794 = vdwg.mxu0
    %3795 = vmatpush.bf16.msra.mxu0 %v3733
    %3796 = vmatpush.bf16.msra.mxu0 %v3729
    %3797 = vmatpush.bf16.msra.mxu0 %v3725
    %3798 = vmatpush.bf16.msra.mxu0 %v3721
    %3799 = vmatpush.bf16.msra.mxu0 %v3717
    %3800 = vmatpush.bf16.msra.mxu0 %v3713
    %3801 = vmatpush.bf16.msra.mxu0 %v3709
    %3802 = vmatpush.bf16.msra.mxu0 %v3705
    %3803 = vmatmul.bf16.gmra.mxu0 %v3605
    %v3804 = vpop.f32.mrf.mxu0
    %v3805 = vadd.f32 0.0, %v3804
    %v3806 = vpop.f32.mrf.mxu0
    %v3807 = vadd.f32 0.0, %v3806
    %3808 = vdwg.mxu0
    %3809 = vmatpush.bf16.msra.mxu0 %v3734
    %3810 = vmatpush.bf16.msra.mxu0 %v3730
    %3811 = vmatpush.bf16.msra.mxu0 %v3726
    %3812 = vmatpush.bf16.msra.mxu0 %v3722
    %3813 = vmatpush.bf16.msra.mxu0 %v3718
    %3814 = vmatpush.bf16.msra.mxu0 %v3714
    %3815 = vmatpush.bf16.msra.mxu0 %v3710
    %3816 = vmatpush.bf16.msra.mxu0 %v3706
    %3817 = vmatmul.bf16.gmra.mxu0 %v3605
    %v3818 = vpop.f32.mrf.mxu0
    %v3819 = vadd.f32 0.0, %v3818
    %v3820 = vpop.f32.mrf.mxu0
    %v3821 = vadd.f32 0.0, %v3820
    %3822 = vdwg.mxu0
    %v3823 = vadd.f32 %v3561, %v3777
    %v3824 = vadd.f32 %v3562, %v3791
    %v3825 = vadd.f32 %v3563, %v3805
    %v3826 = vadd.f32 %v3564, %v3819
    %v3827 = vadd.f32 %v3565, %v3779
    %v3828 = vadd.f32 %v3566, %v3793
    %v3829 = vadd.f32 %v3567, %v3807
    %v3830 = vadd.f32 %v3568, %v3821
    %v3831 = vxor.u32 %v3550, 2147483648
    %v3832 = vxor.u32 %v3551, 2147483648
    %v3833 = vxor.u32 %v3553, 2147483648
    %v3834 = vxor.u32 %v3554, 2147483648
    %v3835 = vxor.u32 %v3555, 2147483648
    %v3836 = vxor.u32 %v3557, 2147483648
    %v3837 = vmul.f32 %v3831, 1.442695
    %v3838 = vpow.pop %v3837
    %v3839 = vmul.f32 %v3832, 1.442695
    %v3840 = vpow.pop %v3839
    %v3841 = vmul.f32 %v3833, 1.442695
    %v3842 = vpow.pop %v3841
    %v3843 = vmul.f32 %v3834, 1.442695
    %v3844 = vpow.pop %v3843
    %v3845 = vmul.f32 %v3835, 1.442695
    %v3846 = vpow.pop %v3845
    %v3847 = vmul.f32 %v3836, 1.442695
    %v3848 = vpow.pop %v3847
    %v3849 = vadd.f32 %v3838, 1.0
    %v3850 = vadd.f32 %v3840, 1.0
    %v3851 = vadd.f32 %v3842, 1.0
    %v3852 = vadd.f32 %v3844, 1.0
    %v3853 = vadd.f32 %v3846, 1.0
    %v3854 = vadd.f32 %v3848, 1.0
    %v3855 = vrcp.pop %v3849
    %v3856 = vmul.f32 %v3849, %v3855
    %v3857 = vsub.f32 1.0, %v3856
    %v3858 = vmul.f32 %v3855, %v3857
    %v3859 = vadd.f32 %v3855, %v3858
    %vm3860 = vweird.f32 %v3849
    %vm3861 = vweird.f32 %v3855
    %vm3862 = vmor %vm3860, %vm3861
    %v3863 = vsel %vm3862, %v3855, %v3859
    %v3864 = vand.u32 2147483647, %v3849
    %vm3865 = vcmp.eq.f32.partialorder %v3864, 8.507059e+37
    %v3866 = vand.u32 %v3849, 2147483648
    %v3867 = vor.u32 1.1754944e-38, %v3866
    %v3868 = vsel %vm3865, %v3867, %v3863
    %v3869 = vmul.f32 1.0, %v3868
    %v3870 = vrcp.pop %v3850
    %v3871 = vmul.f32 %v3850, %v3870
    %v3872 = vsub.f32 1.0, %v3871
    %v3873 = vmul.f32 %v3870, %v3872
    %v3874 = vadd.f32 %v3870, %v3873
    %vm3875 = vweird.f32 %v3850
    %vm3876 = vweird.f32 %v3870
    %vm3877 = vmor %vm3875, %vm3876
    %v3878 = vsel %vm3877, %v3870, %v3874
    %v3879 = vand.u32 2147483647, %v3850
    %vm3880 = vcmp.eq.f32.partialorder %v3879, 8.507059e+37
    %v3881 = vand.u32 %v3850, 2147483648
    %v3882 = vor.u32 1.1754944e-38, %v3881
    %v3883 = vsel %vm3880, %v3882, %v3878
    %v3884 = vmul.f32 1.0, %v3883
    %v3885 = vrcp.pop %v3851
    %v3886 = vmul.f32 %v3851, %v3885
    %v3887 = vsub.f32 1.0, %v3886
    %v3888 = vmul.f32 %v3885, %v3887
    %v3889 = vadd.f32 %v3885, %v3888
    %vm3890 = vweird.f32 %v3851
    %vm3891 = vweird.f32 %v3885
    %vm3892 = vmor %vm3890, %vm3891
    %v3893 = vsel %vm3892, %v3885, %v3889
    %v3894 = vand.u32 2147483647, %v3851
    %vm3895 = vcmp.eq.f32.partialorder %v3894, 8.507059e+37
    %v3896 = vand.u32 %v3851, 2147483648
    %v3897 = vor.u32 1.1754944e-38, %v3896
    %v3898 = vsel %vm3895, %v3897, %v3893
    %v3899 = vmul.f32 1.0, %v3898
    %v3900 = vrcp.pop %v3852
    %v3901 = vmul.f32 %v3852, %v3900
    %v3902 = vsub.f32 1.0, %v3901
    %v3903 = vmul.f32 %v3900, %v3902
    %v3904 = vadd.f32 %v3900, %v3903
    %vm3905 = vweird.f32 %v3852
    %vm3906 = vweird.f32 %v3900
    %vm3907 = vmor %vm3905, %vm3906
    %v3908 = vsel %vm3907, %v3900, %v3904
    %v3909 = vand.u32 2147483647, %v3852
    %vm3910 = vcmp.eq.f32.partialorder %v3909, 8.507059e+37
    %v3911 = vand.u32 %v3852, 2147483648
    %v3912 = vor.u32 1.1754944e-38, %v3911
    %v3913 = vsel %vm3910, %v3912, %v3908
    %v3914 = vmul.f32 1.0, %v3913
    %v3915 = vrcp.pop %v3853
    %v3916 = vmul.f32 %v3853, %v3915
    %v3917 = vsub.f32 1.0, %v3916
    %v3918 = vmul.f32 %v3915, %v3917
    %v3919 = vadd.f32 %v3915, %v3918
    %vm3920 = vweird.f32 %v3853
    %vm3921 = vweird.f32 %v3915
    %vm3922 = vmor %vm3920, %vm3921
    %v3923 = vsel %vm3922, %v3915, %v3919
    %v3924 = vand.u32 2147483647, %v3853
    %vm3925 = vcmp.eq.f32.partialorder %v3924, 8.507059e+37
    %v3926 = vand.u32 %v3853, 2147483648
    %v3927 = vor.u32 1.1754944e-38, %v3926
    %v3928 = vsel %vm3925, %v3927, %v3923
    %v3929 = vmul.f32 1.0, %v3928
    %v3930 = vrcp.pop %v3854
    %v3931 = vmul.f32 %v3854, %v3930
    %v3932 = vsub.f32 1.0, %v3931
    %v3933 = vmul.f32 %v3930, %v3932
    %v3934 = vadd.f32 %v3930, %v3933
    %vm3935 = vweird.f32 %v3854
    %vm3936 = vweird.f32 %v3930
    %vm3937 = vmor %vm3935, %vm3936
    %v3938 = vsel %vm3937, %v3930, %v3934
    %v3939 = vand.u32 2147483647, %v3854
    %vm3940 = vcmp.eq.f32.partialorder %v3939, 8.507059e+37
    %v3941 = vand.u32 %v3854, 2147483648
    %v3942 = vor.u32 1.1754944e-38, %v3941
    %v3943 = vsel %vm3940, %v3942, %v3938
    %v3944 = vmul.f32 1.0, %v3943
    %v3945 = vtanh.pop %v3552
    %v3946 = vtanh.pop %v3556
    %v3947 = vmul.f32 %v3884, %v3139
    %v3948 = vmul.f32 %v3929, %v3140
    %v3949 = vmul.f32 %v3869, %v3945
    %v3950 = vmul.f32 %v3914, %v3946
    %v3951 = vadd.f32 %v3947, %v3949
    %v3952 = vadd.f32 %v3948, %v3950
    %v3953 = vtanh.pop %v3951
    %v3954 = vtanh.pop %v3952
    %v3955 = vmul.f32 %v3899, %v3953
    %v3956 = vmul.f32 %v3944, %v3954
    %v3957 = vxor.u32 %v3823, 2147483648
    %v3958 = vxor.u32 %v3824, 2147483648
    %v3959 = vxor.u32 %v3826, 2147483648
    %v3960 = vxor.u32 %v3827, 2147483648
    %v3961 = vxor.u32 %v3828, 2147483648
    %v3962 = vxor.u32 %v3830, 2147483648
    %v3963 = vmul.f32 %v3957, 1.442695
    %v3964 = vpow.pop %v3963
    %v3965 = vmul.f32 %v3958, 1.442695
    %v3966 = vpow.pop %v3965
    %v3967 = vmul.f32 %v3959, 1.442695
    %v3968 = vpow.pop %v3967
    %v3969 = vmul.f32 %v3960, 1.442695
    %v3970 = vpow.pop %v3969
    %v3971 = vmul.f32 %v3961, 1.442695
    %v3972 = vpow.pop %v3971
    %v3973 = vmul.f32 %v3962, 1.442695
    %v3974 = vpow.pop %v3973
    %v3975 = vadd.f32 %v3964, 1.0
    %v3976 = vadd.f32 %v3966, 1.0
    %v3977 = vadd.f32 %v3968, 1.0
    %v3978 = vadd.f32 %v3970, 1.0
    %v3979 = vadd.f32 %v3972, 1.0
    %v3980 = vadd.f32 %v3974, 1.0
    %v3981 = vrcp.pop %v3975
    %v3982 = vmul.f32 %v3975, %v3981
    %v3983 = vsub.f32 1.0, %v3982
    %v3984 = vmul.f32 %v3981, %v3983
    %v3985 = vadd.f32 %v3981, %v3984
    %vm3986 = vweird.f32 %v3975
    %vm3987 = vweird.f32 %v3981
    %vm3988 = vmor %vm3986, %vm3987
    %v3989 = vsel %vm3988, %v3981, %v3985
    %v3990 = vand.u32 2147483647, %v3975
    %vm3991 = vcmp.eq.f32.partialorder %v3990, 8.507059e+37
    %v3992 = vand.u32 %v3975, 2147483648
    %v3993 = vor.u32 1.1754944e-38, %v3992
    %v3994 = vsel %vm3991, %v3993, %v3989
    %v3995 = vmul.f32 1.0, %v3994
    %v3996 = vrcp.pop %v3976
    %v3997 = vmul.f32 %v3976, %v3996
    %v3998 = vsub.f32 1.0, %v3997
    %v3999 = vmul.f32 %v3996, %v3998
    %v4000 = vadd.f32 %v3996, %v3999
    %vm4001 = vweird.f32 %v3976
    %vm4002 = vweird.f32 %v3996
    %vm4003 = vmor %vm4001, %vm4002
    %v4004 = vsel %vm4003, %v3996, %v4000
    %v4005 = vand.u32 2147483647, %v3976
    %vm4006 = vcmp.eq.f32.partialorder %v4005, 8.507059e+37
    %v4007 = vand.u32 %v3976, 2147483648
    %v4008 = vor.u32 1.1754944e-38, %v4007
    %v4009 = vsel %vm4006, %v4008, %v4004
    %v4010 = vmul.f32 1.0, %v4009
    %v4011 = vrcp.pop %v3977
    %v4012 = vmul.f32 %v3977, %v4011
    %v4013 = vsub.f32 1.0, %v4012
    %v4014 = vmul.f32 %v4011, %v4013
    %v4015 = vadd.f32 %v4011, %v4014
    %vm4016 = vweird.f32 %v3977
    %vm4017 = vweird.f32 %v4011
    %vm4018 = vmor %vm4016, %vm4017
    %v4019 = vsel %vm4018, %v4011, %v4015
    %v4020 = vand.u32 2147483647, %v3977
    %vm4021 = vcmp.eq.f32.partialorder %v4020, 8.507059e+37
    %v4022 = vand.u32 %v3977, 2147483648
    %v4023 = vor.u32 1.1754944e-38, %v4022
    %v4024 = vsel %vm4021, %v4023, %v4019
    %v4025 = vmul.f32 1.0, %v4024
    %v4026 = vrcp.pop %v3978
    %v4027 = vmul.f32 %v3978, %v4026
    %v4028 = vsub.f32 1.0, %v4027
    %v4029 = vmul.f32 %v4026, %v4028
    %v4030 = vadd.f32 %v4026, %v4029
    %vm4031 = vweird.f32 %v3978
    %vm4032 = vweird.f32 %v4026
    %vm4033 = vmor %vm4031, %vm4032
    %v4034 = vsel %vm4033, %v4026, %v4030
    %v4035 = vand.u32 2147483647, %v3978
    %vm4036 = vcmp.eq.f32.partialorder %v4035, 8.507059e+37
    %v4037 = vand.u32 %v3978, 2147483648
    %v4038 = vor.u32 1.1754944e-38, %v4037
    %v4039 = vsel %vm4036, %v4038, %v4034
    %v4040 = vmul.f32 1.0, %v4039
    %v4041 = vrcp.pop %v3979
    %v4042 = vmul.f32 %v3979, %v4041
    %v4043 = vsub.f32 1.0, %v4042
    %v4044 = vmul.f32 %v4041, %v4043
    %v4045 = vadd.f32 %v4041, %v4044
    %vm4046 = vweird.f32 %v3979
    %vm4047 = vweird.f32 %v4041
    %vm4048 = vmor %vm4046, %vm4047
    %v4049 = vsel %vm4048, %v4041, %v4045
    %v4050 = vand.u32 2147483647, %v3979
    %vm4051 = vcmp.eq.f32.partialorder %v4050, 8.507059e+37
    %v4052 = vand.u32 %v3979, 2147483648
    %v4053 = vor.u32 1.1754944e-38, %v4052
    %v4054 = vsel %vm4051, %v4053, %v4049
    %v4055 = vmul.f32 1.0, %v4054
    %v4056 = vrcp.pop %v3980
    %v4057 = vmul.f32 %v3980, %v4056
    %v4058 = vsub.f32 1.0, %v4057
    %v4059 = vmul.f32 %v4056, %v4058
    %v4060 = vadd.f32 %v4056, %v4059
    %vm4061 = vweird.f32 %v3980
    %vm4062 = vweird.f32 %v4056
    %vm4063 = vmor %vm4061, %vm4062
    %v4064 = vsel %vm4063, %v4056, %v4060
    %v4065 = vand.u32 2147483647, %v3980
    %vm4066 = vcmp.eq.f32.partialorder %v4065, 8.507059e+37
    %v4067 = vand.u32 %v3980, 2147483648
    %v4068 = vor.u32 1.1754944e-38, %v4067
    %v4069 = vsel %vm4066, %v4068, %v4064
    %v4070 = vmul.f32 1.0, %v4069
    %v4071 = vtanh.pop %v3825
    %v4072 = vtanh.pop %v3829
    %v4073 = vmul.f32 %v4010, %v3265
    %v4074 = vmul.f32 %v4055, %v3266
    %v4075 = vmul.f32 %v3995, %v4071
    %v4076 = vmul.f32 %v4040, %v4072
    %v4077 = vadd.f32 %v4073, %v4075
    %v4078 = vadd.f32 %v4074, %v4076
    %v4079 = vtanh.pop %v4077
    %v4080 = vtanh.pop %v4078
    %v4081 = vmul.f32 %v4025, %v4079
    %v4082 = vmul.f32 %v4070, %v4080
    %v4083 = vpack.c.bf16 %v3955, %v3955
    %v4084 = vpack.c.bf16 %v3956, %v3956
    %s4085 = smul.u32 6, 2
    %s4086 = smul.addr %s4085, 4
    %s4087 = scalar_lea.vmem [#allocation4], %s4086
    %4088 = vst [vmem:[%s4087] sm:$0xf] %v4083
    %4089 = vst [vmem:[%s4087 + $0x8] sm:$0xf] %v4084
    %v4090 = vpack.c.bf16 %v4081, %v4081
    %v4091 = vpack.c.bf16 %v4082, %v4082
    %s4092 = smul.u32 8, 2
    %s4093 = smul.addr %s4092, 4
    %s4094 = scalar_lea.vmem [#allocation4], %s4093
    %4095 = vst [vmem:[%s4094 + $0x4] sm:$0xf] %v4090
    %4096 = vst [vmem:[%s4094 + $0xc] sm:$0xf] %v4091
    %s4097 = smul.addr %s3558, 8
    %s4098 = scalar_lea.vmem [#allocation2], %s4097
    %v4099 = vld [vmem:[%s4098] sm:$0xff]
    %v4100 = vld [vmem:[%s4098 + $0x8] sm:$0xff]
    %v4101 = vld [vmem:[%s4098 + $0x10] sm:$0xff]
    %v4102 = vld [vmem:[%s4098 + $0x18] sm:$0xff]
    %v4103 = vld [vmem:[%s4098 + $0x20] sm:$0xff]
    %v4104 = vld [vmem:[%s4098 + $0x28] sm:$0xff]
    %v4105 = vld [vmem:[%s4098 + $0x30] sm:$0xff]
    %v4106 = vld [vmem:[%s4098 + $0x38] sm:$0xff]
    %v4107 = vld [vmem:[#allocation5] sm:$0xff]
    %v4108 = vld [vmem:[#allocation5 + $0x8] sm:$0xff]
    %v4109 = vld [vmem:[#allocation5 + $0x10] sm:$0xff]
    %v4110 = vld [vmem:[#allocation5 + $0x18] sm:$0xff]
    %v4111 = vld [vmem:[#allocation5 + $0x20] sm:$0xff]
    %v4112 = vld [vmem:[#allocation5 + $0x28] sm:$0xff]
    %v4113 = vld [vmem:[#allocation5 + $0x30] sm:$0xff]
    %v4114 = vld [vmem:[#allocation5 + $0x38] sm:$0xff]
    %v4115 = vld [vmem:[#allocation5 + $0x40] sm:$0xff]
    %v4116 = vld [vmem:[#allocation5 + $0x48] sm:$0xff]
    %v4117 = vld [vmem:[#allocation5 + $0x50] sm:$0xff]
    %v4118 = vld [vmem:[#allocation5 + $0x58] sm:$0xff]
    %v4119 = vld [vmem:[#allocation5 + $0x60] sm:$0xff]
    %v4120 = vld [vmem:[#allocation5 + $0x68] sm:$0xff]
    %v4121 = vld [vmem:[#allocation5 + $0x70] sm:$0xff]
    %v4122 = vld [vmem:[#allocation5 + $0x78] sm:$0xff]
    %v4123 = vld [vmem:[#allocation5 + $0x80] sm:$0xff]
    %v4124 = vld [vmem:[#allocation5 + $0x88] sm:$0xff]
    %v4125 = vld [vmem:[#allocation5 + $0x90] sm:$0xff]
    %v4126 = vld [vmem:[#allocation5 + $0x98] sm:$0xff]
    %v4127 = vld [vmem:[#allocation5 + $0xa0] sm:$0xff]
    %v4128 = vld [vmem:[#allocation5 + $0xa8] sm:$0xff]
    %v4129 = vld [vmem:[#allocation5 + $0xb0] sm:$0xff]
    %v4130 = vld [vmem:[#allocation5 + $0xb8] sm:$0xff]
    %v4131 = vld [vmem:[#allocation5 + $0xc0] sm:$0xff]
    %v4132 = vld [vmem:[#allocation5 + $0xc8] sm:$0xff]
    %v4133 = vld [vmem:[#allocation5 + $0xd0] sm:$0xff]
    %v4134 = vld [vmem:[#allocation5 + $0xd8] sm:$0xff]
    %v4135 = vld [vmem:[#allocation5 + $0xe0] sm:$0xff]
    %v4136 = vld [vmem:[#allocation5 + $0xe8] sm:$0xff]
    %v4137 = vld [vmem:[#allocation5 + $0xf0] sm:$0xff]
    %v4138 = vld [vmem:[#allocation5 + $0xf8] sm:$0xff]
    %v4141 = vunpack.c.l.b16 %v4083
    %v4142 = vunpack.c.l.b16 %v4084
    %v4143 = vpack.c.b16 %v4142, %v4141
    %v4177 = vunpack.c.l.b16 %v4107
    %v4178 = vunpack.c.h.b16 %v4107
    %v4179 = vunpack.c.l.b16 %v4108
    %v4180 = vunpack.c.h.b16 %v4108
    %v4181 = vunpack.c.l.b16 %v4109
    %v4182 = vunpack.c.h.b16 %v4109
    %v4183 = vunpack.c.l.b16 %v4110
    %v4184 = vunpack.c.h.b16 %v4110
    %v4185 = vunpack.c.l.b16 %v4111
    %v4186 = vunpack.c.h.b16 %v4111
    %v4187 = vunpack.c.l.b16 %v4112
    %v4188 = vunpack.c.h.b16 %v4112
    %v4189 = vunpack.c.l.b16 %v4113
    %v4190 = vunpack.c.h.b16 %v4113
    %v4191 = vunpack.c.l.b16 %v4114
    %v4192 = vunpack.c.h.b16 %v4114
    %v4193 = vunpack.c.l.b16 %v4115
    %v4194 = vunpack.c.h.b16 %v4115
    %v4195 = vunpack.c.l.b16 %v4116
    %v4196 = vunpack.c.h.b16 %v4116
    %v4197 = vunpack.c.l.b16 %v4117
    %v4198 = vunpack.c.h.b16 %v4117
    %v4199 = vunpack.c.l.b16 %v4118
    %v4200 = vunpack.c.h.b16 %v4118
    %v4201 = vunpack.c.l.b16 %v4119
    %v4202 = vunpack.c.h.b16 %v4119
    %v4203 = vunpack.c.l.b16 %v4120
    %v4204 = vunpack.c.h.b16 %v4120
    %v4205 = vunpack.c.l.b16 %v4121
    %v4206 = vunpack.c.h.b16 %v4121
    %v4207 = vunpack.c.l.b16 %v4122
    %v4208 = vunpack.c.h.b16 %v4122
    %v4209 = vunpack.c.l.b16 %v4123
    %v4210 = vunpack.c.h.b16 %v4123
    %v4211 = vunpack.c.l.b16 %v4124
    %v4212 = vunpack.c.h.b16 %v4124
    %v4213 = vunpack.c.l.b16 %v4125
    %v4214 = vunpack.c.h.b16 %v4125
    %v4215 = vunpack.c.l.b16 %v4126
    %v4216 = vunpack.c.h.b16 %v4126
    %v4217 = vunpack.c.l.b16 %v4127
    %v4218 = vunpack.c.h.b16 %v4127
    %v4219 = vunpack.c.l.b16 %v4128
    %v4220 = vunpack.c.h.b16 %v4128
    %v4221 = vunpack.c.l.b16 %v4129
    %v4222 = vunpack.c.h.b16 %v4129
    %v4223 = vunpack.c.l.b16 %v4130
    %v4224 = vunpack.c.h.b16 %v4130
    %v4225 = vunpack.c.l.b16 %v4131
    %v4226 = vunpack.c.h.b16 %v4131
    %v4227 = vunpack.c.l.b16 %v4132
    %v4228 = vunpack.c.h.b16 %v4132
    %v4229 = vunpack.c.l.b16 %v4133
    %v4230 = vunpack.c.h.b16 %v4133
    %v4231 = vunpack.c.l.b16 %v4134
    %v4232 = vunpack.c.h.b16 %v4134
    %v4233 = vunpack.c.l.b16 %v4135
    %v4234 = vunpack.c.h.b16 %v4135
    %v4235 = vunpack.c.l.b16 %v4136
    %v4236 = vunpack.c.h.b16 %v4136
    %v4237 = vunpack.c.l.b16 %v4137
    %v4238 = vunpack.c.h.b16 %v4137
    %v4239 = vunpack.c.l.b16 %v4138
    %v4240 = vunpack.c.h.b16 %v4138
    %v4241 = vpack.c.b16 %v4181, %v4177
    %v4242 = vpack.c.b16 %v4182, %v4178
    %v4243 = vpack.c.b16 %v4183, %v4179
    %v4244 = vpack.c.b16 %v4184, %v4180
    %v4245 = vpack.c.b16 %v4189, %v4185
    %v4246 = vpack.c.b16 %v4190, %v4186
    %v4247 = vpack.c.b16 %v4191, %v4187
    %v4248 = vpack.c.b16 %v4192, %v4188
    %v4249 = vpack.c.b16 %v4197, %v4193
    %v4250 = vpack.c.b16 %v4198, %v4194
    %v4251 = vpack.c.b16 %v4199, %v4195
    %v4252 = vpack.c.b16 %v4200, %v4196
    %v4253 = vpack.c.b16 %v4205, %v4201
    %v4254 = vpack.c.b16 %v4206, %v4202
    %v4255 = vpack.c.b16 %v4207, %v4203
    %v4256 = vpack.c.b16 %v4208, %v4204
    %v4257 = vpack.c.b16 %v4213, %v4209
    %v4258 = vpack.c.b16 %v4214, %v4210
    %v4259 = vpack.c.b16 %v4215, %v4211
    %v4260 = vpack.c.b16 %v4216, %v4212
    %v4261 = vpack.c.b16 %v4221, %v4217
    %v4262 = vpack.c.b16 %v4222, %v4218
    %v4263 = vpack.c.b16 %v4223, %v4219
    %v4264 = vpack.c.b16 %v4224, %v4220
    %v4265 = vpack.c.b16 %v4229, %v4225
    %v4266 = vpack.c.b16 %v4230, %v4226
    %v4267 = vpack.c.b16 %v4231, %v4227
    %v4268 = vpack.c.b16 %v4232, %v4228
    %v4269 = vpack.c.b16 %v4237, %v4233
    %v4270 = vpack.c.b16 %v4238, %v4234
    %v4271 = vpack.c.b16 %v4239, %v4235
    %v4272 = vpack.c.b16 %v4240, %v4236
    %4305 = vmatpush.bf16.msra.mxu0 %v4269
    %4306 = vmatpush.bf16.msra.mxu0 %v4265
    %4307 = vmatpush.bf16.msra.mxu0 %v4261
    %4308 = vmatpush.bf16.msra.mxu0 %v4257
    %4309 = vmatpush.bf16.msra.mxu0 %v4253
    %4310 = vmatpush.bf16.msra.mxu0 %v4249
    %4311 = vmatpush.bf16.msra.mxu0 %v4245
    %4312 = vmatpush.bf16.msra.mxu0 %v4241
    %4313 = vmatmul.bf16.gmra.mxu0 %v4143
    %v4314 = vpop.f32.mrf.mxu0
    %v4315 = vadd.f32 0.0, %v4314
    %v4316 = vpop.f32.mrf.mxu0
    %v4317 = vadd.f32 0.0, %v4316
    %4318 = vdwg.mxu0
    %4319 = vmatpush.bf16.msra.mxu0 %v4270
    %4320 = vmatpush.bf16.msra.mxu0 %v4266
    %4321 = vmatpush.bf16.msra.mxu0 %v4262
    %4322 = vmatpush.bf16.msra.mxu0 %v4258
    %4323 = vmatpush.bf16.msra.mxu0 %v4254
    %4324 = vmatpush.bf16.msra.mxu0 %v4250
    %4325 = vmatpush.bf16.msra.mxu0 %v4246
    %4326 = vmatpush.bf16.msra.mxu0 %v4242
    %4327 = vmatmul.bf16.gmra.mxu0 %v4143
    %v4328 = vpop.f32.mrf.mxu0
    %v4329 = vadd.f32 0.0, %v4328
    %v4330 = vpop.f32.mrf.mxu0
    %v4331 = vadd.f32 0.0, %v4330
    %4332 = vdwg.mxu0
    %4333 = vmatpush.bf16.msra.mxu0 %v4271
    %4334 = vmatpush.bf16.msra.mxu0 %v4267
    %4335 = vmatpush.bf16.msra.mxu0 %v4263
    %4336 = vmatpush.bf16.msra.mxu0 %v4259
    %4337 = vmatpush.bf16.msra.mxu0 %v4255
    %4338 = vmatpush.bf16.msra.mxu0 %v4251
    %4339 = vmatpush.bf16.msra.mxu0 %v4247
    %4340 = vmatpush.bf16.msra.mxu0 %v4243
    %4341 = vmatmul.bf16.gmra.mxu0 %v4143
    %v4342 = vpop.f32.mrf.mxu0
    %v4343 = vadd.f32 0.0, %v4342
    %v4344 = vpop.f32.mrf.mxu0
    %v4345 = vadd.f32 0.0, %v4344
    %4346 = vdwg.mxu0
    %4347 = vmatpush.bf16.msra.mxu0 %v4272
    %4348 = vmatpush.bf16.msra.mxu0 %v4268
    %4349 = vmatpush.bf16.msra.mxu0 %v4264
    %4350 = vmatpush.bf16.msra.mxu0 %v4260
    %4351 = vmatpush.bf16.msra.mxu0 %v4256
    %4352 = vmatpush.bf16.msra.mxu0 %v4252
    %4353 = vmatpush.bf16.msra.mxu0 %v4248
    %4354 = vmatpush.bf16.msra.mxu0 %v4244
    %4355 = vmatmul.bf16.gmra.mxu0 %v4143
    %v4356 = vpop.f32.mrf.mxu0
    %v4357 = vadd.f32 0.0, %v4356
    %v4358 = vpop.f32.mrf.mxu0
    %v4359 = vadd.f32 0.0, %v4358
    %4360 = vdwg.mxu0
    %v4361 = vadd.f32 %v4099, %v4315
    %v4362 = vadd.f32 %v4100, %v4329
    %v4363 = vadd.f32 %v4101, %v4343
    %v4364 = vadd.f32 %v4102, %v4357
    %v4365 = vadd.f32 %v4103, %v4317
    %v4366 = vadd.f32 %v4104, %v4331
    %v4367 = vadd.f32 %v4105, %v4345
    %v4368 = vadd.f32 %v4106, %v4359
    %s4369 = smul.addr %s3285, 8
    %s4370 = scalar_lea.vmem [#allocation3], %s4369
    %v4371 = vld [vmem:[%s4370] sm:$0xff]
    %v4372 = vld [vmem:[%s4370 + $0x8] sm:$0xff]
    %v4373 = vld [vmem:[%s4370 + $0x10] sm:$0xff]
    %v4374 = vld [vmem:[%s4370 + $0x18] sm:$0xff]
    %v4375 = vld [vmem:[%s4370 + $0x20] sm:$0xff]
    %v4376 = vld [vmem:[%s4370 + $0x28] sm:$0xff]
    %v4377 = vld [vmem:[%s4370 + $0x30] sm:$0xff]
    %v4378 = vld [vmem:[%s4370 + $0x38] sm:$0xff]
    %v4379 = vld [vmem:[#allocation8] sm:$0xff]
    %v4380 = vld [vmem:[#allocation8 + $0x8] sm:$0xff]
    %v4381 = vld [vmem:[#allocation8 + $0x10] sm:$0xff]
    %v4382 = vld [vmem:[#allocation8 + $0x18] sm:$0xff]
    %v4383 = vld [vmem:[#allocation8 + $0x20] sm:$0xff]
    %v4384 = vld [vmem:[#allocation8 + $0x28] sm:$0xff]
    %v4385 = vld [vmem:[#allocation8 + $0x30] sm:$0xff]
    %v4386 = vld [vmem:[#allocation8 + $0x38] sm:$0xff]
    %v4387 = vld [vmem:[#allocation8 + $0x40] sm:$0xff]
    %v4388 = vld [vmem:[#allocation8 + $0x48] sm:$0xff]
    %v4389 = vld [vmem:[#allocation8 + $0x50] sm:$0xff]
    %v4390 = vld [vmem:[#allocation8 + $0x58] sm:$0xff]
    %v4391 = vld [vmem:[#allocation8 + $0x60] sm:$0xff]
    %v4392 = vld [vmem:[#allocation8 + $0x68] sm:$0xff]
    %v4393 = vld [vmem:[#allocation8 + $0x70] sm:$0xff]
    %v4394 = vld [vmem:[#allocation8 + $0x78] sm:$0xff]
    %v4395 = vld [vmem:[#allocation8 + $0x80] sm:$0xff]
    %v4396 = vld [vmem:[#allocation8 + $0x88] sm:$0xff]
    %v4397 = vld [vmem:[#allocation8 + $0x90] sm:$0xff]
    %v4398 = vld [vmem:[#allocation8 + $0x98] sm:$0xff]
    %v4399 = vld [vmem:[#allocation8 + $0xa0] sm:$0xff]
    %v4400 = vld [vmem:[#allocation8 + $0xa8] sm:$0xff]
    %v4401 = vld [vmem:[#allocation8 + $0xb0] sm:$0xff]
    %v4402 = vld [vmem:[#allocation8 + $0xb8] sm:$0xff]
    %v4403 = vld [vmem:[#allocation8 + $0xc0] sm:$0xff]
    %v4404 = vld [vmem:[#allocation8 + $0xc8] sm:$0xff]
    %v4405 = vld [vmem:[#allocation8 + $0xd0] sm:$0xff]
    %v4406 = vld [vmem:[#allocation8 + $0xd8] sm:$0xff]
    %v4407 = vld [vmem:[#allocation8 + $0xe0] sm:$0xff]
    %v4408 = vld [vmem:[#allocation8 + $0xe8] sm:$0xff]
    %v4409 = vld [vmem:[#allocation8 + $0xf0] sm:$0xff]
    %v4410 = vld [vmem:[#allocation8 + $0xf8] sm:$0xff]
    %v4413 = vunpack.c.l.b16 %v4090
    %v4414 = vunpack.c.l.b16 %v4091
    %v4415 = vpack.c.b16 %v4414, %v4413
    %v4449 = vunpack.c.l.b16 %v4379
    %v4450 = vunpack.c.h.b16 %v4379
    %v4451 = vunpack.c.l.b16 %v4380
    %v4452 = vunpack.c.h.b16 %v4380
    %v4453 = vunpack.c.l.b16 %v4381
    %v4454 = vunpack.c.h.b16 %v4381
    %v4455 = vunpack.c.l.b16 %v4382
    %v4456 = vunpack.c.h.b16 %v4382
    %v4457 = vunpack.c.l.b16 %v4383
    %v4458 = vunpack.c.h.b16 %v4383
    %v4459 = vunpack.c.l.b16 %v4384
    %v4460 = vunpack.c.h.b16 %v4384
    %v4461 = vunpack.c.l.b16 %v4385
    %v4462 = vunpack.c.h.b16 %v4385
    %v4463 = vunpack.c.l.b16 %v4386
    %v4464 = vunpack.c.h.b16 %v4386
    %v4465 = vunpack.c.l.b16 %v4387
    %v4466 = vunpack.c.h.b16 %v4387
    %v4467 = vunpack.c.l.b16 %v4388
    %v4468 = vunpack.c.h.b16 %v4388
    %v4469 = vunpack.c.l.b16 %v4389
    %v4470 = vunpack.c.h.b16 %v4389
    %v4471 = vunpack.c.l.b16 %v4390
    %v4472 = vunpack.c.h.b16 %v4390
    %v4473 = vunpack.c.l.b16 %v4391
    %v4474 = vunpack.c.h.b16 %v4391
    %v4475 = vunpack.c.l.b16 %v4392
    %v4476 = vunpack.c.h.b16 %v4392
    %v4477 = vunpack.c.l.b16 %v4393
    %v4478 = vunpack.c.h.b16 %v4393
    %v4479 = vunpack.c.l.b16 %v4394
    %v4480 = vunpack.c.h.b16 %v4394
    %v4481 = vunpack.c.l.b16 %v4395
    %v4482 = vunpack.c.h.b16 %v4395
    %v4483 = vunpack.c.l.b16 %v4396
    %v4484 = vunpack.c.h.b16 %v4396
    %v4485 = vunpack.c.l.b16 %v4397
    %v4486 = vunpack.c.h.b16 %v4397
    %v4487 = vunpack.c.l.b16 %v4398
    %v4488 = vunpack.c.h.b16 %v4398
    %v4489 = vunpack.c.l.b16 %v4399
    %v4490 = vunpack.c.h.b16 %v4399
    %v4491 = vunpack.c.l.b16 %v4400
    %v4492 = vunpack.c.h.b16 %v4400
    %v4493 = vunpack.c.l.b16 %v4401
    %v4494 = vunpack.c.h.b16 %v4401
    %v4495 = vunpack.c.l.b16 %v4402
    %v4496 = vunpack.c.h.b16 %v4402
    %v4497 = vunpack.c.l.b16 %v4403
    %v4498 = vunpack.c.h.b16 %v4403
    %v4499 = vunpack.c.l.b16 %v4404
    %v4500 = vunpack.c.h.b16 %v4404
    %v4501 = vunpack.c.l.b16 %v4405
    %v4502 = vunpack.c.h.b16 %v4405
    %v4503 = vunpack.c.l.b16 %v4406
    %v4504 = vunpack.c.h.b16 %v4406
    %v4505 = vunpack.c.l.b16 %v4407
    %v4506 = vunpack.c.h.b16 %v4407
    %v4507 = vunpack.c.l.b16 %v4408
    %v4508 = vunpack.c.h.b16 %v4408
    %v4509 = vunpack.c.l.b16 %v4409
    %v4510 = vunpack.c.h.b16 %v4409
    %v4511 = vunpack.c.l.b16 %v4410
    %v4512 = vunpack.c.h.b16 %v4410
    %v4513 = vpack.c.b16 %v4453, %v4449
    %v4514 = vpack.c.b16 %v4454, %v4450
    %v4515 = vpack.c.b16 %v4455, %v4451
    %v4516 = vpack.c.b16 %v4456, %v4452
    %v4517 = vpack.c.b16 %v4461, %v4457
    %v4518 = vpack.c.b16 %v4462, %v4458
    %v4519 = vpack.c.b16 %v4463, %v4459
    %v4520 = vpack.c.b16 %v4464, %v4460
    %v4521 = vpack.c.b16 %v4469, %v4465
    %v4522 = vpack.c.b16 %v4470, %v4466
    %v4523 = vpack.c.b16 %v4471, %v4467
    %v4524 = vpack.c.b16 %v4472, %v4468
    %v4525 = vpack.c.b16 %v4477, %v4473
    %v4526 = vpack.c.b16 %v4478, %v4474
    %v4527 = vpack.c.b16 %v4479, %v4475
    %v4528 = vpack.c.b16 %v4480, %v4476
    %v4529 = vpack.c.b16 %v4485, %v4481
    %v4530 = vpack.c.b16 %v4486, %v4482
    %v4531 = vpack.c.b16 %v4487, %v4483
    %v4532 = vpack.c.b16 %v4488, %v4484
    %v4533 = vpack.c.b16 %v4493, %v4489
    %v4534 = vpack.c.b16 %v4494, %v4490
    %v4535 = vpack.c.b16 %v4495, %v4491
    %v4536 = vpack.c.b16 %v4496, %v4492
    %v4537 = vpack.c.b16 %v4501, %v4497
    %v4538 = vpack.c.b16 %v4502, %v4498
    %v4539 = vpack.c.b16 %v4503, %v4499
    %v4540 = vpack.c.b16 %v4504, %v4500
    %v4541 = vpack.c.b16 %v4509, %v4505
    %v4542 = vpack.c.b16 %v4510, %v4506
    %v4543 = vpack.c.b16 %v4511, %v4507
    %v4544 = vpack.c.b16 %v4512, %v4508
    %4577 = vmatpush.bf16.msra.mxu0 %v4541
    %4578 = vmatpush.bf16.msra.mxu0 %v4537
    %4579 = vmatpush.bf16.msra.mxu0 %v4533
    %4580 = vmatpush.bf16.msra.mxu0 %v4529
    %4581 = vmatpush.bf16.msra.mxu0 %v4525
    %4582 = vmatpush.bf16.msra.mxu0 %v4521
    %4583 = vmatpush.bf16.msra.mxu0 %v4517
    %4584 = vmatpush.bf16.msra.mxu0 %v4513
    %4585 = vmatmul.bf16.gmra.mxu0 %v4415
    %v4586 = vpop.f32.mrf.mxu0
    %v4587 = vadd.f32 0.0, %v4586
    %v4588 = vpop.f32.mrf.mxu0
    %v4589 = vadd.f32 0.0, %v4588
    %4590 = vdwg.mxu0
    %4591 = vmatpush.bf16.msra.mxu0 %v4542
    %4592 = vmatpush.bf16.msra.mxu0 %v4538
    %4593 = vmatpush.bf16.msra.mxu0 %v4534
    %4594 = vmatpush.bf16.msra.mxu0 %v4530
    %4595 = vmatpush.bf16.msra.mxu0 %v4526
    %4596 = vmatpush.bf16.msra.mxu0 %v4522
    %4597 = vmatpush.bf16.msra.mxu0 %v4518
    %4598 = vmatpush.bf16.msra.mxu0 %v4514
    %4599 = vmatmul.bf16.gmra.mxu0 %v4415
    %v4600 = vpop.f32.mrf.mxu0
    %v4601 = vadd.f32 0.0, %v4600
    %v4602 = vpop.f32.mrf.mxu0
    %v4603 = vadd.f32 0.0, %v4602
    %4604 = vdwg.mxu0
    %4605 = vmatpush.bf16.msra.mxu0 %v4543
    %4606 = vmatpush.bf16.msra.mxu0 %v4539
    %4607 = vmatpush.bf16.msra.mxu0 %v4535
    %4608 = vmatpush.bf16.msra.mxu0 %v4531
    %4609 = vmatpush.bf16.msra.mxu0 %v4527
    %4610 = vmatpush.bf16.msra.mxu0 %v4523
    %4611 = vmatpush.bf16.msra.mxu0 %v4519
    %4612 = vmatpush.bf16.msra.mxu0 %v4515
    %4613 = vmatmul.bf16.gmra.mxu0 %v4415
    %v4614 = vpop.f32.mrf.mxu0
    %v4615 = vadd.f32 0.0, %v4614
    %v4616 = vpop.f32.mrf.mxu0
    %v4617 = vadd.f32 0.0, %v4616
    %4618 = vdwg.mxu0
    %4619 = vmatpush.bf16.msra.mxu0 %v4544
    %4620 = vmatpush.bf16.msra.mxu0 %v4540
    %4621 = vmatpush.bf16.msra.mxu0 %v4536
    %4622 = vmatpush.bf16.msra.mxu0 %v4532
    %4623 = vmatpush.bf16.msra.mxu0 %v4528
    %4624 = vmatpush.bf16.msra.mxu0 %v4524
    %4625 = vmatpush.bf16.msra.mxu0 %v4520
    %4626 = vmatpush.bf16.msra.mxu0 %v4516
    %4627 = vmatmul.bf16.gmra.mxu0 %v4415
    %v4628 = vpop.f32.mrf.mxu0
    %v4629 = vadd.f32 0.0, %v4628
    %v4630 = vpop.f32.mrf.mxu0
    %v4631 = vadd.f32 0.0, %v4630
    %4632 = vdwg.mxu0
    %v4633 = vadd.f32 %v4371, %v4587
    %v4634 = vadd.f32 %v4372, %v4601
    %v4635 = vadd.f32 %v4373, %v4615
    %v4636 = vadd.f32 %v4374, %v4629
    %v4637 = vadd.f32 %v4375, %v4589
    %v4638 = vadd.f32 %v4376, %v4603
    %v4639 = vadd.f32 %v4377, %v4617
    %v4640 = vadd.f32 %v4378, %v4631
    %v4641 = vxor.u32 %v4361, 2147483648
    %v4642 = vxor.u32 %v4362, 2147483648
    %v4643 = vxor.u32 %v4364, 2147483648
    %v4644 = vxor.u32 %v4365, 2147483648
    %v4645 = vxor.u32 %v4366, 2147483648
    %v4646 = vxor.u32 %v4368, 2147483648
    %v4647 = vmul.f32 %v4641, 1.442695
    %v4648 = vpow.pop %v4647
    %v4649 = vmul.f32 %v4642, 1.442695
    %v4650 = vpow.pop %v4649
    %v4651 = vmul.f32 %v4643, 1.442695
    %v4652 = vpow.pop %v4651
    %v4653 = vmul.f32 %v4644, 1.442695
    %v4654 = vpow.pop %v4653
    %v4655 = vmul.f32 %v4645, 1.442695
    %v4656 = vpow.pop %v4655
    %v4657 = vmul.f32 %v4646, 1.442695
    %v4658 = vpow.pop %v4657
    %v4659 = vadd.f32 %v4648, 1.0
    %v4660 = vadd.f32 %v4650, 1.0
    %v4661 = vadd.f32 %v4652, 1.0
    %v4662 = vadd.f32 %v4654, 1.0
    %v4663 = vadd.f32 %v4656, 1.0
    %v4664 = vadd.f32 %v4658, 1.0
    %v4665 = vrcp.pop %v4659
    %v4666 = vmul.f32 %v4659, %v4665
    %v4667 = vsub.f32 1.0, %v4666
    %v4668 = vmul.f32 %v4665, %v4667
    %v4669 = vadd.f32 %v4665, %v4668
    %vm4670 = vweird.f32 %v4659
    %vm4671 = vweird.f32 %v4665
    %vm4672 = vmor %vm4670, %vm4671
    %v4673 = vsel %vm4672, %v4665, %v4669
    %v4674 = vand.u32 2147483647, %v4659
    %vm4675 = vcmp.eq.f32.partialorder %v4674, 8.507059e+37
    %v4676 = vand.u32 %v4659, 2147483648
    %v4677 = vor.u32 1.1754944e-38, %v4676
    %v4678 = vsel %vm4675, %v4677, %v4673
    %v4679 = vmul.f32 1.0, %v4678
    %v4680 = vrcp.pop %v4660
    %v4681 = vmul.f32 %v4660, %v4680
    %v4682 = vsub.f32 1.0, %v4681
    %v4683 = vmul.f32 %v4680, %v4682
    %v4684 = vadd.f32 %v4680, %v4683
    %vm4685 = vweird.f32 %v4660
    %vm4686 = vweird.f32 %v4680
    %vm4687 = vmor %vm4685, %vm4686
    %v4688 = vsel %vm4687, %v4680, %v4684
    %v4689 = vand.u32 2147483647, %v4660
    %vm4690 = vcmp.eq.f32.partialorder %v4689, 8.507059e+37
    %v4691 = vand.u32 %v4660, 2147483648
    %v4692 = vor.u32 1.1754944e-38, %v4691
    %v4693 = vsel %vm4690, %v4692, %v4688
    %v4694 = vmul.f32 1.0, %v4693
    %v4695 = vrcp.pop %v4661
    %v4696 = vmul.f32 %v4661, %v4695
    %v4697 = vsub.f32 1.0, %v4696
    %v4698 = vmul.f32 %v4695, %v4697
    %v4699 = vadd.f32 %v4695, %v4698
    %vm4700 = vweird.f32 %v4661
    %vm4701 = vweird.f32 %v4695
    %vm4702 = vmor %vm4700, %vm4701
    %v4703 = vsel %vm4702, %v4695, %v4699
    %v4704 = vand.u32 2147483647, %v4661
    %vm4705 = vcmp.eq.f32.partialorder %v4704, 8.507059e+37
    %v4706 = vand.u32 %v4661, 2147483648
    %v4707 = vor.u32 1.1754944e-38, %v4706
    %v4708 = vsel %vm4705, %v4707, %v4703
    %v4709 = vmul.f32 1.0, %v4708
    %v4710 = vrcp.pop %v4662
    %v4711 = vmul.f32 %v4662, %v4710
    %v4712 = vsub.f32 1.0, %v4711
    %v4713 = vmul.f32 %v4710, %v4712
    %v4714 = vadd.f32 %v4710, %v4713
    %vm4715 = vweird.f32 %v4662
    %vm4716 = vweird.f32 %v4710
    %vm4717 = vmor %vm4715, %vm4716
    %v4718 = vsel %vm4717, %v4710, %v4714
    %v4719 = vand.u32 2147483647, %v4662
    %vm4720 = vcmp.eq.f32.partialorder %v4719, 8.507059e+37
    %v4721 = vand.u32 %v4662, 2147483648
    %v4722 = vor.u32 1.1754944e-38, %v4721
    %v4723 = vsel %vm4720, %v4722, %v4718
    %v4724 = vmul.f32 1.0, %v4723
    %v4725 = vrcp.pop %v4663
    %v4726 = vmul.f32 %v4663, %v4725
    %v4727 = vsub.f32 1.0, %v4726
    %v4728 = vmul.f32 %v4725, %v4727
    %v4729 = vadd.f32 %v4725, %v4728
    %vm4730 = vweird.f32 %v4663
    %vm4731 = vweird.f32 %v4725
    %vm4732 = vmor %vm4730, %vm4731
    %v4733 = vsel %vm4732, %v4725, %v4729
    %v4734 = vand.u32 2147483647, %v4663
    %vm4735 = vcmp.eq.f32.partialorder %v4734, 8.507059e+37
    %v4736 = vand.u32 %v4663, 2147483648
    %v4737 = vor.u32 1.1754944e-38, %v4736
    %v4738 = vsel %vm4735, %v4737, %v4733
    %v4739 = vmul.f32 1.0, %v4738
    %v4740 = vrcp.pop %v4664
    %v4741 = vmul.f32 %v4664, %v4740
    %v4742 = vsub.f32 1.0, %v4741
    %v4743 = vmul.f32 %v4740, %v4742
    %v4744 = vadd.f32 %v4740, %v4743
    %vm4745 = vweird.f32 %v4664
    %vm4746 = vweird.f32 %v4740
    %vm4747 = vmor %vm4745, %vm4746
    %v4748 = vsel %vm4747, %v4740, %v4744
    %v4749 = vand.u32 2147483647, %v4664
    %vm4750 = vcmp.eq.f32.partialorder %v4749, 8.507059e+37
    %v4751 = vand.u32 %v4664, 2147483648
    %v4752 = vor.u32 1.1754944e-38, %v4751
    %v4753 = vsel %vm4750, %v4752, %v4748
    %v4754 = vmul.f32 1.0, %v4753
    %v4755 = vtanh.pop %v4363
    %v4756 = vtanh.pop %v4367
    %v4757 = vmul.f32 %v4694, %v3951
    %v4758 = vmul.f32 %v4739, %v3952
    %v4759 = vmul.f32 %v4679, %v4755
    %v4760 = vmul.f32 %v4724, %v4756
    %v4761 = vadd.f32 %v4757, %v4759
    %v4762 = vadd.f32 %v4758, %v4760
    %v4763 = vtanh.pop %v4761
    %v4764 = vtanh.pop %v4762
    %v4765 = vmul.f32 %v4709, %v4763
    %v4766 = vmul.f32 %v4754, %v4764
    %v4767 = vxor.u32 %v4633, 2147483648
    %v4768 = vxor.u32 %v4634, 2147483648
    %v4769 = vxor.u32 %v4636, 2147483648
    %v4770 = vxor.u32 %v4637, 2147483648
    %v4771 = vxor.u32 %v4638, 2147483648
    %v4772 = vxor.u32 %v4640, 2147483648
    %v4773 = vmul.f32 %v4767, 1.442695
    %v4774 = vpow.pop %v4773
    %v4775 = vmul.f32 %v4768, 1.442695
    %v4776 = vpow.pop %v4775
    %v4777 = vmul.f32 %v4769, 1.442695
    %v4778 = vpow.pop %v4777
    %v4779 = vmul.f32 %v4770, 1.442695
    %v4780 = vpow.pop %v4779
    %v4781 = vmul.f32 %v4771, 1.442695
    %v4782 = vpow.pop %v4781
    %v4783 = vmul.f32 %v4772, 1.442695
    %v4784 = vpow.pop %v4783
    %v4785 = vadd.f32 %v4774, 1.0
    %v4786 = vadd.f32 %v4776, 1.0
    %v4787 = vadd.f32 %v4778, 1.0
    %v4788 = vadd.f32 %v4780, 1.0
    %v4789 = vadd.f32 %v4782, 1.0
    %v4790 = vadd.f32 %v4784, 1.0
    %v4791 = vrcp.pop %v4785
    %v4792 = vmul.f32 %v4785, %v4791
    %v4793 = vsub.f32 1.0, %v4792
    %v4794 = vmul.f32 %v4791, %v4793
    %v4795 = vadd.f32 %v4791, %v4794
    %vm4796 = vweird.f32 %v4785
    %vm4797 = vweird.f32 %v4791
    %vm4798 = vmor %vm4796, %vm4797
    %v4799 = vsel %vm4798, %v4791, %v4795
    %v4800 = vand.u32 2147483647, %v4785
    %vm4801 = vcmp.eq.f32.partialorder %v4800, 8.507059e+37
    %v4802 = vand.u32 %v4785, 2147483648
    %v4803 = vor.u32 1.1754944e-38, %v4802
    %v4804 = vsel %vm4801, %v4803, %v4799
    %v4805 = vmul.f32 1.0, %v4804
    %v4806 = vrcp.pop %v4786
    %v4807 = vmul.f32 %v4786, %v4806
    %v4808 = vsub.f32 1.0, %v4807
    %v4809 = vmul.f32 %v4806, %v4808
    %v4810 = vadd.f32 %v4806, %v4809
    %vm4811 = vweird.f32 %v4786
    %vm4812 = vweird.f32 %v4806
    %vm4813 = vmor %vm4811, %vm4812
    %v4814 = vsel %vm4813, %v4806, %v4810
    %v4815 = vand.u32 2147483647, %v4786
    %vm4816 = vcmp.eq.f32.partialorder %v4815, 8.507059e+37
    %v4817 = vand.u32 %v4786, 2147483648
    %v4818 = vor.u32 1.1754944e-38, %v4817
    %v4819 = vsel %vm4816, %v4818, %v4814
    %v4820 = vmul.f32 1.0, %v4819
    %v4821 = vrcp.pop %v4787
    %v4822 = vmul.f32 %v4787, %v4821
    %v4823 = vsub.f32 1.0, %v4822
    %v4824 = vmul.f32 %v4821, %v4823
    %v4825 = vadd.f32 %v4821, %v4824
    %vm4826 = vweird.f32 %v4787
    %vm4827 = vweird.f32 %v4821
    %vm4828 = vmor %vm4826, %vm4827
    %v4829 = vsel %vm4828, %v4821, %v4825
    %v4830 = vand.u32 2147483647, %v4787
    %vm4831 = vcmp.eq.f32.partialorder %v4830, 8.507059e+37
    %v4832 = vand.u32 %v4787, 2147483648
    %v4833 = vor.u32 1.1754944e-38, %v4832
    %v4834 = vsel %vm4831, %v4833, %v4829
    %v4835 = vmul.f32 1.0, %v4834
    %v4836 = vrcp.pop %v4788
    %v4837 = vmul.f32 %v4788, %v4836
    %v4838 = vsub.f32 1.0, %v4837
    %v4839 = vmul.f32 %v4836, %v4838
    %v4840 = vadd.f32 %v4836, %v4839
    %vm4841 = vweird.f32 %v4788
    %vm4842 = vweird.f32 %v4836
    %vm4843 = vmor %vm4841, %vm4842
    %v4844 = vsel %vm4843, %v4836, %v4840
    %v4845 = vand.u32 2147483647, %v4788
    %vm4846 = vcmp.eq.f32.partialorder %v4845, 8.507059e+37
    %v4847 = vand.u32 %v4788, 2147483648
    %v4848 = vor.u32 1.1754944e-38, %v4847
    %v4849 = vsel %vm4846, %v4848, %v4844
    %v4850 = vmul.f32 1.0, %v4849
    %v4851 = vrcp.pop %v4789
    %v4852 = vmul.f32 %v4789, %v4851
    %v4853 = vsub.f32 1.0, %v4852
    %v4854 = vmul.f32 %v4851, %v4853
    %v4855 = vadd.f32 %v4851, %v4854
    %vm4856 = vweird.f32 %v4789
    %vm4857 = vweird.f32 %v4851
    %vm4858 = vmor %vm4856, %vm4857
    %v4859 = vsel %vm4858, %v4851, %v4855
    %v4860 = vand.u32 2147483647, %v4789
    %vm4861 = vcmp.eq.f32.partialorder %v4860, 8.507059e+37
    %v4862 = vand.u32 %v4789, 2147483648
    %v4863 = vor.u32 1.1754944e-38, %v4862
    %v4864 = vsel %vm4861, %v4863, %v4859
    %v4865 = vmul.f32 1.0, %v4864
    %v4866 = vrcp.pop %v4790
    %v4867 = vmul.f32 %v4790, %v4866
    %v4868 = vsub.f32 1.0, %v4867
    %v4869 = vmul.f32 %v4866, %v4868
    %v4870 = vadd.f32 %v4866, %v4869
    %vm4871 = vweird.f32 %v4790
    %vm4872 = vweird.f32 %v4866
    %vm4873 = vmor %vm4871, %vm4872
    %v4874 = vsel %vm4873, %v4866, %v4870
    %v4875 = vand.u32 2147483647, %v4790
    %vm4876 = vcmp.eq.f32.partialorder %v4875, 8.507059e+37
    %v4877 = vand.u32 %v4790, 2147483648
    %v4878 = vor.u32 1.1754944e-38, %v4877
    %v4879 = vsel %vm4876, %v4878, %v4874
    %v4880 = vmul.f32 1.0, %v4879
    %v4881 = vtanh.pop %v4635
    %v4882 = vtanh.pop %v4639
    %v4883 = vmul.f32 %v4820, %v4077
    %v4884 = vmul.f32 %v4865, %v4078
    %v4885 = vmul.f32 %v4805, %v4881
    %v4886 = vmul.f32 %v4850, %v4882
    %v4887 = vadd.f32 %v4883, %v4885
    %v4888 = vadd.f32 %v4884, %v4886
    %v4889 = vtanh.pop %v4887
    %v4890 = vtanh.pop %v4888
    %v4891 = vmul.f32 %v4835, %v4889
    %v4892 = vmul.f32 %v4880, %v4890
    %v4893 = vpack.c.bf16 %v4765, %v4765
    %v4894 = vpack.c.bf16 %v4766, %v4766
    %4895 = vst [vmem:[%s4094] sm:$0xf] %v4893
    %4896 = vst [vmem:[%s4094 + $0x8] sm:$0xf] %v4894
    %v4897 = vpack.c.bf16 %v4891, %v4891
    %v4898 = vpack.c.bf16 %v4892, %v4892
    %4899 = vst [vmem:[%s4087 + $0x4] sm:$0xf] %v4897
    %4900 = vst [vmem:[%s4087 + $0xc] sm:$0xf] %v4898
    %s4901 = smul.addr %s2746, 8
    %s4902 = scalar_lea.vmem [#allocation2], %s4901
    %v4903 = vld [vmem:[%s4902] sm:$0xff]
    %v4904 = vld [vmem:[%s4902 + $0x8] sm:$0xff]
    %v4905 = vld [vmem:[%s4902 + $0x10] sm:$0xff]
    %v4906 = vld [vmem:[%s4902 + $0x18] sm:$0xff]
    %v4907 = vld [vmem:[%s4902 + $0x20] sm:$0xff]
    %v4908 = vld [vmem:[%s4902 + $0x28] sm:$0xff]
    %v4909 = vld [vmem:[%s4902 + $0x30] sm:$0xff]
    %v4910 = vld [vmem:[%s4902 + $0x38] sm:$0xff]
    %v4911 = vld [vmem:[#allocation5] sm:$0xff]
    %v4912 = vld [vmem:[#allocation5 + $0x8] sm:$0xff]
    %v4913 = vld [vmem:[#allocation5 + $0x10] sm:$0xff]
    %v4914 = vld [vmem:[#allocation5 + $0x18] sm:$0xff]
    %v4915 = vld [vmem:[#allocation5 + $0x20] sm:$0xff]
    %v4916 = vld [vmem:[#allocation5 + $0x28] sm:$0xff]
    %v4917 = vld [vmem:[#allocation5 + $0x30] sm:$0xff]
    %v4918 = vld [vmem:[#allocation5 + $0x38] sm:$0xff]
    %v4919 = vld [vmem:[#allocation5 + $0x40] sm:$0xff]
    %v4920 = vld [vmem:[#allocation5 + $0x48] sm:$0xff]
    %v4921 = vld [vmem:[#allocation5 + $0x50] sm:$0xff]
    %v4922 = vld [vmem:[#allocation5 + $0x58] sm:$0xff]
    %v4923 = vld [vmem:[#allocation5 + $0x60] sm:$0xff]
    %v4924 = vld [vmem:[#allocation5 + $0x68] sm:$0xff]
    %v4925 = vld [vmem:[#allocation5 + $0x70] sm:$0xff]
    %v4926 = vld [vmem:[#allocation5 + $0x78] sm:$0xff]
    %v4927 = vld [vmem:[#allocation5 + $0x80] sm:$0xff]
    %v4928 = vld [vmem:[#allocation5 + $0x88] sm:$0xff]
    %v4929 = vld [vmem:[#allocation5 + $0x90] sm:$0xff]
    %v4930 = vld [vmem:[#allocation5 + $0x98] sm:$0xff]
    %v4931 = vld [vmem:[#allocation5 + $0xa0] sm:$0xff]
    %v4932 = vld [vmem:[#allocation5 + $0xa8] sm:$0xff]
    %v4933 = vld [vmem:[#allocation5 + $0xb0] sm:$0xff]
    %v4934 = vld [vmem:[#allocation5 + $0xb8] sm:$0xff]
    %v4935 = vld [vmem:[#allocation5 + $0xc0] sm:$0xff]
    %v4936 = vld [vmem:[#allocation5 + $0xc8] sm:$0xff]
    %v4937 = vld [vmem:[#allocation5 + $0xd0] sm:$0xff]
    %v4938 = vld [vmem:[#allocation5 + $0xd8] sm:$0xff]
    %v4939 = vld [vmem:[#allocation5 + $0xe0] sm:$0xff]
    %v4940 = vld [vmem:[#allocation5 + $0xe8] sm:$0xff]
    %v4941 = vld [vmem:[#allocation5 + $0xf0] sm:$0xff]
    %v4942 = vld [vmem:[#allocation5 + $0xf8] sm:$0xff]
    %v4945 = vunpack.c.l.b16 %v4893
    %v4946 = vunpack.c.l.b16 %v4894
    %v4947 = vpack.c.b16 %v4946, %v4945
    %v4981 = vunpack.c.l.b16 %v4911
    %v4982 = vunpack.c.h.b16 %v4911
    %v4983 = vunpack.c.l.b16 %v4912
    %v4984 = vunpack.c.h.b16 %v4912
    %v4985 = vunpack.c.l.b16 %v4913
    %v4986 = vunpack.c.h.b16 %v4913
    %v4987 = vunpack.c.l.b16 %v4914
    %v4988 = vunpack.c.h.b16 %v4914
    %v4989 = vunpack.c.l.b16 %v4915
    %v4990 = vunpack.c.h.b16 %v4915
    %v4991 = vunpack.c.l.b16 %v4916
    %v4992 = vunpack.c.h.b16 %v4916
    %v4993 = vunpack.c.l.b16 %v4917
    %v4994 = vunpack.c.h.b16 %v4917
    %v4995 = vunpack.c.l.b16 %v4918
    %v4996 = vunpack.c.h.b16 %v4918
    %v4997 = vunpack.c.l.b16 %v4919
    %v4998 = vunpack.c.h.b16 %v4919
    %v4999 = vunpack.c.l.b16 %v4920
    %v5000 = vunpack.c.h.b16 %v4920
    %v5001 = vunpack.c.l.b16 %v4921
    %v5002 = vunpack.c.h.b16 %v4921
    %v5003 = vunpack.c.l.b16 %v4922
    %v5004 = vunpack.c.h.b16 %v4922
    %v5005 = vunpack.c.l.b16 %v4923
    %v5006 = vunpack.c.h.b16 %v4923
    %v5007 = vunpack.c.l.b16 %v4924
    %v5008 = vunpack.c.h.b16 %v4924
    %v5009 = vunpack.c.l.b16 %v4925
    %v5010 = vunpack.c.h.b16 %v4925
    %v5011 = vunpack.c.l.b16 %v4926
    %v5012 = vunpack.c.h.b16 %v4926
    %v5013 = vunpack.c.l.b16 %v4927
    %v5014 = vunpack.c.h.b16 %v4927
    %v5015 = vunpack.c.l.b16 %v4928
    %v5016 = vunpack.c.h.b16 %v4928
    %v5017 = vunpack.c.l.b16 %v4929
    %v5018 = vunpack.c.h.b16 %v4929
    %v5019 = vunpack.c.l.b16 %v4930
    %v5020 = vunpack.c.h.b16 %v4930
    %v5021 = vunpack.c.l.b16 %v4931
    %v5022 = vunpack.c.h.b16 %v4931
    %v5023 = vunpack.c.l.b16 %v4932
    %v5024 = vunpack.c.h.b16 %v4932
    %v5025 = vunpack.c.l.b16 %v4933
    %v5026 = vunpack.c.h.b16 %v4933
    %v5027 = vunpack.c.l.b16 %v4934
    %v5028 = vunpack.c.h.b16 %v4934
    %v5029 = vunpack.c.l.b16 %v4935
    %v5030 = vunpack.c.h.b16 %v4935
    %v5031 = vunpack.c.l.b16 %v4936
    %v5032 = vunpack.c.h.b16 %v4936
    %v5033 = vunpack.c.l.b16 %v4937
    %v5034 = vunpack.c.h.b16 %v4937
    %v5035 = vunpack.c.l.b16 %v4938
    %v5036 = vunpack.c.h.b16 %v4938
    %v5037 = vunpack.c.l.b16 %v4939
    %v5038 = vunpack.c.h.b16 %v4939
    %v5039 = vunpack.c.l.b16 %v4940
    %v5040 = vunpack.c.h.b16 %v4940
    %v5041 = vunpack.c.l.b16 %v4941
    %v5042 = vunpack.c.h.b16 %v4941
    %v5043 = vunpack.c.l.b16 %v4942
    %v5044 = vunpack.c.h.b16 %v4942
    %v5045 = vpack.c.b16 %v4985, %v4981
    %v5046 = vpack.c.b16 %v4986, %v4982
    %v5047 = vpack.c.b16 %v4987, %v4983
    %v5048 = vpack.c.b16 %v4988, %v4984
    %v5049 = vpack.c.b16 %v4993, %v4989
    %v5050 = vpack.c.b16 %v4994, %v4990
    %v5051 = vpack.c.b16 %v4995, %v4991
    %v5052 = vpack.c.b16 %v4996, %v4992
    %v5053 = vpack.c.b16 %v5001, %v4997
    %v5054 = vpack.c.b16 %v5002, %v4998
    %v5055 = vpack.c.b16 %v5003, %v4999
    %v5056 = vpack.c.b16 %v5004, %v5000
    %v5057 = vpack.c.b16 %v5009, %v5005
    %v5058 = vpack.c.b16 %v5010, %v5006
    %v5059 = vpack.c.b16 %v5011, %v5007
    %v5060 = vpack.c.b16 %v5012, %v5008
    %v5061 = vpack.c.b16 %v5017, %v5013
    %v5062 = vpack.c.b16 %v5018, %v5014
    %v5063 = vpack.c.b16 %v5019, %v5015
    %v5064 = vpack.c.b16 %v5020, %v5016
    %v5065 = vpack.c.b16 %v5025, %v5021
    %v5066 = vpack.c.b16 %v5026, %v5022
    %v5067 = vpack.c.b16 %v5027, %v5023
    %v5068 = vpack.c.b16 %v5028, %v5024
    %v5069 = vpack.c.b16 %v5033, %v5029
    %v5070 = vpack.c.b16 %v5034, %v5030
    %v5071 = vpack.c.b16 %v5035, %v5031
    %v5072 = vpack.c.b16 %v5036, %v5032
    %v5073 = vpack.c.b16 %v5041, %v5037
    %v5074 = vpack.c.b16 %v5042, %v5038
    %v5075 = vpack.c.b16 %v5043, %v5039
    %v5076 = vpack.c.b16 %v5044, %v5040
    %5109 = vmatpush.bf16.msra.mxu0 %v5073
    %5110 = vmatpush.bf16.msra.mxu0 %v5069
    %5111 = vmatpush.bf16.msra.mxu0 %v5065
    %5112 = vmatpush.bf16.msra.mxu0 %v5061
    %5113 = vmatpush.bf16.msra.mxu0 %v5057
    %5114 = vmatpush.bf16.msra.mxu0 %v5053
    %5115 = vmatpush.bf16.msra.mxu0 %v5049
    %5116 = vmatpush.bf16.msra.mxu0 %v5045
    %5117 = vmatmul.bf16.gmra.mxu0 %v4947
    %v5118 = vpop.f32.mrf.mxu0
    %v5119 = vadd.f32 0.0, %v5118
    %v5120 = vpop.f32.mrf.mxu0
    %v5121 = vadd.f32 0.0, %v5120
    %5122 = vdwg.mxu0
    %5123 = vmatpush.bf16.msra.mxu0 %v5074
    %5124 = vmatpush.bf16.msra.mxu0 %v5070
    %5125 = vmatpush.bf16.msra.mxu0 %v5066
    %5126 = vmatpush.bf16.msra.mxu0 %v5062
    %5127 = vmatpush.bf16.msra.mxu0 %v5058
    %5128 = vmatpush.bf16.msra.mxu0 %v5054
    %5129 = vmatpush.bf16.msra.mxu0 %v5050
    %5130 = vmatpush.bf16.msra.mxu0 %v5046
    %5131 = vmatmul.bf16.gmra.mxu0 %v4947
    %v5132 = vpop.f32.mrf.mxu0
    %v5133 = vadd.f32 0.0, %v5132
    %v5134 = vpop.f32.mrf.mxu0
    %v5135 = vadd.f32 0.0, %v5134
    %5136 = vdwg.mxu0
    %5137 = vmatpush.bf16.msra.mxu0 %v5075
    %5138 = vmatpush.bf16.msra.mxu0 %v5071
    %5139 = vmatpush.bf16.msra.mxu0 %v5067
    %5140 = vmatpush.bf16.msra.mxu0 %v5063
    %5141 = vmatpush.bf16.msra.mxu0 %v5059
    %5142 = vmatpush.bf16.msra.mxu0 %v5055
    %5143 = vmatpush.bf16.msra.mxu0 %v5051
    %5144 = vmatpush.bf16.msra.mxu0 %v5047
    %5145 = vmatmul.bf16.gmra.mxu0 %v4947
    %v5146 = vpop.f32.mrf.mxu0
    %v5147 = vadd.f32 0.0, %v5146
    %v5148 = vpop.f32.mrf.mxu0
    %v5149 = vadd.f32 0.0, %v5148
    %5150 = vdwg.mxu0
    %5151 = vmatpush.bf16.msra.mxu0 %v5076
    %5152 = vmatpush.bf16.msra.mxu0 %v5072
    %5153 = vmatpush.bf16.msra.mxu0 %v5068
    %5154 = vmatpush.bf16.msra.mxu0 %v5064
    %5155 = vmatpush.bf16.msra.mxu0 %v5060
    %5156 = vmatpush.bf16.msra.mxu0 %v5056
    %5157 = vmatpush.bf16.msra.mxu0 %v5052
    %5158 = vmatpush.bf16.msra.mxu0 %v5048
    %5159 = vmatmul.bf16.gmra.mxu0 %v4947
    %v5160 = vpop.f32.mrf.mxu0
    %v5161 = vadd.f32 0.0, %v5160
    %v5162 = vpop.f32.mrf.mxu0
    %v5163 = vadd.f32 0.0, %v5162
    %5164 = vdwg.mxu0
    %v5165 = vadd.f32 %v4903, %v5119
    %v5166 = vadd.f32 %v4904, %v5133
    %v5167 = vadd.f32 %v4905, %v5147
    %v5168 = vadd.f32 %v4906, %v5161
    %v5169 = vadd.f32 %v4907, %v5121
    %v5170 = vadd.f32 %v4908, %v5135
    %v5171 = vadd.f32 %v4909, %v5149
    %v5172 = vadd.f32 %v4910, %v5163
    %s5173 = smul.addr %s2473, 8
    %s5174 = scalar_lea.vmem [#allocation3], %s5173
    %v5175 = vld [vmem:[%s5174] sm:$0xff]
    %v5176 = vld [vmem:[%s5174 + $0x8] sm:$0xff]
    %v5177 = vld [vmem:[%s5174 + $0x10] sm:$0xff]
    %v5178 = vld [vmem:[%s5174 + $0x18] sm:$0xff]
    %v5179 = vld [vmem:[%s5174 + $0x20] sm:$0xff]
    %v5180 = vld [vmem:[%s5174 + $0x28] sm:$0xff]
    %v5181 = vld [vmem:[%s5174 + $0x30] sm:$0xff]
    %v5182 = vld [vmem:[%s5174 + $0x38] sm:$0xff]
    %v5183 = vld [vmem:[#allocation8] sm:$0xff]
    %v5184 = vld [vmem:[#allocation8 + $0x8] sm:$0xff]
    %v5185 = vld [vmem:[#allocation8 + $0x10] sm:$0xff]
    %v5186 = vld [vmem:[#allocation8 + $0x18] sm:$0xff]
    %v5187 = vld [vmem:[#allocation8 + $0x20] sm:$0xff]
    %v5188 = vld [vmem:[#allocation8 + $0x28] sm:$0xff]
    %v5189 = vld [vmem:[#allocation8 + $0x30] sm:$0xff]
    %v5190 = vld [vmem:[#allocation8 + $0x38] sm:$0xff]
    %v5191 = vld [vmem:[#allocation8 + $0x40] sm:$0xff]
    %v5192 = vld [vmem:[#allocation8 + $0x48] sm:$0xff]
    %v5193 = vld [vmem:[#allocation8 + $0x50] sm:$0xff]
    %v5194 = vld [vmem:[#allocation8 + $0x58] sm:$0xff]
    %v5195 = vld [vmem:[#allocation8 + $0x60] sm:$0xff]
    %v5196 = vld [vmem:[#allocation8 + $0x68] sm:$0xff]
    %v5197 = vld [vmem:[#allocation8 + $0x70] sm:$0xff]
    %v5198 = vld [vmem:[#allocation8 + $0x78] sm:$0xff]
    %v5199 = vld [vmem:[#allocation8 + $0x80] sm:$0xff]
    %v5200 = vld [vmem:[#allocation8 + $0x88] sm:$0xff]
    %v5201 = vld [vmem:[#allocation8 + $0x90] sm:$0xff]
    %v5202 = vld [vmem:[#allocation8 + $0x98] sm:$0xff]
    %v5203 = vld [vmem:[#allocation8 + $0xa0] sm:$0xff]
    %v5204 = vld [vmem:[#allocation8 + $0xa8] sm:$0xff]
    %v5205 = vld [vmem:[#allocation8 + $0xb0] sm:$0xff]
    %v5206 = vld [vmem:[#allocation8 + $0xb8] sm:$0xff]
    %v5207 = vld [vmem:[#allocation8 + $0xc0] sm:$0xff]
    %v5208 = vld [vmem:[#allocation8 + $0xc8] sm:$0xff]
    %v5209 = vld [vmem:[#allocation8 + $0xd0] sm:$0xff]
    %v5210 = vld [vmem:[#allocation8 + $0xd8] sm:$0xff]
    %v5211 = vld [vmem:[#allocation8 + $0xe0] sm:$0xff]
    %v5212 = vld [vmem:[#allocation8 + $0xe8] sm:$0xff]
    %v5213 = vld [vmem:[#allocation8 + $0xf0] sm:$0xff]
    %v5214 = vld [vmem:[#allocation8 + $0xf8] sm:$0xff]
    %v5217 = vunpack.c.l.b16 %v4897
    %v5218 = vunpack.c.l.b16 %v4898
    %v5219 = vpack.c.b16 %v5218, %v5217
    %v5253 = vunpack.c.l.b16 %v5183
    %v5254 = vunpack.c.h.b16 %v5183
    %v5255 = vunpack.c.l.b16 %v5184
    %v5256 = vunpack.c.h.b16 %v5184
    %v5257 = vunpack.c.l.b16 %v5185
    %v5258 = vunpack.c.h.b16 %v5185
    %v5259 = vunpack.c.l.b16 %v5186
    %v5260 = vunpack.c.h.b16 %v5186
    %v5261 = vunpack.c.l.b16 %v5187
    %v5262 = vunpack.c.h.b16 %v5187
    %v5263 = vunpack.c.l.b16 %v5188
    %v5264 = vunpack.c.h.b16 %v5188
    %v5265 = vunpack.c.l.b16 %v5189
    %v5266 = vunpack.c.h.b16 %v5189
    %v5267 = vunpack.c.l.b16 %v5190
    %v5268 = vunpack.c.h.b16 %v5190
    %v5269 = vunpack.c.l.b16 %v5191
    %v5270 = vunpack.c.h.b16 %v5191
    %v5271 = vunpack.c.l.b16 %v5192
    %v5272 = vunpack.c.h.b16 %v5192
    %v5273 = vunpack.c.l.b16 %v5193
    %v5274 = vunpack.c.h.b16 %v5193
    %v5275 = vunpack.c.l.b16 %v5194
    %v5276 = vunpack.c.h.b16 %v5194
    %v5277 = vunpack.c.l.b16 %v5195
    %v5278 = vunpack.c.h.b16 %v5195
    %v5279 = vunpack.c.l.b16 %v5196
    %v5280 = vunpack.c.h.b16 %v5196
    %v5281 = vunpack.c.l.b16 %v5197
    %v5282 = vunpack.c.h.b16 %v5197
    %v5283 = vunpack.c.l.b16 %v5198
    %v5284 = vunpack.c.h.b16 %v5198
    %v5285 = vunpack.c.l.b16 %v5199
    %v5286 = vunpack.c.h.b16 %v5199
    %v5287 = vunpack.c.l.b16 %v5200
    %v5288 = vunpack.c.h.b16 %v5200
    %v5289 = vunpack.c.l.b16 %v5201
    %v5290 = vunpack.c.h.b16 %v5201
    %v5291 = vunpack.c.l.b16 %v5202
    %v5292 = vunpack.c.h.b16 %v5202
    %v5293 = vunpack.c.l.b16 %v5203
    %v5294 = vunpack.c.h.b16 %v5203
    %v5295 = vunpack.c.l.b16 %v5204
    %v5296 = vunpack.c.h.b16 %v5204
    %v5297 = vunpack.c.l.b16 %v5205
    %v5298 = vunpack.c.h.b16 %v5205
    %v5299 = vunpack.c.l.b16 %v5206
    %v5300 = vunpack.c.h.b16 %v5206
    %v5301 = vunpack.c.l.b16 %v5207
    %v5302 = vunpack.c.h.b16 %v5207
    %v5303 = vunpack.c.l.b16 %v5208
    %v5304 = vunpack.c.h.b16 %v5208
    %v5305 = vunpack.c.l.b16 %v5209
    %v5306 = vunpack.c.h.b16 %v5209
    %v5307 = vunpack.c.l.b16 %v5210
    %v5308 = vunpack.c.h.b16 %v5210
    %v5309 = vunpack.c.l.b16 %v5211
    %v5310 = vunpack.c.h.b16 %v5211
    %v5311 = vunpack.c.l.b16 %v5212
    %v5312 = vunpack.c.h.b16 %v5212
    %v5313 = vunpack.c.l.b16 %v5213
    %v5314 = vunpack.c.h.b16 %v5213
    %v5315 = vunpack.c.l.b16 %v5214
    %v5316 = vunpack.c.h.b16 %v5214
    %v5317 = vpack.c.b16 %v5257, %v5253
    %v5318 = vpack.c.b16 %v5258, %v5254
    %v5319 = vpack.c.b16 %v5259, %v5255
    %v5320 = vpack.c.b16 %v5260, %v5256
    %v5321 = vpack.c.b16 %v5265, %v5261
    %v5322 = vpack.c.b16 %v5266, %v5262
    %v5323 = vpack.c.b16 %v5267, %v5263
    %v5324 = vpack.c.b16 %v5268, %v5264
    %v5325 = vpack.c.b16 %v5273, %v5269
    %v5326 = vpack.c.b16 %v5274, %v5270
    %v5327 = vpack.c.b16 %v5275, %v5271
    %v5328 = vpack.c.b16 %v5276, %v5272
    %v5329 = vpack.c.b16 %v5281, %v5277
    %v5330 = vpack.c.b16 %v5282, %v5278
    %v5331 = vpack.c.b16 %v5283, %v5279
    %v5332 = vpack.c.b16 %v5284, %v5280
    %v5333 = vpack.c.b16 %v5289, %v5285
    %v5334 = vpack.c.b16 %v5290, %v5286
    %v5335 = vpack.c.b16 %v5291, %v5287
    %v5336 = vpack.c.b16 %v5292, %v5288
    %v5337 = vpack.c.b16 %v5297, %v5293
    %v5338 = vpack.c.b16 %v5298, %v5294
    %v5339 = vpack.c.b16 %v5299, %v5295
    %v5340 = vpack.c.b16 %v5300, %v5296
    %v5341 = vpack.c.b16 %v5305, %v5301
    %v5342 = vpack.c.b16 %v5306, %v5302
    %v5343 = vpack.c.b16 %v5307, %v5303
    %v5344 = vpack.c.b16 %v5308, %v5304
    %v5345 = vpack.c.b16 %v5313, %v5309
    %v5346 = vpack.c.b16 %v5314, %v5310
    %v5347 = vpack.c.b16 %v5315, %v5311
    %v5348 = vpack.c.b16 %v5316, %v5312
    %5381 = vmatpush.bf16.msra.mxu0 %v5345
    %5382 = vmatpush.bf16.msra.mxu0 %v5341
    %5383 = vmatpush.bf16.msra.mxu0 %v5337
    %5384 = vmatpush.bf16.msra.mxu0 %v5333
    %5385 = vmatpush.bf16.msra.mxu0 %v5329
    %5386 = vmatpush.bf16.msra.mxu0 %v5325
    %5387 = vmatpush.bf16.msra.mxu0 %v5321
    %5388 = vmatpush.bf16.msra.mxu0 %v5317
    %5389 = vmatmul.bf16.gmra.mxu0 %v5219
    %v5390 = vpop.f32.mrf.mxu0
    %v5391 = vadd.f32 0.0, %v5390
    %v5392 = vpop.f32.mrf.mxu0
    %v5393 = vadd.f32 0.0, %v5392
    %5394 = vdwg.mxu0
    %5395 = vmatpush.bf16.msra.mxu0 %v5346
    %5396 = vmatpush.bf16.msra.mxu0 %v5342
    %5397 = vmatpush.bf16.msra.mxu0 %v5338
    %5398 = vmatpush.bf16.msra.mxu0 %v5334
    %5399 = vmatpush.bf16.msra.mxu0 %v5330
    %5400 = vmatpush.bf16.msra.mxu0 %v5326
    %5401 = vmatpush.bf16.msra.mxu0 %v5322
    %5402 = vmatpush.bf16.msra.mxu0 %v5318
    %5403 = vmatmul.bf16.gmra.mxu0 %v5219
    %v5404 = vpop.f32.mrf.mxu0
    %v5405 = vadd.f32 0.0, %v5404
    %v5406 = vpop.f32.mrf.mxu0
    %v5407 = vadd.f32 0.0, %v5406
    %5408 = vdwg.mxu0
    %5409 = vmatpush.bf16.msra.mxu0 %v5347
    %5410 = vmatpush.bf16.msra.mxu0 %v5343
    %5411 = vmatpush.bf16.msra.mxu0 %v5339
    %5412 = vmatpush.bf16.msra.mxu0 %v5335
    %5413 = vmatpush.bf16.msra.mxu0 %v5331
    %5414 = vmatpush.bf16.msra.mxu0 %v5327
    %5415 = vmatpush.bf16.msra.mxu0 %v5323
    %5416 = vmatpush.bf16.msra.mxu0 %v5319
    %5417 = vmatmul.bf16.gmra.mxu0 %v5219
    %v5418 = vpop.f32.mrf.mxu0
    %v5419 = vadd.f32 0.0, %v5418
    %v5420 = vpop.f32.mrf.mxu0
    %v5421 = vadd.f32 0.0, %v5420
    %5422 = vdwg.mxu0
    %5423 = vmatpush.bf16.msra.mxu0 %v5348
    %5424 = vmatpush.bf16.msra.mxu0 %v5344
    %5425 = vmatpush.bf16.msra.mxu0 %v5340
    %5426 = vmatpush.bf16.msra.mxu0 %v5336
    %5427 = vmatpush.bf16.msra.mxu0 %v5332
    %5428 = vmatpush.bf16.msra.mxu0 %v5328
    %5429 = vmatpush.bf16.msra.mxu0 %v5324
    %5430 = vmatpush.bf16.msra.mxu0 %v5320
    %5431 = vmatmul.bf16.gmra.mxu0 %v5219
    %v5432 = vpop.f32.mrf.mxu0
    %v5433 = vadd.f32 0.0, %v5432
    %v5434 = vpop.f32.mrf.mxu0
    %v5435 = vadd.f32 0.0, %v5434
    %5436 = vdwg.mxu0
    %v5437 = vadd.f32 %v5175, %v5391
    %v5438 = vadd.f32 %v5176, %v5405
    %v5439 = vadd.f32 %v5177, %v5419
    %v5440 = vadd.f32 %v5178, %v5433
    %v5441 = vadd.f32 %v5179, %v5393
    %v5442 = vadd.f32 %v5180, %v5407
    %v5443 = vadd.f32 %v5181, %v5421
    %v5444 = vadd.f32 %v5182, %v5435
    %v5445 = vxor.u32 %v5165, 2147483648
    %v5446 = vxor.u32 %v5166, 2147483648
    %v5447 = vxor.u32 %v5168, 2147483648
    %v5448 = vxor.u32 %v5169, 2147483648
    %v5449 = vxor.u32 %v5170, 2147483648
    %v5450 = vxor.u32 %v5172, 2147483648
    %v5451 = vmul.f32 %v5445, 1.442695
    %v5452 = vpow.pop %v5451
    %v5453 = vmul.f32 %v5446, 1.442695
    %v5454 = vpow.pop %v5453
    %v5455 = vmul.f32 %v5447, 1.442695
    %v5456 = vpow.pop %v5455
    %v5457 = vmul.f32 %v5448, 1.442695
    %v5458 = vpow.pop %v5457
    %v5459 = vmul.f32 %v5449, 1.442695
    %v5460 = vpow.pop %v5459
    %v5461 = vmul.f32 %v5450, 1.442695
    %v5462 = vpow.pop %v5461
    %v5463 = vadd.f32 %v5452, 1.0
    %v5464 = vadd.f32 %v5454, 1.0
    %v5465 = vadd.f32 %v5456, 1.0
    %v5466 = vadd.f32 %v5458, 1.0
    %v5467 = vadd.f32 %v5460, 1.0
    %v5468 = vadd.f32 %v5462, 1.0
    %v5469 = vrcp.pop %v5463
    %v5470 = vmul.f32 %v5463, %v5469
    %v5471 = vsub.f32 1.0, %v5470
    %v5472 = vmul.f32 %v5469, %v5471
    %v5473 = vadd.f32 %v5469, %v5472
    %vm5474 = vweird.f32 %v5463
    %vm5475 = vweird.f32 %v5469
    %vm5476 = vmor %vm5474, %vm5475
    %v5477 = vsel %vm5476, %v5469, %v5473
    %v5478 = vand.u32 2147483647, %v5463
    %vm5479 = vcmp.eq.f32.partialorder %v5478, 8.507059e+37
    %v5480 = vand.u32 %v5463, 2147483648
    %v5481 = vor.u32 1.1754944e-38, %v5480
    %v5482 = vsel %vm5479, %v5481, %v5477
    %v5483 = vmul.f32 1.0, %v5482
    %v5484 = vrcp.pop %v5464
    %v5485 = vmul.f32 %v5464, %v5484
    %v5486 = vsub.f32 1.0, %v5485
    %v5487 = vmul.f32 %v5484, %v5486
    %v5488 = vadd.f32 %v5484, %v5487
    %vm5489 = vweird.f32 %v5464
    %vm5490 = vweird.f32 %v5484
    %vm5491 = vmor %vm5489, %vm5490
    %v5492 = vsel %vm5491, %v5484, %v5488
    %v5493 = vand.u32 2147483647, %v5464
    %vm5494 = vcmp.eq.f32.partialorder %v5493, 8.507059e+37
    %v5495 = vand.u32 %v5464, 2147483648
    %v5496 = vor.u32 1.1754944e-38, %v5495
    %v5497 = vsel %vm5494, %v5496, %v5492
    %v5498 = vmul.f32 1.0, %v5497
    %v5499 = vrcp.pop %v5465
    %v5500 = vmul.f32 %v5465, %v5499
    %v5501 = vsub.f32 1.0, %v5500
    %v5502 = vmul.f32 %v5499, %v5501
    %v5503 = vadd.f32 %v5499, %v5502
    %vm5504 = vweird.f32 %v5465
    %vm5505 = vweird.f32 %v5499
    %vm5506 = vmor %vm5504, %vm5505
    %v5507 = vsel %vm5506, %v5499, %v5503
    %v5508 = vand.u32 2147483647, %v5465
    %vm5509 = vcmp.eq.f32.partialorder %v5508, 8.507059e+37
    %v5510 = vand.u32 %v5465, 2147483648
    %v5511 = vor.u32 1.1754944e-38, %v5510
    %v5512 = vsel %vm5509, %v5511, %v5507
    %v5513 = vmul.f32 1.0, %v5512
    %v5514 = vrcp.pop %v5466
    %v5515 = vmul.f32 %v5466, %v5514
    %v5516 = vsub.f32 1.0, %v5515
    %v5517 = vmul.f32 %v5514, %v5516
    %v5518 = vadd.f32 %v5514, %v5517
    %vm5519 = vweird.f32 %v5466
    %vm5520 = vweird.f32 %v5514
    %vm5521 = vmor %vm5519, %vm5520
    %v5522 = vsel %vm5521, %v5514, %v5518
    %v5523 = vand.u32 2147483647, %v5466
    %vm5524 = vcmp.eq.f32.partialorder %v5523, 8.507059e+37
    %v5525 = vand.u32 %v5466, 2147483648
    %v5526 = vor.u32 1.1754944e-38, %v5525
    %v5527 = vsel %vm5524, %v5526, %v5522
    %v5528 = vmul.f32 1.0, %v5527
    %v5529 = vrcp.pop %v5467
    %v5530 = vmul.f32 %v5467, %v5529
    %v5531 = vsub.f32 1.0, %v5530
    %v5532 = vmul.f32 %v5529, %v5531
    %v5533 = vadd.f32 %v5529, %v5532
    %vm5534 = vweird.f32 %v5467
    %vm5535 = vweird.f32 %v5529
    %vm5536 = vmor %vm5534, %vm5535
    %v5537 = vsel %vm5536, %v5529, %v5533
    %v5538 = vand.u32 2147483647, %v5467
    %vm5539 = vcmp.eq.f32.partialorder %v5538, 8.507059e+37
    %v5540 = vand.u32 %v5467, 2147483648
    %v5541 = vor.u32 1.1754944e-38, %v5540
    %v5542 = vsel %vm5539, %v5541, %v5537
    %v5543 = vmul.f32 1.0, %v5542
    %v5544 = vrcp.pop %v5468
    %v5545 = vmul.f32 %v5468, %v5544
    %v5546 = vsub.f32 1.0, %v5545
    %v5547 = vmul.f32 %v5544, %v5546
    %v5548 = vadd.f32 %v5544, %v5547
    %vm5549 = vweird.f32 %v5468
    %vm5550 = vweird.f32 %v5544
    %vm5551 = vmor %vm5549, %vm5550
    %v5552 = vsel %vm5551, %v5544, %v5548
    %v5553 = vand.u32 2147483647, %v5468
    %vm5554 = vcmp.eq.f32.partialorder %v5553, 8.507059e+37
    %v5555 = vand.u32 %v5468, 2147483648
    %v5556 = vor.u32 1.1754944e-38, %v5555
    %v5557 = vsel %vm5554, %v5556, %v5552
    %v5558 = vmul.f32 1.0, %v5557
    %v5559 = vtanh.pop %v5167
    %v5560 = vtanh.pop %v5171
    %v5561 = vmul.f32 %v5498, %v4761
    %v5562 = vmul.f32 %v5543, %v4762
    %v5563 = vmul.f32 %v5483, %v5559
    %v5564 = vmul.f32 %v5528, %v5560
    %v5565 = vadd.f32 %v5561, %v5563
    %v5566 = vadd.f32 %v5562, %v5564
    %v5567 = vtanh.pop %v5565
    %v5568 = vtanh.pop %v5566
    %v5569 = vmul.f32 %v5513, %v5567
    %v5570 = vmul.f32 %v5558, %v5568
    %v5571 = vxor.u32 %v5437, 2147483648
    %v5572 = vxor.u32 %v5438, 2147483648
    %v5573 = vxor.u32 %v5440, 2147483648
    %v5574 = vxor.u32 %v5441, 2147483648
    %v5575 = vxor.u32 %v5442, 2147483648
    %v5576 = vxor.u32 %v5444, 2147483648
    %v5577 = vmul.f32 %v5571, 1.442695
    %v5578 = vpow.pop %v5577
    %v5579 = vmul.f32 %v5572, 1.442695
    %v5580 = vpow.pop %v5579
    %v5581 = vmul.f32 %v5573, 1.442695
    %v5582 = vpow.pop %v5581
    %v5583 = vmul.f32 %v5574, 1.442695
    %v5584 = vpow.pop %v5583
    %v5585 = vmul.f32 %v5575, 1.442695
    %v5586 = vpow.pop %v5585
    %v5587 = vmul.f32 %v5576, 1.442695
    %v5588 = vpow.pop %v5587
    %v5589 = vadd.f32 %v5578, 1.0
    %v5590 = vadd.f32 %v5580, 1.0
    %v5591 = vadd.f32 %v5582, 1.0
    %v5592 = vadd.f32 %v5584, 1.0
    %v5593 = vadd.f32 %v5586, 1.0
    %v5594 = vadd.f32 %v5588, 1.0
    %v5595 = vrcp.pop %v5589
    %v5596 = vmul.f32 %v5589, %v5595
    %v5597 = vsub.f32 1.0, %v5596
    %v5598 = vmul.f32 %v5595, %v5597
    %v5599 = vadd.f32 %v5595, %v5598
    %vm5600 = vweird.f32 %v5589
    %vm5601 = vweird.f32 %v5595
    %vm5602 = vmor %vm5600, %vm5601
    %v5603 = vsel %vm5602, %v5595, %v5599
    %v5604 = vand.u32 2147483647, %v5589
    %vm5605 = vcmp.eq.f32.partialorder %v5604, 8.507059e+37
    %v5606 = vand.u32 %v5589, 2147483648
    %v5607 = vor.u32 1.1754944e-38, %v5606
    %v5608 = vsel %vm5605, %v5607, %v5603
    %v5609 = vmul.f32 1.0, %v5608
    %v5610 = vrcp.pop %v5590
    %v5611 = vmul.f32 %v5590, %v5610
    %v5612 = vsub.f32 1.0, %v5611
    %v5613 = vmul.f32 %v5610, %v5612
    %v5614 = vadd.f32 %v5610, %v5613
    %vm5615 = vweird.f32 %v5590
    %vm5616 = vweird.f32 %v5610
    %vm5617 = vmor %vm5615, %vm5616
    %v5618 = vsel %vm5617, %v5610, %v5614
    %v5619 = vand.u32 2147483647, %v5590
    %vm5620 = vcmp.eq.f32.partialorder %v5619, 8.507059e+37
    %v5621 = vand.u32 %v5590, 2147483648
    %v5622 = vor.u32 1.1754944e-38, %v5621
    %v5623 = vsel %vm5620, %v5622, %v5618
    %v5624 = vmul.f32 1.0, %v5623
    %v5625 = vrcp.pop %v5591
    %v5626 = vmul.f32 %v5591, %v5625
    %v5627 = vsub.f32 1.0, %v5626
    %v5628 = vmul.f32 %v5625, %v5627
    %v5629 = vadd.f32 %v5625, %v5628
    %vm5630 = vweird.f32 %v5591
    %vm5631 = vweird.f32 %v5625
    %vm5632 = vmor %vm5630, %vm5631
    %v5633 = vsel %vm5632, %v5625, %v5629
    %v5634 = vand.u32 2147483647, %v5591
    %vm5635 = vcmp.eq.f32.partialorder %v5634, 8.507059e+37
    %v5636 = vand.u32 %v5591, 2147483648
    %v5637 = vor.u32 1.1754944e-38, %v5636
    %v5638 = vsel %vm5635, %v5637, %v5633
    %v5639 = vmul.f32 1.0, %v5638
    %v5640 = vrcp.pop %v5592
    %v5641 = vmul.f32 %v5592, %v5640
    %v5642 = vsub.f32 1.0, %v5641
    %v5643 = vmul.f32 %v5640, %v5642
    %v5644 = vadd.f32 %v5640, %v5643
    %vm5645 = vweird.f32 %v5592
    %vm5646 = vweird.f32 %v5640
    %vm5647 = vmor %vm5645, %vm5646
    %v5648 = vsel %vm5647, %v5640, %v5644
    %v5649 = vand.u32 2147483647, %v5592
    %vm5650 = vcmp.eq.f32.partialorder %v5649, 8.507059e+37
    %v5651 = vand.u32 %v5592, 2147483648
    %v5652 = vor.u32 1.1754944e-38, %v5651
    %v5653 = vsel %vm5650, %v5652, %v5648
    %v5654 = vmul.f32 1.0, %v5653
    %v5655 = vrcp.pop %v5593
    %v5656 = vmul.f32 %v5593, %v5655
    %v5657 = vsub.f32 1.0, %v5656
    %v5658 = vmul.f32 %v5655, %v5657
    %v5659 = vadd.f32 %v5655, %v5658
    %vm5660 = vweird.f32 %v5593
    %vm5661 = vweird.f32 %v5655
    %vm5662 = vmor %vm5660, %vm5661
    %v5663 = vsel %vm5662, %v5655, %v5659
    %v5664 = vand.u32 2147483647, %v5593
    %vm5665 = vcmp.eq.f32.partialorder %v5664, 8.507059e+37
    %v5666 = vand.u32 %v5593, 2147483648
    %v5667 = vor.u32 1.1754944e-38, %v5666
    %v5668 = vsel %vm5665, %v5667, %v5663
    %v5669 = vmul.f32 1.0, %v5668
    %v5670 = vrcp.pop %v5594
    %v5671 = vmul.f32 %v5594, %v5670
    %v5672 = vsub.f32 1.0, %v5671
    %v5673 = vmul.f32 %v5670, %v5672
    %v5674 = vadd.f32 %v5670, %v5673
    %vm5675 = vweird.f32 %v5594
    %vm5676 = vweird.f32 %v5670
    %vm5677 = vmor %vm5675, %vm5676
    %v5678 = vsel %vm5677, %v5670, %v5674
    %v5679 = vand.u32 2147483647, %v5594
    %vm5680 = vcmp.eq.f32.partialorder %v5679, 8.507059e+37
    %v5681 = vand.u32 %v5594, 2147483648
    %v5682 = vor.u32 1.1754944e-38, %v5681
    %v5683 = vsel %vm5680, %v5682, %v5678
    %v5684 = vmul.f32 1.0, %v5683
    %v5685 = vtanh.pop %v5439
    %v5686 = vtanh.pop %v5443
    %v5687 = vmul.f32 %v5624, %v4887
    %v5688 = vmul.f32 %v5669, %v4888
    %v5689 = vmul.f32 %v5609, %v5685
    %v5690 = vmul.f32 %v5654, %v5686
    %v5691 = vadd.f32 %v5687, %v5689
    %v5692 = vadd.f32 %v5688, %v5690
    %v5693 = vtanh.pop %v5691
    %v5694 = vtanh.pop %v5692
    %v5695 = vmul.f32 %v5639, %v5693
    %v5696 = vmul.f32 %v5684, %v5694
    %v5697 = vpack.c.bf16 %v5569, %v5569
    %v5698 = vpack.c.bf16 %v5570, %v5570
    %5699 = vst [vmem:[%s3282] sm:$0xf] %v5697
    %5700 = vst [vmem:[%s3282 + $0x8] sm:$0xf] %v5698
    %v5701 = vpack.c.bf16 %v5695, %v5695
    %v5702 = vpack.c.bf16 %v5696, %v5696
    %5703 = vst [vmem:[%s3275 + $0x4] sm:$0xf] %v5701
    %5704 = vst [vmem:[%s3275 + $0xc] sm:$0xf] %v5702
    %s5705 = smul.addr %s1934, 8
    %s5706 = scalar_lea.vmem [#allocation2], %s5705
    %v5707 = vld [vmem:[%s5706] sm:$0xff]
    %v5708 = vld [vmem:[%s5706 + $0x8] sm:$0xff]
    %v5709 = vld [vmem:[%s5706 + $0x10] sm:$0xff]
    %v5710 = vld [vmem:[%s5706 + $0x18] sm:$0xff]
    %v5711 = vld [vmem:[%s5706 + $0x20] sm:$0xff]
    %v5712 = vld [vmem:[%s5706 + $0x28] sm:$0xff]
    %v5713 = vld [vmem:[%s5706 + $0x30] sm:$0xff]
    %v5714 = vld [vmem:[%s5706 + $0x38] sm:$0xff]
    %v5715 = vld [vmem:[#allocation5] sm:$0xff]
    %v5716 = vld [vmem:[#allocation5 + $0x8] sm:$0xff]
    %v5717 = vld [vmem:[#allocation5 + $0x10] sm:$0xff]
    %v5718 = vld [vmem:[#allocation5 + $0x18] sm:$0xff]
    %v5719 = vld [vmem:[#allocation5 + $0x20] sm:$0xff]
    %v5720 = vld [vmem:[#allocation5 + $0x28] sm:$0xff]
    %v5721 = vld [vmem:[#allocation5 + $0x30] sm:$0xff]
    %v5722 = vld [vmem:[#allocation5 + $0x38] sm:$0xff]
    %v5723 = vld [vmem:[#allocation5 + $0x40] sm:$0xff]
    %v5724 = vld [vmem:[#allocation5 + $0x48] sm:$0xff]
    %v5725 = vld [vmem:[#allocation5 + $0x50] sm:$0xff]
    %v5726 = vld [vmem:[#allocation5 + $0x58] sm:$0xff]
    %v5727 = vld [vmem:[#allocation5 + $0x60] sm:$0xff]
    %v5728 = vld [vmem:[#allocation5 + $0x68] sm:$0xff]
    %v5729 = vld [vmem:[#allocation5 + $0x70] sm:$0xff]
    %v5730 = vld [vmem:[#allocation5 + $0x78] sm:$0xff]
    %v5731 = vld [vmem:[#allocation5 + $0x80] sm:$0xff]
    %v5732 = vld [vmem:[#allocation5 + $0x88] sm:$0xff]
    %v5733 = vld [vmem:[#allocation5 + $0x90] sm:$0xff]
    %v5734 = vld [vmem:[#allocation5 + $0x98] sm:$0xff]
    %v5735 = vld [vmem:[#allocation5 + $0xa0] sm:$0xff]
    %v5736 = vld [vmem:[#allocation5 + $0xa8] sm:$0xff]
    %v5737 = vld [vmem:[#allocation5 + $0xb0] sm:$0xff]
    %v5738 = vld [vmem:[#allocation5 + $0xb8] sm:$0xff]
    %v5739 = vld [vmem:[#allocation5 + $0xc0] sm:$0xff]
    %v5740 = vld [vmem:[#allocation5 + $0xc8] sm:$0xff]
    %v5741 = vld [vmem:[#allocation5 + $0xd0] sm:$0xff]
    %v5742 = vld [vmem:[#allocation5 + $0xd8] sm:$0xff]
    %v5743 = vld [vmem:[#allocation5 + $0xe0] sm:$0xff]
    %v5744 = vld [vmem:[#allocation5 + $0xe8] sm:$0xff]
    %v5745 = vld [vmem:[#allocation5 + $0xf0] sm:$0xff]
    %v5746 = vld [vmem:[#allocation5 + $0xf8] sm:$0xff]
    %v5749 = vunpack.c.l.b16 %v5697
    %v5750 = vunpack.c.l.b16 %v5698
    %v5751 = vpack.c.b16 %v5750, %v5749
    %v5785 = vunpack.c.l.b16 %v5715
    %v5786 = vunpack.c.h.b16 %v5715
    %v5787 = vunpack.c.l.b16 %v5716
    %v5788 = vunpack.c.h.b16 %v5716
    %v5789 = vunpack.c.l.b16 %v5717
    %v5790 = vunpack.c.h.b16 %v5717
    %v5791 = vunpack.c.l.b16 %v5718
    %v5792 = vunpack.c.h.b16 %v5718
    %v5793 = vunpack.c.l.b16 %v5719
    %v5794 = vunpack.c.h.b16 %v5719
    %v5795 = vunpack.c.l.b16 %v5720
    %v5796 = vunpack.c.h.b16 %v5720
    %v5797 = vunpack.c.l.b16 %v5721
    %v5798 = vunpack.c.h.b16 %v5721
    %v5799 = vunpack.c.l.b16 %v5722
    %v5800 = vunpack.c.h.b16 %v5722
    %v5801 = vunpack.c.l.b16 %v5723
    %v5802 = vunpack.c.h.b16 %v5723
    %v5803 = vunpack.c.l.b16 %v5724
    %v5804 = vunpack.c.h.b16 %v5724
    %v5805 = vunpack.c.l.b16 %v5725
    %v5806 = vunpack.c.h.b16 %v5725
    %v5807 = vunpack.c.l.b16 %v5726
    %v5808 = vunpack.c.h.b16 %v5726
    %v5809 = vunpack.c.l.b16 %v5727
    %v5810 = vunpack.c.h.b16 %v5727
    %v5811 = vunpack.c.l.b16 %v5728
    %v5812 = vunpack.c.h.b16 %v5728
    %v5813 = vunpack.c.l.b16 %v5729
    %v5814 = vunpack.c.h.b16 %v5729
    %v5815 = vunpack.c.l.b16 %v5730
    %v5816 = vunpack.c.h.b16 %v5730
    %v5817 = vunpack.c.l.b16 %v5731
    %v5818 = vunpack.c.h.b16 %v5731
    %v5819 = vunpack.c.l.b16 %v5732
    %v5820 = vunpack.c.h.b16 %v5732
    %v5821 = vunpack.c.l.b16 %v5733
    %v5822 = vunpack.c.h.b16 %v5733
    %v5823 = vunpack.c.l.b16 %v5734
    %v5824 = vunpack.c.h.b16 %v5734
    %v5825 = vunpack.c.l.b16 %v5735
    %v5826 = vunpack.c.h.b16 %v5735
    %v5827 = vunpack.c.l.b16 %v5736
    %v5828 = vunpack.c.h.b16 %v5736
    %v5829 = vunpack.c.l.b16 %v5737
    %v5830 = vunpack.c.h.b16 %v5737
    %v5831 = vunpack.c.l.b16 %v5738
    %v5832 = vunpack.c.h.b16 %v5738
    %v5833 = vunpack.c.l.b16 %v5739
    %v5834 = vunpack.c.h.b16 %v5739
    %v5835 = vunpack.c.l.b16 %v5740
    %v5836 = vunpack.c.h.b16 %v5740
    %v5837 = vunpack.c.l.b16 %v5741
    %v5838 = vunpack.c.h.b16 %v5741
    %v5839 = vunpack.c.l.b16 %v5742
    %v5840 = vunpack.c.h.b16 %v5742
    %v5841 = vunpack.c.l.b16 %v5743
    %v5842 = vunpack.c.h.b16 %v5743
    %v5843 = vunpack.c.l.b16 %v5744
    %v5844 = vunpack.c.h.b16 %v5744
    %v5845 = vunpack.c.l.b16 %v5745
    %v5846 = vunpack.c.h.b16 %v5745
    %v5847 = vunpack.c.l.b16 %v5746
    %v5848 = vunpack.c.h.b16 %v5746
    %v5849 = vpack.c.b16 %v5789, %v5785
    %v5850 = vpack.c.b16 %v5790, %v5786
    %v5851 = vpack.c.b16 %v5791, %v5787
    %v5852 = vpack.c.b16 %v5792, %v5788
    %v5853 = vpack.c.b16 %v5797, %v5793
    %v5854 = vpack.c.b16 %v5798, %v5794
    %v5855 = vpack.c.b16 %v5799, %v5795
    %v5856 = vpack.c.b16 %v5800, %v5796
    %v5857 = vpack.c.b16 %v5805, %v5801
    %v5858 = vpack.c.b16 %v5806, %v5802
    %v5859 = vpack.c.b16 %v5807, %v5803
    %v5860 = vpack.c.b16 %v5808, %v5804
    %v5861 = vpack.c.b16 %v5813, %v5809
    %v5862 = vpack.c.b16 %v5814, %v5810
    %v5863 = vpack.c.b16 %v5815, %v5811
    %v5864 = vpack.c.b16 %v5816, %v5812
    %v5865 = vpack.c.b16 %v5821, %v5817
    %v5866 = vpack.c.b16 %v5822, %v5818
    %v5867 = vpack.c.b16 %v5823, %v5819
    %v5868 = vpack.c.b16 %v5824, %v5820
    %v5869 = vpack.c.b16 %v5829, %v5825
    %v5870 = vpack.c.b16 %v5830, %v5826
    %v5871 = vpack.c.b16 %v5831, %v5827
    %v5872 = vpack.c.b16 %v5832, %v5828
    %v5873 = vpack.c.b16 %v5837, %v5833
    %v5874 = vpack.c.b16 %v5838, %v5834
    %v5875 = vpack.c.b16 %v5839, %v5835
    %v5876 = vpack.c.b16 %v5840, %v5836
    %v5877 = vpack.c.b16 %v5845, %v5841
    %v5878 = vpack.c.b16 %v5846, %v5842
    %v5879 = vpack.c.b16 %v5847, %v5843
    %v5880 = vpack.c.b16 %v5848, %v5844
    %5913 = vmatpush.bf16.msra.mxu0 %v5877
    %5914 = vmatpush.bf16.msra.mxu0 %v5873
    %5915 = vmatpush.bf16.msra.mxu0 %v5869
    %5916 = vmatpush.bf16.msra.mxu0 %v5865
    %5917 = vmatpush.bf16.msra.mxu0 %v5861
    %5918 = vmatpush.bf16.msra.mxu0 %v5857
    %5919 = vmatpush.bf16.msra.mxu0 %v5853
    %5920 = vmatpush.bf16.msra.mxu0 %v5849
    %5921 = vmatmul.bf16.gmra.mxu0 %v5751
    %v5922 = vpop.f32.mrf.mxu0
    %v5923 = vadd.f32 0.0, %v5922
    %v5924 = vpop.f32.mrf.mxu0
    %v5925 = vadd.f32 0.0, %v5924
    %5926 = vdwg.mxu0
    %5927 = vmatpush.bf16.msra.mxu0 %v5878
    %5928 = vmatpush.bf16.msra.mxu0 %v5874
    %5929 = vmatpush.bf16.msra.mxu0 %v5870
    %5930 = vmatpush.bf16.msra.mxu0 %v5866
    %5931 = vmatpush.bf16.msra.mxu0 %v5862
    %5932 = vmatpush.bf16.msra.mxu0 %v5858
    %5933 = vmatpush.bf16.msra.mxu0 %v5854
    %5934 = vmatpush.bf16.msra.mxu0 %v5850
    %5935 = vmatmul.bf16.gmra.mxu0 %v5751
    %v5936 = vpop.f32.mrf.mxu0
    %v5937 = vadd.f32 0.0, %v5936
    %v5938 = vpop.f32.mrf.mxu0
    %v5939 = vadd.f32 0.0, %v5938
    %5940 = vdwg.mxu0
    %5941 = vmatpush.bf16.msra.mxu0 %v5879
    %5942 = vmatpush.bf16.msra.mxu0 %v5875
    %5943 = vmatpush.bf16.msra.mxu0 %v5871
    %5944 = vmatpush.bf16.msra.mxu0 %v5867
    %5945 = vmatpush.bf16.msra.mxu0 %v5863
    %5946 = vmatpush.bf16.msra.mxu0 %v5859
    %5947 = vmatpush.bf16.msra.mxu0 %v5855
    %5948 = vmatpush.bf16.msra.mxu0 %v5851
    %5949 = vmatmul.bf16.gmra.mxu0 %v5751
    %v5950 = vpop.f32.mrf.mxu0
    %v5951 = vadd.f32 0.0, %v5950
    %v5952 = vpop.f32.mrf.mxu0
    %v5953 = vadd.f32 0.0, %v5952
    %5954 = vdwg.mxu0
    %5955 = vmatpush.bf16.msra.mxu0 %v5880
    %5956 = vmatpush.bf16.msra.mxu0 %v5876
    %5957 = vmatpush.bf16.msra.mxu0 %v5872
    %5958 = vmatpush.bf16.msra.mxu0 %v5868
    %5959 = vmatpush.bf16.msra.mxu0 %v5864
    %5960 = vmatpush.bf16.msra.mxu0 %v5860
    %5961 = vmatpush.bf16.msra.mxu0 %v5856
    %5962 = vmatpush.bf16.msra.mxu0 %v5852
    %5963 = vmatmul.bf16.gmra.mxu0 %v5751
    %v5964 = vpop.f32.mrf.mxu0
    %v5965 = vadd.f32 0.0, %v5964
    %v5966 = vpop.f32.mrf.mxu0
    %v5967 = vadd.f32 0.0, %v5966
    %5968 = vdwg.mxu0
    %v5969 = vadd.f32 %v5707, %v5923
    %v5970 = vadd.f32 %v5708, %v5937
    %v5971 = vadd.f32 %v5709, %v5951
    %v5972 = vadd.f32 %v5710, %v5965
    %v5973 = vadd.f32 %v5711, %v5925
    %v5974 = vadd.f32 %v5712, %v5939
    %v5975 = vadd.f32 %v5713, %v5953
    %v5976 = vadd.f32 %v5714, %v5967
    %s5977 = smul.addr %s1661, 8
    %s5978 = scalar_lea.vmem [#allocation3], %s5977
    %v5979 = vld [vmem:[%s5978] sm:$0xff]
    %v5980 = vld [vmem:[%s5978 + $0x8] sm:$0xff]
    %v5981 = vld [vmem:[%s5978 + $0x10] sm:$0xff]
    %v5982 = vld [vmem:[%s5978 + $0x18] sm:$0xff]
    %v5983 = vld [vmem:[%s5978 + $0x20] sm:$0xff]
    %v5984 = vld [vmem:[%s5978 + $0x28] sm:$0xff]
    %v5985 = vld [vmem:[%s5978 + $0x30] sm:$0xff]
    %v5986 = vld [vmem:[%s5978 + $0x38] sm:$0xff]
    %v5987 = vld [vmem:[#allocation8] sm:$0xff]
    %v5988 = vld [vmem:[#allocation8 + $0x8] sm:$0xff]
    %v5989 = vld [vmem:[#allocation8 + $0x10] sm:$0xff]
    %v5990 = vld [vmem:[#allocation8 + $0x18] sm:$0xff]
    %v5991 = vld [vmem:[#allocation8 + $0x20] sm:$0xff]
    %v5992 = vld [vmem:[#allocation8 + $0x28] sm:$0xff]
    %v5993 = vld [vmem:[#allocation8 + $0x30] sm:$0xff]
    %v5994 = vld [vmem:[#allocation8 + $0x38] sm:$0xff]
    %v5995 = vld [vmem:[#allocation8 + $0x40] sm:$0xff]
    %v5996 = vld [vmem:[#allocation8 + $0x48] sm:$0xff]
    %v5997 = vld [vmem:[#allocation8 + $0x50] sm:$0xff]
    %v5998 = vld [vmem:[#allocation8 + $0x58] sm:$0xff]
    %v5999 = vld [vmem:[#allocation8 + $0x60] sm:$0xff]
    %v6000 = vld [vmem:[#allocation8 + $0x68] sm:$0xff]
    %v6001 = vld [vmem:[#allocation8 + $0x70] sm:$0xff]
    %v6002 = vld [vmem:[#allocation8 + $0x78] sm:$0xff]
    %v6003 = vld [vmem:[#allocation8 + $0x80] sm:$0xff]
    %v6004 = vld [vmem:[#allocation8 + $0x88] sm:$0xff]
    %v6005 = vld [vmem:[#allocation8 + $0x90] sm:$0xff]
    %v6006 = vld [vmem:[#allocation8 + $0x98] sm:$0xff]
    %v6007 = vld [vmem:[#allocation8 + $0xa0] sm:$0xff]
    %v6008 = vld [vmem:[#allocation8 + $0xa8] sm:$0xff]
    %v6009 = vld [vmem:[#allocation8 + $0xb0] sm:$0xff]
    %v6010 = vld [vmem:[#allocation8 + $0xb8] sm:$0xff]
    %v6011 = vld [vmem:[#allocation8 + $0xc0] sm:$0xff]
    %v6012 = vld [vmem:[#allocation8 + $0xc8] sm:$0xff]
    %v6013 = vld [vmem:[#allocation8 + $0xd0] sm:$0xff]
    %v6014 = vld [vmem:[#allocation8 + $0xd8] sm:$0xff]
    %v6015 = vld [vmem:[#allocation8 + $0xe0] sm:$0xff]
    %v6016 = vld [vmem:[#allocation8 + $0xe8] sm:$0xff]
    %v6017 = vld [vmem:[#allocation8 + $0xf0] sm:$0xff]
    %v6018 = vld [vmem:[#allocation8 + $0xf8] sm:$0xff]
    %v6021 = vunpack.c.l.b16 %v5701
    %v6022 = vunpack.c.l.b16 %v5702
    %v6023 = vpack.c.b16 %v6022, %v6021
    %v6057 = vunpack.c.l.b16 %v5987
    %v6058 = vunpack.c.h.b16 %v5987
    %v6059 = vunpack.c.l.b16 %v5988
    %v6060 = vunpack.c.h.b16 %v5988
    %v6061 = vunpack.c.l.b16 %v5989
    %v6062 = vunpack.c.h.b16 %v5989
    %v6063 = vunpack.c.l.b16 %v5990
    %v6064 = vunpack.c.h.b16 %v5990
    %v6065 = vunpack.c.l.b16 %v5991
    %v6066 = vunpack.c.h.b16 %v5991
    %v6067 = vunpack.c.l.b16 %v5992
    %v6068 = vunpack.c.h.b16 %v5992
    %v6069 = vunpack.c.l.b16 %v5993
    %v6070 = vunpack.c.h.b16 %v5993
    %v6071 = vunpack.c.l.b16 %v5994
    %v6072 = vunpack.c.h.b16 %v5994
    %v6073 = vunpack.c.l.b16 %v5995
    %v6074 = vunpack.c.h.b16 %v5995
    %v6075 = vunpack.c.l.b16 %v5996
    %v6076 = vunpack.c.h.b16 %v5996
    %v6077 = vunpack.c.l.b16 %v5997
    %v6078 = vunpack.c.h.b16 %v5997
    %v6079 = vunpack.c.l.b16 %v5998
    %v6080 = vunpack.c.h.b16 %v5998
    %v6081 = vunpack.c.l.b16 %v5999
    %v6082 = vunpack.c.h.b16 %v5999
    %v6083 = vunpack.c.l.b16 %v6000
    %v6084 = vunpack.c.h.b16 %v6000
    %v6085 = vunpack.c.l.b16 %v6001
    %v6086 = vunpack.c.h.b16 %v6001
    %v6087 = vunpack.c.l.b16 %v6002
    %v6088 = vunpack.c.h.b16 %v6002
    %v6089 = vunpack.c.l.b16 %v6003
    %v6090 = vunpack.c.h.b16 %v6003
    %v6091 = vunpack.c.l.b16 %v6004
    %v6092 = vunpack.c.h.b16 %v6004
    %v6093 = vunpack.c.l.b16 %v6005
    %v6094 = vunpack.c.h.b16 %v6005
    %v6095 = vunpack.c.l.b16 %v6006
    %v6096 = vunpack.c.h.b16 %v6006
    %v6097 = vunpack.c.l.b16 %v6007
    %v6098 = vunpack.c.h.b16 %v6007
    %v6099 = vunpack.c.l.b16 %v6008
    %v6100 = vunpack.c.h.b16 %v6008
    %v6101 = vunpack.c.l.b16 %v6009
    %v6102 = vunpack.c.h.b16 %v6009
    %v6103 = vunpack.c.l.b16 %v6010
    %v6104 = vunpack.c.h.b16 %v6010
    %v6105 = vunpack.c.l.b16 %v6011
    %v6106 = vunpack.c.h.b16 %v6011
    %v6107 = vunpack.c.l.b16 %v6012
    %v6108 = vunpack.c.h.b16 %v6012
    %v6109 = vunpack.c.l.b16 %v6013
    %v6110 = vunpack.c.h.b16 %v6013
    %v6111 = vunpack.c.l.b16 %v6014
    %v6112 = vunpack.c.h.b16 %v6014
    %v6113 = vunpack.c.l.b16 %v6015
    %v6114 = vunpack.c.h.b16 %v6015
    %v6115 = vunpack.c.l.b16 %v6016
    %v6116 = vunpack.c.h.b16 %v6016
    %v6117 = vunpack.c.l.b16 %v6017
    %v6118 = vunpack.c.h.b16 %v6017
    %v6119 = vunpack.c.l.b16 %v6018
    %v6120 = vunpack.c.h.b16 %v6018
    %v6121 = vpack.c.b16 %v6061, %v6057
    %v6122 = vpack.c.b16 %v6062, %v6058
    %v6123 = vpack.c.b16 %v6063, %v6059
    %v6124 = vpack.c.b16 %v6064, %v6060
    %v6125 = vpack.c.b16 %v6069, %v6065
    %v6126 = vpack.c.b16 %v6070, %v6066
    %v6127 = vpack.c.b16 %v6071, %v6067
    %v6128 = vpack.c.b16 %v6072, %v6068
    %v6129 = vpack.c.b16 %v6077, %v6073
    %v6130 = vpack.c.b16 %v6078, %v6074
    %v6131 = vpack.c.b16 %v6079, %v6075
    %v6132 = vpack.c.b16 %v6080, %v6076
    %v6133 = vpack.c.b16 %v6085, %v6081
    %v6134 = vpack.c.b16 %v6086, %v6082
    %v6135 = vpack.c.b16 %v6087, %v6083
    %v6136 = vpack.c.b16 %v6088, %v6084
    %v6137 = vpack.c.b16 %v6093, %v6089
    %v6138 = vpack.c.b16 %v6094, %v6090
    %v6139 = vpack.c.b16 %v6095, %v6091
    %v6140 = vpack.c.b16 %v6096, %v6092
    %v6141 = vpack.c.b16 %v6101, %v6097
    %v6142 = vpack.c.b16 %v6102, %v6098
    %v6143 = vpack.c.b16 %v6103, %v6099
    %v6144 = vpack.c.b16 %v6104, %v6100
    %v6145 = vpack.c.b16 %v6109, %v6105
    %v6146 = vpack.c.b16 %v6110, %v6106
    %v6147 = vpack.c.b16 %v6111, %v6107
    %v6148 = vpack.c.b16 %v6112, %v6108
    %v6149 = vpack.c.b16 %v6117, %v6113
    %v6150 = vpack.c.b16 %v6118, %v6114
    %v6151 = vpack.c.b16 %v6119, %v6115
    %v6152 = vpack.c.b16 %v6120, %v6116
    %6185 = vmatpush.bf16.msra.mxu0 %v6149
    %6186 = vmatpush.bf16.msra.mxu0 %v6145
    %6187 = vmatpush.bf16.msra.mxu0 %v6141
    %6188 = vmatpush.bf16.msra.mxu0 %v6137
    %6189 = vmatpush.bf16.msra.mxu0 %v6133
    %6190 = vmatpush.bf16.msra.mxu0 %v6129
    %6191 = vmatpush.bf16.msra.mxu0 %v6125
    %6192 = vmatpush.bf16.msra.mxu0 %v6121
    %6193 = vmatmul.bf16.gmra.mxu0 %v6023
    %v6194 = vpop.f32.mrf.mxu0
    %v6195 = vadd.f32 0.0, %v6194
    %v6196 = vpop.f32.mrf.mxu0
    %v6197 = vadd.f32 0.0, %v6196
    %6198 = vdwg.mxu0
    %6199 = vmatpush.bf16.msra.mxu0 %v6150
    %6200 = vmatpush.bf16.msra.mxu0 %v6146
    %6201 = vmatpush.bf16.msra.mxu0 %v6142
    %6202 = vmatpush.bf16.msra.mxu0 %v6138
    %6203 = vmatpush.bf16.msra.mxu0 %v6134
    %6204 = vmatpush.bf16.msra.mxu0 %v6130
    %6205 = vmatpush.bf16.msra.mxu0 %v6126
    %6206 = vmatpush.bf16.msra.mxu0 %v6122
    %6207 = vmatmul.bf16.gmra.mxu0 %v6023
    %v6208 = vpop.f32.mrf.mxu0
    %v6209 = vadd.f32 0.0, %v6208
    %v6210 = vpop.f32.mrf.mxu0
    %v6211 = vadd.f32 0.0, %v6210
    %6212 = vdwg.mxu0
    %6213 = vmatpush.bf16.msra.mxu0 %v6151
    %6214 = vmatpush.bf16.msra.mxu0 %v6147
    %6215 = vmatpush.bf16.msra.mxu0 %v6143
    %6216 = vmatpush.bf16.msra.mxu0 %v6139
    %6217 = vmatpush.bf16.msra.mxu0 %v6135
    %6218 = vmatpush.bf16.msra.mxu0 %v6131
    %6219 = vmatpush.bf16.msra.mxu0 %v6127
    %6220 = vmatpush.bf16.msra.mxu0 %v6123
    %6221 = vmatmul.bf16.gmra.mxu0 %v6023
    %v6222 = vpop.f32.mrf.mxu0
    %v6223 = vadd.f32 0.0, %v6222
    %v6224 = vpop.f32.mrf.mxu0
    %v6225 = vadd.f32 0.0, %v6224
    %6226 = vdwg.mxu0
    %6227 = vmatpush.bf16.msra.mxu0 %v6152
    %6228 = vmatpush.bf16.msra.mxu0 %v6148
    %6229 = vmatpush.bf16.msra.mxu0 %v6144
    %6230 = vmatpush.bf16.msra.mxu0 %v6140
    %6231 = vmatpush.bf16.msra.mxu0 %v6136
    %6232 = vmatpush.bf16.msra.mxu0 %v6132
    %6233 = vmatpush.bf16.msra.mxu0 %v6128
    %6234 = vmatpush.bf16.msra.mxu0 %v6124
    %6235 = vmatmul.bf16.gmra.mxu0 %v6023
    %v6236 = vpop.f32.mrf.mxu0
    %v6237 = vadd.f32 0.0, %v6236
    %v6238 = vpop.f32.mrf.mxu0
    %v6239 = vadd.f32 0.0, %v6238
    %6240 = vdwg.mxu0
    %v6241 = vadd.f32 %v5979, %v6195
    %v6242 = vadd.f32 %v5980, %v6209
    %v6243 = vadd.f32 %v5981, %v6223
    %v6244 = vadd.f32 %v5982, %v6237
    %v6245 = vadd.f32 %v5983, %v6197
    %v6246 = vadd.f32 %v5984, %v6211
    %v6247 = vadd.f32 %v5985, %v6225
    %v6248 = vadd.f32 %v5986, %v6239
    %v6249 = vxor.u32 %v5969, 2147483648
    %v6250 = vxor.u32 %v5970, 2147483648
    %v6251 = vxor.u32 %v5972, 2147483648
    %v6252 = vxor.u32 %v5973, 2147483648
    %v6253 = vxor.u32 %v5974, 2147483648
    %v6254 = vxor.u32 %v5976, 2147483648
    %v6255 = vmul.f32 %v6249, 1.442695
    %v6256 = vpow.pop %v6255
    %v6257 = vmul.f32 %v6250, 1.442695
    %v6258 = vpow.pop %v6257
    %v6259 = vmul.f32 %v6251, 1.442695
    %v6260 = vpow.pop %v6259
    %v6261 = vmul.f32 %v6252, 1.442695
    %v6262 = vpow.pop %v6261
    %v6263 = vmul.f32 %v6253, 1.442695
    %v6264 = vpow.pop %v6263
    %v6265 = vmul.f32 %v6254, 1.442695
    %v6266 = vpow.pop %v6265
    %v6267 = vadd.f32 %v6256, 1.0
    %v6268 = vadd.f32 %v6258, 1.0
    %v6269 = vadd.f32 %v6260, 1.0
    %v6270 = vadd.f32 %v6262, 1.0
    %v6271 = vadd.f32 %v6264, 1.0
    %v6272 = vadd.f32 %v6266, 1.0
    %v6273 = vrcp.pop %v6267
    %v6274 = vmul.f32 %v6267, %v6273
    %v6275 = vsub.f32 1.0, %v6274
    %v6276 = vmul.f32 %v6273, %v6275
    %v6277 = vadd.f32 %v6273, %v6276
    %vm6278 = vweird.f32 %v6267
    %vm6279 = vweird.f32 %v6273
    %vm6280 = vmor %vm6278, %vm6279
    %v6281 = vsel %vm6280, %v6273, %v6277
    %v6282 = vand.u32 2147483647, %v6267
    %vm6283 = vcmp.eq.f32.partialorder %v6282, 8.507059e+37
    %v6284 = vand.u32 %v6267, 2147483648
    %v6285 = vor.u32 1.1754944e-38, %v6284
    %v6286 = vsel %vm6283, %v6285, %v6281
    %v6287 = vmul.f32 1.0, %v6286
    %v6288 = vrcp.pop %v6268
    %v6289 = vmul.f32 %v6268, %v6288
    %v6290 = vsub.f32 1.0, %v6289
    %v6291 = vmul.f32 %v6288, %v6290
    %v6292 = vadd.f32 %v6288, %v6291
    %vm6293 = vweird.f32 %v6268
    %vm6294 = vweird.f32 %v6288
    %vm6295 = vmor %vm6293, %vm6294
    %v6296 = vsel %vm6295, %v6288, %v6292
    %v6297 = vand.u32 2147483647, %v6268
    %vm6298 = vcmp.eq.f32.partialorder %v6297, 8.507059e+37
    %v6299 = vand.u32 %v6268, 2147483648
    %v6300 = vor.u32 1.1754944e-38, %v6299
    %v6301 = vsel %vm6298, %v6300, %v6296
    %v6302 = vmul.f32 1.0, %v6301
    %v6303 = vrcp.pop %v6269
    %v6304 = vmul.f32 %v6269, %v6303
    %v6305 = vsub.f32 1.0, %v6304
    %v6306 = vmul.f32 %v6303, %v6305
    %v6307 = vadd.f32 %v6303, %v6306
    %vm6308 = vweird.f32 %v6269
    %vm6309 = vweird.f32 %v6303
    %vm6310 = vmor %vm6308, %vm6309
    %v6311 = vsel %vm6310, %v6303, %v6307
    %v6312 = vand.u32 2147483647, %v6269
    %vm6313 = vcmp.eq.f32.partialorder %v6312, 8.507059e+37
    %v6314 = vand.u32 %v6269, 2147483648
    %v6315 = vor.u32 1.1754944e-38, %v6314
    %v6316 = vsel %vm6313, %v6315, %v6311
    %v6317 = vmul.f32 1.0, %v6316
    %v6318 = vrcp.pop %v6270
    %v6319 = vmul.f32 %v6270, %v6318
    %v6320 = vsub.f32 1.0, %v6319
    %v6321 = vmul.f32 %v6318, %v6320
    %v6322 = vadd.f32 %v6318, %v6321
    %vm6323 = vweird.f32 %v6270
    %vm6324 = vweird.f32 %v6318
    %vm6325 = vmor %vm6323, %vm6324
    %v6326 = vsel %vm6325, %v6318, %v6322
    %v6327 = vand.u32 2147483647, %v6270
    %vm6328 = vcmp.eq.f32.partialorder %v6327, 8.507059e+37
    %v6329 = vand.u32 %v6270, 2147483648
    %v6330 = vor.u32 1.1754944e-38, %v6329
    %v6331 = vsel %vm6328, %v6330, %v6326
    %v6332 = vmul.f32 1.0, %v6331
    %v6333 = vrcp.pop %v6271
    %v6334 = vmul.f32 %v6271, %v6333
    %v6335 = vsub.f32 1.0, %v6334
    %v6336 = vmul.f32 %v6333, %v6335
    %v6337 = vadd.f32 %v6333, %v6336
    %vm6338 = vweird.f32 %v6271
    %vm6339 = vweird.f32 %v6333
    %vm6340 = vmor %vm6338, %vm6339
    %v6341 = vsel %vm6340, %v6333, %v6337
    %v6342 = vand.u32 2147483647, %v6271
    %vm6343 = vcmp.eq.f32.partialorder %v6342, 8.507059e+37
    %v6344 = vand.u32 %v6271, 2147483648
    %v6345 = vor.u32 1.1754944e-38, %v6344
    %v6346 = vsel %vm6343, %v6345, %v6341
    %v6347 = vmul.f32 1.0, %v6346
    %v6348 = vrcp.pop %v6272
    %v6349 = vmul.f32 %v6272, %v6348
    %v6350 = vsub.f32 1.0, %v6349
    %v6351 = vmul.f32 %v6348, %v6350
    %v6352 = vadd.f32 %v6348, %v6351
    %vm6353 = vweird.f32 %v6272
    %vm6354 = vweird.f32 %v6348
    %vm6355 = vmor %vm6353, %vm6354
    %v6356 = vsel %vm6355, %v6348, %v6352
    %v6357 = vand.u32 2147483647, %v6272
    %vm6358 = vcmp.eq.f32.partialorder %v6357, 8.507059e+37
    %v6359 = vand.u32 %v6272, 2147483648
    %v6360 = vor.u32 1.1754944e-38, %v6359
    %v6361 = vsel %vm6358, %v6360, %v6356
    %v6362 = vmul.f32 1.0, %v6361
    %v6363 = vtanh.pop %v5971
    %v6364 = vtanh.pop %v5975
    %v6365 = vmul.f32 %v6302, %v5565
    %v6366 = vmul.f32 %v6347, %v5566
    %v6367 = vmul.f32 %v6287, %v6363
    %v6368 = vmul.f32 %v6332, %v6364
    %v6369 = vadd.f32 %v6365, %v6367
    %v6370 = vadd.f32 %v6366, %v6368
    %v6371 = vtanh.pop %v6369
    %v6372 = vtanh.pop %v6370
    %v6373 = vmul.f32 %v6317, %v6371
    %v6374 = vmul.f32 %v6362, %v6372
    %v6375 = vxor.u32 %v6241, 2147483648
    %v6376 = vxor.u32 %v6242, 2147483648
    %v6377 = vxor.u32 %v6244, 2147483648
    %v6378 = vxor.u32 %v6245, 2147483648
    %v6379 = vxor.u32 %v6246, 2147483648
    %v6380 = vxor.u32 %v6248, 2147483648
    %v6381 = vmul.f32 %v6375, 1.442695
    %v6382 = vpow.pop %v6381
    %v6383 = vmul.f32 %v6376, 1.442695
    %v6384 = vpow.pop %v6383
    %v6385 = vmul.f32 %v6377, 1.442695
    %v6386 = vpow.pop %v6385
    %v6387 = vmul.f32 %v6378, 1.442695
    %v6388 = vpow.pop %v6387
    %v6389 = vmul.f32 %v6379, 1.442695
    %v6390 = vpow.pop %v6389
    %v6391 = vmul.f32 %v6380, 1.442695
    %v6392 = vpow.pop %v6391
    %v6393 = vadd.f32 %v6382, 1.0
    %v6394 = vadd.f32 %v6384, 1.0
    %v6395 = vadd.f32 %v6386, 1.0
    %v6396 = vadd.f32 %v6388, 1.0
    %v6397 = vadd.f32 %v6390, 1.0
    %v6398 = vadd.f32 %v6392, 1.0
    %v6399 = vrcp.pop %v6393
    %v6400 = vmul.f32 %v6393, %v6399
    %v6401 = vsub.f32 1.0, %v6400
    %v6402 = vmul.f32 %v6399, %v6401
    %v6403 = vadd.f32 %v6399, %v6402
    %vm6404 = vweird.f32 %v6393
    %vm6405 = vweird.f32 %v6399
    %vm6406 = vmor %vm6404, %vm6405
    %v6407 = vsel %vm6406, %v6399, %v6403
    %v6408 = vand.u32 2147483647, %v6393
    %vm6409 = vcmp.eq.f32.partialorder %v6408, 8.507059e+37
    %v6410 = vand.u32 %v6393, 2147483648
    %v6411 = vor.u32 1.1754944e-38, %v6410
    %v6412 = vsel %vm6409, %v6411, %v6407
    %v6413 = vmul.f32 1.0, %v6412
    %v6414 = vrcp.pop %v6394
    %v6415 = vmul.f32 %v6394, %v6414
    %v6416 = vsub.f32 1.0, %v6415
    %v6417 = vmul.f32 %v6414, %v6416
    %v6418 = vadd.f32 %v6414, %v6417
    %vm6419 = vweird.f32 %v6394
    %vm6420 = vweird.f32 %v6414
    %vm6421 = vmor %vm6419, %vm6420
    %v6422 = vsel %vm6421, %v6414, %v6418
    %v6423 = vand.u32 2147483647, %v6394
    %vm6424 = vcmp.eq.f32.partialorder %v6423, 8.507059e+37
    %v6425 = vand.u32 %v6394, 2147483648
    %v6426 = vor.u32 1.1754944e-38, %v6425
    %v6427 = vsel %vm6424, %v6426, %v6422
    %v6428 = vmul.f32 1.0, %v6427
    %v6429 = vrcp.pop %v6395
    %v6430 = vmul.f32 %v6395, %v6429
    %v6431 = vsub.f32 1.0, %v6430
    %v6432 = vmul.f32 %v6429, %v6431
    %v6433 = vadd.f32 %v6429, %v6432
    %vm6434 = vweird.f32 %v6395
    %vm6435 = vweird.f32 %v6429
    %vm6436 = vmor %vm6434, %vm6435
    %v6437 = vsel %vm6436, %v6429, %v6433
    %v6438 = vand.u32 2147483647, %v6395
    %vm6439 = vcmp.eq.f32.partialorder %v6438, 8.507059e+37
    %v6440 = vand.u32 %v6395, 2147483648
    %v6441 = vor.u32 1.1754944e-38, %v6440
    %v6442 = vsel %vm6439, %v6441, %v6437
    %v6443 = vmul.f32 1.0, %v6442
    %v6444 = vrcp.pop %v6396
    %v6445 = vmul.f32 %v6396, %v6444
    %v6446 = vsub.f32 1.0, %v6445
    %v6447 = vmul.f32 %v6444, %v6446
    %v6448 = vadd.f32 %v6444, %v6447
    %vm6449 = vweird.f32 %v6396
    %vm6450 = vweird.f32 %v6444
    %vm6451 = vmor %vm6449, %vm6450
    %v6452 = vsel %vm6451, %v6444, %v6448
    %v6453 = vand.u32 2147483647, %v6396
    %vm6454 = vcmp.eq.f32.partialorder %v6453, 8.507059e+37
    %v6455 = vand.u32 %v6396, 2147483648
    %v6456 = vor.u32 1.1754944e-38, %v6455
    %v6457 = vsel %vm6454, %v6456, %v6452
    %v6458 = vmul.f32 1.0, %v6457
    %v6459 = vrcp.pop %v6397
    %v6460 = vmul.f32 %v6397, %v6459
    %v6461 = vsub.f32 1.0, %v6460
    %v6462 = vmul.f32 %v6459, %v6461
    %v6463 = vadd.f32 %v6459, %v6462
    %vm6464 = vweird.f32 %v6397
    %vm6465 = vweird.f32 %v6459
    %vm6466 = vmor %vm6464, %vm6465
    %v6467 = vsel %vm6466, %v6459, %v6463
    %v6468 = vand.u32 2147483647, %v6397
    %vm6469 = vcmp.eq.f32.partialorder %v6468, 8.507059e+37
    %v6470 = vand.u32 %v6397, 2147483648
    %v6471 = vor.u32 1.1754944e-38, %v6470
    %v6472 = vsel %vm6469, %v6471, %v6467
    %v6473 = vmul.f32 1.0, %v6472
    %v6474 = vrcp.pop %v6398
    %v6475 = vmul.f32 %v6398, %v6474
    %v6476 = vsub.f32 1.0, %v6475
    %v6477 = vmul.f32 %v6474, %v6476
    %v6478 = vadd.f32 %v6474, %v6477
    %vm6479 = vweird.f32 %v6398
    %vm6480 = vweird.f32 %v6474
    %vm6481 = vmor %vm6479, %vm6480
    %v6482 = vsel %vm6481, %v6474, %v6478
    %v6483 = vand.u32 2147483647, %v6398
    %vm6484 = vcmp.eq.f32.partialorder %v6483, 8.507059e+37
    %v6485 = vand.u32 %v6398, 2147483648
    %v6486 = vor.u32 1.1754944e-38, %v6485
    %v6487 = vsel %vm6484, %v6486, %v6482
    %v6488 = vmul.f32 1.0, %v6487
    %v6489 = vtanh.pop %v6243
    %v6490 = vtanh.pop %v6247
    %v6491 = vmul.f32 %v6428, %v5691
    %v6492 = vmul.f32 %v6473, %v5692
    %v6493 = vmul.f32 %v6413, %v6489
    %v6494 = vmul.f32 %v6458, %v6490
    %v6495 = vadd.f32 %v6491, %v6493
    %v6496 = vadd.f32 %v6492, %v6494
    %v6497 = vtanh.pop %v6495
    %v6498 = vtanh.pop %v6496
    %v6499 = vmul.f32 %v6443, %v6497
    %v6500 = vmul.f32 %v6488, %v6498
    %v6501 = vpack.c.bf16 %v6373, %v6373
    %v6502 = vpack.c.bf16 %v6374, %v6374
    %6503 = vst [vmem:[%s2470] sm:$0xf] %v6501
    %6504 = vst [vmem:[%s2470 + $0x8] sm:$0xf] %v6502
    %v6505 = vpack.c.bf16 %v6499, %v6499
    %v6506 = vpack.c.bf16 %v6500, %v6500
    %6507 = vst [vmem:[%s2463 + $0x4] sm:$0xf] %v6505
    %6508 = vst [vmem:[%s2463 + $0xc] sm:$0xf] %v6506
    %s6509 = smul.addr %s1128, 8
    %s6510 = scalar_lea.vmem [#allocation2], %s6509
    %v6511 = vld [vmem:[%s6510] sm:$0xff]
    %v6512 = vld [vmem:[%s6510 + $0x8] sm:$0xff]
    %v6513 = vld [vmem:[%s6510 + $0x10] sm:$0xff]
    %v6514 = vld [vmem:[%s6510 + $0x18] sm:$0xff]
    %v6515 = vld [vmem:[%s6510 + $0x20] sm:$0xff]
    %v6516 = vld [vmem:[%s6510 + $0x28] sm:$0xff]
    %v6517 = vld [vmem:[%s6510 + $0x30] sm:$0xff]
    %v6518 = vld [vmem:[%s6510 + $0x38] sm:$0xff]
    %v6519 = vld [vmem:[#allocation5] sm:$0xff]
    %v6520 = vld [vmem:[#allocation5 + $0x8] sm:$0xff]
    %v6521 = vld [vmem:[#allocation5 + $0x10] sm:$0xff]
    %v6522 = vld [vmem:[#allocation5 + $0x18] sm:$0xff]
    %v6523 = vld [vmem:[#allocation5 + $0x20] sm:$0xff]
    %v6524 = vld [vmem:[#allocation5 + $0x28] sm:$0xff]
    %v6525 = vld [vmem:[#allocation5 + $0x30] sm:$0xff]
    %v6526 = vld [vmem:[#allocation5 + $0x38] sm:$0xff]
    %v6527 = vld [vmem:[#allocation5 + $0x40] sm:$0xff]
    %v6528 = vld [vmem:[#allocation5 + $0x48] sm:$0xff]
    %v6529 = vld [vmem:[#allocation5 + $0x50] sm:$0xff]
    %v6530 = vld [vmem:[#allocation5 + $0x58] sm:$0xff]
    %v6531 = vld [vmem:[#allocation5 + $0x60] sm:$0xff]
    %v6532 = vld [vmem:[#allocation5 + $0x68] sm:$0xff]
    %v6533 = vld [vmem:[#allocation5 + $0x70] sm:$0xff]
    %v6534 = vld [vmem:[#allocation5 + $0x78] sm:$0xff]
    %v6535 = vld [vmem:[#allocation5 + $0x80] sm:$0xff]
    %v6536 = vld [vmem:[#allocation5 + $0x88] sm:$0xff]
    %v6537 = vld [vmem:[#allocation5 + $0x90] sm:$0xff]
    %v6538 = vld [vmem:[#allocation5 + $0x98] sm:$0xff]
    %v6539 = vld [vmem:[#allocation5 + $0xa0] sm:$0xff]
    %v6540 = vld [vmem:[#allocation5 + $0xa8] sm:$0xff]
    %v6541 = vld [vmem:[#allocation5 + $0xb0] sm:$0xff]
    %v6542 = vld [vmem:[#allocation5 + $0xb8] sm:$0xff]
    %v6543 = vld [vmem:[#allocation5 + $0xc0] sm:$0xff]
    %v6544 = vld [vmem:[#allocation5 + $0xc8] sm:$0xff]
    %v6545 = vld [vmem:[#allocation5 + $0xd0] sm:$0xff]
    %v6546 = vld [vmem:[#allocation5 + $0xd8] sm:$0xff]
    %v6547 = vld [vmem:[#allocation5 + $0xe0] sm:$0xff]
    %v6548 = vld [vmem:[#allocation5 + $0xe8] sm:$0xff]
    %v6549 = vld [vmem:[#allocation5 + $0xf0] sm:$0xff]
    %v6550 = vld [vmem:[#allocation5 + $0xf8] sm:$0xff]
    %v6553 = vunpack.c.l.b16 %v6501
    %v6554 = vunpack.c.l.b16 %v6502
    %v6555 = vpack.c.b16 %v6554, %v6553
    %v6589 = vunpack.c.l.b16 %v6519
    %v6590 = vunpack.c.h.b16 %v6519
    %v6591 = vunpack.c.l.b16 %v6520
    %v6592 = vunpack.c.h.b16 %v6520
    %v6593 = vunpack.c.l.b16 %v6521
    %v6594 = vunpack.c.h.b16 %v6521
    %v6595 = vunpack.c.l.b16 %v6522
    %v6596 = vunpack.c.h.b16 %v6522
    %v6597 = vunpack.c.l.b16 %v6523
    %v6598 = vunpack.c.h.b16 %v6523
    %v6599 = vunpack.c.l.b16 %v6524
    %v6600 = vunpack.c.h.b16 %v6524
    %v6601 = vunpack.c.l.b16 %v6525
    %v6602 = vunpack.c.h.b16 %v6525
    %v6603 = vunpack.c.l.b16 %v6526
    %v6604 = vunpack.c.h.b16 %v6526
    %v6605 = vunpack.c.l.b16 %v6527
    %v6606 = vunpack.c.h.b16 %v6527
    %v6607 = vunpack.c.l.b16 %v6528
    %v6608 = vunpack.c.h.b16 %v6528
    %v6609 = vunpack.c.l.b16 %v6529
    %v6610 = vunpack.c.h.b16 %v6529
    %v6611 = vunpack.c.l.b16 %v6530
    %v6612 = vunpack.c.h.b16 %v6530
    %v6613 = vunpack.c.l.b16 %v6531
    %v6614 = vunpack.c.h.b16 %v6531
    %v6615 = vunpack.c.l.b16 %v6532
    %v6616 = vunpack.c.h.b16 %v6532
    %v6617 = vunpack.c.l.b16 %v6533
    %v6618 = vunpack.c.h.b16 %v6533
    %v6619 = vunpack.c.l.b16 %v6534
    %v6620 = vunpack.c.h.b16 %v6534
    %v6621 = vunpack.c.l.b16 %v6535
    %v6622 = vunpack.c.h.b16 %v6535
    %v6623 = vunpack.c.l.b16 %v6536
    %v6624 = vunpack.c.h.b16 %v6536
    %v6625 = vunpack.c.l.b16 %v6537
    %v6626 = vunpack.c.h.b16 %v6537
    %v6627 = vunpack.c.l.b16 %v6538
    %v6628 = vunpack.c.h.b16 %v6538
    %v6629 = vunpack.c.l.b16 %v6539
    %v6630 = vunpack.c.h.b16 %v6539
    %v6631 = vunpack.c.l.b16 %v6540
    %v6632 = vunpack.c.h.b16 %v6540
    %v6633 = vunpack.c.l.b16 %v6541
    %v6634 = vunpack.c.h.b16 %v6541
    %v6635 = vunpack.c.l.b16 %v6542
    %v6636 = vunpack.c.h.b16 %v6542
    %v6637 = vunpack.c.l.b16 %v6543
    %v6638 = vunpack.c.h.b16 %v6543
    %v6639 = vunpack.c.l.b16 %v6544
    %v6640 = vunpack.c.h.b16 %v6544
    %v6641 = vunpack.c.l.b16 %v6545
    %v6642 = vunpack.c.h.b16 %v6545
    %v6643 = vunpack.c.l.b16 %v6546
    %v6644 = vunpack.c.h.b16 %v6546
    %v6645 = vunpack.c.l.b16 %v6547
    %v6646 = vunpack.c.h.b16 %v6547
    %v6647 = vunpack.c.l.b16 %v6548
    %v6648 = vunpack.c.h.b16 %v6548
    %v6649 = vunpack.c.l.b16 %v6549
    %v6650 = vunpack.c.h.b16 %v6549
    %v6651 = vunpack.c.l.b16 %v6550
    %v6652 = vunpack.c.h.b16 %v6550
    %v6653 = vpack.c.b16 %v6593, %v6589
    %v6654 = vpack.c.b16 %v6594, %v6590
    %v6655 = vpack.c.b16 %v6595, %v6591
    %v6656 = vpack.c.b16 %v6596, %v6592
    %v6657 = vpack.c.b16 %v6601, %v6597
    %v6658 = vpack.c.b16 %v6602, %v6598
    %v6659 = vpack.c.b16 %v6603, %v6599
    %v6660 = vpack.c.b16 %v6604, %v6600
    %v6661 = vpack.c.b16 %v6609, %v6605
    %v6662 = vpack.c.b16 %v6610, %v6606
    %v6663 = vpack.c.b16 %v6611, %v6607
    %v6664 = vpack.c.b16 %v6612, %v6608
    %v6665 = vpack.c.b16 %v6617, %v6613
    %v6666 = vpack.c.b16 %v6618, %v6614
    %v6667 = vpack.c.b16 %v6619, %v6615
    %v6668 = vpack.c.b16 %v6620, %v6616
    %v6669 = vpack.c.b16 %v6625, %v6621
    %v6670 = vpack.c.b16 %v6626, %v6622
    %v6671 = vpack.c.b16 %v6627, %v6623
    %v6672 = vpack.c.b16 %v6628, %v6624
    %v6673 = vpack.c.b16 %v6633, %v6629
    %v6674 = vpack.c.b16 %v6634, %v6630
    %v6675 = vpack.c.b16 %v6635, %v6631
    %v6676 = vpack.c.b16 %v6636, %v6632
    %v6677 = vpack.c.b16 %v6641, %v6637
    %v6678 = vpack.c.b16 %v6642, %v6638
    %v6679 = vpack.c.b16 %v6643, %v6639
    %v6680 = vpack.c.b16 %v6644, %v6640
    %v6681 = vpack.c.b16 %v6649, %v6645
    %v6682 = vpack.c.b16 %v6650, %v6646
    %v6683 = vpack.c.b16 %v6651, %v6647
    %v6684 = vpack.c.b16 %v6652, %v6648
    %6717 = vmatpush.bf16.msra.mxu0 %v6681
    %6718 = vmatpush.bf16.msra.mxu0 %v6677
    %6719 = vmatpush.bf16.msra.mxu0 %v6673
    %6720 = vmatpush.bf16.msra.mxu0 %v6669
    %6721 = vmatpush.bf16.msra.mxu0 %v6665
    %6722 = vmatpush.bf16.msra.mxu0 %v6661
    %6723 = vmatpush.bf16.msra.mxu0 %v6657
    %6724 = vmatpush.bf16.msra.mxu0 %v6653
    %6725 = vmatmul.bf16.gmra.mxu0 %v6555
    %v6726 = vpop.f32.mrf.mxu0
    %v6727 = vadd.f32 0.0, %v6726
    %v6728 = vpop.f32.mrf.mxu0
    %v6729 = vadd.f32 0.0, %v6728
    %6730 = vdwg.mxu0
    %6731 = vmatpush.bf16.msra.mxu0 %v6682
    %6732 = vmatpush.bf16.msra.mxu0 %v6678
    %6733 = vmatpush.bf16.msra.mxu0 %v6674
    %6734 = vmatpush.bf16.msra.mxu0 %v6670
    %6735 = vmatpush.bf16.msra.mxu0 %v6666
    %6736 = vmatpush.bf16.msra.mxu0 %v6662
    %6737 = vmatpush.bf16.msra.mxu0 %v6658
    %6738 = vmatpush.bf16.msra.mxu0 %v6654
    %6739 = vmatmul.bf16.gmra.mxu0 %v6555
    %v6740 = vpop.f32.mrf.mxu0
    %v6741 = vadd.f32 0.0, %v6740
    %v6742 = vpop.f32.mrf.mxu0
    %v6743 = vadd.f32 0.0, %v6742
    %6744 = vdwg.mxu0
    %6745 = vmatpush.bf16.msra.mxu0 %v6683
    %6746 = vmatpush.bf16.msra.mxu0 %v6679
    %6747 = vmatpush.bf16.msra.mxu0 %v6675
    %6748 = vmatpush.bf16.msra.mxu0 %v6671
    %6749 = vmatpush.bf16.msra.mxu0 %v6667
    %6750 = vmatpush.bf16.msra.mxu0 %v6663
    %6751 = vmatpush.bf16.msra.mxu0 %v6659
    %6752 = vmatpush.bf16.msra.mxu0 %v6655
    %6753 = vmatmul.bf16.gmra.mxu0 %v6555
    %v6754 = vpop.f32.mrf.mxu0
    %v6755 = vadd.f32 0.0, %v6754
    %v6756 = vpop.f32.mrf.mxu0
    %v6757 = vadd.f32 0.0, %v6756
    %6758 = vdwg.mxu0
    %6759 = vmatpush.bf16.msra.mxu0 %v6684
    %6760 = vmatpush.bf16.msra.mxu0 %v6680
    %6761 = vmatpush.bf16.msra.mxu0 %v6676
    %6762 = vmatpush.bf16.msra.mxu0 %v6672
    %6763 = vmatpush.bf16.msra.mxu0 %v6668
    %6764 = vmatpush.bf16.msra.mxu0 %v6664
    %6765 = vmatpush.bf16.msra.mxu0 %v6660
    %6766 = vmatpush.bf16.msra.mxu0 %v6656
    %6767 = vmatmul.bf16.gmra.mxu0 %v6555
    %v6768 = vpop.f32.mrf.mxu0
    %v6769 = vadd.f32 0.0, %v6768
    %v6770 = vpop.f32.mrf.mxu0
    %v6771 = vadd.f32 0.0, %v6770
    %6772 = vdwg.mxu0
    %v6773 = vadd.f32 %v6511, %v6727
    %v6774 = vadd.f32 %v6512, %v6741
    %v6775 = vadd.f32 %v6513, %v6755
    %v6776 = vadd.f32 %v6514, %v6769
    %v6777 = vadd.f32 %v6515, %v6729
    %v6778 = vadd.f32 %v6516, %v6743
    %v6779 = vadd.f32 %v6517, %v6757
    %v6780 = vadd.f32 %v6518, %v6771
    %s6781 = smul.addr %s861, 8
    %s6782 = scalar_lea.vmem [#allocation3], %s6781
    %v6783 = vld [vmem:[%s6782] sm:$0xff]
    %v6784 = vld [vmem:[%s6782 + $0x8] sm:$0xff]
    %v6785 = vld [vmem:[%s6782 + $0x10] sm:$0xff]
    %v6786 = vld [vmem:[%s6782 + $0x18] sm:$0xff]
    %v6787 = vld [vmem:[%s6782 + $0x20] sm:$0xff]
    %v6788 = vld [vmem:[%s6782 + $0x28] sm:$0xff]
    %v6789 = vld [vmem:[%s6782 + $0x30] sm:$0xff]
    %v6790 = vld [vmem:[%s6782 + $0x38] sm:$0xff]
    %v6791 = vld [vmem:[#allocation8] sm:$0xff]
    %v6792 = vld [vmem:[#allocation8 + $0x8] sm:$0xff]
    %v6793 = vld [vmem:[#allocation8 + $0x10] sm:$0xff]
    %v6794 = vld [vmem:[#allocation8 + $0x18] sm:$0xff]
    %v6795 = vld [vmem:[#allocation8 + $0x20] sm:$0xff]
    %v6796 = vld [vmem:[#allocation8 + $0x28] sm:$0xff]
    %v6797 = vld [vmem:[#allocation8 + $0x30] sm:$0xff]
    %v6798 = vld [vmem:[#allocation8 + $0x38] sm:$0xff]
    %v6799 = vld [vmem:[#allocation8 + $0x40] sm:$0xff]
    %v6800 = vld [vmem:[#allocation8 + $0x48] sm:$0xff]
    %v6801 = vld [vmem:[#allocation8 + $0x50] sm:$0xff]
    %v6802 = vld [vmem:[#allocation8 + $0x58] sm:$0xff]
    %v6803 = vld [vmem:[#allocation8 + $0x60] sm:$0xff]
    %v6804 = vld [vmem:[#allocation8 + $0x68] sm:$0xff]
    %v6805 = vld [vmem:[#allocation8 + $0x70] sm:$0xff]
    %v6806 = vld [vmem:[#allocation8 + $0x78] sm:$0xff]
    %v6807 = vld [vmem:[#allocation8 + $0x80] sm:$0xff]
    %v6808 = vld [vmem:[#allocation8 + $0x88] sm:$0xff]
    %v6809 = vld [vmem:[#allocation8 + $0x90] sm:$0xff]
    %v6810 = vld [vmem:[#allocation8 + $0x98] sm:$0xff]
    %v6811 = vld [vmem:[#allocation8 + $0xa0] sm:$0xff]
    %v6812 = vld [vmem:[#allocation8 + $0xa8] sm:$0xff]
    %v6813 = vld [vmem:[#allocation8 + $0xb0] sm:$0xff]
    %v6814 = vld [vmem:[#allocation8 + $0xb8] sm:$0xff]
    %v6815 = vld [vmem:[#allocation8 + $0xc0] sm:$0xff]
    %v6816 = vld [vmem:[#allocation8 + $0xc8] sm:$0xff]
    %v6817 = vld [vmem:[#allocation8 + $0xd0] sm:$0xff]
    %v6818 = vld [vmem:[#allocation8 + $0xd8] sm:$0xff]
    %v6819 = vld [vmem:[#allocation8 + $0xe0] sm:$0xff]
    %v6820 = vld [vmem:[#allocation8 + $0xe8] sm:$0xff]
    %v6821 = vld [vmem:[#allocation8 + $0xf0] sm:$0xff]
    %v6822 = vld [vmem:[#allocation8 + $0xf8] sm:$0xff]
    %v6825 = vunpack.c.l.b16 %v6505
    %v6826 = vunpack.c.l.b16 %v6506
    %v6827 = vpack.c.b16 %v6826, %v6825
    %v6861 = vunpack.c.l.b16 %v6791
    %v6862 = vunpack.c.h.b16 %v6791
    %v6863 = vunpack.c.l.b16 %v6792
    %v6864 = vunpack.c.h.b16 %v6792
    %v6865 = vunpack.c.l.b16 %v6793
    %v6866 = vunpack.c.h.b16 %v6793
    %v6867 = vunpack.c.l.b16 %v6794
    %v6868 = vunpack.c.h.b16 %v6794
    %v6869 = vunpack.c.l.b16 %v6795
    %v6870 = vunpack.c.h.b16 %v6795
    %v6871 = vunpack.c.l.b16 %v6796
    %v6872 = vunpack.c.h.b16 %v6796
    %v6873 = vunpack.c.l.b16 %v6797
    %v6874 = vunpack.c.h.b16 %v6797
    %v6875 = vunpack.c.l.b16 %v6798
    %v6876 = vunpack.c.h.b16 %v6798
    %v6877 = vunpack.c.l.b16 %v6799
    %v6878 = vunpack.c.h.b16 %v6799
    %v6879 = vunpack.c.l.b16 %v6800
    %v6880 = vunpack.c.h.b16 %v6800
    %v6881 = vunpack.c.l.b16 %v6801
    %v6882 = vunpack.c.h.b16 %v6801
    %v6883 = vunpack.c.l.b16 %v6802
    %v6884 = vunpack.c.h.b16 %v6802
    %v6885 = vunpack.c.l.b16 %v6803
    %v6886 = vunpack.c.h.b16 %v6803
    %v6887 = vunpack.c.l.b16 %v6804
    %v6888 = vunpack.c.h.b16 %v6804
    %v6889 = vunpack.c.l.b16 %v6805
    %v6890 = vunpack.c.h.b16 %v6805
    %v6891 = vunpack.c.l.b16 %v6806
    %v6892 = vunpack.c.h.b16 %v6806
    %v6893 = vunpack.c.l.b16 %v6807
    %v6894 = vunpack.c.h.b16 %v6807
    %v6895 = vunpack.c.l.b16 %v6808
    %v6896 = vunpack.c.h.b16 %v6808
    %v6897 = vunpack.c.l.b16 %v6809
    %v6898 = vunpack.c.h.b16 %v6809
    %v6899 = vunpack.c.l.b16 %v6810
    %v6900 = vunpack.c.h.b16 %v6810
    %v6901 = vunpack.c.l.b16 %v6811
    %v6902 = vunpack.c.h.b16 %v6811
    %v6903 = vunpack.c.l.b16 %v6812
    %v6904 = vunpack.c.h.b16 %v6812
    %v6905 = vunpack.c.l.b16 %v6813
    %v6906 = vunpack.c.h.b16 %v6813
    %v6907 = vunpack.c.l.b16 %v6814
    %v6908 = vunpack.c.h.b16 %v6814
    %v6909 = vunpack.c.l.b16 %v6815
    %v6910 = vunpack.c.h.b16 %v6815
    %v6911 = vunpack.c.l.b16 %v6816
    %v6912 = vunpack.c.h.b16 %v6816
    %v6913 = vunpack.c.l.b16 %v6817
    %v6914 = vunpack.c.h.b16 %v6817
    %v6915 = vunpack.c.l.b16 %v6818
    %v6916 = vunpack.c.h.b16 %v6818
    %v6917 = vunpack.c.l.b16 %v6819
    %v6918 = vunpack.c.h.b16 %v6819
    %v6919 = vunpack.c.l.b16 %v6820
    %v6920 = vunpack.c.h.b16 %v6820
    %v6921 = vunpack.c.l.b16 %v6821
    %v6922 = vunpack.c.h.b16 %v6821
    %v6923 = vunpack.c.l.b16 %v6822
    %v6924 = vunpack.c.h.b16 %v6822
    %v6925 = vpack.c.b16 %v6865, %v6861
    %v6926 = vpack.c.b16 %v6866, %v6862
    %v6927 = vpack.c.b16 %v6867, %v6863
    %v6928 = vpack.c.b16 %v6868, %v6864
    %v6929 = vpack.c.b16 %v6873, %v6869
    %v6930 = vpack.c.b16 %v6874, %v6870
    %v6931 = vpack.c.b16 %v6875, %v6871
    %v6932 = vpack.c.b16 %v6876, %v6872
    %v6933 = vpack.c.b16 %v6881, %v6877
    %v6934 = vpack.c.b16 %v6882, %v6878
    %v6935 = vpack.c.b16 %v6883, %v6879
    %v6936 = vpack.c.b16 %v6884, %v6880
    %v6937 = vpack.c.b16 %v6889, %v6885
    %v6938 = vpack.c.b16 %v6890, %v6886
    %v6939 = vpack.c.b16 %v6891, %v6887
    %v6940 = vpack.c.b16 %v6892, %v6888
    %v6941 = vpack.c.b16 %v6897, %v6893
    %v6942 = vpack.c.b16 %v6898, %v6894
    %v6943 = vpack.c.b16 %v6899, %v6895
    %v6944 = vpack.c.b16 %v6900, %v6896
    %v6945 = vpack.c.b16 %v6905, %v6901
    %v6946 = vpack.c.b16 %v6906, %v6902
    %v6947 = vpack.c.b16 %v6907, %v6903
    %v6948 = vpack.c.b16 %v6908, %v6904
    %v6949 = vpack.c.b16 %v6913, %v6909
    %v6950 = vpack.c.b16 %v6914, %v6910
    %v6951 = vpack.c.b16 %v6915, %v6911
    %v6952 = vpack.c.b16 %v6916, %v6912
    %v6953 = vpack.c.b16 %v6921, %v6917
    %v6954 = vpack.c.b16 %v6922, %v6918
    %v6955 = vpack.c.b16 %v6923, %v6919
    %v6956 = vpack.c.b16 %v6924, %v6920
    %6989 = vmatpush.bf16.msra.mxu0 %v6953
    %6990 = vmatpush.bf16.msra.mxu0 %v6949
    %6991 = vmatpush.bf16.msra.mxu0 %v6945
    %6992 = vmatpush.bf16.msra.mxu0 %v6941
    %6993 = vmatpush.bf16.msra.mxu0 %v6937
    %6994 = vmatpush.bf16.msra.mxu0 %v6933
    %6995 = vmatpush.bf16.msra.mxu0 %v6929
    %6996 = vmatpush.bf16.msra.mxu0 %v6925
    %6997 = vmatmul.bf16.gmra.mxu0 %v6827
    %v6998 = vpop.f32.mrf.mxu0
    %v6999 = vadd.f32 0.0, %v6998
    %v7000 = vpop.f32.mrf.mxu0
    %v7001 = vadd.f32 0.0, %v7000
    %7002 = vdwg.mxu0
    %7003 = vmatpush.bf16.msra.mxu0 %v6954
    %7004 = vmatpush.bf16.msra.mxu0 %v6950
    %7005 = vmatpush.bf16.msra.mxu0 %v6946
    %7006 = vmatpush.bf16.msra.mxu0 %v6942
    %7007 = vmatpush.bf16.msra.mxu0 %v6938
    %7008 = vmatpush.bf16.msra.mxu0 %v6934
    %7009 = vmatpush.bf16.msra.mxu0 %v6930
    %7010 = vmatpush.bf16.msra.mxu0 %v6926
    %7011 = vmatmul.bf16.gmra.mxu0 %v6827
    %v7012 = vpop.f32.mrf.mxu0
    %v7013 = vadd.f32 0.0, %v7012
    %v7014 = vpop.f32.mrf.mxu0
    %v7015 = vadd.f32 0.0, %v7014
    %7016 = vdwg.mxu0
    %7017 = vmatpush.bf16.msra.mxu0 %v6955
    %7018 = vmatpush.bf16.msra.mxu0 %v6951
    %7019 = vmatpush.bf16.msra.mxu0 %v6947
    %7020 = vmatpush.bf16.msra.mxu0 %v6943
    %7021 = vmatpush.bf16.msra.mxu0 %v6939
    %7022 = vmatpush.bf16.msra.mxu0 %v6935
    %7023 = vmatpush.bf16.msra.mxu0 %v6931
    %7024 = vmatpush.bf16.msra.mxu0 %v6927
    %7025 = vmatmul.bf16.gmra.mxu0 %v6827
    %v7026 = vpop.f32.mrf.mxu0
    %v7027 = vadd.f32 0.0, %v7026
    %v7028 = vpop.f32.mrf.mxu0
    %v7029 = vadd.f32 0.0, %v7028
    %7030 = vdwg.mxu0
    %7031 = vmatpush.bf16.msra.mxu0 %v6956
    %7032 = vmatpush.bf16.msra.mxu0 %v6952
    %7033 = vmatpush.bf16.msra.mxu0 %v6948
    %7034 = vmatpush.bf16.msra.mxu0 %v6944
    %7035 = vmatpush.bf16.msra.mxu0 %v6940
    %7036 = vmatpush.bf16.msra.mxu0 %v6936
    %7037 = vmatpush.bf16.msra.mxu0 %v6932
    %7038 = vmatpush.bf16.msra.mxu0 %v6928
    %7039 = vmatmul.bf16.gmra.mxu0 %v6827
    %v7040 = vpop.f32.mrf.mxu0
    %v7041 = vadd.f32 0.0, %v7040
    %v7042 = vpop.f32.mrf.mxu0
    %v7043 = vadd.f32 0.0, %v7042
    %7044 = vdwg.mxu0
    %v7045 = vadd.f32 %v6783, %v6999
    %v7046 = vadd.f32 %v6784, %v7013
    %v7047 = vadd.f32 %v6785, %v7027
    %v7048 = vadd.f32 %v6786, %v7041
    %v7049 = vadd.f32 %v6787, %v7001
    %v7050 = vadd.f32 %v6788, %v7015
    %v7051 = vadd.f32 %v6789, %v7029
    %v7052 = vadd.f32 %v6790, %v7043
    %v7053 = vxor.u32 %v6773, 2147483648
    %v7054 = vxor.u32 %v6774, 2147483648
    %v7055 = vxor.u32 %v6776, 2147483648
    %v7056 = vxor.u32 %v6777, 2147483648
    %v7057 = vxor.u32 %v6778, 2147483648
    %v7058 = vxor.u32 %v6780, 2147483648
    %v7059 = vmul.f32 %v7053, 1.442695
    %v7060 = vpow.pop %v7059
    %v7061 = vmul.f32 %v7054, 1.442695
    %v7062 = vpow.pop %v7061
    %v7063 = vmul.f32 %v7055, 1.442695
    %v7064 = vpow.pop %v7063
    %v7065 = vmul.f32 %v7056, 1.442695
    %v7066 = vpow.pop %v7065
    %v7067 = vmul.f32 %v7057, 1.442695
    %v7068 = vpow.pop %v7067
    %v7069 = vmul.f32 %v7058, 1.442695
    %v7070 = vpow.pop %v7069
    %v7071 = vadd.f32 %v7060, 1.0
    %v7072 = vadd.f32 %v7062, 1.0
    %v7073 = vadd.f32 %v7064, 1.0
    %v7074 = vadd.f32 %v7066, 1.0
    %v7075 = vadd.f32 %v7068, 1.0
    %v7076 = vadd.f32 %v7070, 1.0
    %v7077 = vrcp.pop %v7071
    %v7078 = vmul.f32 %v7071, %v7077
    %v7079 = vsub.f32 1.0, %v7078
    %v7080 = vmul.f32 %v7077, %v7079
    %v7081 = vadd.f32 %v7077, %v7080
    %vm7082 = vweird.f32 %v7071
    %vm7083 = vweird.f32 %v7077
    %vm7084 = vmor %vm7082, %vm7083
    %v7085 = vsel %vm7084, %v7077, %v7081
    %v7086 = vand.u32 2147483647, %v7071
    %vm7087 = vcmp.eq.f32.partialorder %v7086, 8.507059e+37
    %v7088 = vand.u32 %v7071, 2147483648
    %v7089 = vor.u32 1.1754944e-38, %v7088
    %v7090 = vsel %vm7087, %v7089, %v7085
    %v7091 = vmul.f32 1.0, %v7090
    %v7092 = vrcp.pop %v7072
    %v7093 = vmul.f32 %v7072, %v7092
    %v7094 = vsub.f32 1.0, %v7093
    %v7095 = vmul.f32 %v7092, %v7094
    %v7096 = vadd.f32 %v7092, %v7095
    %vm7097 = vweird.f32 %v7072
    %vm7098 = vweird.f32 %v7092
    %vm7099 = vmor %vm7097, %vm7098
    %v7100 = vsel %vm7099, %v7092, %v7096
    %v7101 = vand.u32 2147483647, %v7072
    %vm7102 = vcmp.eq.f32.partialorder %v7101, 8.507059e+37
    %v7103 = vand.u32 %v7072, 2147483648
    %v7104 = vor.u32 1.1754944e-38, %v7103
    %v7105 = vsel %vm7102, %v7104, %v7100
    %v7106 = vmul.f32 1.0, %v7105
    %v7107 = vrcp.pop %v7073
    %v7108 = vmul.f32 %v7073, %v7107
    %v7109 = vsub.f32 1.0, %v7108
    %v7110 = vmul.f32 %v7107, %v7109
    %v7111 = vadd.f32 %v7107, %v7110
    %vm7112 = vweird.f32 %v7073
    %vm7113 = vweird.f32 %v7107
    %vm7114 = vmor %vm7112, %vm7113
    %v7115 = vsel %vm7114, %v7107, %v7111
    %v7116 = vand.u32 2147483647, %v7073
    %vm7117 = vcmp.eq.f32.partialorder %v7116, 8.507059e+37
    %v7118 = vand.u32 %v7073, 2147483648
    %v7119 = vor.u32 1.1754944e-38, %v7118
    %v7120 = vsel %vm7117, %v7119, %v7115
    %v7121 = vmul.f32 1.0, %v7120
    %v7122 = vrcp.pop %v7074
    %v7123 = vmul.f32 %v7074, %v7122
    %v7124 = vsub.f32 1.0, %v7123
    %v7125 = vmul.f32 %v7122, %v7124
    %v7126 = vadd.f32 %v7122, %v7125
    %vm7127 = vweird.f32 %v7074
    %vm7128 = vweird.f32 %v7122
    %vm7129 = vmor %vm7127, %vm7128
    %v7130 = vsel %vm7129, %v7122, %v7126
    %v7131 = vand.u32 2147483647, %v7074
    %vm7132 = vcmp.eq.f32.partialorder %v7131, 8.507059e+37
    %v7133 = vand.u32 %v7074, 2147483648
    %v7134 = vor.u32 1.1754944e-38, %v7133
    %v7135 = vsel %vm7132, %v7134, %v7130
    %v7136 = vmul.f32 1.0, %v7135
    %v7137 = vrcp.pop %v7075
    %v7138 = vmul.f32 %v7075, %v7137
    %v7139 = vsub.f32 1.0, %v7138
    %v7140 = vmul.f32 %v7137, %v7139
    %v7141 = vadd.f32 %v7137, %v7140
    %vm7142 = vweird.f32 %v7075
    %vm7143 = vweird.f32 %v7137
    %vm7144 = vmor %vm7142, %vm7143
    %v7145 = vsel %vm7144, %v7137, %v7141
    %v7146 = vand.u32 2147483647, %v7075
    %vm7147 = vcmp.eq.f32.partialorder %v7146, 8.507059e+37
    %v7148 = vand.u32 %v7075, 2147483648
    %v7149 = vor.u32 1.1754944e-38, %v7148
    %v7150 = vsel %vm7147, %v7149, %v7145
    %v7151 = vmul.f32 1.0, %v7150
    %v7152 = vrcp.pop %v7076
    %v7153 = vmul.f32 %v7076, %v7152
    %v7154 = vsub.f32 1.0, %v7153
    %v7155 = vmul.f32 %v7152, %v7154
    %v7156 = vadd.f32 %v7152, %v7155
    %vm7157 = vweird.f32 %v7076
    %vm7158 = vweird.f32 %v7152
    %vm7159 = vmor %vm7157, %vm7158
    %v7160 = vsel %vm7159, %v7152, %v7156
    %v7161 = vand.u32 2147483647, %v7076
    %vm7162 = vcmp.eq.f32.partialorder %v7161, 8.507059e+37
    %v7163 = vand.u32 %v7076, 2147483648
    %v7164 = vor.u32 1.1754944e-38, %v7163
    %v7165 = vsel %vm7162, %v7164, %v7160
    %v7166 = vmul.f32 1.0, %v7165
    %v7167 = vtanh.pop %v6775
    %v7168 = vtanh.pop %v6779
    %v7169 = vmul.f32 %v7106, %v6369
    %v7170 = vmul.f32 %v7151, %v6370
    %v7171 = vmul.f32 %v7091, %v7167
    %v7172 = vmul.f32 %v7136, %v7168
    %v7173 = vadd.f32 %v7169, %v7171
    %v7174 = vadd.f32 %v7170, %v7172
    %v7175 = vtanh.pop %v7173
    %v7176 = vtanh.pop %v7174
    %v7177 = vmul.f32 %v7121, %v7175
    %v7178 = vmul.f32 %v7166, %v7176
    %v7179 = vxor.u32 %v7045, 2147483648
    %v7180 = vxor.u32 %v7046, 2147483648
    %v7181 = vxor.u32 %v7048, 2147483648
    %v7182 = vxor.u32 %v7049, 2147483648
    %v7183 = vxor.u32 %v7050, 2147483648
    %v7184 = vxor.u32 %v7052, 2147483648
    %v7185 = vmul.f32 %v7179, 1.442695
    %v7186 = vpow.pop %v7185
    %v7187 = vmul.f32 %v7180, 1.442695
    %v7188 = vpow.pop %v7187
    %v7189 = vmul.f32 %v7181, 1.442695
    %v7190 = vpow.pop %v7189
    %v7191 = vmul.f32 %v7182, 1.442695
    %v7192 = vpow.pop %v7191
    %v7193 = vmul.f32 %v7183, 1.442695
    %v7194 = vpow.pop %v7193
    %v7195 = vmul.f32 %v7184, 1.442695
    %v7196 = vpow.pop %v7195
    %v7197 = vadd.f32 %v7186, 1.0
    %v7198 = vadd.f32 %v7188, 1.0
    %v7199 = vadd.f32 %v7190, 1.0
    %v7200 = vadd.f32 %v7192, 1.0
    %v7201 = vadd.f32 %v7194, 1.0
    %v7202 = vadd.f32 %v7196, 1.0
    %v7203 = vrcp.pop %v7197
    %v7204 = vmul.f32 %v7197, %v7203
    %v7205 = vsub.f32 1.0, %v7204
    %v7206 = vmul.f32 %v7203, %v7205
    %v7207 = vadd.f32 %v7203, %v7206
    %vm7208 = vweird.f32 %v7197
    %vm7209 = vweird.f32 %v7203
    %vm7210 = vmor %vm7208, %vm7209
    %v7211 = vsel %vm7210, %v7203, %v7207
    %v7212 = vand.u32 2147483647, %v7197
    %vm7213 = vcmp.eq.f32.partialorder %v7212, 8.507059e+37
    %v7214 = vand.u32 %v7197, 2147483648
    %v7215 = vor.u32 1.1754944e-38, %v7214
    %v7216 = vsel %vm7213, %v7215, %v7211
    %v7217 = vmul.f32 1.0, %v7216
    %v7218 = vrcp.pop %v7198
    %v7219 = vmul.f32 %v7198, %v7218
    %v7220 = vsub.f32 1.0, %v7219
    %v7221 = vmul.f32 %v7218, %v7220
    %v7222 = vadd.f32 %v7218, %v7221
    %vm7223 = vweird.f32 %v7198
    %vm7224 = vweird.f32 %v7218
    %vm7225 = vmor %vm7223, %vm7224
    %v7226 = vsel %vm7225, %v7218, %v7222
    %v7227 = vand.u32 2147483647, %v7198
    %vm7228 = vcmp.eq.f32.partialorder %v7227, 8.507059e+37
    %v7229 = vand.u32 %v7198, 2147483648
    %v7230 = vor.u32 1.1754944e-38, %v7229
    %v7231 = vsel %vm7228, %v7230, %v7226
    %v7232 = vmul.f32 1.0, %v7231
    %v7233 = vrcp.pop %v7199
    %v7234 = vmul.f32 %v7199, %v7233
    %v7235 = vsub.f32 1.0, %v7234
    %v7236 = vmul.f32 %v7233, %v7235
    %v7237 = vadd.f32 %v7233, %v7236
    %vm7238 = vweird.f32 %v7199
    %vm7239 = vweird.f32 %v7233
    %vm7240 = vmor %vm7238, %vm7239
    %v7241 = vsel %vm7240, %v7233, %v7237
    %v7242 = vand.u32 2147483647, %v7199
    %vm7243 = vcmp.eq.f32.partialorder %v7242, 8.507059e+37
    %v7244 = vand.u32 %v7199, 2147483648
    %v7245 = vor.u32 1.1754944e-38, %v7244
    %v7246 = vsel %vm7243, %v7245, %v7241
    %v7247 = vmul.f32 1.0, %v7246
    %v7248 = vrcp.pop %v7200
    %v7249 = vmul.f32 %v7200, %v7248
    %v7250 = vsub.f32 1.0, %v7249
    %v7251 = vmul.f32 %v7248, %v7250
    %v7252 = vadd.f32 %v7248, %v7251
    %vm7253 = vweird.f32 %v7200
    %vm7254 = vweird.f32 %v7248
    %vm7255 = vmor %vm7253, %vm7254
    %v7256 = vsel %vm7255, %v7248, %v7252
    %v7257 = vand.u32 2147483647, %v7200
    %vm7258 = vcmp.eq.f32.partialorder %v7257, 8.507059e+37
    %v7259 = vand.u32 %v7200, 2147483648
    %v7260 = vor.u32 1.1754944e-38, %v7259
    %v7261 = vsel %vm7258, %v7260, %v7256
    %v7262 = vmul.f32 1.0, %v7261
    %v7263 = vrcp.pop %v7201
    %v7264 = vmul.f32 %v7201, %v7263
    %v7265 = vsub.f32 1.0, %v7264
    %v7266 = vmul.f32 %v7263, %v7265
    %v7267 = vadd.f32 %v7263, %v7266
    %vm7268 = vweird.f32 %v7201
    %vm7269 = vweird.f32 %v7263
    %vm7270 = vmor %vm7268, %vm7269
    %v7271 = vsel %vm7270, %v7263, %v7267
    %v7272 = vand.u32 2147483647, %v7201
    %vm7273 = vcmp.eq.f32.partialorder %v7272, 8.507059e+37
    %v7274 = vand.u32 %v7201, 2147483648
    %v7275 = vor.u32 1.1754944e-38, %v7274
    %v7276 = vsel %vm7273, %v7275, %v7271
    %v7277 = vmul.f32 1.0, %v7276
    %v7278 = vrcp.pop %v7202
    %v7279 = vmul.f32 %v7202, %v7278
    %v7280 = vsub.f32 1.0, %v7279
    %v7281 = vmul.f32 %v7278, %v7280
    %v7282 = vadd.f32 %v7278, %v7281
    %vm7283 = vweird.f32 %v7202
    %vm7284 = vweird.f32 %v7278
    %vm7285 = vmor %vm7283, %vm7284
    %v7286 = vsel %vm7285, %v7278, %v7282
    %v7287 = vand.u32 2147483647, %v7202
    %vm7288 = vcmp.eq.f32.partialorder %v7287, 8.507059e+37
    %v7289 = vand.u32 %v7202, 2147483648
    %v7290 = vor.u32 1.1754944e-38, %v7289
    %v7291 = vsel %vm7288, %v7290, %v7286
    %v7292 = vmul.f32 1.0, %v7291
    %v7293 = vtanh.pop %v7047
    %v7294 = vtanh.pop %v7051
    %v7295 = vmul.f32 %v7232, %v6495
    %v7296 = vmul.f32 %v7277, %v6496
    %v7297 = vmul.f32 %v7217, %v7293
    %v7298 = vmul.f32 %v7262, %v7294
    %v7299 = vadd.f32 %v7295, %v7297
    %v7300 = vadd.f32 %v7296, %v7298
    %v7301 = vtanh.pop %v7299
    %v7302 = vtanh.pop %v7300
    %v7303 = vmul.f32 %v7247, %v7301
    %v7304 = vmul.f32 %v7292, %v7302
    %v7305 = vpack.c.bf16 %v7177, %v7177
    %v7306 = vpack.c.bf16 %v7178, %v7178
    %7307 = vst [vmem:[%s1658] sm:$0xf] %v7305
    %7308 = vst [vmem:[%s1658 + $0x8] sm:$0xf] %v7306
    %v7309 = vpack.c.bf16 %v7303, %v7303
    %v7310 = vpack.c.bf16 %v7304, %v7304
    %7311 = vst [vmem:[%s1651 + $0x4] sm:$0xf] %v7309
    %7312 = vst [vmem:[%s1651 + $0xc] sm:$0xf] %v7310
    %v7313 = vld [vmem:[#allocation4] sm:$0xff]
    %v7314 = vld [vmem:[#allocation4 + $0x8] sm:$0xff]
    %v7315 = vld [vmem:[#allocation4 + $0x10] sm:$0xff]
    %v7316 = vld [vmem:[#allocation4 + $0x18] sm:$0xff]
    %v7317 = vld [vmem:[#allocation4 + $0x20] sm:$0xff]
    %v7318 = vld [vmem:[#allocation4 + $0x28] sm:$0xff]
    %v7319 = vld [vmem:[#allocation4 + $0x30] sm:$0xff]
    %v7320 = vld [vmem:[#allocation4 + $0x38] sm:$0xff]
    %v7321 = vld [vmem:[#allocation4 + $0x40] sm:$0xff]
    %v7322 = vld [vmem:[#allocation4 + $0x48] sm:$0xff]
    %v7323 = vld [vmem:[#allocation4 + $0x50] sm:$0xff]
    %v7324 = vld [vmem:[#allocation4 + $0x58] sm:$0xff]
    %v7325 = vld [vmem:[#allocation4 + $0x60] sm:$0xff]
    %v7326 = vld [vmem:[#allocation4 + $0x68] sm:$0xff]
    %v7327 = vld [vmem:[#allocation4 + $0x70] sm:$0xff]
    %v7328 = vld [vmem:[#allocation4 + $0x78] sm:$0xff]
    %v7329 = vld [vmem:[#allocation10] sm:$0xff]
    %v7330 = vld [vmem:[#allocation10 + $0x8] sm:$0xff]
    %v7331 = vld [vmem:[#allocation10 + $0x10] sm:$0xff]
    %v7332 = vld [vmem:[#allocation10 + $0x18] sm:$0xff]
    %v7333 = vld [vmem:[#allocation10 + $0x20] sm:$0xff]
    %v7334 = vld [vmem:[#allocation10 + $0x28] sm:$0xff]
    %v7335 = vld [vmem:[#allocation10 + $0x30] sm:$0xff]
    %v7336 = vld [vmem:[#allocation10 + $0x38] sm:$0xff]
    %v7337 = vld [vmem:[#allocation10 + $0x40] sm:$0xff]
    %v7338 = vld [vmem:[#allocation10 + $0x48] sm:$0xff]
    %v7339 = vld [vmem:[#allocation10 + $0x50] sm:$0xff]
    %v7340 = vld [vmem:[#allocation10 + $0x58] sm:$0xff]
    %v7341 = vld [vmem:[#allocation10 + $0x60] sm:$0xff]
    %v7342 = vld [vmem:[#allocation10 + $0x68] sm:$0xff]
    %v7343 = vld [vmem:[#allocation10 + $0x70] sm:$0xff]
    %v7344 = vld [vmem:[#allocation10 + $0x78] sm:$0xff]
    %v7345 = vld [vmem:[#allocation10 + $0x80] sm:$0xff]
    %v7346 = vld [vmem:[#allocation10 + $0x88] sm:$0xff]
    %v7347 = vld [vmem:[#allocation10 + $0x90] sm:$0xff]
    %v7348 = vld [vmem:[#allocation10 + $0x98] sm:$0xff]
    %v7349 = vld [vmem:[#allocation10 + $0xa0] sm:$0xff]
    %v7350 = vld [vmem:[#allocation10 + $0xa8] sm:$0xff]
    %v7351 = vld [vmem:[#allocation10 + $0xb0] sm:$0xff]
    %v7352 = vld [vmem:[#allocation10 + $0xb8] sm:$0xff]
    %v7353 = vld [vmem:[#allocation10 + $0xc0] sm:$0xff]
    %v7354 = vld [vmem:[#allocation10 + $0xc8] sm:$0xff]
    %v7355 = vld [vmem:[#allocation10 + $0xd0] sm:$0xff]
    %v7356 = vld [vmem:[#allocation10 + $0xd8] sm:$0xff]
    %v7357 = vld [vmem:[#allocation10 + $0xe0] sm:$0xff]
    %v7358 = vld [vmem:[#allocation10 + $0xe8] sm:$0xff]
    %v7359 = vld [vmem:[#allocation10 + $0xf0] sm:$0xff]
    %v7360 = vld [vmem:[#allocation10 + $0xf8] sm:$0xff]
    %v7361 = vld [vmem:[#allocation10 + $0x100] sm:$0xff]
    %v7362 = vld [vmem:[#allocation10 + $0x108] sm:$0xff]
    %v7363 = vld [vmem:[#allocation10 + $0x110] sm:$0xff]
    %v7364 = vld [vmem:[#allocation10 + $0x118] sm:$0xff]
    %v7365 = vld [vmem:[#allocation10 + $0x120] sm:$0xff]
    %v7366 = vld [vmem:[#allocation10 + $0x128] sm:$0xff]
    %v7367 = vld [vmem:[#allocation10 + $0x130] sm:$0xff]
    %v7368 = vld [vmem:[#allocation10 + $0x138] sm:$0xff]
    %v7369 = vld [vmem:[#allocation10 + $0x140] sm:$0xff]
    %v7370 = vld [vmem:[#allocation10 + $0x148] sm:$0xff]
    %v7371 = vld [vmem:[#allocation10 + $0x150] sm:$0xff]
    %v7372 = vld [vmem:[#allocation10 + $0x158] sm:$0xff]
    %v7373 = vld [vmem:[#allocation10 + $0x160] sm:$0xff]
    %v7374 = vld [vmem:[#allocation10 + $0x168] sm:$0xff]
    %v7375 = vld [vmem:[#allocation10 + $0x170] sm:$0xff]
    %v7376 = vld [vmem:[#allocation10 + $0x178] sm:$0xff]
    %v7377 = vld [vmem:[#allocation10 + $0x180] sm:$0xff]
    %v7378 = vld [vmem:[#allocation10 + $0x188] sm:$0xff]
    %v7379 = vld [vmem:[#allocation10 + $0x190] sm:$0xff]
    %v7380 = vld [vmem:[#allocation10 + $0x198] sm:$0xff]
    %v7381 = vld [vmem:[#allocation10 + $0x1a0] sm:$0xff]
    %v7382 = vld [vmem:[#allocation10 + $0x1a8] sm:$0xff]
    %v7383 = vld [vmem:[#allocation10 + $0x1b0] sm:$0xff]
    %v7384 = vld [vmem:[#allocation10 + $0x1b8] sm:$0xff]
    %v7385 = vld [vmem:[#allocation10 + $0x1c0] sm:$0xff]
    %v7386 = vld [vmem:[#allocation10 + $0x1c8] sm:$0xff]
    %v7387 = vld [vmem:[#allocation10 + $0x1d0] sm:$0xff]
    %v7388 = vld [vmem:[#allocation10 + $0x1d8] sm:$0xff]
    %v7389 = vld [vmem:[#allocation10 + $0x1e0] sm:$0xff]
    %v7390 = vld [vmem:[#allocation10 + $0x1e8] sm:$0xff]
    %v7391 = vld [vmem:[#allocation10 + $0x1f0] sm:$0xff]
    %v7392 = vld [vmem:[#allocation10 + $0x1f8] sm:$0xff]
    %v7393 = vld [vmem:[%s9] sm:$0xf]
    %v7395 = vperm.slane %v7393, 0
    %v7396 = vperm.slane %v7393, 1
    %v7397 = vperm.slane %v7393, 2
    %v7398 = vperm.slane %v7393, 3
    %v7419 = vunpack.c.l.b16 %v7313
    %v7420 = vunpack.c.h.b16 %v7313
    %v7421 = vunpack.c.l.b16 %v7314
    %v7422 = vunpack.c.h.b16 %v7314
    %v7423 = vunpack.c.l.b16 %v7315
    %v7424 = vunpack.c.h.b16 %v7315
    %v7425 = vunpack.c.l.b16 %v7316
    %v7426 = vunpack.c.h.b16 %v7316
    %v7427 = vunpack.c.l.b16 %v7317
    %v7428 = vunpack.c.h.b16 %v7317
    %v7429 = vunpack.c.l.b16 %v7318
    %v7430 = vunpack.c.h.b16 %v7318
    %v7431 = vunpack.c.l.b16 %v7319
    %v7432 = vunpack.c.h.b16 %v7319
    %v7433 = vunpack.c.l.b16 %v7320
    %v7434 = vunpack.c.h.b16 %v7320
    %v7435 = vunpack.c.l.b16 %v7321
    %v7436 = vunpack.c.h.b16 %v7321
    %v7437 = vunpack.c.l.b16 %v7322
    %v7438 = vunpack.c.h.b16 %v7322
    %v7439 = vunpack.c.l.b16 %v7323
    %v7440 = vunpack.c.h.b16 %v7323
    %v7441 = vunpack.c.l.b16 %v7324
    %v7442 = vunpack.c.h.b16 %v7324
    %v7443 = vunpack.c.l.b16 %v7325
    %v7444 = vunpack.c.h.b16 %v7325
    %v7445 = vunpack.c.l.b16 %v7326
    %v7446 = vunpack.c.h.b16 %v7326
    %v7447 = vunpack.c.l.b16 %v7327
    %v7448 = vunpack.c.h.b16 %v7327
    %v7449 = vunpack.c.l.b16 %v7328
    %v7450 = vunpack.c.h.b16 %v7328
    %v7451 = vpack.c.b16 %v7421, %v7419
    %v7452 = vpack.c.b16 %v7422, %v7420
    %v7453 = vpack.c.b16 %v7425, %v7423
    %v7454 = vpack.c.b16 %v7426, %v7424
    %v7455 = vpack.c.b16 %v7429, %v7427
    %v7456 = vpack.c.b16 %v7430, %v7428
    %v7457 = vpack.c.b16 %v7433, %v7431
    %v7458 = vpack.c.b16 %v7434, %v7432
    %v7459 = vpack.c.b16 %v7437, %v7435
    %v7460 = vpack.c.b16 %v7438, %v7436
    %v7461 = vpack.c.b16 %v7441, %v7439
    %v7462 = vpack.c.b16 %v7442, %v7440
    %v7463 = vpack.c.b16 %v7445, %v7443
    %v7464 = vpack.c.b16 %v7446, %v7444
    %v7465 = vpack.c.b16 %v7449, %v7447
    %v7466 = vpack.c.b16 %v7450, %v7448
    %v7547 = vunpack.c.l.b16 %v7329
    %v7548 = vunpack.c.h.b16 %v7329
    %v7549 = vunpack.c.l.b16 %v7330
    %v7550 = vunpack.c.h.b16 %v7330
    %v7551 = vunpack.c.l.b16 %v7331
    %v7552 = vunpack.c.h.b16 %v7331
    %v7553 = vunpack.c.l.b16 %v7332
    %v7554 = vunpack.c.h.b16 %v7332
    %v7555 = vunpack.c.l.b16 %v7333
    %v7556 = vunpack.c.h.b16 %v7333
    %v7557 = vunpack.c.l.b16 %v7334
    %v7558 = vunpack.c.h.b16 %v7334
    %v7559 = vunpack.c.l.b16 %v7335
    %v7560 = vunpack.c.h.b16 %v7335
    %v7561 = vunpack.c.l.b16 %v7336
    %v7562 = vunpack.c.h.b16 %v7336
    %v7563 = vunpack.c.l.b16 %v7337
    %v7564 = vunpack.c.h.b16 %v7337
    %v7565 = vunpack.c.l.b16 %v7338
    %v7566 = vunpack.c.h.b16 %v7338
    %v7567 = vunpack.c.l.b16 %v7339
    %v7568 = vunpack.c.h.b16 %v7339
    %v7569 = vunpack.c.l.b16 %v7340
    %v7570 = vunpack.c.h.b16 %v7340
    %v7571 = vunpack.c.l.b16 %v7341
    %v7572 = vunpack.c.h.b16 %v7341
    %v7573 = vunpack.c.l.b16 %v7342
    %v7574 = vunpack.c.h.b16 %v7342
    %v7575 = vunpack.c.l.b16 %v7343
    %v7576 = vunpack.c.h.b16 %v7343
    %v7577 = vunpack.c.l.b16 %v7344
    %v7578 = vunpack.c.h.b16 %v7344
    %v7579 = vunpack.c.l.b16 %v7345
    %v7580 = vunpack.c.h.b16 %v7345
    %v7581 = vunpack.c.l.b16 %v7346
    %v7582 = vunpack.c.h.b16 %v7346
    %v7583 = vunpack.c.l.b16 %v7347
    %v7584 = vunpack.c.h.b16 %v7347
    %v7585 = vunpack.c.l.b16 %v7348
    %v7586 = vunpack.c.h.b16 %v7348
    %v7587 = vunpack.c.l.b16 %v7349
    %v7588 = vunpack.c.h.b16 %v7349
    %v7589 = vunpack.c.l.b16 %v7350
    %v7590 = vunpack.c.h.b16 %v7350
    %v7591 = vunpack.c.l.b16 %v7351
    %v7592 = vunpack.c.h.b16 %v7351
    %v7593 = vunpack.c.l.b16 %v7352
    %v7594 = vunpack.c.h.b16 %v7352
    %v7595 = vunpack.c.l.b16 %v7353
    %v7596 = vunpack.c.h.b16 %v7353
    %v7597 = vunpack.c.l.b16 %v7354
    %v7598 = vunpack.c.h.b16 %v7354
    %v7599 = vunpack.c.l.b16 %v7355
    %v7600 = vunpack.c.h.b16 %v7355
    %v7601 = vunpack.c.l.b16 %v7356
    %v7602 = vunpack.c.h.b16 %v7356
    %v7603 = vunpack.c.l.b16 %v7357
    %v7604 = vunpack.c.h.b16 %v7357
    %v7605 = vunpack.c.l.b16 %v7358
    %v7606 = vunpack.c.h.b16 %v7358
    %v7607 = vunpack.c.l.b16 %v7359
    %v7608 = vunpack.c.h.b16 %v7359
    %v7609 = vunpack.c.l.b16 %v7360
    %v7610 = vunpack.c.h.b16 %v7360
    %v7611 = vunpack.c.l.b16 %v7361
    %v7612 = vunpack.c.h.b16 %v7361
    %v7613 = vunpack.c.l.b16 %v7362
    %v7614 = vunpack.c.h.b16 %v7362
    %v7615 = vunpack.c.l.b16 %v7363
    %v7616 = vunpack.c.h.b16 %v7363
    %v7617 = vunpack.c.l.b16 %v7364
    %v7618 = vunpack.c.h.b16 %v7364
    %v7619 = vunpack.c.l.b16 %v7365
    %v7620 = vunpack.c.h.b16 %v7365
    %v7621 = vunpack.c.l.b16 %v7366
    %v7622 = vunpack.c.h.b16 %v7366
    %v7623 = vunpack.c.l.b16 %v7367
    %v7624 = vunpack.c.h.b16 %v7367
    %v7625 = vunpack.c.l.b16 %v7368
    %v7626 = vunpack.c.h.b16 %v7368
    %v7627 = vunpack.c.l.b16 %v7369
    %v7628 = vunpack.c.h.b16 %v7369
    %v7629 = vunpack.c.l.b16 %v7370
    %v7630 = vunpack.c.h.b16 %v7370
    %v7631 = vunpack.c.l.b16 %v7371
    %v7632 = vunpack.c.h.b16 %v7371
    %v7633 = vunpack.c.l.b16 %v7372
    %v7634 = vunpack.c.h.b16 %v7372
    %v7635 = vunpack.c.l.b16 %v7373
    %v7636 = vunpack.c.h.b16 %v7373
    %v7637 = vunpack.c.l.b16 %v7374
    %v7638 = vunpack.c.h.b16 %v7374
    %v7639 = vunpack.c.l.b16 %v7375
    %v7640 = vunpack.c.h.b16 %v7375
    %v7641 = vunpack.c.l.b16 %v7376
    %v7642 = vunpack.c.h.b16 %v7376
    %v7643 = vunpack.c.l.b16 %v7377
    %v7644 = vunpack.c.h.b16 %v7377
    %v7645 = vunpack.c.l.b16 %v7378
    %v7646 = vunpack.c.h.b16 %v7378
    %v7647 = vunpack.c.l.b16 %v7379
    %v7648 = vunpack.c.h.b16 %v7379
    %v7649 = vunpack.c.l.b16 %v7380
    %v7650 = vunpack.c.h.b16 %v7380
    %v7651 = vunpack.c.l.b16 %v7381
    %v7652 = vunpack.c.h.b16 %v7381
    %v7653 = vunpack.c.l.b16 %v7382
    %v7654 = vunpack.c.h.b16 %v7382
    %v7655 = vunpack.c.l.b16 %v7383
    %v7656 = vunpack.c.h.b16 %v7383
    %v7657 = vunpack.c.l.b16 %v7384
    %v7658 = vunpack.c.h.b16 %v7384
    %v7659 = vunpack.c.l.b16 %v7385
    %v7660 = vunpack.c.h.b16 %v7385
    %v7661 = vunpack.c.l.b16 %v7386
    %v7662 = vunpack.c.h.b16 %v7386
    %v7663 = vunpack.c.l.b16 %v7387
    %v7664 = vunpack.c.h.b16 %v7387
    %v7665 = vunpack.c.l.b16 %v7388
    %v7666 = vunpack.c.h.b16 %v7388
    %v7667 = vunpack.c.l.b16 %v7389
    %v7668 = vunpack.c.h.b16 %v7389
    %v7669 = vunpack.c.l.b16 %v7390
    %v7670 = vunpack.c.h.b16 %v7390
    %v7671 = vunpack.c.l.b16 %v7391
    %v7672 = vunpack.c.h.b16 %v7391
    %v7673 = vunpack.c.l.b16 %v7392
    %v7674 = vunpack.c.h.b16 %v7392
    %v7675 = vpack.c.b16 %v7551, %v7547
    %v7676 = vpack.c.b16 %v7552, %v7548
    %v7677 = vpack.c.b16 %v7553, %v7549
    %v7678 = vpack.c.b16 %v7554, %v7550
    %v7679 = vpack.c.b16 %v7559, %v7555
    %v7680 = vpack.c.b16 %v7560, %v7556
    %v7681 = vpack.c.b16 %v7561, %v7557
    %v7682 = vpack.c.b16 %v7562, %v7558
    %v7683 = vpack.c.b16 %v7567, %v7563
    %v7684 = vpack.c.b16 %v7568, %v7564
    %v7685 = vpack.c.b16 %v7569, %v7565
    %v7686 = vpack.c.b16 %v7570, %v7566
    %v7687 = vpack.c.b16 %v7575, %v7571
    %v7688 = vpack.c.b16 %v7576, %v7572
    %v7689 = vpack.c.b16 %v7577, %v7573
    %v7690 = vpack.c.b16 %v7578, %v7574
    %v7691 = vpack.c.b16 %v7583, %v7579
    %v7692 = vpack.c.b16 %v7584, %v7580
    %v7693 = vpack.c.b16 %v7585, %v7581
    %v7694 = vpack.c.b16 %v7586, %v7582
    %v7695 = vpack.c.b16 %v7591, %v7587
    %v7696 = vpack.c.b16 %v7592, %v7588
    %v7697 = vpack.c.b16 %v7593, %v7589
    %v7698 = vpack.c.b16 %v7594, %v7590
    %v7699 = vpack.c.b16 %v7599, %v7595
    %v7700 = vpack.c.b16 %v7600, %v7596
    %v7701 = vpack.c.b16 %v7601, %v7597
    %v7702 = vpack.c.b16 %v7602, %v7598
    %v7703 = vpack.c.b16 %v7607, %v7603
    %v7704 = vpack.c.b16 %v7608, %v7604
    %v7705 = vpack.c.b16 %v7609, %v7605
    %v7706 = vpack.c.b16 %v7610, %v7606
    %v7707 = vpack.c.b16 %v7615, %v7611
    %v7708 = vpack.c.b16 %v7616, %v7612
    %v7709 = vpack.c.b16 %v7617, %v7613
    %v7710 = vpack.c.b16 %v7618, %v7614
    %v7711 = vpack.c.b16 %v7623, %v7619
    %v7712 = vpack.c.b16 %v7624, %v7620
    %v7713 = vpack.c.b16 %v7625, %v7621
    %v7714 = vpack.c.b16 %v7626, %v7622
    %v7715 = vpack.c.b16 %v7631, %v7627
    %v7716 = vpack.c.b16 %v7632, %v7628
    %v7717 = vpack.c.b16 %v7633, %v7629
    %v7718 = vpack.c.b16 %v7634, %v7630
    %v7719 = vpack.c.b16 %v7639, %v7635
    %v7720 = vpack.c.b16 %v7640, %v7636
    %v7721 = vpack.c.b16 %v7641, %v7637
    %v7722 = vpack.c.b16 %v7642, %v7638
    %v7723 = vpack.c.b16 %v7647, %v7643
    %v7724 = vpack.c.b16 %v7648, %v7644
    %v7725 = vpack.c.b16 %v7649, %v7645
    %v7726 = vpack.c.b16 %v7650, %v7646
    %v7727 = vpack.c.b16 %v7655, %v7651
    %v7728 = vpack.c.b16 %v7656, %v7652
    %v7729 = vpack.c.b16 %v7657, %v7653
    %v7730 = vpack.c.b16 %v7658, %v7654
    %v7731 = vpack.c.b16 %v7663, %v7659
    %v7732 = vpack.c.b16 %v7664, %v7660
    %v7733 = vpack.c.b16 %v7665, %v7661
    %v7734 = vpack.c.b16 %v7666, %v7662
    %v7735 = vpack.c.b16 %v7671, %v7667
    %v7736 = vpack.c.b16 %v7672, %v7668
    %v7737 = vpack.c.b16 %v7673, %v7669
    %v7738 = vpack.c.b16 %v7674, %v7670
    %7803 = vmatpush.bf16.msra.mxu0 %v7703
    %7804 = vmatpush.bf16.msra.mxu0 %v7699
    %7805 = vmatpush.bf16.msra.mxu0 %v7695
    %7806 = vmatpush.bf16.msra.mxu0 %v7691
    %7807 = vmatpush.bf16.msra.mxu0 %v7687
    %7808 = vmatpush.bf16.msra.mxu0 %v7683
    %7809 = vmatpush.bf16.msra.mxu0 %v7679
    %7810 = vmatpush.bf16.msra.mxu0 %v7675
    %7811 = vmatmul.bf16.gmra.mxu0 %v7451
    %v7812 = vpop.f32.mrf.mxu0
    %v7813 = vadd.f32 %v7395, %v7812
    %v7814 = vpop.f32.mrf.mxu0
    %v7815 = vadd.f32 %v7395, %v7814
    %7816 = vmatmul.bf16.gmra.mxu0 %v7453
    %v7817 = vpop.f32.mrf.mxu0
    %v7818 = vadd.f32 %v7395, %v7817
    %v7819 = vpop.f32.mrf.mxu0
    %v7820 = vadd.f32 %v7395, %v7819
    %7821 = vmatmul.bf16.gmra.mxu0 %v7455
    %v7822 = vpop.f32.mrf.mxu0
    %v7823 = vadd.f32 %v7395, %v7822
    %v7824 = vpop.f32.mrf.mxu0
    %v7825 = vadd.f32 %v7395, %v7824
    %7826 = vmatmul.bf16.gmra.mxu0 %v7457
    %v7827 = vpop.f32.mrf.mxu0
    %v7828 = vadd.f32 %v7395, %v7827
    %v7829 = vpop.f32.mrf.mxu0
    %v7830 = vadd.f32 %v7395, %v7829
    %7831 = vmatmul.bf16.gmra.mxu0 %v7459
    %v7832 = vpop.f32.mrf.mxu0
    %v7833 = vadd.f32 %v7395, %v7832
    %v7834 = vpop.f32.mrf.mxu0
    %v7835 = vadd.f32 %v7395, %v7834
    %7836 = vmatmul.bf16.gmra.mxu0 %v7461
    %v7837 = vpop.f32.mrf.mxu0
    %v7838 = vadd.f32 %v7395, %v7837
    %v7839 = vpop.f32.mrf.mxu0
    %v7840 = vadd.f32 %v7395, %v7839
    %7841 = vmatmul.bf16.gmra.mxu0 %v7463
    %v7842 = vpop.f32.mrf.mxu0
    %v7843 = vadd.f32 %v7395, %v7842
    %v7844 = vpop.f32.mrf.mxu0
    %v7845 = vadd.f32 %v7395, %v7844
    %7846 = vmatmul.bf16.gmra.mxu0 %v7465
    %v7847 = vpop.f32.mrf.mxu0
    %v7848 = vadd.f32 %v7395, %v7847
    %v7849 = vpop.f32.mrf.mxu0
    %v7850 = vadd.f32 %v7395, %v7849
    %7851 = vdwg.mxu0
    %7852 = vmatpush.bf16.msra.mxu0 %v7735
    %7853 = vmatpush.bf16.msra.mxu0 %v7731
    %7854 = vmatpush.bf16.msra.mxu0 %v7727
    %7855 = vmatpush.bf16.msra.mxu0 %v7723
    %7856 = vmatpush.bf16.msra.mxu0 %v7719
    %7857 = vmatpush.bf16.msra.mxu0 %v7715
    %7858 = vmatpush.bf16.msra.mxu0 %v7711
    %7859 = vmatpush.bf16.msra.mxu0 %v7707
    %7860 = vmatmul.bf16.gmra.mxu0 %v7452
    %v7861 = vpop.f32.mrf.mxu0
    %v7862 = vadd.f32 %v7813, %v7861
    %v7863 = vpop.f32.mrf.mxu0
    %v7864 = vadd.f32 %v7815, %v7863
    %7865 = vmatmul.bf16.gmra.mxu0 %v7454
    %v7866 = vpop.f32.mrf.mxu0
    %v7867 = vadd.f32 %v7818, %v7866
    %v7868 = vpop.f32.mrf.mxu0
    %v7869 = vadd.f32 %v7820, %v7868
    %7870 = vmatmul.bf16.gmra.mxu0 %v7456
    %v7871 = vpop.f32.mrf.mxu0
    %v7872 = vadd.f32 %v7823, %v7871
    %v7873 = vpop.f32.mrf.mxu0
    %v7874 = vadd.f32 %v7825, %v7873
    %7875 = vmatmul.bf16.gmra.mxu0 %v7458
    %v7876 = vpop.f32.mrf.mxu0
    %v7877 = vadd.f32 %v7828, %v7876
    %v7878 = vpop.f32.mrf.mxu0
    %v7879 = vadd.f32 %v7830, %v7878
    %7880 = vmatmul.bf16.gmra.mxu0 %v7460
    %v7881 = vpop.f32.mrf.mxu0
    %v7882 = vadd.f32 %v7833, %v7881
    %v7883 = vpop.f32.mrf.mxu0
    %v7884 = vadd.f32 %v7835, %v7883
    %7885 = vmatmul.bf16.gmra.mxu0 %v7462
    %v7886 = vpop.f32.mrf.mxu0
    %v7887 = vadd.f32 %v7838, %v7886
    %v7888 = vpop.f32.mrf.mxu0
    %v7889 = vadd.f32 %v7840, %v7888
    %7890 = vmatmul.bf16.gmra.mxu0 %v7464
    %v7891 = vpop.f32.mrf.mxu0
    %v7892 = vadd.f32 %v7843, %v7891
    %v7893 = vpop.f32.mrf.mxu0
    %v7894 = vadd.f32 %v7845, %v7893
    %7895 = vmatmul.bf16.gmra.mxu0 %v7466
    %v7896 = vpop.f32.mrf.mxu0
    %v7897 = vadd.f32 %v7848, %v7896
    %v7898 = vpop.f32.mrf.mxu0
    %v7899 = vadd.f32 %v7850, %v7898
    %7900 = vdwg.mxu0
    %7901 = vmatpush.bf16.msra.mxu0 %v7704
    %7902 = vmatpush.bf16.msra.mxu0 %v7700
    %7903 = vmatpush.bf16.msra.mxu0 %v7696
    %7904 = vmatpush.bf16.msra.mxu0 %v7692
    %7905 = vmatpush.bf16.msra.mxu0 %v7688
    %7906 = vmatpush.bf16.msra.mxu0 %v7684
    %7907 = vmatpush.bf16.msra.mxu0 %v7680
    %7908 = vmatpush.bf16.msra.mxu0 %v7676
    %7909 = vmatmul.bf16.gmra.mxu0 %v7451
    %v7910 = vpop.f32.mrf.mxu0
    %v7911 = vadd.f32 %v7396, %v7910
    %v7912 = vpop.f32.mrf.mxu0
    %v7913 = vadd.f32 %v7396, %v7912
    %7914 = vmatmul.bf16.gmra.mxu0 %v7453
    %v7915 = vpop.f32.mrf.mxu0
    %v7916 = vadd.f32 %v7396, %v7915
    %v7917 = vpop.f32.mrf.mxu0
    %v7918 = vadd.f32 %v7396, %v7917
    %7919 = vmatmul.bf16.gmra.mxu0 %v7455
    %v7920 = vpop.f32.mrf.mxu0
    %v7921 = vadd.f32 %v7396, %v7920
    %v7922 = vpop.f32.mrf.mxu0
    %v7923 = vadd.f32 %v7396, %v7922
    %7924 = vmatmul.bf16.gmra.mxu0 %v7457
    %v7925 = vpop.f32.mrf.mxu0
    %v7926 = vadd.f32 %v7396, %v7925
    %v7927 = vpop.f32.mrf.mxu0
    %v7928 = vadd.f32 %v7396, %v7927
    %7929 = vmatmul.bf16.gmra.mxu0 %v7459
    %v7930 = vpop.f32.mrf.mxu0
    %v7931 = vadd.f32 %v7396, %v7930
    %v7932 = vpop.f32.mrf.mxu0
    %v7933 = vadd.f32 %v7396, %v7932
    %7934 = vmatmul.bf16.gmra.mxu0 %v7461
    %v7935 = vpop.f32.mrf.mxu0
    %v7936 = vadd.f32 %v7396, %v7935
    %v7937 = vpop.f32.mrf.mxu0
    %v7938 = vadd.f32 %v7396, %v7937
    %7939 = vmatmul.bf16.gmra.mxu0 %v7463
    %v7940 = vpop.f32.mrf.mxu0
    %v7941 = vadd.f32 %v7396, %v7940
    %v7942 = vpop.f32.mrf.mxu0
    %v7943 = vadd.f32 %v7396, %v7942
    %7944 = vmatmul.bf16.gmra.mxu0 %v7465
    %v7945 = vpop.f32.mrf.mxu0
    %v7946 = vadd.f32 %v7396, %v7945
    %v7947 = vpop.f32.mrf.mxu0
    %v7948 = vadd.f32 %v7396, %v7947
    %7949 = vdwg.mxu0
    %7950 = vmatpush.bf16.msra.mxu0 %v7736
    %7951 = vmatpush.bf16.msra.mxu0 %v7732
    %7952 = vmatpush.bf16.msra.mxu0 %v7728
    %7953 = vmatpush.bf16.msra.mxu0 %v7724
    %7954 = vmatpush.bf16.msra.mxu0 %v7720
    %7955 = vmatpush.bf16.msra.mxu0 %v7716
    %7956 = vmatpush.bf16.msra.mxu0 %v7712
    %7957 = vmatpush.bf16.msra.mxu0 %v7708
    %7958 = vmatmul.bf16.gmra.mxu0 %v7452
    %v7959 = vpop.f32.mrf.mxu0
    %v7960 = vadd.f32 %v7911, %v7959
    %v7961 = vpop.f32.mrf.mxu0
    %v7962 = vadd.f32 %v7913, %v7961
    %7963 = vmatmul.bf16.gmra.mxu0 %v7454
    %v7964 = vpop.f32.mrf.mxu0
    %v7965 = vadd.f32 %v7916, %v7964
    %v7966 = vpop.f32.mrf.mxu0
    %v7967 = vadd.f32 %v7918, %v7966
    %7968 = vmatmul.bf16.gmra.mxu0 %v7456
    %v7969 = vpop.f32.mrf.mxu0
    %v7970 = vadd.f32 %v7921, %v7969
    %v7971 = vpop.f32.mrf.mxu0
    %v7972 = vadd.f32 %v7923, %v7971
    %7973 = vmatmul.bf16.gmra.mxu0 %v7458
    %v7974 = vpop.f32.mrf.mxu0
    %v7975 = vadd.f32 %v7926, %v7974
    %v7976 = vpop.f32.mrf.mxu0
    %v7977 = vadd.f32 %v7928, %v7976
    %7978 = vmatmul.bf16.gmra.mxu0 %v7460
    %v7979 = vpop.f32.mrf.mxu0
    %v7980 = vadd.f32 %v7931, %v7979
    %v7981 = vpop.f32.mrf.mxu0
    %v7982 = vadd.f32 %v7933, %v7981
    %7983 = vmatmul.bf16.gmra.mxu0 %v7462
    %v7984 = vpop.f32.mrf.mxu0
    %v7985 = vadd.f32 %v7936, %v7984
    %v7986 = vpop.f32.mrf.mxu0
    %v7987 = vadd.f32 %v7938, %v7986
    %7988 = vmatmul.bf16.gmra.mxu0 %v7464
    %v7989 = vpop.f32.mrf.mxu0
    %v7990 = vadd.f32 %v7941, %v7989
    %v7991 = vpop.f32.mrf.mxu0
    %v7992 = vadd.f32 %v7943, %v7991
    %7993 = vmatmul.bf16.gmra.mxu0 %v7466
    %v7994 = vpop.f32.mrf.mxu0
    %v7995 = vadd.f32 %v7946, %v7994
    %v7996 = vpop.f32.mrf.mxu0
    %v7997 = vadd.f32 %v7948, %v7996
    %7998 = vdwg.mxu0
    %7999 = vmatpush.bf16.msra.mxu0 %v7705
    %8000 = vmatpush.bf16.msra.mxu0 %v7701
    %8001 = vmatpush.bf16.msra.mxu0 %v7697
    %8002 = vmatpush.bf16.msra.mxu0 %v7693
    %8003 = vmatpush.bf16.msra.mxu0 %v7689
    %8004 = vmatpush.bf16.msra.mxu0 %v7685
    %8005 = vmatpush.bf16.msra.mxu0 %v7681
    %8006 = vmatpush.bf16.msra.mxu0 %v7677
    %8007 = vmatmul.bf16.gmra.mxu0 %v7451
    %v8008 = vpop.f32.mrf.mxu0
    %v8009 = vadd.f32 %v7397, %v8008
    %v8010 = vpop.f32.mrf.mxu0
    %v8011 = vadd.f32 %v7397, %v8010
    %8012 = vmatmul.bf16.gmra.mxu0 %v7453
    %v8013 = vpop.f32.mrf.mxu0
    %v8014 = vadd.f32 %v7397, %v8013
    %v8015 = vpop.f32.mrf.mxu0
    %v8016 = vadd.f32 %v7397, %v8015
    %8017 = vmatmul.bf16.gmra.mxu0 %v7455
    %v8018 = vpop.f32.mrf.mxu0
    %v8019 = vadd.f32 %v7397, %v8018
    %v8020 = vpop.f32.mrf.mxu0
    %v8021 = vadd.f32 %v7397, %v8020
    %8022 = vmatmul.bf16.gmra.mxu0 %v7457
    %v8023 = vpop.f32.mrf.mxu0
    %v8024 = vadd.f32 %v7397, %v8023
    %v8025 = vpop.f32.mrf.mxu0
    %v8026 = vadd.f32 %v7397, %v8025
    %8027 = vmatmul.bf16.gmra.mxu0 %v7459
    %v8028 = vpop.f32.mrf.mxu0
    %v8029 = vadd.f32 %v7397, %v8028
    %v8030 = vpop.f32.mrf.mxu0
    %v8031 = vadd.f32 %v7397, %v8030
    %8032 = vmatmul.bf16.gmra.mxu0 %v7461
    %v8033 = vpop.f32.mrf.mxu0
    %v8034 = vadd.f32 %v7397, %v8033
    %v8035 = vpop.f32.mrf.mxu0
    %v8036 = vadd.f32 %v7397, %v8035
    %8037 = vmatmul.bf16.gmra.mxu0 %v7463
    %v8038 = vpop.f32.mrf.mxu0
    %v8039 = vadd.f32 %v7397, %v8038
    %v8040 = vpop.f32.mrf.mxu0
    %v8041 = vadd.f32 %v7397, %v8040
    %8042 = vmatmul.bf16.gmra.mxu0 %v7465
    %v8043 = vpop.f32.mrf.mxu0
    %v8044 = vadd.f32 %v7397, %v8043
    %v8045 = vpop.f32.mrf.mxu0
    %v8046 = vadd.f32 %v7397, %v8045
    %8047 = vdwg.mxu0
    %8048 = vmatpush.bf16.msra.mxu0 %v7737
    %8049 = vmatpush.bf16.msra.mxu0 %v7733
    %8050 = vmatpush.bf16.msra.mxu0 %v7729
    %8051 = vmatpush.bf16.msra.mxu0 %v7725
    %8052 = vmatpush.bf16.msra.mxu0 %v7721
    %8053 = vmatpush.bf16.msra.mxu0 %v7717
    %8054 = vmatpush.bf16.msra.mxu0 %v7713
    %8055 = vmatpush.bf16.msra.mxu0 %v7709
    %8056 = vmatmul.bf16.gmra.mxu0 %v7452
    %v8057 = vpop.f32.mrf.mxu0
    %v8058 = vadd.f32 %v8009, %v8057
    %v8059 = vpop.f32.mrf.mxu0
    %v8060 = vadd.f32 %v8011, %v8059
    %8061 = vmatmul.bf16.gmra.mxu0 %v7454
    %v8062 = vpop.f32.mrf.mxu0
    %v8063 = vadd.f32 %v8014, %v8062
    %v8064 = vpop.f32.mrf.mxu0
    %v8065 = vadd.f32 %v8016, %v8064
    %8066 = vmatmul.bf16.gmra.mxu0 %v7456
    %v8067 = vpop.f32.mrf.mxu0
    %v8068 = vadd.f32 %v8019, %v8067
    %v8069 = vpop.f32.mrf.mxu0
    %v8070 = vadd.f32 %v8021, %v8069
    %8071 = vmatmul.bf16.gmra.mxu0 %v7458
    %v8072 = vpop.f32.mrf.mxu0
    %v8073 = vadd.f32 %v8024, %v8072
    %v8074 = vpop.f32.mrf.mxu0
    %v8075 = vadd.f32 %v8026, %v8074
    %8076 = vmatmul.bf16.gmra.mxu0 %v7460
    %v8077 = vpop.f32.mrf.mxu0
    %v8078 = vadd.f32 %v8029, %v8077
    %v8079 = vpop.f32.mrf.mxu0
    %v8080 = vadd.f32 %v8031, %v8079
    %8081 = vmatmul.bf16.gmra.mxu0 %v7462
    %v8082 = vpop.f32.mrf.mxu0
    %v8083 = vadd.f32 %v8034, %v8082
    %v8084 = vpop.f32.mrf.mxu0
    %v8085 = vadd.f32 %v8036, %v8084
    %8086 = vmatmul.bf16.gmra.mxu0 %v7464
    %v8087 = vpop.f32.mrf.mxu0
    %v8088 = vadd.f32 %v8039, %v8087
    %v8089 = vpop.f32.mrf.mxu0
    %v8090 = vadd.f32 %v8041, %v8089
    %8091 = vmatmul.bf16.gmra.mxu0 %v7466
    %v8092 = vpop.f32.mrf.mxu0
    %v8093 = vadd.f32 %v8044, %v8092
    %v8094 = vpop.f32.mrf.mxu0
    %v8095 = vadd.f32 %v8046, %v8094
    %8096 = vdwg.mxu0
    %8097 = vmatpush.bf16.msra.mxu0 %v7706
    %8098 = vmatpush.bf16.msra.mxu0 %v7702
    %8099 = vmatpush.bf16.msra.mxu0 %v7698
    %8100 = vmatpush.bf16.msra.mxu0 %v7694
    %8101 = vmatpush.bf16.msra.mxu0 %v7690
    %8102 = vmatpush.bf16.msra.mxu0 %v7686
    %8103 = vmatpush.bf16.msra.mxu0 %v7682
    %8104 = vmatpush.bf16.msra.mxu0 %v7678
    %8105 = vmatmul.bf16.gmra.mxu0 %v7451
    %v8106 = vpop.f32.mrf.mxu0
    %v8107 = vadd.f32 %v7398, %v8106
    %v8108 = vpop.f32.mrf.mxu0
    %v8109 = vadd.f32 %v7398, %v8108
    %8110 = vmatmul.bf16.gmra.mxu0 %v7453
    %v8111 = vpop.f32.mrf.mxu0
    %v8112 = vadd.f32 %v7398, %v8111
    %v8113 = vpop.f32.mrf.mxu0
    %v8114 = vadd.f32 %v7398, %v8113
    %8115 = vmatmul.bf16.gmra.mxu0 %v7455
    %v8116 = vpop.f32.mrf.mxu0
    %v8117 = vadd.f32 %v7398, %v8116
    %v8118 = vpop.f32.mrf.mxu0
    %v8119 = vadd.f32 %v7398, %v8118
    %8120 = vmatmul.bf16.gmra.mxu0 %v7457
    %v8121 = vpop.f32.mrf.mxu0
    %v8122 = vadd.f32 %v7398, %v8121
    %v8123 = vpop.f32.mrf.mxu0
    %v8124 = vadd.f32 %v7398, %v8123
    %8125 = vmatmul.bf16.gmra.mxu0 %v7459
    %v8126 = vpop.f32.mrf.mxu0
    %v8127 = vadd.f32 %v7398, %v8126
    %v8128 = vpop.f32.mrf.mxu0
    %v8129 = vadd.f32 %v7398, %v8128
    %8130 = vmatmul.bf16.gmra.mxu0 %v7461
    %v8131 = vpop.f32.mrf.mxu0
    %v8132 = vadd.f32 %v7398, %v8131
    %v8133 = vpop.f32.mrf.mxu0
    %v8134 = vadd.f32 %v7398, %v8133
    %8135 = vmatmul.bf16.gmra.mxu0 %v7463
    %v8136 = vpop.f32.mrf.mxu0
    %v8137 = vadd.f32 %v7398, %v8136
    %v8138 = vpop.f32.mrf.mxu0
    %v8139 = vadd.f32 %v7398, %v8138
    %8140 = vmatmul.bf16.gmra.mxu0 %v7465
    %v8141 = vpop.f32.mrf.mxu0
    %v8142 = vadd.f32 %v7398, %v8141
    %v8143 = vpop.f32.mrf.mxu0
    %v8144 = vadd.f32 %v7398, %v8143
    %8145 = vdwg.mxu0
    %8146 = vmatpush.bf16.msra.mxu0 %v7738
    %8147 = vmatpush.bf16.msra.mxu0 %v7734
    %8148 = vmatpush.bf16.msra.mxu0 %v7730
    %8149 = vmatpush.bf16.msra.mxu0 %v7726
    %8150 = vmatpush.bf16.msra.mxu0 %v7722
    %8151 = vmatpush.bf16.msra.mxu0 %v7718
    %8152 = vmatpush.bf16.msra.mxu0 %v7714
    %8153 = vmatpush.bf16.msra.mxu0 %v7710
    %8154 = vmatmul.bf16.gmra.mxu0 %v7452
    %v8155 = vpop.f32.mrf.mxu0
    %v8156 = vadd.f32 %v8107, %v8155
    %v8157 = vpop.f32.mrf.mxu0
    %v8158 = vadd.f32 %v8109, %v8157
    %8159 = vmatmul.bf16.gmra.mxu0 %v7454
    %v8160 = vpop.f32.mrf.mxu0
    %v8161 = vadd.f32 %v8112, %v8160
    %v8162 = vpop.f32.mrf.mxu0
    %v8163 = vadd.f32 %v8114, %v8162
    %8164 = vmatmul.bf16.gmra.mxu0 %v7456
    %v8165 = vpop.f32.mrf.mxu0
    %v8166 = vadd.f32 %v8117, %v8165
    %v8167 = vpop.f32.mrf.mxu0
    %v8168 = vadd.f32 %v8119, %v8167
    %8169 = vmatmul.bf16.gmra.mxu0 %v7458
    %v8170 = vpop.f32.mrf.mxu0
    %v8171 = vadd.f32 %v8122, %v8170
    %v8172 = vpop.f32.mrf.mxu0
    %v8173 = vadd.f32 %v8124, %v8172
    %8174 = vmatmul.bf16.gmra.mxu0 %v7460
    %v8175 = vpop.f32.mrf.mxu0
    %v8176 = vadd.f32 %v8127, %v8175
    %v8177 = vpop.f32.mrf.mxu0
    %v8178 = vadd.f32 %v8129, %v8177
    %8179 = vmatmul.bf16.gmra.mxu0 %v7462
    %v8180 = vpop.f32.mrf.mxu0
    %v8181 = vadd.f32 %v8132, %v8180
    %v8182 = vpop.f32.mrf.mxu0
    %v8183 = vadd.f32 %v8134, %v8182
    %8184 = vmatmul.bf16.gmra.mxu0 %v7464
    %v8185 = vpop.f32.mrf.mxu0
    %v8186 = vadd.f32 %v8137, %v8185
    %v8187 = vpop.f32.mrf.mxu0
    %v8188 = vadd.f32 %v8139, %v8187
    %8189 = vmatmul.bf16.gmra.mxu0 %v7466
    %v8190 = vpop.f32.mrf.mxu0
    %v8191 = vadd.f32 %v8142, %v8190
    %v8192 = vpop.f32.mrf.mxu0
    %v8193 = vadd.f32 %v8144, %v8192
    %8194 = vdwg.mxu0
    %8195 = vst [vmem:[#allocation2] sm:$0xff] %v7862
    %8196 = vst [vmem:[#allocation2 + $0x8] sm:$0xff] %v7960
    %8197 = vst [vmem:[#allocation2 + $0x10] sm:$0xff] %v8058
    %8198 = vst [vmem:[#allocation2 + $0x18] sm:$0xff] %v8156
    %8199 = vst [vmem:[#allocation2 + $0x20] sm:$0xff] %v7864
    %8200 = vst [vmem:[#allocation2 + $0x28] sm:$0xff] %v7962
    %8201 = vst [vmem:[#allocation2 + $0x30] sm:$0xff] %v8060
    %8202 = vst [vmem:[#allocation2 + $0x38] sm:$0xff] %v8158
    %8203 = vst [vmem:[#allocation2 + $0x40] sm:$0xff] %v7867
    %8204 = vst [vmem:[#allocation2 + $0x48] sm:$0xff] %v7965
    %8205 = vst [vmem:[#allocation2 + $0x50] sm:$0xff] %v8063
    %8206 = vst [vmem:[#allocation2 + $0x58] sm:$0xff] %v8161
    %8207 = vst [vmem:[#allocation2 + $0x60] sm:$0xff] %v7869
    %8208 = vst [vmem:[#allocation2 + $0x68] sm:$0xff] %v7967
    %8209 = vst [vmem:[#allocation2 + $0x70] sm:$0xff] %v8065
    %8210 = vst [vmem:[#allocation2 + $0x78] sm:$0xff] %v8163
    %8211 = vst [vmem:[#allocation2 + $0x80] sm:$0xff] %v7872
    %8212 = vst [vmem:[#allocation2 + $0x88] sm:$0xff] %v7970
    %8213 = vst [vmem:[#allocation2 + $0x90] sm:$0xff] %v8068
    %8214 = vst [vmem:[#allocation2 + $0x98] sm:$0xff] %v8166
    %8215 = vst [vmem:[#allocation2 + $0xa0] sm:$0xff] %v7874
    %8216 = vst [vmem:[#allocation2 + $0xa8] sm:$0xff] %v7972
    %8217 = vst [vmem:[#allocation2 + $0xb0] sm:$0xff] %v8070
    %8218 = vst [vmem:[#allocation2 + $0xb8] sm:$0xff] %v8168
    %8219 = vst [vmem:[#allocation2 + $0xc0] sm:$0xff] %v7877
    %8220 = vst [vmem:[#allocation2 + $0xc8] sm:$0xff] %v7975
    %8221 = vst [vmem:[#allocation2 + $0xd0] sm:$0xff] %v8073
    %8222 = vst [vmem:[#allocation2 + $0xd8] sm:$0xff] %v8171
    %8223 = vst [vmem:[#allocation2 + $0xe0] sm:$0xff] %v7879
    %8224 = vst [vmem:[#allocation2 + $0xe8] sm:$0xff] %v7977
    %8225 = vst [vmem:[#allocation2 + $0xf0] sm:$0xff] %v8075
    %8226 = vst [vmem:[#allocation2 + $0xf8] sm:$0xff] %v8173
    %8227 = vst [vmem:[#allocation2 + $0x100] sm:$0xff] %v7882
    %8228 = vst [vmem:[#allocation2 + $0x108] sm:$0xff] %v7980
    %8229 = vst [vmem:[#allocation2 + $0x110] sm:$0xff] %v8078
    %8230 = vst [vmem:[#allocation2 + $0x118] sm:$0xff] %v8176
    %8231 = vst [vmem:[#allocation2 + $0x120] sm:$0xff] %v7884
    %8232 = vst [vmem:[#allocation2 + $0x128] sm:$0xff] %v7982
    %8233 = vst [vmem:[#allocation2 + $0x130] sm:$0xff] %v8080
    %8234 = vst [vmem:[#allocation2 + $0x138] sm:$0xff] %v8178
    %8235 = vst [vmem:[#allocation2 + $0x140] sm:$0xff] %v7887
    %8236 = vst [vmem:[#allocation2 + $0x148] sm:$0xff] %v7985
    %8237 = vst [vmem:[#allocation2 + $0x150] sm:$0xff] %v8083
    %8238 = vst [vmem:[#allocation2 + $0x158] sm:$0xff] %v8181
    %8239 = vst [vmem:[#allocation2 + $0x160] sm:$0xff] %v7889
    %8240 = vst [vmem:[#allocation2 + $0x168] sm:$0xff] %v7987
    %8241 = vst [vmem:[#allocation2 + $0x170] sm:$0xff] %v8085
    %8242 = vst [vmem:[#allocation2 + $0x178] sm:$0xff] %v8183
    %8243 = vst [vmem:[#allocation2 + $0x180] sm:$0xff] %v7892
    %8244 = vst [vmem:[#allocation2 + $0x188] sm:$0xff] %v7990
    %8245 = vst [vmem:[#allocation2 + $0x190] sm:$0xff] %v8088
    %8246 = vst [vmem:[#allocation2 + $0x198] sm:$0xff] %v8186
    %8247 = vst [vmem:[#allocation2 + $0x1a0] sm:$0xff] %v7894
    %8248 = vst [vmem:[#allocation2 + $0x1a8] sm:$0xff] %v7992
    %8249 = vst [vmem:[#allocation2 + $0x1b0] sm:$0xff] %v8090
    %8250 = vst [vmem:[#allocation2 + $0x1b8] sm:$0xff] %v8188
    %8251 = vst [vmem:[#allocation2 + $0x1c0] sm:$0xff] %v7897
    %8252 = vst [vmem:[#allocation2 + $0x1c8] sm:$0xff] %v7995
    %8253 = vst [vmem:[#allocation2 + $0x1d0] sm:$0xff] %v8093
    %8254 = vst [vmem:[#allocation2 + $0x1d8] sm:$0xff] %v8191
    %8255 = vst [vmem:[#allocation2 + $0x1e0] sm:$0xff] %v7899
    %8256 = vst [vmem:[#allocation2 + $0x1e8] sm:$0xff] %v7997
    %8257 = vst [vmem:[#allocation2 + $0x1f0] sm:$0xff] %v8095
    %8258 = vst [vmem:[#allocation2 + $0x1f8] sm:$0xff] %v8193
    %v8259 = vld [vmem:[%s863] sm:$0xff]
    %v8260 = vld [vmem:[%s863 + $0x8] sm:$0xff]
    %v8261 = vld [vmem:[%s863 + $0x10] sm:$0xff]
    %v8262 = vld [vmem:[%s863 + $0x18] sm:$0xff]
    %v8263 = vld [vmem:[%s863 + $0x20] sm:$0xff]
    %v8264 = vld [vmem:[%s863 + $0x28] sm:$0xff]
    %v8265 = vld [vmem:[%s863 + $0x30] sm:$0xff]
    %v8266 = vld [vmem:[%s863 + $0x38] sm:$0xff]
    %v8267 = vld [vmem:[#allocation11] sm:$0xff]
    %v8268 = vld [vmem:[#allocation11 + $0x8] sm:$0xff]
    %v8269 = vld [vmem:[#allocation11 + $0x10] sm:$0xff]
    %v8270 = vld [vmem:[#allocation11 + $0x18] sm:$0xff]
    %v8271 = vld [vmem:[#allocation11 + $0x20] sm:$0xff]
    %v8272 = vld [vmem:[#allocation11 + $0x28] sm:$0xff]
    %v8273 = vld [vmem:[#allocation11 + $0x30] sm:$0xff]
    %v8274 = vld [vmem:[#allocation11 + $0x38] sm:$0xff]
    %v8275 = vld [vmem:[#allocation11 + $0x40] sm:$0xff]
    %v8276 = vld [vmem:[#allocation11 + $0x48] sm:$0xff]
    %v8277 = vld [vmem:[#allocation11 + $0x50] sm:$0xff]
    %v8278 = vld [vmem:[#allocation11 + $0x58] sm:$0xff]
    %v8279 = vld [vmem:[#allocation11 + $0x60] sm:$0xff]
    %v8280 = vld [vmem:[#allocation11 + $0x68] sm:$0xff]
    %v8281 = vld [vmem:[#allocation11 + $0x70] sm:$0xff]
    %v8282 = vld [vmem:[#allocation11 + $0x78] sm:$0xff]
    %v8283 = vld [vmem:[#allocation11 + $0x80] sm:$0xff]
    %v8284 = vld [vmem:[#allocation11 + $0x88] sm:$0xff]
    %v8285 = vld [vmem:[#allocation11 + $0x90] sm:$0xff]
    %v8286 = vld [vmem:[#allocation11 + $0x98] sm:$0xff]
    %v8287 = vld [vmem:[#allocation11 + $0xa0] sm:$0xff]
    %v8288 = vld [vmem:[#allocation11 + $0xa8] sm:$0xff]
    %v8289 = vld [vmem:[#allocation11 + $0xb0] sm:$0xff]
    %v8290 = vld [vmem:[#allocation11 + $0xb8] sm:$0xff]
    %v8291 = vld [vmem:[#allocation11 + $0xc0] sm:$0xff]
    %v8292 = vld [vmem:[#allocation11 + $0xc8] sm:$0xff]
    %v8293 = vld [vmem:[#allocation11 + $0xd0] sm:$0xff]
    %v8294 = vld [vmem:[#allocation11 + $0xd8] sm:$0xff]
    %v8295 = vld [vmem:[#allocation11 + $0xe0] sm:$0xff]
    %v8296 = vld [vmem:[#allocation11 + $0xe8] sm:$0xff]
    %v8297 = vld [vmem:[#allocation11 + $0xf0] sm:$0xff]
    %v8298 = vld [vmem:[#allocation11 + $0xf8] sm:$0xff]
    %v8331 = vunpack.c.l.b16 %v8267
    %v8332 = vunpack.c.h.b16 %v8267
    %v8333 = vunpack.c.l.b16 %v8268
    %v8334 = vunpack.c.h.b16 %v8268
    %v8335 = vunpack.c.l.b16 %v8269
    %v8336 = vunpack.c.h.b16 %v8269
    %v8337 = vunpack.c.l.b16 %v8270
    %v8338 = vunpack.c.h.b16 %v8270
    %v8339 = vunpack.c.l.b16 %v8271
    %v8340 = vunpack.c.h.b16 %v8271
    %v8341 = vunpack.c.l.b16 %v8272
    %v8342 = vunpack.c.h.b16 %v8272
    %v8343 = vunpack.c.l.b16 %v8273
    %v8344 = vunpack.c.h.b16 %v8273
    %v8345 = vunpack.c.l.b16 %v8274
    %v8346 = vunpack.c.h.b16 %v8274
    %v8347 = vunpack.c.l.b16 %v8275
    %v8348 = vunpack.c.h.b16 %v8275
    %v8349 = vunpack.c.l.b16 %v8276
    %v8350 = vunpack.c.h.b16 %v8276
    %v8351 = vunpack.c.l.b16 %v8277
    %v8352 = vunpack.c.h.b16 %v8277
    %v8353 = vunpack.c.l.b16 %v8278
    %v8354 = vunpack.c.h.b16 %v8278
    %v8355 = vunpack.c.l.b16 %v8279
    %v8356 = vunpack.c.h.b16 %v8279
    %v8357 = vunpack.c.l.b16 %v8280
    %v8358 = vunpack.c.h.b16 %v8280
    %v8359 = vunpack.c.l.b16 %v8281
    %v8360 = vunpack.c.h.b16 %v8281
    %v8361 = vunpack.c.l.b16 %v8282
    %v8362 = vunpack.c.h.b16 %v8282
    %v8363 = vunpack.c.l.b16 %v8283
    %v8364 = vunpack.c.h.b16 %v8283
    %v8365 = vunpack.c.l.b16 %v8284
    %v8366 = vunpack.c.h.b16 %v8284
    %v8367 = vunpack.c.l.b16 %v8285
    %v8368 = vunpack.c.h.b16 %v8285
    %v8369 = vunpack.c.l.b16 %v8286
    %v8370 = vunpack.c.h.b16 %v8286
    %v8371 = vunpack.c.l.b16 %v8287
    %v8372 = vunpack.c.h.b16 %v8287
    %v8373 = vunpack.c.l.b16 %v8288
    %v8374 = vunpack.c.h.b16 %v8288
    %v8375 = vunpack.c.l.b16 %v8289
    %v8376 = vunpack.c.h.b16 %v8289
    %v8377 = vunpack.c.l.b16 %v8290
    %v8378 = vunpack.c.h.b16 %v8290
    %v8379 = vunpack.c.l.b16 %v8291
    %v8380 = vunpack.c.h.b16 %v8291
    %v8381 = vunpack.c.l.b16 %v8292
    %v8382 = vunpack.c.h.b16 %v8292
    %v8383 = vunpack.c.l.b16 %v8293
    %v8384 = vunpack.c.h.b16 %v8293
    %v8385 = vunpack.c.l.b16 %v8294
    %v8386 = vunpack.c.h.b16 %v8294
    %v8387 = vunpack.c.l.b16 %v8295
    %v8388 = vunpack.c.h.b16 %v8295
    %v8389 = vunpack.c.l.b16 %v8296
    %v8390 = vunpack.c.h.b16 %v8296
    %v8391 = vunpack.c.l.b16 %v8297
    %v8392 = vunpack.c.h.b16 %v8297
    %v8393 = vunpack.c.l.b16 %v8298
    %v8394 = vunpack.c.h.b16 %v8298
    %v8395 = vpack.c.b16 %v8335, %v8331
    %v8396 = vpack.c.b16 %v8336, %v8332
    %v8397 = vpack.c.b16 %v8337, %v8333
    %v8398 = vpack.c.b16 %v8338, %v8334
    %v8399 = vpack.c.b16 %v8343, %v8339
    %v8400 = vpack.c.b16 %v8344, %v8340
    %v8401 = vpack.c.b16 %v8345, %v8341
    %v8402 = vpack.c.b16 %v8346, %v8342
    %v8403 = vpack.c.b16 %v8351, %v8347
    %v8404 = vpack.c.b16 %v8352, %v8348
    %v8405 = vpack.c.b16 %v8353, %v8349
    %v8406 = vpack.c.b16 %v8354, %v8350
    %v8407 = vpack.c.b16 %v8359, %v8355
    %v8408 = vpack.c.b16 %v8360, %v8356
    %v8409 = vpack.c.b16 %v8361, %v8357
    %v8410 = vpack.c.b16 %v8362, %v8358
    %v8411 = vpack.c.b16 %v8367, %v8363
    %v8412 = vpack.c.b16 %v8368, %v8364
    %v8413 = vpack.c.b16 %v8369, %v8365
    %v8414 = vpack.c.b16 %v8370, %v8366
    %v8415 = vpack.c.b16 %v8375, %v8371
    %v8416 = vpack.c.b16 %v8376, %v8372
    %v8417 = vpack.c.b16 %v8377, %v8373
    %v8418 = vpack.c.b16 %v8378, %v8374
    %v8419 = vpack.c.b16 %v8383, %v8379
    %v8420 = vpack.c.b16 %v8384, %v8380
    %v8421 = vpack.c.b16 %v8385, %v8381
    %v8422 = vpack.c.b16 %v8386, %v8382
    %v8423 = vpack.c.b16 %v8391, %v8387
    %v8424 = vpack.c.b16 %v8392, %v8388
    %v8425 = vpack.c.b16 %v8393, %v8389
    %v8426 = vpack.c.b16 %v8394, %v8390
    %8459 = vmatpush.bf16.msra.mxu0 %v8423
    %8460 = vmatpush.bf16.msra.mxu0 %v8419
    %8461 = vmatpush.bf16.msra.mxu0 %v8415
    %8462 = vmatpush.bf16.msra.mxu0 %v8411
    %8463 = vmatpush.bf16.msra.mxu0 %v8407
    %8464 = vmatpush.bf16.msra.mxu0 %v8403
    %8465 = vmatpush.bf16.msra.mxu0 %v8399
    %8466 = vmatpush.bf16.msra.mxu0 %v8395
    %8467 = vmatmul.bf16.gmra.mxu0 0
    %v8468 = vpop.f32.mrf.mxu0
    %v8469 = vadd.f32 0.0, %v8468
    %v8470 = vpop.f32.mrf.mxu0
    %v8471 = vadd.f32 0.0, %v8470
    %8472 = vdwg.mxu0
    %8473 = vmatpush.bf16.msra.mxu0 %v8424
    %8474 = vmatpush.bf16.msra.mxu0 %v8420
    %8475 = vmatpush.bf16.msra.mxu0 %v8416
    %8476 = vmatpush.bf16.msra.mxu0 %v8412
    %8477 = vmatpush.bf16.msra.mxu0 %v8408
    %8478 = vmatpush.bf16.msra.mxu0 %v8404
    %8479 = vmatpush.bf16.msra.mxu0 %v8400
    %8480 = vmatpush.bf16.msra.mxu0 %v8396
    %8481 = vmatmul.bf16.gmra.mxu0 0
    %v8482 = vpop.f32.mrf.mxu0
    %v8483 = vadd.f32 0.0, %v8482
    %v8484 = vpop.f32.mrf.mxu0
    %v8485 = vadd.f32 0.0, %v8484
    %8486 = vdwg.mxu0
    %8487 = vmatpush.bf16.msra.mxu0 %v8425
    %8488 = vmatpush.bf16.msra.mxu0 %v8421
    %8489 = vmatpush.bf16.msra.mxu0 %v8417
    %8490 = vmatpush.bf16.msra.mxu0 %v8413
    %8491 = vmatpush.bf16.msra.mxu0 %v8409
    %8492 = vmatpush.bf16.msra.mxu0 %v8405
    %8493 = vmatpush.bf16.msra.mxu0 %v8401
    %8494 = vmatpush.bf16.msra.mxu0 %v8397
    %8495 = vmatmul.bf16.gmra.mxu0 0
    %v8496 = vpop.f32.mrf.mxu0
    %v8497 = vadd.f32 0.0, %v8496
    %v8498 = vpop.f32.mrf.mxu0
    %v8499 = vadd.f32 0.0, %v8498
    %8500 = vdwg.mxu0
    %8501 = vmatpush.bf16.msra.mxu0 %v8426
    %8502 = vmatpush.bf16.msra.mxu0 %v8422
    %8503 = vmatpush.bf16.msra.mxu0 %v8418
    %8504 = vmatpush.bf16.msra.mxu0 %v8414
    %8505 = vmatpush.bf16.msra.mxu0 %v8410
    %8506 = vmatpush.bf16.msra.mxu0 %v8406
    %8507 = vmatpush.bf16.msra.mxu0 %v8402
    %8508 = vmatpush.bf16.msra.mxu0 %v8398
    %8509 = vmatmul.bf16.gmra.mxu0 0
    %v8510 = vpop.f32.mrf.mxu0
    %v8511 = vadd.f32 0.0, %v8510
    %v8512 = vpop.f32.mrf.mxu0
    %v8513 = vadd.f32 0.0, %v8512
    %8514 = vdwg.mxu0
    %v8515 = vadd.f32 %v8259, %v8469
    %v8516 = vadd.f32 %v8260, %v8483
    %v8517 = vadd.f32 %v8261, %v8497
    %v8518 = vadd.f32 %v8262, %v8511
    %v8519 = vadd.f32 %v8263, %v8471
    %v8520 = vadd.f32 %v8264, %v8485
    %v8521 = vadd.f32 %v8265, %v8499
    %v8522 = vadd.f32 %v8266, %v8513
    %v8523 = vxor.u32 %v8515, 2147483648
    %v8524 = vxor.u32 %v8516, 2147483648
    %v8525 = vxor.u32 %v8518, 2147483648
    %v8526 = vxor.u32 %v8519, 2147483648
    %v8527 = vxor.u32 %v8520, 2147483648
    %v8528 = vxor.u32 %v8522, 2147483648
    %v8529 = vmul.f32 %v8523, 1.442695
    %v8530 = vpow.pop %v8529
    %v8531 = vmul.f32 %v8524, 1.442695
    %v8532 = vpow.pop %v8531
    %v8533 = vmul.f32 %v8525, 1.442695
    %v8534 = vpow.pop %v8533
    %v8535 = vmul.f32 %v8526, 1.442695
    %v8536 = vpow.pop %v8535
    %v8537 = vmul.f32 %v8527, 1.442695
    %v8538 = vpow.pop %v8537
    %v8539 = vmul.f32 %v8528, 1.442695
    %v8540 = vpow.pop %v8539
    %v8541 = vadd.f32 %v8530, 1.0
    %v8542 = vadd.f32 %v8532, 1.0
    %v8543 = vadd.f32 %v8534, 1.0
    %v8544 = vadd.f32 %v8536, 1.0
    %v8545 = vadd.f32 %v8538, 1.0
    %v8546 = vadd.f32 %v8540, 1.0
    %v8547 = vrcp.pop %v8541
    %v8548 = vmul.f32 %v8541, %v8547
    %v8549 = vsub.f32 1.0, %v8548
    %v8550 = vmul.f32 %v8547, %v8549
    %v8551 = vadd.f32 %v8547, %v8550
    %vm8552 = vweird.f32 %v8541
    %vm8553 = vweird.f32 %v8547
    %vm8554 = vmor %vm8552, %vm8553
    %v8555 = vsel %vm8554, %v8547, %v8551
    %v8556 = vand.u32 2147483647, %v8541
    %vm8557 = vcmp.eq.f32.partialorder %v8556, 8.507059e+37
    %v8558 = vand.u32 %v8541, 2147483648
    %v8559 = vor.u32 1.1754944e-38, %v8558
    %v8560 = vsel %vm8557, %v8559, %v8555
    %v8561 = vmul.f32 1.0, %v8560
    %v8562 = vrcp.pop %v8542
    %v8563 = vmul.f32 %v8542, %v8562
    %v8564 = vsub.f32 1.0, %v8563
    %v8565 = vmul.f32 %v8562, %v8564
    %v8566 = vadd.f32 %v8562, %v8565
    %vm8567 = vweird.f32 %v8542
    %vm8568 = vweird.f32 %v8562
    %vm8569 = vmor %vm8567, %vm8568
    %v8570 = vsel %vm8569, %v8562, %v8566
    %v8571 = vand.u32 2147483647, %v8542
    %vm8572 = vcmp.eq.f32.partialorder %v8571, 8.507059e+37
    %v8573 = vand.u32 %v8542, 2147483648
    %v8574 = vor.u32 1.1754944e-38, %v8573
    %v8575 = vsel %vm8572, %v8574, %v8570
    %v8576 = vmul.f32 1.0, %v8575
    %v8577 = vrcp.pop %v8543
    %v8578 = vmul.f32 %v8543, %v8577
    %v8579 = vsub.f32 1.0, %v8578
    %v8580 = vmul.f32 %v8577, %v8579
    %v8581 = vadd.f32 %v8577, %v8580
    %vm8582 = vweird.f32 %v8543
    %vm8583 = vweird.f32 %v8577
    %vm8584 = vmor %vm8582, %vm8583
    %v8585 = vsel %vm8584, %v8577, %v8581
    %v8586 = vand.u32 2147483647, %v8543
    %vm8587 = vcmp.eq.f32.partialorder %v8586, 8.507059e+37
    %v8588 = vand.u32 %v8543, 2147483648
    %v8589 = vor.u32 1.1754944e-38, %v8588
    %v8590 = vsel %vm8587, %v8589, %v8585
    %v8591 = vmul.f32 1.0, %v8590
    %v8592 = vrcp.pop %v8544
    %v8593 = vmul.f32 %v8544, %v8592
    %v8594 = vsub.f32 1.0, %v8593
    %v8595 = vmul.f32 %v8592, %v8594
    %v8596 = vadd.f32 %v8592, %v8595
    %vm8597 = vweird.f32 %v8544
    %vm8598 = vweird.f32 %v8592
    %vm8599 = vmor %vm8597, %vm8598
    %v8600 = vsel %vm8599, %v8592, %v8596
    %v8601 = vand.u32 2147483647, %v8544
    %vm8602 = vcmp.eq.f32.partialorder %v8601, 8.507059e+37
    %v8603 = vand.u32 %v8544, 2147483648
    %v8604 = vor.u32 1.1754944e-38, %v8603
    %v8605 = vsel %vm8602, %v8604, %v8600
    %v8606 = vmul.f32 1.0, %v8605
    %v8607 = vrcp.pop %v8545
    %v8608 = vmul.f32 %v8545, %v8607
    %v8609 = vsub.f32 1.0, %v8608
    %v8610 = vmul.f32 %v8607, %v8609
    %v8611 = vadd.f32 %v8607, %v8610
    %vm8612 = vweird.f32 %v8545
    %vm8613 = vweird.f32 %v8607
    %vm8614 = vmor %vm8612, %vm8613
    %v8615 = vsel %vm8614, %v8607, %v8611
    %v8616 = vand.u32 2147483647, %v8545
    %vm8617 = vcmp.eq.f32.partialorder %v8616, 8.507059e+37
    %v8618 = vand.u32 %v8545, 2147483648
    %v8619 = vor.u32 1.1754944e-38, %v8618
    %v8620 = vsel %vm8617, %v8619, %v8615
    %v8621 = vmul.f32 1.0, %v8620
    %v8622 = vrcp.pop %v8546
    %v8623 = vmul.f32 %v8546, %v8622
    %v8624 = vsub.f32 1.0, %v8623
    %v8625 = vmul.f32 %v8622, %v8624
    %v8626 = vadd.f32 %v8622, %v8625
    %vm8627 = vweird.f32 %v8546
    %vm8628 = vweird.f32 %v8622
    %vm8629 = vmor %vm8627, %vm8628
    %v8630 = vsel %vm8629, %v8622, %v8626
    %v8631 = vand.u32 2147483647, %v8546
    %vm8632 = vcmp.eq.f32.partialorder %v8631, 8.507059e+37
    %v8633 = vand.u32 %v8546, 2147483648
    %v8634 = vor.u32 1.1754944e-38, %v8633
    %v8635 = vsel %vm8632, %v8634, %v8630
    %v8636 = vmul.f32 1.0, %v8635
    %v8637 = vtanh.pop %v8517
    %v8638 = vtanh.pop %v8521
    %v8639 = vmul.f32 %v8576, 0.0
    %v8640 = vmul.f32 %v8621, 0.0
    %v8641 = vmul.f32 %v8561, %v8637
    %v8642 = vmul.f32 %v8606, %v8638
    %v8643 = vadd.f32 %v8639, %v8641
    %v8644 = vadd.f32 %v8640, %v8642
    %v8645 = vtanh.pop %v8643
    %v8646 = vtanh.pop %v8644
    %v8647 = vmul.f32 %v8591, %v8645
    %v8648 = vmul.f32 %v8636, %v8646
    %v8649 = vld [vmem:[%s1663] sm:$0xff]
    %v8650 = vld [vmem:[%s1663 + $0x8] sm:$0xff]
    %v8651 = vld [vmem:[%s1663 + $0x10] sm:$0xff]
    %v8652 = vld [vmem:[%s1663 + $0x18] sm:$0xff]
    %v8653 = vld [vmem:[%s1663 + $0x20] sm:$0xff]
    %v8654 = vld [vmem:[%s1663 + $0x28] sm:$0xff]
    %v8655 = vld [vmem:[%s1663 + $0x30] sm:$0xff]
    %v8656 = vld [vmem:[%s1663 + $0x38] sm:$0xff]
    %v8657 = vpack.c.bf16 %v8648, %v8647
    %8658 = vmatpush.bf16.msra.mxu0 %v8423
    %8659 = vmatpush.bf16.msra.mxu0 %v8419
    %8660 = vmatpush.bf16.msra.mxu0 %v8415
    %8661 = vmatpush.bf16.msra.mxu0 %v8411
    %8662 = vmatpush.bf16.msra.mxu0 %v8407
    %8663 = vmatpush.bf16.msra.mxu0 %v8403
    %8664 = vmatpush.bf16.msra.mxu0 %v8399
    %8665 = vmatpush.bf16.msra.mxu0 %v8395
    %8666 = vmatmul.bf16.gmra.mxu0 %v8657
    %v8667 = vpop.f32.mrf.mxu0
    %v8668 = vadd.f32 0.0, %v8667
    %v8669 = vpop.f32.mrf.mxu0
    %v8670 = vadd.f32 0.0, %v8669
    %8671 = vdwg.mxu0
    %8672 = vmatpush.bf16.msra.mxu0 %v8424
    %8673 = vmatpush.bf16.msra.mxu0 %v8420
    %8674 = vmatpush.bf16.msra.mxu0 %v8416
    %8675 = vmatpush.bf16.msra.mxu0 %v8412
    %8676 = vmatpush.bf16.msra.mxu0 %v8408
    %8677 = vmatpush.bf16.msra.mxu0 %v8404
    %8678 = vmatpush.bf16.msra.mxu0 %v8400
    %8679 = vmatpush.bf16.msra.mxu0 %v8396
    %8680 = vmatmul.bf16.gmra.mxu0 %v8657
    %v8681 = vpop.f32.mrf.mxu0
    %v8682 = vadd.f32 0.0, %v8681
    %v8683 = vpop.f32.mrf.mxu0
    %v8684 = vadd.f32 0.0, %v8683
    %8685 = vdwg.mxu0
    %8686 = vmatpush.bf16.msra.mxu0 %v8425
    %8687 = vmatpush.bf16.msra.mxu0 %v8421
    %8688 = vmatpush.bf16.msra.mxu0 %v8417
    %8689 = vmatpush.bf16.msra.mxu0 %v8413
    %8690 = vmatpush.bf16.msra.mxu0 %v8409
    %8691 = vmatpush.bf16.msra.mxu0 %v8405
    %8692 = vmatpush.bf16.msra.mxu0 %v8401
    %8693 = vmatpush.bf16.msra.mxu0 %v8397
    %8694 = vmatmul.bf16.gmra.mxu0 %v8657
    %v8695 = vpop.f32.mrf.mxu0
    %v8696 = vadd.f32 0.0, %v8695
    %v8697 = vpop.f32.mrf.mxu0
    %v8698 = vadd.f32 0.0, %v8697
    %8699 = vdwg.mxu0
    %8700 = vmatpush.bf16.msra.mxu0 %v8426
    %8701 = vmatpush.bf16.msra.mxu0 %v8422
    %8702 = vmatpush.bf16.msra.mxu0 %v8418
    %8703 = vmatpush.bf16.msra.mxu0 %v8414
    %8704 = vmatpush.bf16.msra.mxu0 %v8410
    %8705 = vmatpush.bf16.msra.mxu0 %v8406
    %8706 = vmatpush.bf16.msra.mxu0 %v8402
    %8707 = vmatpush.bf16.msra.mxu0 %v8398
    %8708 = vmatmul.bf16.gmra.mxu0 %v8657
    %v8709 = vpop.f32.mrf.mxu0
    %v8710 = vadd.f32 0.0, %v8709
    %v8711 = vpop.f32.mrf.mxu0
    %v8712 = vadd.f32 0.0, %v8711
    %8713 = vdwg.mxu0
    %v8714 = vadd.f32 %v8649, %v8668
    %v8715 = vadd.f32 %v8650, %v8682
    %v8716 = vadd.f32 %v8651, %v8696
    %v8717 = vadd.f32 %v8652, %v8710
    %v8718 = vadd.f32 %v8653, %v8670
    %v8719 = vadd.f32 %v8654, %v8684
    %v8720 = vadd.f32 %v8655, %v8698
    %v8721 = vadd.f32 %v8656, %v8712
    %v8722 = vxor.u32 %v8714, 2147483648
    %v8723 = vxor.u32 %v8715, 2147483648
    %v8724 = vxor.u32 %v8717, 2147483648
    %v8725 = vxor.u32 %v8718, 2147483648
    %v8726 = vxor.u32 %v8719, 2147483648
    %v8727 = vxor.u32 %v8721, 2147483648
    %v8728 = vmul.f32 %v8722, 1.442695
    %v8729 = vpow.pop %v8728
    %v8730 = vmul.f32 %v8723, 1.442695
    %v8731 = vpow.pop %v8730
    %v8732 = vmul.f32 %v8724, 1.442695
    %v8733 = vpow.pop %v8732
    %v8734 = vmul.f32 %v8725, 1.442695
    %v8735 = vpow.pop %v8734
    %v8736 = vmul.f32 %v8726, 1.442695
    %v8737 = vpow.pop %v8736
    %v8738 = vmul.f32 %v8727, 1.442695
    %v8739 = vpow.pop %v8738
    %v8740 = vadd.f32 %v8729, 1.0
    %v8741 = vadd.f32 %v8731, 1.0
    %v8742 = vadd.f32 %v8733, 1.0
    %v8743 = vadd.f32 %v8735, 1.0
    %v8744 = vadd.f32 %v8737, 1.0
    %v8745 = vadd.f32 %v8739, 1.0
    %v8746 = vrcp.pop %v8740
    %v8747 = vmul.f32 %v8740, %v8746
    %v8748 = vsub.f32 1.0, %v8747
    %v8749 = vmul.f32 %v8746, %v8748
    %v8750 = vadd.f32 %v8746, %v8749
    %vm8751 = vweird.f32 %v8740
    %vm8752 = vweird.f32 %v8746
    %vm8753 = vmor %vm8751, %vm8752
    %v8754 = vsel %vm8753, %v8746, %v8750
    %v8755 = vand.u32 2147483647, %v8740
    %vm8756 = vcmp.eq.f32.partialorder %v8755, 8.507059e+37
    %v8757 = vand.u32 %v8740, 2147483648
    %v8758 = vor.u32 1.1754944e-38, %v8757
    %v8759 = vsel %vm8756, %v8758, %v8754
    %v8760 = vmul.f32 1.0, %v8759
    %v8761 = vrcp.pop %v8741
    %v8762 = vmul.f32 %v8741, %v8761
    %v8763 = vsub.f32 1.0, %v8762
    %v8764 = vmul.f32 %v8761, %v8763
    %v8765 = vadd.f32 %v8761, %v8764
    %vm8766 = vweird.f32 %v8741
    %vm8767 = vweird.f32 %v8761
    %vm8768 = vmor %vm8766, %vm8767
    %v8769 = vsel %vm8768, %v8761, %v8765
    %v8770 = vand.u32 2147483647, %v8741
    %vm8771 = vcmp.eq.f32.partialorder %v8770, 8.507059e+37
    %v8772 = vand.u32 %v8741, 2147483648
    %v8773 = vor.u32 1.1754944e-38, %v8772
    %v8774 = vsel %vm8771, %v8773, %v8769
    %v8775 = vmul.f32 1.0, %v8774
    %v8776 = vrcp.pop %v8742
    %v8777 = vmul.f32 %v8742, %v8776
    %v8778 = vsub.f32 1.0, %v8777
    %v8779 = vmul.f32 %v8776, %v8778
    %v8780 = vadd.f32 %v8776, %v8779
    %vm8781 = vweird.f32 %v8742
    %vm8782 = vweird.f32 %v8776
    %vm8783 = vmor %vm8781, %vm8782
    %v8784 = vsel %vm8783, %v8776, %v8780
    %v8785 = vand.u32 2147483647, %v8742
    %vm8786 = vcmp.eq.f32.partialorder %v8785, 8.507059e+37
    %v8787 = vand.u32 %v8742, 2147483648
    %v8788 = vor.u32 1.1754944e-38, %v8787
    %v8789 = vsel %vm8786, %v8788, %v8784
    %v8790 = vmul.f32 1.0, %v8789
    %v8791 = vrcp.pop %v8743
    %v8792 = vmul.f32 %v8743, %v8791
    %v8793 = vsub.f32 1.0, %v8792
    %v8794 = vmul.f32 %v8791, %v8793
    %v8795 = vadd.f32 %v8791, %v8794
    %vm8796 = vweird.f32 %v8743
    %vm8797 = vweird.f32 %v8791
    %vm8798 = vmor %vm8796, %vm8797
    %v8799 = vsel %vm8798, %v8791, %v8795
    %v8800 = vand.u32 2147483647, %v8743
    %vm8801 = vcmp.eq.f32.partialorder %v8800, 8.507059e+37
    %v8802 = vand.u32 %v8743, 2147483648
    %v8803 = vor.u32 1.1754944e-38, %v8802
    %v8804 = vsel %vm8801, %v8803, %v8799
    %v8805 = vmul.f32 1.0, %v8804
    %v8806 = vrcp.pop %v8744
    %v8807 = vmul.f32 %v8744, %v8806
    %v8808 = vsub.f32 1.0, %v8807
    %v8809 = vmul.f32 %v8806, %v8808
    %v8810 = vadd.f32 %v8806, %v8809
    %vm8811 = vweird.f32 %v8744
    %vm8812 = vweird.f32 %v8806
    %vm8813 = vmor %vm8811, %vm8812
    %v8814 = vsel %vm8813, %v8806, %v8810
    %v8815 = vand.u32 2147483647, %v8744
    %vm8816 = vcmp.eq.f32.partialorder %v8815, 8.507059e+37
    %v8817 = vand.u32 %v8744, 2147483648
    %v8818 = vor.u32 1.1754944e-38, %v8817
    %v8819 = vsel %vm8816, %v8818, %v8814
    %v8820 = vmul.f32 1.0, %v8819
    %v8821 = vrcp.pop %v8745
    %v8822 = vmul.f32 %v8745, %v8821
    %v8823 = vsub.f32 1.0, %v8822
    %v8824 = vmul.f32 %v8821, %v8823
    %v8825 = vadd.f32 %v8821, %v8824
    %vm8826 = vweird.f32 %v8745
    %vm8827 = vweird.f32 %v8821
    %vm8828 = vmor %vm8826, %vm8827
    %v8829 = vsel %vm8828, %v8821, %v8825
    %v8830 = vand.u32 2147483647, %v8745
    %vm8831 = vcmp.eq.f32.partialorder %v8830, 8.507059e+37
    %v8832 = vand.u32 %v8745, 2147483648
    %v8833 = vor.u32 1.1754944e-38, %v8832
    %v8834 = vsel %vm8831, %v8833, %v8829
    %v8835 = vmul.f32 1.0, %v8834
    %v8836 = vtanh.pop %v8716
    %v8837 = vtanh.pop %v8720
    %v8838 = vmul.f32 %v8775, %v8643
    %v8839 = vmul.f32 %v8820, %v8644
    %v8840 = vmul.f32 %v8760, %v8836
    %v8841 = vmul.f32 %v8805, %v8837
    %v8842 = vadd.f32 %v8838, %v8840
    %v8843 = vadd.f32 %v8839, %v8841
    %v8844 = vtanh.pop %v8842
    %v8845 = vtanh.pop %v8843
    %v8846 = vmul.f32 %v8790, %v8844
    %v8847 = vmul.f32 %v8835, %v8845
    %v8848 = vld [vmem:[%s2475] sm:$0xff]
    %v8849 = vld [vmem:[%s2475 + $0x8] sm:$0xff]
    %v8850 = vld [vmem:[%s2475 + $0x10] sm:$0xff]
    %v8851 = vld [vmem:[%s2475 + $0x18] sm:$0xff]
    %v8852 = vld [vmem:[%s2475 + $0x20] sm:$0xff]
    %v8853 = vld [vmem:[%s2475 + $0x28] sm:$0xff]
    %v8854 = vld [vmem:[%s2475 + $0x30] sm:$0xff]
    %v8855 = vld [vmem:[%s2475 + $0x38] sm:$0xff]
    %v8856 = vpack.c.bf16 %v8847, %v8846
    %8857 = vmatpush.bf16.msra.mxu0 %v8423
    %8858 = vmatpush.bf16.msra.mxu0 %v8419
    %8859 = vmatpush.bf16.msra.mxu0 %v8415
    %8860 = vmatpush.bf16.msra.mxu0 %v8411
    %8861 = vmatpush.bf16.msra.mxu0 %v8407
    %8862 = vmatpush.bf16.msra.mxu0 %v8403
    %8863 = vmatpush.bf16.msra.mxu0 %v8399
    %8864 = vmatpush.bf16.msra.mxu0 %v8395
    %8865 = vmatmul.bf16.gmra.mxu0 %v8856
    %v8866 = vpop.f32.mrf.mxu0
    %v8867 = vadd.f32 0.0, %v8866
    %v8868 = vpop.f32.mrf.mxu0
    %v8869 = vadd.f32 0.0, %v8868
    %8870 = vdwg.mxu0
    %8871 = vmatpush.bf16.msra.mxu0 %v8424
    %8872 = vmatpush.bf16.msra.mxu0 %v8420
    %8873 = vmatpush.bf16.msra.mxu0 %v8416
    %8874 = vmatpush.bf16.msra.mxu0 %v8412
    %8875 = vmatpush.bf16.msra.mxu0 %v8408
    %8876 = vmatpush.bf16.msra.mxu0 %v8404
    %8877 = vmatpush.bf16.msra.mxu0 %v8400
    %8878 = vmatpush.bf16.msra.mxu0 %v8396
    %8879 = vmatmul.bf16.gmra.mxu0 %v8856
    %v8880 = vpop.f32.mrf.mxu0
    %v8881 = vadd.f32 0.0, %v8880
    %v8882 = vpop.f32.mrf.mxu0
    %v8883 = vadd.f32 0.0, %v8882
    %8884 = vdwg.mxu0
    %8885 = vmatpush.bf16.msra.mxu0 %v8425
    %8886 = vmatpush.bf16.msra.mxu0 %v8421
    %8887 = vmatpush.bf16.msra.mxu0 %v8417
    %8888 = vmatpush.bf16.msra.mxu0 %v8413
    %8889 = vmatpush.bf16.msra.mxu0 %v8409
    %8890 = vmatpush.bf16.msra.mxu0 %v8405
    %8891 = vmatpush.bf16.msra.mxu0 %v8401
    %8892 = vmatpush.bf16.msra.mxu0 %v8397
    %8893 = vmatmul.bf16.gmra.mxu0 %v8856
    %v8894 = vpop.f32.mrf.mxu0
    %v8895 = vadd.f32 0.0, %v8894
    %v8896 = vpop.f32.mrf.mxu0
    %v8897 = vadd.f32 0.0, %v8896
    %8898 = vdwg.mxu0
    %8899 = vmatpush.bf16.msra.mxu0 %v8426
    %8900 = vmatpush.bf16.msra.mxu0 %v8422
    %8901 = vmatpush.bf16.msra.mxu0 %v8418
    %8902 = vmatpush.bf16.msra.mxu0 %v8414
    %8903 = vmatpush.bf16.msra.mxu0 %v8410
    %8904 = vmatpush.bf16.msra.mxu0 %v8406
    %8905 = vmatpush.bf16.msra.mxu0 %v8402
    %8906 = vmatpush.bf16.msra.mxu0 %v8398
    %8907 = vmatmul.bf16.gmra.mxu0 %v8856
    %v8908 = vpop.f32.mrf.mxu0
    %v8909 = vadd.f32 0.0, %v8908
    %v8910 = vpop.f32.mrf.mxu0
    %v8911 = vadd.f32 0.0, %v8910
    %8912 = vdwg.mxu0
    %v8913 = vadd.f32 %v8848, %v8867
    %v8914 = vadd.f32 %v8849, %v8881
    %v8915 = vadd.f32 %v8850, %v8895
    %v8916 = vadd.f32 %v8851, %v8909
    %v8917 = vadd.f32 %v8852, %v8869
    %v8918 = vadd.f32 %v8853, %v8883
    %v8919 = vadd.f32 %v8854, %v8897
    %v8920 = vadd.f32 %v8855, %v8911
    %v8921 = vxor.u32 %v8913, 2147483648
    %v8922 = vxor.u32 %v8914, 2147483648
    %v8923 = vxor.u32 %v8916, 2147483648
    %v8924 = vxor.u32 %v8917, 2147483648
    %v8925 = vxor.u32 %v8918, 2147483648
    %v8926 = vxor.u32 %v8920, 2147483648
    %v8927 = vmul.f32 %v8921, 1.442695
    %v8928 = vpow.pop %v8927
    %v8929 = vmul.f32 %v8922, 1.442695
    %v8930 = vpow.pop %v8929
    %v8931 = vmul.f32 %v8923, 1.442695
    %v8932 = vpow.pop %v8931
    %v8933 = vmul.f32 %v8924, 1.442695
    %v8934 = vpow.pop %v8933
    %v8935 = vmul.f32 %v8925, 1.442695
    %v8936 = vpow.pop %v8935
    %v8937 = vmul.f32 %v8926, 1.442695
    %v8938 = vpow.pop %v8937
    %v8939 = vadd.f32 %v8928, 1.0
    %v8940 = vadd.f32 %v8930, 1.0
    %v8941 = vadd.f32 %v8932, 1.0
    %v8942 = vadd.f32 %v8934, 1.0
    %v8943 = vadd.f32 %v8936, 1.0
    %v8944 = vadd.f32 %v8938, 1.0
    %v8945 = vrcp.pop %v8939
    %v8946 = vmul.f32 %v8939, %v8945
    %v8947 = vsub.f32 1.0, %v8946
    %v8948 = vmul.f32 %v8945, %v8947
    %v8949 = vadd.f32 %v8945, %v8948
    %vm8950 = vweird.f32 %v8939
    %vm8951 = vweird.f32 %v8945
    %vm8952 = vmor %vm8950, %vm8951
    %v8953 = vsel %vm8952, %v8945, %v8949
    %v8954 = vand.u32 2147483647, %v8939
    %vm8955 = vcmp.eq.f32.partialorder %v8954, 8.507059e+37
    %v8956 = vand.u32 %v8939, 2147483648
    %v8957 = vor.u32 1.1754944e-38, %v8956
    %v8958 = vsel %vm8955, %v8957, %v8953
    %v8959 = vmul.f32 1.0, %v8958
    %v8960 = vrcp.pop %v8940
    %v8961 = vmul.f32 %v8940, %v8960
    %v8962 = vsub.f32 1.0, %v8961
    %v8963 = vmul.f32 %v8960, %v8962
    %v8964 = vadd.f32 %v8960, %v8963
    %vm8965 = vweird.f32 %v8940
    %vm8966 = vweird.f32 %v8960
    %vm8967 = vmor %vm8965, %vm8966
    %v8968 = vsel %vm8967, %v8960, %v8964
    %v8969 = vand.u32 2147483647, %v8940
    %vm8970 = vcmp.eq.f32.partialorder %v8969, 8.507059e+37
    %v8971 = vand.u32 %v8940, 2147483648
    %v8972 = vor.u32 1.1754944e-38, %v8971
    %v8973 = vsel %vm8970, %v8972, %v8968
    %v8974 = vmul.f32 1.0, %v8973
    %v8975 = vrcp.pop %v8941
    %v8976 = vmul.f32 %v8941, %v8975
    %v8977 = vsub.f32 1.0, %v8976
    %v8978 = vmul.f32 %v8975, %v8977
    %v8979 = vadd.f32 %v8975, %v8978
    %vm8980 = vweird.f32 %v8941
    %vm8981 = vweird.f32 %v8975
    %vm8982 = vmor %vm8980, %vm8981
    %v8983 = vsel %vm8982, %v8975, %v8979
    %v8984 = vand.u32 2147483647, %v8941
    %vm8985 = vcmp.eq.f32.partialorder %v8984, 8.507059e+37
    %v8986 = vand.u32 %v8941, 2147483648
    %v8987 = vor.u32 1.1754944e-38, %v8986
    %v8988 = vsel %vm8985, %v8987, %v8983
    %v8989 = vmul.f32 1.0, %v8988
    %v8990 = vrcp.pop %v8942
    %v8991 = vmul.f32 %v8942, %v8990
    %v8992 = vsub.f32 1.0, %v8991
    %v8993 = vmul.f32 %v8990, %v8992
    %v8994 = vadd.f32 %v8990, %v8993
    %vm8995 = vweird.f32 %v8942
    %vm8996 = vweird.f32 %v8990
    %vm8997 = vmor %vm8995, %vm8996
    %v8998 = vsel %vm8997, %v8990, %v8994
    %v8999 = vand.u32 2147483647, %v8942
    %vm9000 = vcmp.eq.f32.partialorder %v8999, 8.507059e+37
    %v9001 = vand.u32 %v8942, 2147483648
    %v9002 = vor.u32 1.1754944e-38, %v9001
    %v9003 = vsel %vm9000, %v9002, %v8998
    %v9004 = vmul.f32 1.0, %v9003
    %v9005 = vrcp.pop %v8943
    %v9006 = vmul.f32 %v8943, %v9005
    %v9007 = vsub.f32 1.0, %v9006
    %v9008 = vmul.f32 %v9005, %v9007
    %v9009 = vadd.f32 %v9005, %v9008
    %vm9010 = vweird.f32 %v8943
    %vm9011 = vweird.f32 %v9005
    %vm9012 = vmor %vm9010, %vm9011
    %v9013 = vsel %vm9012, %v9005, %v9009
    %v9014 = vand.u32 2147483647, %v8943
    %vm9015 = vcmp.eq.f32.partialorder %v9014, 8.507059e+37
    %v9016 = vand.u32 %v8943, 2147483648
    %v9017 = vor.u32 1.1754944e-38, %v9016
    %v9018 = vsel %vm9015, %v9017, %v9013
    %v9019 = vmul.f32 1.0, %v9018
    %v9020 = vrcp.pop %v8944
    %v9021 = vmul.f32 %v8944, %v9020
    %v9022 = vsub.f32 1.0, %v9021
    %v9023 = vmul.f32 %v9020, %v9022
    %v9024 = vadd.f32 %v9020, %v9023
    %vm9025 = vweird.f32 %v8944
    %vm9026 = vweird.f32 %v9020
    %vm9027 = vmor %vm9025, %vm9026
    %v9028 = vsel %vm9027, %v9020, %v9024
    %v9029 = vand.u32 2147483647, %v8944
    %vm9030 = vcmp.eq.f32.partialorder %v9029, 8.507059e+37
    %v9031 = vand.u32 %v8944, 2147483648
    %v9032 = vor.u32 1.1754944e-38, %v9031
    %v9033 = vsel %vm9030, %v9032, %v9028
    %v9034 = vmul.f32 1.0, %v9033
    %v9035 = vtanh.pop %v8915
    %v9036 = vtanh.pop %v8919
    %v9037 = vmul.f32 %v8974, %v8842
    %v9038 = vmul.f32 %v9019, %v8843
    %v9039 = vmul.f32 %v8959, %v9035
    %v9040 = vmul.f32 %v9004, %v9036
    %v9041 = vadd.f32 %v9037, %v9039
    %v9042 = vadd.f32 %v9038, %v9040
    %v9043 = vtanh.pop %v9041
    %v9044 = vtanh.pop %v9042
    %v9045 = vmul.f32 %v8989, %v9043
    %v9046 = vmul.f32 %v9034, %v9044
    %v9047 = vld [vmem:[%s3287] sm:$0xff]
    %v9048 = vld [vmem:[%s3287 + $0x8] sm:$0xff]
    %v9049 = vld [vmem:[%s3287 + $0x10] sm:$0xff]
    %v9050 = vld [vmem:[%s3287 + $0x18] sm:$0xff]
    %v9051 = vld [vmem:[%s3287 + $0x20] sm:$0xff]
    %v9052 = vld [vmem:[%s3287 + $0x28] sm:$0xff]
    %v9053 = vld [vmem:[%s3287 + $0x30] sm:$0xff]
    %v9054 = vld [vmem:[%s3287 + $0x38] sm:$0xff]
    %v9055 = vpack.c.bf16 %v9046, %v9045
    %9056 = vmatpush.bf16.msra.mxu0 %v8423
    %9057 = vmatpush.bf16.msra.mxu0 %v8419
    %9058 = vmatpush.bf16.msra.mxu0 %v8415
    %9059 = vmatpush.bf16.msra.mxu0 %v8411
    %9060 = vmatpush.bf16.msra.mxu0 %v8407
    %9061 = vmatpush.bf16.msra.mxu0 %v8403
    %9062 = vmatpush.bf16.msra.mxu0 %v8399
    %9063 = vmatpush.bf16.msra.mxu0 %v8395
    %9064 = vmatmul.bf16.gmra.mxu0 %v9055
    %v9065 = vpop.f32.mrf.mxu0
    %v9066 = vadd.f32 0.0, %v9065
    %v9067 = vpop.f32.mrf.mxu0
    %v9068 = vadd.f32 0.0, %v9067
    %9069 = vdwg.mxu0
    %9070 = vmatpush.bf16.msra.mxu0 %v8424
    %9071 = vmatpush.bf16.msra.mxu0 %v8420
    %9072 = vmatpush.bf16.msra.mxu0 %v8416
    %9073 = vmatpush.bf16.msra.mxu0 %v8412
    %9074 = vmatpush.bf16.msra.mxu0 %v8408
    %9075 = vmatpush.bf16.msra.mxu0 %v8404
    %9076 = vmatpush.bf16.msra.mxu0 %v8400
    %9077 = vmatpush.bf16.msra.mxu0 %v8396
    %9078 = vmatmul.bf16.gmra.mxu0 %v9055
    %v9079 = vpop.f32.mrf.mxu0
    %v9080 = vadd.f32 0.0, %v9079
    %v9081 = vpop.f32.mrf.mxu0
    %v9082 = vadd.f32 0.0, %v9081
    %9083 = vdwg.mxu0
    %9084 = vmatpush.bf16.msra.mxu0 %v8425
    %9085 = vmatpush.bf16.msra.mxu0 %v8421
    %9086 = vmatpush.bf16.msra.mxu0 %v8417
    %9087 = vmatpush.bf16.msra.mxu0 %v8413
    %9088 = vmatpush.bf16.msra.mxu0 %v8409
    %9089 = vmatpush.bf16.msra.mxu0 %v8405
    %9090 = vmatpush.bf16.msra.mxu0 %v8401
    %9091 = vmatpush.bf16.msra.mxu0 %v8397
    %9092 = vmatmul.bf16.gmra.mxu0 %v9055
    %v9093 = vpop.f32.mrf.mxu0
    %v9094 = vadd.f32 0.0, %v9093
    %v9095 = vpop.f32.mrf.mxu0
    %v9096 = vadd.f32 0.0, %v9095
    %9097 = vdwg.mxu0
    %9098 = vmatpush.bf16.msra.mxu0 %v8426
    %9099 = vmatpush.bf16.msra.mxu0 %v8422
    %9100 = vmatpush.bf16.msra.mxu0 %v8418
    %9101 = vmatpush.bf16.msra.mxu0 %v8414
    %9102 = vmatpush.bf16.msra.mxu0 %v8410
    %9103 = vmatpush.bf16.msra.mxu0 %v8406
    %9104 = vmatpush.bf16.msra.mxu0 %v8402
    %9105 = vmatpush.bf16.msra.mxu0 %v8398
    %9106 = vmatmul.bf16.gmra.mxu0 %v9055
    %v9107 = vpop.f32.mrf.mxu0
    %v9108 = vadd.f32 0.0, %v9107
    %v9109 = vpop.f32.mrf.mxu0
    %v9110 = vadd.f32 0.0, %v9109
    %9111 = vdwg.mxu0
    %v9112 = vadd.f32 %v9047, %v9066
    %v9113 = vadd.f32 %v9048, %v9080
    %v9114 = vadd.f32 %v9049, %v9094
    %v9115 = vadd.f32 %v9050, %v9108
    %v9116 = vadd.f32 %v9051, %v9068
    %v9117 = vadd.f32 %v9052, %v9082
    %v9118 = vadd.f32 %v9053, %v9096
    %v9119 = vadd.f32 %v9054, %v9110
    %v9120 = vxor.u32 %v9112, 2147483648
    %v9121 = vxor.u32 %v9113, 2147483648
    %v9122 = vxor.u32 %v9115, 2147483648
    %v9123 = vxor.u32 %v9116, 2147483648
    %v9124 = vxor.u32 %v9117, 2147483648
    %v9125 = vxor.u32 %v9119, 2147483648
    %v9126 = vmul.f32 %v9120, 1.442695
    %v9127 = vpow.pop %v9126
    %v9128 = vmul.f32 %v9121, 1.442695
    %v9129 = vpow.pop %v9128
    %v9130 = vmul.f32 %v9122, 1.442695
    %v9131 = vpow.pop %v9130
    %v9132 = vmul.f32 %v9123, 1.442695
    %v9133 = vpow.pop %v9132
    %v9134 = vmul.f32 %v9124, 1.442695
    %v9135 = vpow.pop %v9134
    %v9136 = vmul.f32 %v9125, 1.442695
    %v9137 = vpow.pop %v9136
    %v9138 = vadd.f32 %v9127, 1.0
    %v9139 = vadd.f32 %v9129, 1.0
    %v9140 = vadd.f32 %v9131, 1.0
    %v9141 = vadd.f32 %v9133, 1.0
    %v9142 = vadd.f32 %v9135, 1.0
    %v9143 = vadd.f32 %v9137, 1.0
    %v9144 = vrcp.pop %v9138
    %v9145 = vmul.f32 %v9138, %v9144
    %v9146 = vsub.f32 1.0, %v9145
    %v9147 = vmul.f32 %v9144, %v9146
    %v9148 = vadd.f32 %v9144, %v9147
    %vm9149 = vweird.f32 %v9138
    %vm9150 = vweird.f32 %v9144
    %vm9151 = vmor %vm9149, %vm9150
    %v9152 = vsel %vm9151, %v9144, %v9148
    %v9153 = vand.u32 2147483647, %v9138
    %vm9154 = vcmp.eq.f32.partialorder %v9153, 8.507059e+37
    %v9155 = vand.u32 %v9138, 2147483648
    %v9156 = vor.u32 1.1754944e-38, %v9155
    %v9157 = vsel %vm9154, %v9156, %v9152
    %v9158 = vmul.f32 1.0, %v9157
    %v9159 = vrcp.pop %v9139
    %v9160 = vmul.f32 %v9139, %v9159
    %v9161 = vsub.f32 1.0, %v9160
    %v9162 = vmul.f32 %v9159, %v9161
    %v9163 = vadd.f32 %v9159, %v9162
    %vm9164 = vweird.f32 %v9139
    %vm9165 = vweird.f32 %v9159
    %vm9166 = vmor %vm9164, %vm9165
    %v9167 = vsel %vm9166, %v9159, %v9163
    %v9168 = vand.u32 2147483647, %v9139
    %vm9169 = vcmp.eq.f32.partialorder %v9168, 8.507059e+37
    %v9170 = vand.u32 %v9139, 2147483648
    %v9171 = vor.u32 1.1754944e-38, %v9170
    %v9172 = vsel %vm9169, %v9171, %v9167
    %v9173 = vmul.f32 1.0, %v9172
    %v9174 = vrcp.pop %v9140
    %v9175 = vmul.f32 %v9140, %v9174
    %v9176 = vsub.f32 1.0, %v9175
    %v9177 = vmul.f32 %v9174, %v9176
    %v9178 = vadd.f32 %v9174, %v9177
    %vm9179 = vweird.f32 %v9140
    %vm9180 = vweird.f32 %v9174
    %vm9181 = vmor %vm9179, %vm9180
    %v9182 = vsel %vm9181, %v9174, %v9178
    %v9183 = vand.u32 2147483647, %v9140
    %vm9184 = vcmp.eq.f32.partialorder %v9183, 8.507059e+37
    %v9185 = vand.u32 %v9140, 2147483648
    %v9186 = vor.u32 1.1754944e-38, %v9185
    %v9187 = vsel %vm9184, %v9186, %v9182
    %v9188 = vmul.f32 1.0, %v9187
    %v9189 = vrcp.pop %v9141
    %v9190 = vmul.f32 %v9141, %v9189
    %v9191 = vsub.f32 1.0, %v9190
    %v9192 = vmul.f32 %v9189, %v9191
    %v9193 = vadd.f32 %v9189, %v9192
    %vm9194 = vweird.f32 %v9141
    %vm9195 = vweird.f32 %v9189
    %vm9196 = vmor %vm9194, %vm9195
    %v9197 = vsel %vm9196, %v9189, %v9193
    %v9198 = vand.u32 2147483647, %v9141
    %vm9199 = vcmp.eq.f32.partialorder %v9198, 8.507059e+37
    %v9200 = vand.u32 %v9141, 2147483648
    %v9201 = vor.u32 1.1754944e-38, %v9200
    %v9202 = vsel %vm9199, %v9201, %v9197
    %v9203 = vmul.f32 1.0, %v9202
    %v9204 = vrcp.pop %v9142
    %v9205 = vmul.f32 %v9142, %v9204
    %v9206 = vsub.f32 1.0, %v9205
    %v9207 = vmul.f32 %v9204, %v9206
    %v9208 = vadd.f32 %v9204, %v9207
    %vm9209 = vweird.f32 %v9142
    %vm9210 = vweird.f32 %v9204
    %vm9211 = vmor %vm9209, %vm9210
    %v9212 = vsel %vm9211, %v9204, %v9208
    %v9213 = vand.u32 2147483647, %v9142
    %vm9214 = vcmp.eq.f32.partialorder %v9213, 8.507059e+37
    %v9215 = vand.u32 %v9142, 2147483648
    %v9216 = vor.u32 1.1754944e-38, %v9215
    %v9217 = vsel %vm9214, %v9216, %v9212
    %v9218 = vmul.f32 1.0, %v9217
    %v9219 = vrcp.pop %v9143
    %v9220 = vmul.f32 %v9143, %v9219
    %v9221 = vsub.f32 1.0, %v9220
    %v9222 = vmul.f32 %v9219, %v9221
    %v9223 = vadd.f32 %v9219, %v9222
    %vm9224 = vweird.f32 %v9143
    %vm9225 = vweird.f32 %v9219
    %vm9226 = vmor %vm9224, %vm9225
    %v9227 = vsel %vm9226, %v9219, %v9223
    %v9228 = vand.u32 2147483647, %v9143
    %vm9229 = vcmp.eq.f32.partialorder %v9228, 8.507059e+37
    %v9230 = vand.u32 %v9143, 2147483648
    %v9231 = vor.u32 1.1754944e-38, %v9230
    %v9232 = vsel %vm9229, %v9231, %v9227
    %v9233 = vmul.f32 1.0, %v9232
    %v9234 = vtanh.pop %v9114
    %v9235 = vtanh.pop %v9118
    %v9236 = vmul.f32 %v9173, %v9041
    %v9237 = vmul.f32 %v9218, %v9042
    %v9238 = vmul.f32 %v9158, %v9234
    %v9239 = vmul.f32 %v9203, %v9235
    %v9240 = vadd.f32 %v9236, %v9238
    %v9241 = vadd.f32 %v9237, %v9239
    %v9242 = vtanh.pop %v9240
    %v9243 = vtanh.pop %v9241
    %v9244 = vmul.f32 %v9188, %v9242
    %v9245 = vmul.f32 %v9233, %v9243
    %v9246 = vld [vmem:[%s4098] sm:$0xff]
    %v9247 = vld [vmem:[%s4098 + $0x8] sm:$0xff]
    %v9248 = vld [vmem:[%s4098 + $0x10] sm:$0xff]
    %v9249 = vld [vmem:[%s4098 + $0x18] sm:$0xff]
    %v9250 = vld [vmem:[%s4098 + $0x20] sm:$0xff]
    %v9251 = vld [vmem:[%s4098 + $0x28] sm:$0xff]
    %v9252 = vld [vmem:[%s4098 + $0x30] sm:$0xff]
    %v9253 = vld [vmem:[%s4098 + $0x38] sm:$0xff]
    %v9254 = vpack.c.bf16 %v9245, %v9244
    %9255 = vmatpush.bf16.msra.mxu0 %v8423
    %9256 = vmatpush.bf16.msra.mxu0 %v8419
    %9257 = vmatpush.bf16.msra.mxu0 %v8415
    %9258 = vmatpush.bf16.msra.mxu0 %v8411
    %9259 = vmatpush.bf16.msra.mxu0 %v8407
    %9260 = vmatpush.bf16.msra.mxu0 %v8403
    %9261 = vmatpush.bf16.msra.mxu0 %v8399
    %9262 = vmatpush.bf16.msra.mxu0 %v8395
    %9263 = vmatmul.bf16.gmra.mxu0 %v9254
    %v9264 = vpop.f32.mrf.mxu0
    %v9265 = vadd.f32 0.0, %v9264
    %v9266 = vpop.f32.mrf.mxu0
    %v9267 = vadd.f32 0.0, %v9266
    %9268 = vdwg.mxu0
    %9269 = vmatpush.bf16.msra.mxu0 %v8424
    %9270 = vmatpush.bf16.msra.mxu0 %v8420
    %9271 = vmatpush.bf16.msra.mxu0 %v8416
    %9272 = vmatpush.bf16.msra.mxu0 %v8412
    %9273 = vmatpush.bf16.msra.mxu0 %v8408
    %9274 = vmatpush.bf16.msra.mxu0 %v8404
    %9275 = vmatpush.bf16.msra.mxu0 %v8400
    %9276 = vmatpush.bf16.msra.mxu0 %v8396
    %9277 = vmatmul.bf16.gmra.mxu0 %v9254
    %v9278 = vpop.f32.mrf.mxu0
    %v9279 = vadd.f32 0.0, %v9278
    %v9280 = vpop.f32.mrf.mxu0
    %v9281 = vadd.f32 0.0, %v9280
    %9282 = vdwg.mxu0
    %9283 = vmatpush.bf16.msra.mxu0 %v8425
    %9284 = vmatpush.bf16.msra.mxu0 %v8421
    %9285 = vmatpush.bf16.msra.mxu0 %v8417
    %9286 = vmatpush.bf16.msra.mxu0 %v8413
    %9287 = vmatpush.bf16.msra.mxu0 %v8409
    %9288 = vmatpush.bf16.msra.mxu0 %v8405
    %9289 = vmatpush.bf16.msra.mxu0 %v8401
    %9290 = vmatpush.bf16.msra.mxu0 %v8397
    %9291 = vmatmul.bf16.gmra.mxu0 %v9254
    %v9292 = vpop.f32.mrf.mxu0
    %v9293 = vadd.f32 0.0, %v9292
    %v9294 = vpop.f32.mrf.mxu0
    %v9295 = vadd.f32 0.0, %v9294
    %9296 = vdwg.mxu0
    %9297 = vmatpush.bf16.msra.mxu0 %v8426
    %9298 = vmatpush.bf16.msra.mxu0 %v8422
    %9299 = vmatpush.bf16.msra.mxu0 %v8418
    %9300 = vmatpush.bf16.msra.mxu0 %v8414
    %9301 = vmatpush.bf16.msra.mxu0 %v8410
    %9302 = vmatpush.bf16.msra.mxu0 %v8406
    %9303 = vmatpush.bf16.msra.mxu0 %v8402
    %9304 = vmatpush.bf16.msra.mxu0 %v8398
    %9305 = vmatmul.bf16.gmra.mxu0 %v9254
    %v9306 = vpop.f32.mrf.mxu0
    %v9307 = vadd.f32 0.0, %v9306
    %v9308 = vpop.f32.mrf.mxu0
    %v9309 = vadd.f32 0.0, %v9308
    %9310 = vdwg.mxu0
    %v9311 = vadd.f32 %v9246, %v9265
    %v9312 = vadd.f32 %v9247, %v9279
    %v9313 = vadd.f32 %v9248, %v9293
    %v9314 = vadd.f32 %v9249, %v9307
    %v9315 = vadd.f32 %v9250, %v9267
    %v9316 = vadd.f32 %v9251, %v9281
    %v9317 = vadd.f32 %v9252, %v9295
    %v9318 = vadd.f32 %v9253, %v9309
    %v9319 = vxor.u32 %v9311, 2147483648
    %v9320 = vxor.u32 %v9312, 2147483648
    %v9321 = vxor.u32 %v9314, 2147483648
    %v9322 = vxor.u32 %v9315, 2147483648
    %v9323 = vxor.u32 %v9316, 2147483648
    %v9324 = vxor.u32 %v9318, 2147483648
    %v9325 = vmul.f32 %v9319, 1.442695
    %v9326 = vpow.pop %v9325
    %v9327 = vmul.f32 %v9320, 1.442695
    %v9328 = vpow.pop %v9327
    %v9329 = vmul.f32 %v9321, 1.442695
    %v9330 = vpow.pop %v9329
    %v9331 = vmul.f32 %v9322, 1.442695
    %v9332 = vpow.pop %v9331
    %v9333 = vmul.f32 %v9323, 1.442695
    %v9334 = vpow.pop %v9333
    %v9335 = vmul.f32 %v9324, 1.442695
    %v9336 = vpow.pop %v9335
    %v9337 = vadd.f32 %v9326, 1.0
    %v9338 = vadd.f32 %v9328, 1.0
    %v9339 = vadd.f32 %v9330, 1.0
    %v9340 = vadd.f32 %v9332, 1.0
    %v9341 = vadd.f32 %v9334, 1.0
    %v9342 = vadd.f32 %v9336, 1.0
    %v9343 = vrcp.pop %v9337
    %v9344 = vmul.f32 %v9337, %v9343
    %v9345 = vsub.f32 1.0, %v9344
    %v9346 = vmul.f32 %v9343, %v9345
    %v9347 = vadd.f32 %v9343, %v9346
    %vm9348 = vweird.f32 %v9337
    %vm9349 = vweird.f32 %v9343
    %vm9350 = vmor %vm9348, %vm9349
    %v9351 = vsel %vm9350, %v9343, %v9347
    %v9352 = vand.u32 2147483647, %v9337
    %vm9353 = vcmp.eq.f32.partialorder %v9352, 8.507059e+37
    %v9354 = vand.u32 %v9337, 2147483648
    %v9355 = vor.u32 1.1754944e-38, %v9354
    %v9356 = vsel %vm9353, %v9355, %v9351
    %v9357 = vmul.f32 1.0, %v9356
    %v9358 = vrcp.pop %v9338
    %v9359 = vmul.f32 %v9338, %v9358
    %v9360 = vsub.f32 1.0, %v9359
    %v9361 = vmul.f32 %v9358, %v9360
    %v9362 = vadd.f32 %v9358, %v9361
    %vm9363 = vweird.f32 %v9338
    %vm9364 = vweird.f32 %v9358
    %vm9365 = vmor %vm9363, %vm9364
    %v9366 = vsel %vm9365, %v9358, %v9362
    %v9367 = vand.u32 2147483647, %v9338
    %vm9368 = vcmp.eq.f32.partialorder %v9367, 8.507059e+37
    %v9369 = vand.u32 %v9338, 2147483648
    %v9370 = vor.u32 1.1754944e-38, %v9369
    %v9371 = vsel %vm9368, %v9370, %v9366
    %v9372 = vmul.f32 1.0, %v9371
    %v9373 = vrcp.pop %v9339
    %v9374 = vmul.f32 %v9339, %v9373
    %v9375 = vsub.f32 1.0, %v9374
    %v9376 = vmul.f32 %v9373, %v9375
    %v9377 = vadd.f32 %v9373, %v9376
    %vm9378 = vweird.f32 %v9339
    %vm9379 = vweird.f32 %v9373
    %vm9380 = vmor %vm9378, %vm9379
    %v9381 = vsel %vm9380, %v9373, %v9377
    %v9382 = vand.u32 2147483647, %v9339
    %vm9383 = vcmp.eq.f32.partialorder %v9382, 8.507059e+37
    %v9384 = vand.u32 %v9339, 2147483648
    %v9385 = vor.u32 1.1754944e-38, %v9384
    %v9386 = vsel %vm9383, %v9385, %v9381
    %v9387 = vmul.f32 1.0, %v9386
    %v9388 = vrcp.pop %v9340
    %v9389 = vmul.f32 %v9340, %v9388
    %v9390 = vsub.f32 1.0, %v9389
    %v9391 = vmul.f32 %v9388, %v9390
    %v9392 = vadd.f32 %v9388, %v9391
    %vm9393 = vweird.f32 %v9340
    %vm9394 = vweird.f32 %v9388
    %vm9395 = vmor %vm9393, %vm9394
    %v9396 = vsel %vm9395, %v9388, %v9392
    %v9397 = vand.u32 2147483647, %v9340
    %vm9398 = vcmp.eq.f32.partialorder %v9397, 8.507059e+37
    %v9399 = vand.u32 %v9340, 2147483648
    %v9400 = vor.u32 1.1754944e-38, %v9399
    %v9401 = vsel %vm9398, %v9400, %v9396
    %v9402 = vmul.f32 1.0, %v9401
    %v9403 = vrcp.pop %v9341
    %v9404 = vmul.f32 %v9341, %v9403
    %v9405 = vsub.f32 1.0, %v9404
    %v9406 = vmul.f32 %v9403, %v9405
    %v9407 = vadd.f32 %v9403, %v9406
    %vm9408 = vweird.f32 %v9341
    %vm9409 = vweird.f32 %v9403
    %vm9410 = vmor %vm9408, %vm9409
    %v9411 = vsel %vm9410, %v9403, %v9407
    %v9412 = vand.u32 2147483647, %v9341
    %vm9413 = vcmp.eq.f32.partialorder %v9412, 8.507059e+37
    %v9414 = vand.u32 %v9341, 2147483648
    %v9415 = vor.u32 1.1754944e-38, %v9414
    %v9416 = vsel %vm9413, %v9415, %v9411
    %v9417 = vmul.f32 1.0, %v9416
    %v9418 = vrcp.pop %v9342
    %v9419 = vmul.f32 %v9342, %v9418
    %v9420 = vsub.f32 1.0, %v9419
    %v9421 = vmul.f32 %v9418, %v9420
    %v9422 = vadd.f32 %v9418, %v9421
    %vm9423 = vweird.f32 %v9342
    %vm9424 = vweird.f32 %v9418
    %vm9425 = vmor %vm9423, %vm9424
    %v9426 = vsel %vm9425, %v9418, %v9422
    %v9427 = vand.u32 2147483647, %v9342
    %vm9428 = vcmp.eq.f32.partialorder %v9427, 8.507059e+37
    %v9429 = vand.u32 %v9342, 2147483648
    %v9430 = vor.u32 1.1754944e-38, %v9429
    %v9431 = vsel %vm9428, %v9430, %v9426
    %v9432 = vmul.f32 1.0, %v9431
    %v9433 = vtanh.pop %v9313
    %v9434 = vtanh.pop %v9317
    %v9435 = vmul.f32 %v9372, %v9240
    %v9436 = vmul.f32 %v9417, %v9241
    %v9437 = vmul.f32 %v9357, %v9433
    %v9438 = vmul.f32 %v9402, %v9434
    %v9439 = vadd.f32 %v9435, %v9437
    %v9440 = vadd.f32 %v9436, %v9438
    %v9441 = vtanh.pop %v9439
    %v9442 = vtanh.pop %v9440
    %v9443 = vmul.f32 %v9387, %v9441
    %v9444 = vmul.f32 %v9432, %v9442
    %v9445 = vld [vmem:[%s4902] sm:$0xff]
    %v9446 = vld [vmem:[%s4902 + $0x8] sm:$0xff]
    %v9447 = vld [vmem:[%s4902 + $0x10] sm:$0xff]
    %v9448 = vld [vmem:[%s4902 + $0x18] sm:$0xff]
    %v9449 = vld [vmem:[%s4902 + $0x20] sm:$0xff]
    %v9450 = vld [vmem:[%s4902 + $0x28] sm:$0xff]
    %v9451 = vld [vmem:[%s4902 + $0x30] sm:$0xff]
    %v9452 = vld [vmem:[%s4902 + $0x38] sm:$0xff]
    %v9453 = vpack.c.bf16 %v9444, %v9443
    %9454 = vmatpush.bf16.msra.mxu0 %v8423
    %9455 = vmatpush.bf16.msra.mxu0 %v8419
    %9456 = vmatpush.bf16.msra.mxu0 %v8415
    %9457 = vmatpush.bf16.msra.mxu0 %v8411
    %9458 = vmatpush.bf16.msra.mxu0 %v8407
    %9459 = vmatpush.bf16.msra.mxu0 %v8403
    %9460 = vmatpush.bf16.msra.mxu0 %v8399
    %9461 = vmatpush.bf16.msra.mxu0 %v8395
    %9462 = vmatmul.bf16.gmra.mxu0 %v9453
    %v9463 = vpop.f32.mrf.mxu0
    %v9464 = vadd.f32 0.0, %v9463
    %v9465 = vpop.f32.mrf.mxu0
    %v9466 = vadd.f32 0.0, %v9465
    %9467 = vdwg.mxu0
    %9468 = vmatpush.bf16.msra.mxu0 %v8424
    %9469 = vmatpush.bf16.msra.mxu0 %v8420
    %9470 = vmatpush.bf16.msra.mxu0 %v8416
    %9471 = vmatpush.bf16.msra.mxu0 %v8412
    %9472 = vmatpush.bf16.msra.mxu0 %v8408
    %9473 = vmatpush.bf16.msra.mxu0 %v8404
    %9474 = vmatpush.bf16.msra.mxu0 %v8400
    %9475 = vmatpush.bf16.msra.mxu0 %v8396
    %9476 = vmatmul.bf16.gmra.mxu0 %v9453
    %v9477 = vpop.f32.mrf.mxu0
    %v9478 = vadd.f32 0.0, %v9477
    %v9479 = vpop.f32.mrf.mxu0
    %v9480 = vadd.f32 0.0, %v9479
    %9481 = vdwg.mxu0
    %9482 = vmatpush.bf16.msra.mxu0 %v8425
    %9483 = vmatpush.bf16.msra.mxu0 %v8421
    %9484 = vmatpush.bf16.msra.mxu0 %v8417
    %9485 = vmatpush.bf16.msra.mxu0 %v8413
    %9486 = vmatpush.bf16.msra.mxu0 %v8409
    %9487 = vmatpush.bf16.msra.mxu0 %v8405
    %9488 = vmatpush.bf16.msra.mxu0 %v8401
    %9489 = vmatpush.bf16.msra.mxu0 %v8397
    %9490 = vmatmul.bf16.gmra.mxu0 %v9453
    %v9491 = vpop.f32.mrf.mxu0
    %v9492 = vadd.f32 0.0, %v9491
    %v9493 = vpop.f32.mrf.mxu0
    %v9494 = vadd.f32 0.0, %v9493
    %9495 = vdwg.mxu0
    %9496 = vmatpush.bf16.msra.mxu0 %v8426
    %9497 = vmatpush.bf16.msra.mxu0 %v8422
    %9498 = vmatpush.bf16.msra.mxu0 %v8418
    %9499 = vmatpush.bf16.msra.mxu0 %v8414
    %9500 = vmatpush.bf16.msra.mxu0 %v8410
    %9501 = vmatpush.bf16.msra.mxu0 %v8406
    %9502 = vmatpush.bf16.msra.mxu0 %v8402
    %9503 = vmatpush.bf16.msra.mxu0 %v8398
    %9504 = vmatmul.bf16.gmra.mxu0 %v9453
    %v9505 = vpop.f32.mrf.mxu0
    %v9506 = vadd.f32 0.0, %v9505
    %v9507 = vpop.f32.mrf.mxu0
    %v9508 = vadd.f32 0.0, %v9507
    %9509 = vdwg.mxu0
    %v9510 = vadd.f32 %v9445, %v9464
    %v9511 = vadd.f32 %v9446, %v9478
    %v9512 = vadd.f32 %v9447, %v9492
    %v9513 = vadd.f32 %v9448, %v9506
    %v9514 = vadd.f32 %v9449, %v9466
    %v9515 = vadd.f32 %v9450, %v9480
    %v9516 = vadd.f32 %v9451, %v9494
    %v9517 = vadd.f32 %v9452, %v9508
    %v9518 = vxor.u32 %v9510, 2147483648
    %v9519 = vxor.u32 %v9511, 2147483648
    %v9520 = vxor.u32 %v9513, 2147483648
    %v9521 = vxor.u32 %v9514, 2147483648
    %v9522 = vxor.u32 %v9515, 2147483648
    %v9523 = vxor.u32 %v9517, 2147483648
    %v9524 = vmul.f32 %v9518, 1.442695
    %v9525 = vpow.pop %v9524
    %v9526 = vmul.f32 %v9519, 1.442695
    %v9527 = vpow.pop %v9526
    %v9528 = vmul.f32 %v9520, 1.442695
    %v9529 = vpow.pop %v9528
    %v9530 = vmul.f32 %v9521, 1.442695
    %v9531 = vpow.pop %v9530
    %v9532 = vmul.f32 %v9522, 1.442695
    %v9533 = vpow.pop %v9532
    %v9534 = vmul.f32 %v9523, 1.442695
    %v9535 = vpow.pop %v9534
    %v9536 = vadd.f32 %v9525, 1.0
    %v9537 = vadd.f32 %v9527, 1.0
    %v9538 = vadd.f32 %v9529, 1.0
    %v9539 = vadd.f32 %v9531, 1.0
    %v9540 = vadd.f32 %v9533, 1.0
    %v9541 = vadd.f32 %v9535, 1.0
    %v9542 = vrcp.pop %v9536
    %v9543 = vmul.f32 %v9536, %v9542
    %v9544 = vsub.f32 1.0, %v9543
    %v9545 = vmul.f32 %v9542, %v9544
    %v9546 = vadd.f32 %v9542, %v9545
    %vm9547 = vweird.f32 %v9536
    %vm9548 = vweird.f32 %v9542
    %vm9549 = vmor %vm9547, %vm9548
    %v9550 = vsel %vm9549, %v9542, %v9546
    %v9551 = vand.u32 2147483647, %v9536
    %vm9552 = vcmp.eq.f32.partialorder %v9551, 8.507059e+37
    %v9553 = vand.u32 %v9536, 2147483648
    %v9554 = vor.u32 1.1754944e-38, %v9553
    %v9555 = vsel %vm9552, %v9554, %v9550
    %v9556 = vmul.f32 1.0, %v9555
    %v9557 = vrcp.pop %v9537
    %v9558 = vmul.f32 %v9537, %v9557
    %v9559 = vsub.f32 1.0, %v9558
    %v9560 = vmul.f32 %v9557, %v9559
    %v9561 = vadd.f32 %v9557, %v9560
    %vm9562 = vweird.f32 %v9537
    %vm9563 = vweird.f32 %v9557
    %vm9564 = vmor %vm9562, %vm9563
    %v9565 = vsel %vm9564, %v9557, %v9561
    %v9566 = vand.u32 2147483647, %v9537
    %vm9567 = vcmp.eq.f32.partialorder %v9566, 8.507059e+37
    %v9568 = vand.u32 %v9537, 2147483648
    %v9569 = vor.u32 1.1754944e-38, %v9568
    %v9570 = vsel %vm9567, %v9569, %v9565
    %v9571 = vmul.f32 1.0, %v9570
    %v9572 = vrcp.pop %v9538
    %v9573 = vmul.f32 %v9538, %v9572
    %v9574 = vsub.f32 1.0, %v9573
    %v9575 = vmul.f32 %v9572, %v9574
    %v9576 = vadd.f32 %v9572, %v9575
    %vm9577 = vweird.f32 %v9538
    %vm9578 = vweird.f32 %v9572
    %vm9579 = vmor %vm9577, %vm9578
    %v9580 = vsel %vm9579, %v9572, %v9576
    %v9581 = vand.u32 2147483647, %v9538
    %vm9582 = vcmp.eq.f32.partialorder %v9581, 8.507059e+37
    %v9583 = vand.u32 %v9538, 2147483648
    %v9584 = vor.u32 1.1754944e-38, %v9583
    %v9585 = vsel %vm9582, %v9584, %v9580
    %v9586 = vmul.f32 1.0, %v9585
    %v9587 = vrcp.pop %v9539
    %v9588 = vmul.f32 %v9539, %v9587
    %v9589 = vsub.f32 1.0, %v9588
    %v9590 = vmul.f32 %v9587, %v9589
    %v9591 = vadd.f32 %v9587, %v9590
    %vm9592 = vweird.f32 %v9539
    %vm9593 = vweird.f32 %v9587
    %vm9594 = vmor %vm9592, %vm9593
    %v9595 = vsel %vm9594, %v9587, %v9591
    %v9596 = vand.u32 2147483647, %v9539
    %vm9597 = vcmp.eq.f32.partialorder %v9596, 8.507059e+37
    %v9598 = vand.u32 %v9539, 2147483648
    %v9599 = vor.u32 1.1754944e-38, %v9598
    %v9600 = vsel %vm9597, %v9599, %v9595
    %v9601 = vmul.f32 1.0, %v9600
    %v9602 = vrcp.pop %v9540
    %v9603 = vmul.f32 %v9540, %v9602
    %v9604 = vsub.f32 1.0, %v9603
    %v9605 = vmul.f32 %v9602, %v9604
    %v9606 = vadd.f32 %v9602, %v9605
    %vm9607 = vweird.f32 %v9540
    %vm9608 = vweird.f32 %v9602
    %vm9609 = vmor %vm9607, %vm9608
    %v9610 = vsel %vm9609, %v9602, %v9606
    %v9611 = vand.u32 2147483647, %v9540
    %vm9612 = vcmp.eq.f32.partialorder %v9611, 8.507059e+37
    %v9613 = vand.u32 %v9540, 2147483648
    %v9614 = vor.u32 1.1754944e-38, %v9613
    %v9615 = vsel %vm9612, %v9614, %v9610
    %v9616 = vmul.f32 1.0, %v9615
    %v9617 = vrcp.pop %v9541
    %v9618 = vmul.f32 %v9541, %v9617
    %v9619 = vsub.f32 1.0, %v9618
    %v9620 = vmul.f32 %v9617, %v9619
    %v9621 = vadd.f32 %v9617, %v9620
    %vm9622 = vweird.f32 %v9541
    %vm9623 = vweird.f32 %v9617
    %vm9624 = vmor %vm9622, %vm9623
    %v9625 = vsel %vm9624, %v9617, %v9621
    %v9626 = vand.u32 2147483647, %v9541
    %vm9627 = vcmp.eq.f32.partialorder %v9626, 8.507059e+37
    %v9628 = vand.u32 %v9541, 2147483648
    %v9629 = vor.u32 1.1754944e-38, %v9628
    %v9630 = vsel %vm9627, %v9629, %v9625
    %v9631 = vmul.f32 1.0, %v9630
    %v9632 = vtanh.pop %v9512
    %v9633 = vtanh.pop %v9516
    %v9634 = vmul.f32 %v9571, %v9439
    %v9635 = vmul.f32 %v9616, %v9440
    %v9636 = vmul.f32 %v9556, %v9632
    %v9637 = vmul.f32 %v9601, %v9633
    %v9638 = vadd.f32 %v9634, %v9636
    %v9639 = vadd.f32 %v9635, %v9637
    %v9640 = vtanh.pop %v9638
    %v9641 = vtanh.pop %v9639
    %v9642 = vmul.f32 %v9586, %v9640
    %v9643 = vmul.f32 %v9631, %v9641
    %v9644 = vld [vmem:[%s5706] sm:$0xff]
    %v9645 = vld [vmem:[%s5706 + $0x8] sm:$0xff]
    %v9646 = vld [vmem:[%s5706 + $0x10] sm:$0xff]
    %v9647 = vld [vmem:[%s5706 + $0x18] sm:$0xff]
    %v9648 = vld [vmem:[%s5706 + $0x20] sm:$0xff]
    %v9649 = vld [vmem:[%s5706 + $0x28] sm:$0xff]
    %v9650 = vld [vmem:[%s5706 + $0x30] sm:$0xff]
    %v9651 = vld [vmem:[%s5706 + $0x38] sm:$0xff]
    %v9652 = vpack.c.bf16 %v9643, %v9642
    %9653 = vmatpush.bf16.msra.mxu0 %v8423
    %9654 = vmatpush.bf16.msra.mxu0 %v8419
    %9655 = vmatpush.bf16.msra.mxu0 %v8415
    %9656 = vmatpush.bf16.msra.mxu0 %v8411
    %9657 = vmatpush.bf16.msra.mxu0 %v8407
    %9658 = vmatpush.bf16.msra.mxu0 %v8403
    %9659 = vmatpush.bf16.msra.mxu0 %v8399
    %9660 = vmatpush.bf16.msra.mxu0 %v8395
    %9661 = vmatmul.bf16.gmra.mxu0 %v9652
    %v9662 = vpop.f32.mrf.mxu0
    %v9663 = vadd.f32 0.0, %v9662
    %v9664 = vpop.f32.mrf.mxu0
    %v9665 = vadd.f32 0.0, %v9664
    %9666 = vdwg.mxu0
    %9667 = vmatpush.bf16.msra.mxu0 %v8424
    %9668 = vmatpush.bf16.msra.mxu0 %v8420
    %9669 = vmatpush.bf16.msra.mxu0 %v8416
    %9670 = vmatpush.bf16.msra.mxu0 %v8412
    %9671 = vmatpush.bf16.msra.mxu0 %v8408
    %9672 = vmatpush.bf16.msra.mxu0 %v8404
    %9673 = vmatpush.bf16.msra.mxu0 %v8400
    %9674 = vmatpush.bf16.msra.mxu0 %v8396
    %9675 = vmatmul.bf16.gmra.mxu0 %v9652
    %v9676 = vpop.f32.mrf.mxu0
    %v9677 = vadd.f32 0.0, %v9676
    %v9678 = vpop.f32.mrf.mxu0
    %v9679 = vadd.f32 0.0, %v9678
    %9680 = vdwg.mxu0
    %9681 = vmatpush.bf16.msra.mxu0 %v8425
    %9682 = vmatpush.bf16.msra.mxu0 %v8421
    %9683 = vmatpush.bf16.msra.mxu0 %v8417
    %9684 = vmatpush.bf16.msra.mxu0 %v8413
    %9685 = vmatpush.bf16.msra.mxu0 %v8409
    %9686 = vmatpush.bf16.msra.mxu0 %v8405
    %9687 = vmatpush.bf16.msra.mxu0 %v8401
    %9688 = vmatpush.bf16.msra.mxu0 %v8397
    %9689 = vmatmul.bf16.gmra.mxu0 %v9652
    %v9690 = vpop.f32.mrf.mxu0
    %v9691 = vadd.f32 0.0, %v9690
    %v9692 = vpop.f32.mrf.mxu0
    %v9693 = vadd.f32 0.0, %v9692
    %9694 = vdwg.mxu0
    %9695 = vmatpush.bf16.msra.mxu0 %v8426
    %9696 = vmatpush.bf16.msra.mxu0 %v8422
    %9697 = vmatpush.bf16.msra.mxu0 %v8418
    %9698 = vmatpush.bf16.msra.mxu0 %v8414
    %9699 = vmatpush.bf16.msra.mxu0 %v8410
    %9700 = vmatpush.bf16.msra.mxu0 %v8406
    %9701 = vmatpush.bf16.msra.mxu0 %v8402
    %9702 = vmatpush.bf16.msra.mxu0 %v8398
    %9703 = vmatmul.bf16.gmra.mxu0 %v9652
    %v9704 = vpop.f32.mrf.mxu0
    %v9705 = vadd.f32 0.0, %v9704
    %v9706 = vpop.f32.mrf.mxu0
    %v9707 = vadd.f32 0.0, %v9706
    %9708 = vdwg.mxu0
    %v9709 = vadd.f32 %v9644, %v9663
    %v9710 = vadd.f32 %v9645, %v9677
    %v9711 = vadd.f32 %v9646, %v9691
    %v9712 = vadd.f32 %v9647, %v9705
    %v9713 = vadd.f32 %v9648, %v9665
    %v9714 = vadd.f32 %v9649, %v9679
    %v9715 = vadd.f32 %v9650, %v9693
    %v9716 = vadd.f32 %v9651, %v9707
    %v9717 = vxor.u32 %v9709, 2147483648
    %v9718 = vxor.u32 %v9710, 2147483648
    %v9719 = vxor.u32 %v9712, 2147483648
    %v9720 = vxor.u32 %v9713, 2147483648
    %v9721 = vxor.u32 %v9714, 2147483648
    %v9722 = vxor.u32 %v9716, 2147483648
    %v9723 = vmul.f32 %v9717, 1.442695
    %v9724 = vpow.pop %v9723
    %v9725 = vmul.f32 %v9718, 1.442695
    %v9726 = vpow.pop %v9725
    %v9727 = vmul.f32 %v9719, 1.442695
    %v9728 = vpow.pop %v9727
    %v9729 = vmul.f32 %v9720, 1.442695
    %v9730 = vpow.pop %v9729
    %v9731 = vmul.f32 %v9721, 1.442695
    %v9732 = vpow.pop %v9731
    %v9733 = vmul.f32 %v9722, 1.442695
    %v9734 = vpow.pop %v9733
    %v9735 = vadd.f32 %v9724, 1.0
    %v9736 = vadd.f32 %v9726, 1.0
    %v9737 = vadd.f32 %v9728, 1.0
    %v9738 = vadd.f32 %v9730, 1.0
    %v9739 = vadd.f32 %v9732, 1.0
    %v9740 = vadd.f32 %v9734, 1.0
    %v9741 = vrcp.pop %v9735
    %v9742 = vmul.f32 %v9735, %v9741
    %v9743 = vsub.f32 1.0, %v9742
    %v9744 = vmul.f32 %v9741, %v9743
    %v9745 = vadd.f32 %v9741, %v9744
    %vm9746 = vweird.f32 %v9735
    %vm9747 = vweird.f32 %v9741
    %vm9748 = vmor %vm9746, %vm9747
    %v9749 = vsel %vm9748, %v9741, %v9745
    %v9750 = vand.u32 2147483647, %v9735
    %vm9751 = vcmp.eq.f32.partialorder %v9750, 8.507059e+37
    %v9752 = vand.u32 %v9735, 2147483648
    %v9753 = vor.u32 1.1754944e-38, %v9752
    %v9754 = vsel %vm9751, %v9753, %v9749
    %v9755 = vmul.f32 1.0, %v9754
    %v9756 = vrcp.pop %v9736
    %v9757 = vmul.f32 %v9736, %v9756
    %v9758 = vsub.f32 1.0, %v9757
    %v9759 = vmul.f32 %v9756, %v9758
    %v9760 = vadd.f32 %v9756, %v9759
    %vm9761 = vweird.f32 %v9736
    %vm9762 = vweird.f32 %v9756
    %vm9763 = vmor %vm9761, %vm9762
    %v9764 = vsel %vm9763, %v9756, %v9760
    %v9765 = vand.u32 2147483647, %v9736
    %vm9766 = vcmp.eq.f32.partialorder %v9765, 8.507059e+37
    %v9767 = vand.u32 %v9736, 2147483648
    %v9768 = vor.u32 1.1754944e-38, %v9767
    %v9769 = vsel %vm9766, %v9768, %v9764
    %v9770 = vmul.f32 1.0, %v9769
    %v9771 = vrcp.pop %v9737
    %v9772 = vmul.f32 %v9737, %v9771
    %v9773 = vsub.f32 1.0, %v9772
    %v9774 = vmul.f32 %v9771, %v9773
    %v9775 = vadd.f32 %v9771, %v9774
    %vm9776 = vweird.f32 %v9737
    %vm9777 = vweird.f32 %v9771
    %vm9778 = vmor %vm9776, %vm9777
    %v9779 = vsel %vm9778, %v9771, %v9775
    %v9780 = vand.u32 2147483647, %v9737
    %vm9781 = vcmp.eq.f32.partialorder %v9780, 8.507059e+37
    %v9782 = vand.u32 %v9737, 2147483648
    %v9783 = vor.u32 1.1754944e-38, %v9782
    %v9784 = vsel %vm9781, %v9783, %v9779
    %v9785 = vmul.f32 1.0, %v9784
    %v9786 = vrcp.pop %v9738
    %v9787 = vmul.f32 %v9738, %v9786
    %v9788 = vsub.f32 1.0, %v9787
    %v9789 = vmul.f32 %v9786, %v9788
    %v9790 = vadd.f32 %v9786, %v9789
    %vm9791 = vweird.f32 %v9738
    %vm9792 = vweird.f32 %v9786
    %vm9793 = vmor %vm9791, %vm9792
    %v9794 = vsel %vm9793, %v9786, %v9790
    %v9795 = vand.u32 2147483647, %v9738
    %vm9796 = vcmp.eq.f32.partialorder %v9795, 8.507059e+37
    %v9797 = vand.u32 %v9738, 2147483648
    %v9798 = vor.u32 1.1754944e-38, %v9797
    %v9799 = vsel %vm9796, %v9798, %v9794
    %v9800 = vmul.f32 1.0, %v9799
    %v9801 = vrcp.pop %v9739
    %v9802 = vmul.f32 %v9739, %v9801
    %v9803 = vsub.f32 1.0, %v9802
    %v9804 = vmul.f32 %v9801, %v9803
    %v9805 = vadd.f32 %v9801, %v9804
    %vm9806 = vweird.f32 %v9739
    %vm9807 = vweird.f32 %v9801
    %vm9808 = vmor %vm9806, %vm9807
    %v9809 = vsel %vm9808, %v9801, %v9805
    %v9810 = vand.u32 2147483647, %v9739
    %vm9811 = vcmp.eq.f32.partialorder %v9810, 8.507059e+37
    %v9812 = vand.u32 %v9739, 2147483648
    %v9813 = vor.u32 1.1754944e-38, %v9812
    %v9814 = vsel %vm9811, %v9813, %v9809
    %v9815 = vmul.f32 1.0, %v9814
    %v9816 = vrcp.pop %v9740
    %v9817 = vmul.f32 %v9740, %v9816
    %v9818 = vsub.f32 1.0, %v9817
    %v9819 = vmul.f32 %v9816, %v9818
    %v9820 = vadd.f32 %v9816, %v9819
    %vm9821 = vweird.f32 %v9740
    %vm9822 = vweird.f32 %v9816
    %vm9823 = vmor %vm9821, %vm9822
    %v9824 = vsel %vm9823, %v9816, %v9820
    %v9825 = vand.u32 2147483647, %v9740
    %vm9826 = vcmp.eq.f32.partialorder %v9825, 8.507059e+37
    %v9827 = vand.u32 %v9740, 2147483648
    %v9828 = vor.u32 1.1754944e-38, %v9827
    %v9829 = vsel %vm9826, %v9828, %v9824
    %v9830 = vmul.f32 1.0, %v9829
    %v9831 = vtanh.pop %v9711
    %v9832 = vtanh.pop %v9715
    %v9833 = vmul.f32 %v9770, %v9638
    %v9834 = vmul.f32 %v9815, %v9639
    %v9835 = vmul.f32 %v9755, %v9831
    %v9836 = vmul.f32 %v9800, %v9832
    %v9837 = vadd.f32 %v9833, %v9835
    %v9838 = vadd.f32 %v9834, %v9836
    %v9839 = vtanh.pop %v9837
    %v9840 = vtanh.pop %v9838
    %v9841 = vmul.f32 %v9785, %v9839
    %v9842 = vmul.f32 %v9830, %v9840
    %v9843 = vld [vmem:[%s6510] sm:$0xff]
    %v9844 = vld [vmem:[%s6510 + $0x8] sm:$0xff]
    %v9845 = vld [vmem:[%s6510 + $0x10] sm:$0xff]
    %v9846 = vld [vmem:[%s6510 + $0x18] sm:$0xff]
    %v9847 = vld [vmem:[%s6510 + $0x20] sm:$0xff]
    %v9848 = vld [vmem:[%s6510 + $0x28] sm:$0xff]
    %v9849 = vld [vmem:[%s6510 + $0x30] sm:$0xff]
    %v9850 = vld [vmem:[%s6510 + $0x38] sm:$0xff]
    %v9851 = vpack.c.bf16 %v9842, %v9841
    %9852 = vmatpush.bf16.msra.mxu0 %v8423
    %9853 = vmatpush.bf16.msra.mxu0 %v8419
    %9854 = vmatpush.bf16.msra.mxu0 %v8415
    %9855 = vmatpush.bf16.msra.mxu0 %v8411
    %9856 = vmatpush.bf16.msra.mxu0 %v8407
    %9857 = vmatpush.bf16.msra.mxu0 %v8403
    %9858 = vmatpush.bf16.msra.mxu0 %v8399
    %9859 = vmatpush.bf16.msra.mxu0 %v8395
    %9860 = vmatmul.bf16.gmra.mxu0 %v9851
    %v9861 = vpop.f32.mrf.mxu0
    %v9862 = vadd.f32 0.0, %v9861
    %v9863 = vpop.f32.mrf.mxu0
    %v9864 = vadd.f32 0.0, %v9863
    %9865 = vdwg.mxu0
    %9866 = vmatpush.bf16.msra.mxu0 %v8424
    %9867 = vmatpush.bf16.msra.mxu0 %v8420
    %9868 = vmatpush.bf16.msra.mxu0 %v8416
    %9869 = vmatpush.bf16.msra.mxu0 %v8412
    %9870 = vmatpush.bf16.msra.mxu0 %v8408
    %9871 = vmatpush.bf16.msra.mxu0 %v8404
    %9872 = vmatpush.bf16.msra.mxu0 %v8400
    %9873 = vmatpush.bf16.msra.mxu0 %v8396
    %9874 = vmatmul.bf16.gmra.mxu0 %v9851
    %v9875 = vpop.f32.mrf.mxu0
    %v9876 = vadd.f32 0.0, %v9875
    %v9877 = vpop.f32.mrf.mxu0
    %v9878 = vadd.f32 0.0, %v9877
    %9879 = vdwg.mxu0
    %9880 = vmatpush.bf16.msra.mxu0 %v8425
    %9881 = vmatpush.bf16.msra.mxu0 %v8421
    %9882 = vmatpush.bf16.msra.mxu0 %v8417
    %9883 = vmatpush.bf16.msra.mxu0 %v8413
    %9884 = vmatpush.bf16.msra.mxu0 %v8409
    %9885 = vmatpush.bf16.msra.mxu0 %v8405
    %9886 = vmatpush.bf16.msra.mxu0 %v8401
    %9887 = vmatpush.bf16.msra.mxu0 %v8397
    %9888 = vmatmul.bf16.gmra.mxu0 %v9851
    %v9889 = vpop.f32.mrf.mxu0
    %v9890 = vadd.f32 0.0, %v9889
    %v9891 = vpop.f32.mrf.mxu0
    %v9892 = vadd.f32 0.0, %v9891
    %9893 = vdwg.mxu0
    %9894 = vmatpush.bf16.msra.mxu0 %v8426
    %9895 = vmatpush.bf16.msra.mxu0 %v8422
    %9896 = vmatpush.bf16.msra.mxu0 %v8418
    %9897 = vmatpush.bf16.msra.mxu0 %v8414
    %9898 = vmatpush.bf16.msra.mxu0 %v8410
    %9899 = vmatpush.bf16.msra.mxu0 %v8406
    %9900 = vmatpush.bf16.msra.mxu0 %v8402
    %9901 = vmatpush.bf16.msra.mxu0 %v8398
    %9902 = vmatmul.bf16.gmra.mxu0 %v9851
    %v9903 = vpop.f32.mrf.mxu0
    %v9904 = vadd.f32 0.0, %v9903
    %v9905 = vpop.f32.mrf.mxu0
    %v9906 = vadd.f32 0.0, %v9905
    %9907 = vdwg.mxu0
    %v9908 = vadd.f32 %v9843, %v9862
    %v9909 = vadd.f32 %v9844, %v9876
    %v9910 = vadd.f32 %v9845, %v9890
    %v9911 = vadd.f32 %v9846, %v9904
    %v9912 = vadd.f32 %v9847, %v9864
    %v9913 = vadd.f32 %v9848, %v9878
    %v9914 = vadd.f32 %v9849, %v9892
    %v9915 = vadd.f32 %v9850, %v9906
    %v9916 = vxor.u32 %v9908, 2147483648
    %v9917 = vxor.u32 %v9909, 2147483648
    %v9918 = vxor.u32 %v9911, 2147483648
    %v9919 = vxor.u32 %v9912, 2147483648
    %v9920 = vxor.u32 %v9913, 2147483648
    %v9921 = vxor.u32 %v9915, 2147483648
    %v9922 = vmul.f32 %v9916, 1.442695
    %v9923 = vpow.pop %v9922
    %v9924 = vmul.f32 %v9917, 1.442695
    %v9925 = vpow.pop %v9924
    %v9926 = vmul.f32 %v9918, 1.442695
    %v9927 = vpow.pop %v9926
    %v9928 = vmul.f32 %v9919, 1.442695
    %v9929 = vpow.pop %v9928
    %v9930 = vmul.f32 %v9920, 1.442695
    %v9931 = vpow.pop %v9930
    %v9932 = vmul.f32 %v9921, 1.442695
    %v9933 = vpow.pop %v9932
    %v9934 = vadd.f32 %v9923, 1.0
    %v9935 = vadd.f32 %v9925, 1.0
    %v9936 = vadd.f32 %v9927, 1.0
    %v9937 = vadd.f32 %v9929, 1.0
    %v9938 = vadd.f32 %v9931, 1.0
    %v9939 = vadd.f32 %v9933, 1.0
    %v9940 = vrcp.pop %v9934
    %v9941 = vmul.f32 %v9934, %v9940
    %v9942 = vsub.f32 1.0, %v9941
    %v9943 = vmul.f32 %v9940, %v9942
    %v9944 = vadd.f32 %v9940, %v9943
    %vm9945 = vweird.f32 %v9934
    %vm9946 = vweird.f32 %v9940
    %vm9947 = vmor %vm9945, %vm9946
    %v9948 = vsel %vm9947, %v9940, %v9944
    %v9949 = vand.u32 2147483647, %v9934
    %vm9950 = vcmp.eq.f32.partialorder %v9949, 8.507059e+37
    %v9951 = vand.u32 %v9934, 2147483648
    %v9952 = vor.u32 1.1754944e-38, %v9951
    %v9953 = vsel %vm9950, %v9952, %v9948
    %v9954 = vmul.f32 1.0, %v9953
    %v9955 = vrcp.pop %v9935
    %v9956 = vmul.f32 %v9935, %v9955
    %v9957 = vsub.f32 1.0, %v9956
    %v9958 = vmul.f32 %v9955, %v9957
    %v9959 = vadd.f32 %v9955, %v9958
    %vm9960 = vweird.f32 %v9935
    %vm9961 = vweird.f32 %v9955
    %vm9962 = vmor %vm9960, %vm9961
    %v9963 = vsel %vm9962, %v9955, %v9959
    %v9964 = vand.u32 2147483647, %v9935
    %vm9965 = vcmp.eq.f32.partialorder %v9964, 8.507059e+37
    %v9966 = vand.u32 %v9935, 2147483648
    %v9967 = vor.u32 1.1754944e-38, %v9966
    %v9968 = vsel %vm9965, %v9967, %v9963
    %v9969 = vmul.f32 1.0, %v9968
    %v9970 = vrcp.pop %v9936
    %v9971 = vmul.f32 %v9936, %v9970
    %v9972 = vsub.f32 1.0, %v9971
    %v9973 = vmul.f32 %v9970, %v9972
    %v9974 = vadd.f32 %v9970, %v9973
    %vm9975 = vweird.f32 %v9936
    %vm9976 = vweird.f32 %v9970
    %vm9977 = vmor %vm9975, %vm9976
    %v9978 = vsel %vm9977, %v9970, %v9974
    %v9979 = vand.u32 2147483647, %v9936
    %vm9980 = vcmp.eq.f32.partialorder %v9979, 8.507059e+37
    %v9981 = vand.u32 %v9936, 2147483648
    %v9982 = vor.u32 1.1754944e-38, %v9981
    %v9983 = vsel %vm9980, %v9982, %v9978
    %v9984 = vmul.f32 1.0, %v9983
    %v9985 = vrcp.pop %v9937
    %v9986 = vmul.f32 %v9937, %v9985
    %v9987 = vsub.f32 1.0, %v9986
    %v9988 = vmul.f32 %v9985, %v9987
    %v9989 = vadd.f32 %v9985, %v9988
    %vm9990 = vweird.f32 %v9937
    %vm9991 = vweird.f32 %v9985
    %vm9992 = vmor %vm9990, %vm9991
    %v9993 = vsel %vm9992, %v9985, %v9989
    %v9994 = vand.u32 2147483647, %v9937
    %vm9995 = vcmp.eq.f32.partialorder %v9994, 8.507059e+37
    %v9996 = vand.u32 %v9937, 2147483648
    %v9997 = vor.u32 1.1754944e-38, %v9996
    %v9998 = vsel %vm9995, %v9997, %v9993
    %v9999 = vmul.f32 1.0, %v9998
    %v10000 = vrcp.pop %v9938
    %v10001 = vmul.f32 %v9938, %v10000
    %v10002 = vsub.f32 1.0, %v10001
    %v10003 = vmul.f32 %v10000, %v10002
    %v10004 = vadd.f32 %v10000, %v10003
    %vm10005 = vweird.f32 %v9938
    %vm10006 = vweird.f32 %v10000
    %vm10007 = vmor %vm10005, %vm10006
    %v10008 = vsel %vm10007, %v10000, %v10004
    %v10009 = vand.u32 2147483647, %v9938
    %vm10010 = vcmp.eq.f32.partialorder %v10009, 8.507059e+37
    %v10011 = vand.u32 %v9938, 2147483648
    %v10012 = vor.u32 1.1754944e-38, %v10011
    %v10013 = vsel %vm10010, %v10012, %v10008
    %v10014 = vmul.f32 1.0, %v10013
    %v10015 = vrcp.pop %v9939
    %v10016 = vmul.f32 %v9939, %v10015
    %v10017 = vsub.f32 1.0, %v10016
    %v10018 = vmul.f32 %v10015, %v10017
    %v10019 = vadd.f32 %v10015, %v10018
    %vm10020 = vweird.f32 %v9939
    %vm10021 = vweird.f32 %v10015
    %vm10022 = vmor %vm10020, %vm10021
    %v10023 = vsel %vm10022, %v10015, %v10019
    %v10024 = vand.u32 2147483647, %v9939
    %vm10025 = vcmp.eq.f32.partialorder %v10024, 8.507059e+37
    %v10026 = vand.u32 %v9939, 2147483648
    %v10027 = vor.u32 1.1754944e-38, %v10026
    %v10028 = vsel %vm10025, %v10027, %v10023
    %v10029 = vmul.f32 1.0, %v10028
    %v10030 = vtanh.pop %v9910
    %v10031 = vtanh.pop %v9914
    %v10032 = vmul.f32 %v9969, %v9837
    %v10033 = vmul.f32 %v10014, %v9838
    %v10034 = vmul.f32 %v9954, %v10030
    %v10035 = vmul.f32 %v9999, %v10031
    %v10036 = vadd.f32 %v10032, %v10034
    %v10037 = vadd.f32 %v10033, %v10035
    %v10038 = vtanh.pop %v10036
    %v10039 = vtanh.pop %v10037
    %v10040 = vmul.f32 %v9984, %v10038
    %v10041 = vmul.f32 %v10029, %v10039
    %v10042 = vld [vmem:[%s1658] sm:$0xff]
    %v10043 = vld [vmem:[%s1658 + $0x8] sm:$0xff]
    %v10044 = vld [vmem:[#allocation13] sm:$0xff]
    %v10045 = vld [vmem:[#allocation13 + $0x8] sm:$0xff]
    %v10046 = vld [vmem:[#allocation13 + $0x10] sm:$0xff]
    %v10047 = vld [vmem:[#allocation13 + $0x18] sm:$0xff]
    %v10048 = vld [vmem:[#allocation13 + $0x20] sm:$0xff]
    %v10049 = vld [vmem:[#allocation13 + $0x28] sm:$0xff]
    %v10050 = vld [vmem:[#allocation13 + $0x30] sm:$0xff]
    %v10051 = vld [vmem:[#allocation13 + $0x38] sm:$0xff]
    %v10052 = vld [vmem:[#allocation13 + $0x40] sm:$0xff]
    %v10053 = vld [vmem:[#allocation13 + $0x48] sm:$0xff]
    %v10054 = vld [vmem:[#allocation13 + $0x50] sm:$0xff]
    %v10055 = vld [vmem:[#allocation13 + $0x58] sm:$0xff]
    %v10056 = vld [vmem:[#allocation13 + $0x60] sm:$0xff]
    %v10057 = vld [vmem:[#allocation13 + $0x68] sm:$0xff]
    %v10058 = vld [vmem:[#allocation13 + $0x70] sm:$0xff]
    %v10059 = vld [vmem:[#allocation13 + $0x78] sm:$0xff]
    %v10060 = vld [vmem:[#allocation13 + $0x80] sm:$0xff]
    %v10061 = vld [vmem:[#allocation13 + $0x88] sm:$0xff]
    %v10062 = vld [vmem:[#allocation13 + $0x90] sm:$0xff]
    %v10063 = vld [vmem:[#allocation13 + $0x98] sm:$0xff]
    %v10064 = vld [vmem:[#allocation13 + $0xa0] sm:$0xff]
    %v10065 = vld [vmem:[#allocation13 + $0xa8] sm:$0xff]
    %v10066 = vld [vmem:[#allocation13 + $0xb0] sm:$0xff]
    %v10067 = vld [vmem:[#allocation13 + $0xb8] sm:$0xff]
    %v10068 = vld [vmem:[#allocation13 + $0xc0] sm:$0xff]
    %v10069 = vld [vmem:[#allocation13 + $0xc8] sm:$0xff]
    %v10070 = vld [vmem:[#allocation13 + $0xd0] sm:$0xff]
    %v10071 = vld [vmem:[#allocation13 + $0xd8] sm:$0xff]
    %v10072 = vld [vmem:[#allocation13 + $0xe0] sm:$0xff]
    %v10073 = vld [vmem:[#allocation13 + $0xe8] sm:$0xff]
    %v10074 = vld [vmem:[#allocation13 + $0xf0] sm:$0xff]
    %v10075 = vld [vmem:[#allocation13 + $0xf8] sm:$0xff]
    %v10076 = vld [vmem:[#allocation13 + $0x100] sm:$0xff]
    %v10077 = vld [vmem:[#allocation13 + $0x108] sm:$0xff]
    %v10078 = vld [vmem:[#allocation13 + $0x110] sm:$0xff]
    %v10079 = vld [vmem:[#allocation13 + $0x118] sm:$0xff]
    %v10080 = vld [vmem:[#allocation13 + $0x120] sm:$0xff]
    %v10081 = vld [vmem:[#allocation13 + $0x128] sm:$0xff]
    %v10082 = vld [vmem:[#allocation13 + $0x130] sm:$0xff]
    %v10083 = vld [vmem:[#allocation13 + $0x138] sm:$0xff]
    %v10084 = vld [vmem:[#allocation13 + $0x140] sm:$0xff]
    %v10085 = vld [vmem:[#allocation13 + $0x148] sm:$0xff]
    %v10086 = vld [vmem:[#allocation13 + $0x150] sm:$0xff]
    %v10087 = vld [vmem:[#allocation13 + $0x158] sm:$0xff]
    %v10088 = vld [vmem:[#allocation13 + $0x160] sm:$0xff]
    %v10089 = vld [vmem:[#allocation13 + $0x168] sm:$0xff]
    %v10090 = vld [vmem:[#allocation13 + $0x170] sm:$0xff]
    %v10091 = vld [vmem:[#allocation13 + $0x178] sm:$0xff]
    %v10092 = vld [vmem:[#allocation13 + $0x180] sm:$0xff]
    %v10093 = vld [vmem:[#allocation13 + $0x188] sm:$0xff]
    %v10094 = vld [vmem:[#allocation13 + $0x190] sm:$0xff]
    %v10095 = vld [vmem:[#allocation13 + $0x198] sm:$0xff]
    %v10096 = vld [vmem:[#allocation13 + $0x1a0] sm:$0xff]
    %v10097 = vld [vmem:[#allocation13 + $0x1a8] sm:$0xff]
    %v10098 = vld [vmem:[#allocation13 + $0x1b0] sm:$0xff]
    %v10099 = vld [vmem:[#allocation13 + $0x1b8] sm:$0xff]
    %v10100 = vld [vmem:[#allocation13 + $0x1c0] sm:$0xff]
    %v10101 = vld [vmem:[#allocation13 + $0x1c8] sm:$0xff]
    %v10102 = vld [vmem:[#allocation13 + $0x1d0] sm:$0xff]
    %v10103 = vld [vmem:[#allocation13 + $0x1d8] sm:$0xff]
    %v10104 = vld [vmem:[#allocation13 + $0x1e0] sm:$0xff]
    %v10105 = vld [vmem:[#allocation13 + $0x1e8] sm:$0xff]
    %v10106 = vld [vmem:[#allocation13 + $0x1f0] sm:$0xff]
    %v10107 = vld [vmem:[#allocation13 + $0x1f8] sm:$0xff]
    %v10108 = vld [vmem:[%s11] sm:$0xf]
    %v10110 = vperm.slane %v10108, 0
    %v10111 = vperm.slane %v10108, 1
    %v10112 = vperm.slane %v10108, 2
    %v10113 = vperm.slane %v10108, 3
    %v10120 = vunpack.c.l.b16 %v10042
    %v10121 = vunpack.c.h.b16 %v10042
    %v10122 = vunpack.c.l.b16 %v10043
    %v10123 = vunpack.c.h.b16 %v10043
    %v10124 = vpack.c.b16 %v10122, %v10120
    %v10125 = vpack.c.b16 %v10123, %v10121
    %v10192 = vunpack.c.l.b16 %v10044
    %v10193 = vunpack.c.h.b16 %v10044
    %v10194 = vunpack.c.l.b16 %v10045
    %v10195 = vunpack.c.h.b16 %v10045
    %v10196 = vunpack.c.l.b16 %v10046
    %v10197 = vunpack.c.h.b16 %v10046
    %v10198 = vunpack.c.l.b16 %v10047
    %v10199 = vunpack.c.h.b16 %v10047
    %v10200 = vunpack.c.l.b16 %v10048
    %v10201 = vunpack.c.h.b16 %v10048
    %v10202 = vunpack.c.l.b16 %v10049
    %v10203 = vunpack.c.h.b16 %v10049
    %v10204 = vunpack.c.l.b16 %v10050
    %v10205 = vunpack.c.h.b16 %v10050
    %v10206 = vunpack.c.l.b16 %v10051
    %v10207 = vunpack.c.h.b16 %v10051
    %v10208 = vunpack.c.l.b16 %v10052
    %v10209 = vunpack.c.h.b16 %v10052
    %v10210 = vunpack.c.l.b16 %v10053
    %v10211 = vunpack.c.h.b16 %v10053
    %v10212 = vunpack.c.l.b16 %v10054
    %v10213 = vunpack.c.h.b16 %v10054
    %v10214 = vunpack.c.l.b16 %v10055
    %v10215 = vunpack.c.h.b16 %v10055
    %v10216 = vunpack.c.l.b16 %v10056
    %v10217 = vunpack.c.h.b16 %v10056
    %v10218 = vunpack.c.l.b16 %v10057
    %v10219 = vunpack.c.h.b16 %v10057
    %v10220 = vunpack.c.l.b16 %v10058
    %v10221 = vunpack.c.h.b16 %v10058
    %v10222 = vunpack.c.l.b16 %v10059
    %v10223 = vunpack.c.h.b16 %v10059
    %v10224 = vunpack.c.l.b16 %v10060
    %v10225 = vunpack.c.h.b16 %v10060
    %v10226 = vunpack.c.l.b16 %v10061
    %v10227 = vunpack.c.h.b16 %v10061
    %v10228 = vunpack.c.l.b16 %v10062
    %v10229 = vunpack.c.h.b16 %v10062
    %v10230 = vunpack.c.l.b16 %v10063
    %v10231 = vunpack.c.h.b16 %v10063
    %v10232 = vunpack.c.l.b16 %v10064
    %v10233 = vunpack.c.h.b16 %v10064
    %v10234 = vunpack.c.l.b16 %v10065
    %v10235 = vunpack.c.h.b16 %v10065
    %v10236 = vunpack.c.l.b16 %v10066
    %v10237 = vunpack.c.h.b16 %v10066
    %v10238 = vunpack.c.l.b16 %v10067
    %v10239 = vunpack.c.h.b16 %v10067
    %v10240 = vunpack.c.l.b16 %v10068
    %v10241 = vunpack.c.h.b16 %v10068
    %v10242 = vunpack.c.l.b16 %v10069
    %v10243 = vunpack.c.h.b16 %v10069
    %v10244 = vunpack.c.l.b16 %v10070
    %v10245 = vunpack.c.h.b16 %v10070
    %v10246 = vunpack.c.l.b16 %v10071
    %v10247 = vunpack.c.h.b16 %v10071
    %v10248 = vunpack.c.l.b16 %v10072
    %v10249 = vunpack.c.h.b16 %v10072
    %v10250 = vunpack.c.l.b16 %v10073
    %v10251 = vunpack.c.h.b16 %v10073
    %v10252 = vunpack.c.l.b16 %v10074
    %v10253 = vunpack.c.h.b16 %v10074
    %v10254 = vunpack.c.l.b16 %v10075
    %v10255 = vunpack.c.h.b16 %v10075
    %v10256 = vunpack.c.l.b16 %v10076
    %v10257 = vunpack.c.h.b16 %v10076
    %v10258 = vunpack.c.l.b16 %v10077
    %v10259 = vunpack.c.h.b16 %v10077
    %v10260 = vunpack.c.l.b16 %v10078
    %v10261 = vunpack.c.h.b16 %v10078
    %v10262 = vunpack.c.l.b16 %v10079
    %v10263 = vunpack.c.h.b16 %v10079
    %v10264 = vunpack.c.l.b16 %v10080
    %v10265 = vunpack.c.h.b16 %v10080
    %v10266 = vunpack.c.l.b16 %v10081
    %v10267 = vunpack.c.h.b16 %v10081
    %v10268 = vunpack.c.l.b16 %v10082
    %v10269 = vunpack.c.h.b16 %v10082
    %v10270 = vunpack.c.l.b16 %v10083
    %v10271 = vunpack.c.h.b16 %v10083
    %v10272 = vunpack.c.l.b16 %v10084
    %v10273 = vunpack.c.h.b16 %v10084
    %v10274 = vunpack.c.l.b16 %v10085
    %v10275 = vunpack.c.h.b16 %v10085
    %v10276 = vunpack.c.l.b16 %v10086
    %v10277 = vunpack.c.h.b16 %v10086
    %v10278 = vunpack.c.l.b16 %v10087
    %v10279 = vunpack.c.h.b16 %v10087
    %v10280 = vunpack.c.l.b16 %v10088
    %v10281 = vunpack.c.h.b16 %v10088
    %v10282 = vunpack.c.l.b16 %v10089
    %v10283 = vunpack.c.h.b16 %v10089
    %v10284 = vunpack.c.l.b16 %v10090
    %v10285 = vunpack.c.h.b16 %v10090
    %v10286 = vunpack.c.l.b16 %v10091
    %v10287 = vunpack.c.h.b16 %v10091
    %v10288 = vunpack.c.l.b16 %v10092
    %v10289 = vunpack.c.h.b16 %v10092
    %v10290 = vunpack.c.l.b16 %v10093
    %v10291 = vunpack.c.h.b16 %v10093
    %v10292 = vunpack.c.l.b16 %v10094
    %v10293 = vunpack.c.h.b16 %v10094
    %v10294 = vunpack.c.l.b16 %v10095
    %v10295 = vunpack.c.h.b16 %v10095
    %v10296 = vunpack.c.l.b16 %v10096
    %v10297 = vunpack.c.h.b16 %v10096
    %v10298 = vunpack.c.l.b16 %v10097
    %v10299 = vunpack.c.h.b16 %v10097
    %v10300 = vunpack.c.l.b16 %v10098
    %v10301 = vunpack.c.h.b16 %v10098
    %v10302 = vunpack.c.l.b16 %v10099
    %v10303 = vunpack.c.h.b16 %v10099
    %v10304 = vunpack.c.l.b16 %v10100
    %v10305 = vunpack.c.h.b16 %v10100
    %v10306 = vunpack.c.l.b16 %v10101
    %v10307 = vunpack.c.h.b16 %v10101
    %v10308 = vunpack.c.l.b16 %v10102
    %v10309 = vunpack.c.h.b16 %v10102
    %v10310 = vunpack.c.l.b16 %v10103
    %v10311 = vunpack.c.h.b16 %v10103
    %v10312 = vunpack.c.l.b16 %v10104
    %v10313 = vunpack.c.h.b16 %v10104
    %v10314 = vunpack.c.l.b16 %v10105
    %v10315 = vunpack.c.h.b16 %v10105
    %v10316 = vunpack.c.l.b16 %v10106
    %v10317 = vunpack.c.h.b16 %v10106
    %v10318 = vunpack.c.l.b16 %v10107
    %v10319 = vunpack.c.h.b16 %v10107
    %v10320 = vpack.c.b16 %v10196, %v10192
    %v10321 = vpack.c.b16 %v10197, %v10193
    %v10322 = vpack.c.b16 %v10198, %v10194
    %v10323 = vpack.c.b16 %v10199, %v10195
    %v10324 = vpack.c.b16 %v10204, %v10200
    %v10325 = vpack.c.b16 %v10205, %v10201
    %v10326 = vpack.c.b16 %v10206, %v10202
    %v10327 = vpack.c.b16 %v10207, %v10203
    %v10328 = vpack.c.b16 %v10212, %v10208
    %v10329 = vpack.c.b16 %v10213, %v10209
    %v10330 = vpack.c.b16 %v10214, %v10210
    %v10331 = vpack.c.b16 %v10215, %v10211
    %v10332 = vpack.c.b16 %v10220, %v10216
    %v10333 = vpack.c.b16 %v10221, %v10217
    %v10334 = vpack.c.b16 %v10222, %v10218
    %v10335 = vpack.c.b16 %v10223, %v10219
    %v10336 = vpack.c.b16 %v10228, %v10224
    %v10337 = vpack.c.b16 %v10229, %v10225
    %v10338 = vpack.c.b16 %v10230, %v10226
    %v10339 = vpack.c.b16 %v10231, %v10227
    %v10340 = vpack.c.b16 %v10236, %v10232
    %v10341 = vpack.c.b16 %v10237, %v10233
    %v10342 = vpack.c.b16 %v10238, %v10234
    %v10343 = vpack.c.b16 %v10239, %v10235
    %v10344 = vpack.c.b16 %v10244, %v10240
    %v10345 = vpack.c.b16 %v10245, %v10241
    %v10346 = vpack.c.b16 %v10246, %v10242
    %v10347 = vpack.c.b16 %v10247, %v10243
    %v10348 = vpack.c.b16 %v10252, %v10248
    %v10349 = vpack.c.b16 %v10253, %v10249
    %v10350 = vpack.c.b16 %v10254, %v10250
    %v10351 = vpack.c.b16 %v10255, %v10251
    %v10352 = vpack.c.b16 %v10260, %v10256
    %v10353 = vpack.c.b16 %v10261, %v10257
    %v10354 = vpack.c.b16 %v10262, %v10258
    %v10355 = vpack.c.b16 %v10263, %v10259
    %v10356 = vpack.c.b16 %v10268, %v10264
    %v10357 = vpack.c.b16 %v10269, %v10265
    %v10358 = vpack.c.b16 %v10270, %v10266
    %v10359 = vpack.c.b16 %v10271, %v10267
    %v10360 = vpack.c.b16 %v10276, %v10272
    %v10361 = vpack.c.b16 %v10277, %v10273
    %v10362 = vpack.c.b16 %v10278, %v10274
    %v10363 = vpack.c.b16 %v10279, %v10275
    %v10364 = vpack.c.b16 %v10284, %v10280
    %v10365 = vpack.c.b16 %v10285, %v10281
    %v10366 = vpack.c.b16 %v10286, %v10282
    %v10367 = vpack.c.b16 %v10287, %v10283
    %v10368 = vpack.c.b16 %v10292, %v10288
    %v10369 = vpack.c.b16 %v10293, %v10289
    %v10370 = vpack.c.b16 %v10294, %v10290
    %v10371 = vpack.c.b16 %v10295, %v10291
    %v10372 = vpack.c.b16 %v10300, %v10296
    %v10373 = vpack.c.b16 %v10301, %v10297
    %v10374 = vpack.c.b16 %v10302, %v10298
    %v10375 = vpack.c.b16 %v10303, %v10299
    %v10376 = vpack.c.b16 %v10308, %v10304
    %v10377 = vpack.c.b16 %v10309, %v10305
    %v10378 = vpack.c.b16 %v10310, %v10306
    %v10379 = vpack.c.b16 %v10311, %v10307
    %v10380 = vpack.c.b16 %v10316, %v10312
    %v10381 = vpack.c.b16 %v10317, %v10313
    %v10382 = vpack.c.b16 %v10318, %v10314
    %v10383 = vpack.c.b16 %v10319, %v10315
    %10448 = vmatpush.bf16.msra.mxu0 %v10348
    %10449 = vmatpush.bf16.msra.mxu0 %v10344
    %10450 = vmatpush.bf16.msra.mxu0 %v10340
    %10451 = vmatpush.bf16.msra.mxu0 %v10336
    %10452 = vmatpush.bf16.msra.mxu0 %v10332
    %10453 = vmatpush.bf16.msra.mxu0 %v10328
    %10454 = vmatpush.bf16.msra.mxu0 %v10324
    %10455 = vmatpush.bf16.msra.mxu0 %v10320
    %10456 = vmatmul.bf16.gmra.mxu0 %v10124
    %v10457 = vpop.f32.mrf.mxu0
    %v10458 = vadd.f32 %v10110, %v10457
    %v10459 = vpop.f32.mrf.mxu0
    %v10460 = vadd.f32 %v10110, %v10459
    %10461 = vdwg.mxu0
    %10462 = vmatpush.bf16.msra.mxu0 %v10380
    %10463 = vmatpush.bf16.msra.mxu0 %v10376
    %10464 = vmatpush.bf16.msra.mxu0 %v10372
    %10465 = vmatpush.bf16.msra.mxu0 %v10368
    %10466 = vmatpush.bf16.msra.mxu0 %v10364
    %10467 = vmatpush.bf16.msra.mxu0 %v10360
    %10468 = vmatpush.bf16.msra.mxu0 %v10356
    %10469 = vmatpush.bf16.msra.mxu0 %v10352
    %10470 = vmatmul.bf16.gmra.mxu0 %v10125
    %v10471 = vpop.f32.mrf.mxu0
    %v10472 = vadd.f32 %v10458, %v10471
    %v10473 = vpop.f32.mrf.mxu0
    %v10474 = vadd.f32 %v10460, %v10473
    %10475 = vdwg.mxu0
    %10476 = vmatpush.bf16.msra.mxu0 %v10349
    %10477 = vmatpush.bf16.msra.mxu0 %v10345
    %10478 = vmatpush.bf16.msra.mxu0 %v10341
    %10479 = vmatpush.bf16.msra.mxu0 %v10337
    %10480 = vmatpush.bf16.msra.mxu0 %v10333
    %10481 = vmatpush.bf16.msra.mxu0 %v10329
    %10482 = vmatpush.bf16.msra.mxu0 %v10325
    %10483 = vmatpush.bf16.msra.mxu0 %v10321
    %10484 = vmatmul.bf16.gmra.mxu0 %v10124
    %v10485 = vpop.f32.mrf.mxu0
    %v10486 = vadd.f32 %v10111, %v10485
    %v10487 = vpop.f32.mrf.mxu0
    %v10488 = vadd.f32 %v10111, %v10487
    %10489 = vdwg.mxu0
    %10490 = vmatpush.bf16.msra.mxu0 %v10381
    %10491 = vmatpush.bf16.msra.mxu0 %v10377
    %10492 = vmatpush.bf16.msra.mxu0 %v10373
    %10493 = vmatpush.bf16.msra.mxu0 %v10369
    %10494 = vmatpush.bf16.msra.mxu0 %v10365
    %10495 = vmatpush.bf16.msra.mxu0 %v10361
    %10496 = vmatpush.bf16.msra.mxu0 %v10357
    %10497 = vmatpush.bf16.msra.mxu0 %v10353
    %10498 = vmatmul.bf16.gmra.mxu0 %v10125
    %v10499 = vpop.f32.mrf.mxu0
    %v10500 = vadd.f32 %v10486, %v10499
    %v10501 = vpop.f32.mrf.mxu0
    %v10502 = vadd.f32 %v10488, %v10501
    %10503 = vdwg.mxu0
    %10504 = vmatpush.bf16.msra.mxu0 %v10350
    %10505 = vmatpush.bf16.msra.mxu0 %v10346
    %10506 = vmatpush.bf16.msra.mxu0 %v10342
    %10507 = vmatpush.bf16.msra.mxu0 %v10338
    %10508 = vmatpush.bf16.msra.mxu0 %v10334
    %10509 = vmatpush.bf16.msra.mxu0 %v10330
    %10510 = vmatpush.bf16.msra.mxu0 %v10326
    %10511 = vmatpush.bf16.msra.mxu0 %v10322
    %10512 = vmatmul.bf16.gmra.mxu0 %v10124
    %v10513 = vpop.f32.mrf.mxu0
    %v10514 = vadd.f32 %v10112, %v10513
    %v10515 = vpop.f32.mrf.mxu0
    %v10516 = vadd.f32 %v10112, %v10515
    %10517 = vdwg.mxu0
    %10518 = vmatpush.bf16.msra.mxu0 %v10382
    %10519 = vmatpush.bf16.msra.mxu0 %v10378
    %10520 = vmatpush.bf16.msra.mxu0 %v10374
    %10521 = vmatpush.bf16.msra.mxu0 %v10370
    %10522 = vmatpush.bf16.msra.mxu0 %v10366
    %10523 = vmatpush.bf16.msra.mxu0 %v10362
    %10524 = vmatpush.bf16.msra.mxu0 %v10358
    %10525 = vmatpush.bf16.msra.mxu0 %v10354
    %10526 = vmatmul.bf16.gmra.mxu0 %v10125
    %v10527 = vpop.f32.mrf.mxu0
    %v10528 = vadd.f32 %v10514, %v10527
    %v10529 = vpop.f32.mrf.mxu0
    %v10530 = vadd.f32 %v10516, %v10529
    %10531 = vdwg.mxu0
    %10532 = vmatpush.bf16.msra.mxu0 %v10351
    %10533 = vmatpush.bf16.msra.mxu0 %v10347
    %10534 = vmatpush.bf16.msra.mxu0 %v10343
    %10535 = vmatpush.bf16.msra.mxu0 %v10339
    %10536 = vmatpush.bf16.msra.mxu0 %v10335
    %10537 = vmatpush.bf16.msra.mxu0 %v10331
    %10538 = vmatpush.bf16.msra.mxu0 %v10327
    %10539 = vmatpush.bf16.msra.mxu0 %v10323
    %10540 = vmatmul.bf16.gmra.mxu0 %v10124
    %v10541 = vpop.f32.mrf.mxu0
    %v10542 = vadd.f32 %v10113, %v10541
    %v10543 = vpop.f32.mrf.mxu0
    %v10544 = vadd.f32 %v10113, %v10543
    %10545 = vdwg.mxu0
    %10546 = vmatpush.bf16.msra.mxu0 %v10383
    %10547 = vmatpush.bf16.msra.mxu0 %v10379
    %10548 = vmatpush.bf16.msra.mxu0 %v10375
    %10549 = vmatpush.bf16.msra.mxu0 %v10371
    %10550 = vmatpush.bf16.msra.mxu0 %v10367
    %10551 = vmatpush.bf16.msra.mxu0 %v10363
    %10552 = vmatpush.bf16.msra.mxu0 %v10359
    %10553 = vmatpush.bf16.msra.mxu0 %v10355
    %10554 = vmatmul.bf16.gmra.mxu0 %v10125
    %v10555 = vpop.f32.mrf.mxu0
    %v10556 = vadd.f32 %v10542, %v10555
    %v10557 = vpop.f32.mrf.mxu0
    %v10558 = vadd.f32 %v10544, %v10557
    %10559 = vdwg.mxu0
    %v10560 = vxor.u32 %v10472, 2147483648
    %v10561 = vxor.u32 %v10500, 2147483648
    %v10562 = vxor.u32 %v10556, 2147483648
    %v10563 = vxor.u32 %v10474, 2147483648
    %v10564 = vxor.u32 %v10502, 2147483648
    %v10565 = vxor.u32 %v10558, 2147483648
    %v10566 = vmul.f32 %v10560, 1.442695
    %v10567 = vpow.pop %v10566
    %v10568 = vmul.f32 %v10561, 1.442695
    %v10569 = vpow.pop %v10568
    %v10570 = vmul.f32 %v10562, 1.442695
    %v10571 = vpow.pop %v10570
    %v10572 = vmul.f32 %v10563, 1.442695
    %v10573 = vpow.pop %v10572
    %v10574 = vmul.f32 %v10564, 1.442695
    %v10575 = vpow.pop %v10574
    %v10576 = vmul.f32 %v10565, 1.442695
    %v10577 = vpow.pop %v10576
    %v10578 = vadd.f32 %v10567, 1.0
    %v10579 = vadd.f32 %v10569, 1.0
    %v10580 = vadd.f32 %v10571, 1.0
    %v10581 = vadd.f32 %v10573, 1.0
    %v10582 = vadd.f32 %v10575, 1.0
    %v10583 = vadd.f32 %v10577, 1.0
    %v10584 = vrcp.pop %v10578
    %v10585 = vmul.f32 %v10578, %v10584
    %v10586 = vsub.f32 1.0, %v10585
    %v10587 = vmul.f32 %v10584, %v10586
    %v10588 = vadd.f32 %v10584, %v10587
    %vm10589 = vweird.f32 %v10578
    %vm10590 = vweird.f32 %v10584
    %vm10591 = vmor %vm10589, %vm10590
    %v10592 = vsel %vm10591, %v10584, %v10588
    %v10593 = vand.u32 2147483647, %v10578
    %vm10594 = vcmp.eq.f32.partialorder %v10593, 8.507059e+37
    %v10595 = vand.u32 %v10578, 2147483648
    %v10596 = vor.u32 1.1754944e-38, %v10595
    %v10597 = vsel %vm10594, %v10596, %v10592
    %v10598 = vmul.f32 1.0, %v10597
    %v10599 = vrcp.pop %v10579
    %v10600 = vmul.f32 %v10579, %v10599
    %v10601 = vsub.f32 1.0, %v10600
    %v10602 = vmul.f32 %v10599, %v10601
    %v10603 = vadd.f32 %v10599, %v10602
    %vm10604 = vweird.f32 %v10579
    %vm10605 = vweird.f32 %v10599
    %vm10606 = vmor %vm10604, %vm10605
    %v10607 = vsel %vm10606, %v10599, %v10603
    %v10608 = vand.u32 2147483647, %v10579
    %vm10609 = vcmp.eq.f32.partialorder %v10608, 8.507059e+37
    %v10610 = vand.u32 %v10579, 2147483648
    %v10611 = vor.u32 1.1754944e-38, %v10610
    %v10612 = vsel %vm10609, %v10611, %v10607
    %v10613 = vmul.f32 1.0, %v10612
    %v10614 = vrcp.pop %v10580
    %v10615 = vmul.f32 %v10580, %v10614
    %v10616 = vsub.f32 1.0, %v10615
    %v10617 = vmul.f32 %v10614, %v10616
    %v10618 = vadd.f32 %v10614, %v10617
    %vm10619 = vweird.f32 %v10580
    %vm10620 = vweird.f32 %v10614
    %vm10621 = vmor %vm10619, %vm10620
    %v10622 = vsel %vm10621, %v10614, %v10618
    %v10623 = vand.u32 2147483647, %v10580
    %vm10624 = vcmp.eq.f32.partialorder %v10623, 8.507059e+37
    %v10625 = vand.u32 %v10580, 2147483648
    %v10626 = vor.u32 1.1754944e-38, %v10625
    %v10627 = vsel %vm10624, %v10626, %v10622
    %v10628 = vmul.f32 1.0, %v10627
    %v10629 = vrcp.pop %v10581
    %v10630 = vmul.f32 %v10581, %v10629
    %v10631 = vsub.f32 1.0, %v10630
    %v10632 = vmul.f32 %v10629, %v10631
    %v10633 = vadd.f32 %v10629, %v10632
    %vm10634 = vweird.f32 %v10581
    %vm10635 = vweird.f32 %v10629
    %vm10636 = vmor %vm10634, %vm10635
    %v10637 = vsel %vm10636, %v10629, %v10633
    %v10638 = vand.u32 2147483647, %v10581
    %vm10639 = vcmp.eq.f32.partialorder %v10638, 8.507059e+37
    %v10640 = vand.u32 %v10581, 2147483648
    %v10641 = vor.u32 1.1754944e-38, %v10640
    %v10642 = vsel %vm10639, %v10641, %v10637
    %v10643 = vmul.f32 1.0, %v10642
    %v10644 = vrcp.pop %v10582
    %v10645 = vmul.f32 %v10582, %v10644
    %v10646 = vsub.f32 1.0, %v10645
    %v10647 = vmul.f32 %v10644, %v10646
    %v10648 = vadd.f32 %v10644, %v10647
    %vm10649 = vweird.f32 %v10582
    %vm10650 = vweird.f32 %v10644
    %vm10651 = vmor %vm10649, %vm10650
    %v10652 = vsel %vm10651, %v10644, %v10648
    %v10653 = vand.u32 2147483647, %v10582
    %vm10654 = vcmp.eq.f32.partialorder %v10653, 8.507059e+37
    %v10655 = vand.u32 %v10582, 2147483648
    %v10656 = vor.u32 1.1754944e-38, %v10655
    %v10657 = vsel %vm10654, %v10656, %v10652
    %v10658 = vmul.f32 1.0, %v10657
    %v10659 = vrcp.pop %v10583
    %v10660 = vmul.f32 %v10583, %v10659
    %v10661 = vsub.f32 1.0, %v10660
    %v10662 = vmul.f32 %v10659, %v10661
    %v10663 = vadd.f32 %v10659, %v10662
    %vm10664 = vweird.f32 %v10583
    %vm10665 = vweird.f32 %v10659
    %vm10666 = vmor %vm10664, %vm10665
    %v10667 = vsel %vm10666, %v10659, %v10663
    %v10668 = vand.u32 2147483647, %v10583
    %vm10669 = vcmp.eq.f32.partialorder %v10668, 8.507059e+37
    %v10670 = vand.u32 %v10583, 2147483648
    %v10671 = vor.u32 1.1754944e-38, %v10670
    %v10672 = vsel %vm10669, %v10671, %v10667
    %v10673 = vmul.f32 1.0, %v10672
    %v10674 = vtanh.pop %v10528
    %v10675 = vtanh.pop %v10530
    %v10676 = vmul.f32 %v10613, 0.0
    %v10677 = vmul.f32 %v10658, 0.0
    %v10678 = vmul.f32 %v10598, %v10674
    %v10679 = vmul.f32 %v10643, %v10675
    %v10680 = vadd.f32 %v10676, %v10678
    %v10681 = vadd.f32 %v10677, %v10679
    %v10682 = vtanh.pop %v10680
    %v10683 = vtanh.pop %v10681
    %v10684 = vmul.f32 %v10628, %v10682
    %v10685 = vmul.f32 %v10673, %v10683
    %v10686 = vpack.c.bf16 %v10040, %v10040
    %v10687 = vpack.c.bf16 %v10041, %v10041
    %v10688 = vpack.c.bf16 %v10684, %v10684
    %v10689 = vpack.c.bf16 %v10685, %v10685
    %v10692 = vunpack.c.l.b16 %v10686
    %v10693 = vunpack.c.l.b16 %v10687
    %v10694 = vpack.c.b16 %v10693, %v10692
    %v10698 = vunpack.c.l.b16 %v10688
    %v10699 = vunpack.c.l.b16 %v10689
    %v10700 = vpack.c.b16 %v10699, %v10698
    %v10702 = vld [vmem:[%s12] sm:$0xf]
    %v10703 = vld [vmem:[%s12 + $0x4] sm:$0xf]
    %v10704 = vld [vmem:[%s12 + $0x8] sm:$0xf]
    %v10705 = vld [vmem:[%s12 + $0xc] sm:$0xf]
    %v10706 = vld [vmem:[%s12 + $0x10] sm:$0xf]
    %v10707 = vld [vmem:[%s12 + $0x14] sm:$0xf]
    %v10708 = vld [vmem:[%s12 + $0x18] sm:$0xf]
    %v10709 = vld [vmem:[%s12 + $0x1c] sm:$0xf]
    %v10710 = vld [vmem:[%s12 + $0x20] sm:$0xf]
    %v10711 = vld [vmem:[%s12 + $0x24] sm:$0xf]
    %v10712 = vld [vmem:[%s12 + $0x28] sm:$0xf]
    %v10713 = vld [vmem:[%s12 + $0x2c] sm:$0xf]
    %v10714 = vld [vmem:[%s12 + $0x30] sm:$0xf]
    %v10715 = vld [vmem:[%s12 + $0x34] sm:$0xf]
    %v10716 = vld [vmem:[%s12 + $0x38] sm:$0xf]
    %v10717 = vld [vmem:[%s12 + $0x3c] sm:$0xf]
    %v10718 = vld [vmem:[%s12 + $0x40] sm:$0xf]
    %v10719 = vld [vmem:[%s12 + $0x44] sm:$0xf]
    %v10720 = vld [vmem:[%s12 + $0x48] sm:$0xf]
    %v10721 = vld [vmem:[%s12 + $0x4c] sm:$0xf]
    %v10722 = vld [vmem:[%s12 + $0x50] sm:$0xf]
    %v10723 = vld [vmem:[%s12 + $0x54] sm:$0xf]
    %v10724 = vld [vmem:[%s12 + $0x58] sm:$0xf]
    %v10725 = vld [vmem:[%s12 + $0x5c] sm:$0xf]
    %v10726 = vld [vmem:[%s12 + $0x60] sm:$0xf]
    %v10727 = vld [vmem:[%s12 + $0x64] sm:$0xf]
    %v10728 = vld [vmem:[%s12 + $0x68] sm:$0xf]
    %v10729 = vld [vmem:[%s12 + $0x6c] sm:$0xf]
    %v10730 = vld [vmem:[%s12 + $0x70] sm:$0xf]
    %v10731 = vld [vmem:[%s12 + $0x74] sm:$0xf]
    %v10732 = vld [vmem:[%s12 + $0x78] sm:$0xf]
    %v10733 = vld [vmem:[%s12 + $0x7c] sm:$0xf]
    %v10734 = vld [vmem:[%s13] sm:$0x1]
    %v10736 = vperm.slane %v10734, 0
    %v10770 = vunpack.c.l.b16 %v10702
    %v10771 = vunpack.c.l.b16 %v10703
    %v10772 = vunpack.c.l.b16 %v10704
    %v10773 = vunpack.c.l.b16 %v10705
    %v10774 = vunpack.c.l.b16 %v10706
    %v10775 = vunpack.c.l.b16 %v10707
    %v10776 = vunpack.c.l.b16 %v10708
    %v10777 = vunpack.c.l.b16 %v10709
    %v10778 = vunpack.c.l.b16 %v10710
    %v10779 = vunpack.c.l.b16 %v10711
    %v10780 = vunpack.c.l.b16 %v10712
    %v10781 = vunpack.c.l.b16 %v10713
    %v10782 = vunpack.c.l.b16 %v10714
    %v10783 = vunpack.c.l.b16 %v10715
    %v10784 = vunpack.c.l.b16 %v10716
    %v10785 = vunpack.c.l.b16 %v10717
    %v10786 = vunpack.c.l.b16 %v10718
    %v10787 = vunpack.c.l.b16 %v10719
    %v10788 = vunpack.c.l.b16 %v10720
    %v10789 = vunpack.c.l.b16 %v10721
    %v10790 = vunpack.c.l.b16 %v10722
    %v10791 = vunpack.c.l.b16 %v10723
    %v10792 = vunpack.c.l.b16 %v10724
    %v10793 = vunpack.c.l.b16 %v10725
    %v10794 = vunpack.c.l.b16 %v10726
    %v10795 = vunpack.c.l.b16 %v10727
    %v10796 = vunpack.c.l.b16 %v10728
    %v10797 = vunpack.c.l.b16 %v10729
    %v10798 = vunpack.c.l.b16 %v10730
    %v10799 = vunpack.c.l.b16 %v10731
    %v10800 = vunpack.c.l.b16 %v10732
    %v10801 = vunpack.c.l.b16 %v10733
    %v10802 = vpack.c.b16 %v10771, %v10770
    %v10803 = vpack.c.b16 %v10773, %v10772
    %v10804 = vpack.c.b16 %v10775, %v10774
    %v10805 = vpack.c.b16 %v10777, %v10776
    %v10806 = vpack.c.b16 %v10779, %v10778
    %v10807 = vpack.c.b16 %v10781, %v10780
    %v10808 = vpack.c.b16 %v10783, %v10782
    %v10809 = vpack.c.b16 %v10785, %v10784
    %v10810 = vpack.c.b16 %v10787, %v10786
    %v10811 = vpack.c.b16 %v10789, %v10788
    %v10812 = vpack.c.b16 %v10791, %v10790
    %v10813 = vpack.c.b16 %v10793, %v10792
    %v10814 = vpack.c.b16 %v10795, %v10794
    %v10815 = vpack.c.b16 %v10797, %v10796
    %v10816 = vpack.c.b16 %v10799, %v10798
    %v10817 = vpack.c.b16 %v10801, %v10800
    %10834 = vmatpush.bf16.msra.mxu0 %v10809
    %10835 = vmatpush.bf16.msra.mxu0 %v10808
    %10836 = vmatpush.bf16.msra.mxu0 %v10807
    %10837 = vmatpush.bf16.msra.mxu0 %v10806
    %10838 = vmatpush.bf16.msra.mxu0 %v10805
    %10839 = vmatpush.bf16.msra.mxu0 %v10804
    %10840 = vmatpush.bf16.msra.mxu0 %v10803
    %10841 = vmatpush.bf16.msra.mxu0 %v10802
    %10842 = vmatmul.bf16.gmra.mxu0 %v10694
    %v10843 = vpop.f32.mrf.mxu0
    %v10844 = vadd.f32 %v10736, %v10843
    %v10845 = vpop.f32.mrf.mxu0
    %v10846 = vadd.f32 %v10736, %v10845
    %10847 = vdwg.mxu0
    %10848 = vmatpush.bf16.msra.mxu0 %v10817
    %10849 = vmatpush.bf16.msra.mxu0 %v10816
    %10850 = vmatpush.bf16.msra.mxu0 %v10815
    %10851 = vmatpush.bf16.msra.mxu0 %v10814
    %10852 = vmatpush.bf16.msra.mxu0 %v10813
    %10853 = vmatpush.bf16.msra.mxu0 %v10812
    %10854 = vmatpush.bf16.msra.mxu0 %v10811
    %10855 = vmatpush.bf16.msra.mxu0 %v10810
    %10856 = vmatmul.bf16.gmra.mxu0 %v10700
    %v10857 = vpop.f32.mrf.mxu0
    %v10858 = vadd.f32 %v10844, %v10857
    %v10859 = vpop.f32.mrf.mxu0
    %v10860 = vadd.f32 %v10846, %v10859
    %10861 = vdwg.mxu0
    %vm10862 = vcmask 80896
    %10863 = vst.msk [vmem:[#allocation14] sm:$0xff] %vm10862, %v10858
    %10864 = vst.msk [vmem:[#allocation14 + $0x8] sm:$0xff] %vm10862, %v10860
    // Predicated region
    $region78: #{tpu_custom_call.1} parent=1 // pred_check
      _
    $region79: #{tpu_custom_call.1} parent=1 // pred_check_branch
      %10866 = sbr.rel (0) target = $region81
    $region80: #{tpu_custom_call.1} parent=1 // pred_region
      %10868 = vsyncadd [#allocation7], 0
      %s10869 = sshll.u32 [#allocation14], 4
      %s10870 = int_to_ptr.vmem [resolvable:$true] %s10869
      %s10871 = sshll.u32 %s14, 4
      %s10872 = int_to_ptr.hbm [resolvable:$true] %s10871
      %10877 = dma.vmem_to_hbm [thread:$0]  %s10870, 256, %s10872, [#allocation7], 128, 128, 8
    $region81: #{tpu_custom_call.1} parent=1 // pred_fallthru
      _
    // Predicated region
    $region82: #{tpu_custom_call.1} parent=1 // pred_check
      _
    $region83: #{tpu_custom_call.1} parent=1 // pred_check_branch
      %10879 = sbr.rel (0) target = $region85
    $region84: #{tpu_custom_call.1} parent=1 // pred_region
      %10881 = dma.done [#allocation7], 256
    $region85: #{tpu_custom_call.1} parent=1 // pred_fallthru
      _
    %10882 = vsyncpa [#allocation6], 1
    %10883 = vsyncpa [#allocation9], 1
    %10884 = vsyncpa [#allocation12], 1
    %10885 = vsyncpa [#allocation7], 1

</llo_original>
